<compile_context>
chip_gen: v6e
topology: v6e:2x2x1
jax: 0.10.0
libtpu: 0.0.40
codegen_flags: <defaults>
</compile_context>

<pallas_src>
import functools
import math

import numpy as np
import jax
import jax.numpy as jnp
from jax import lax
from jax.experimental import pallas as pl
from jax.experimental.pallas import tpu as pltpu


# ------------------------------------------------------------------ Pallas kernels
# All kernels operate on 2-D (rows, channels/features) tiles.  The row (M) axis
# is tiled by the grid; weights / scales / shifts are broadcast (full) blocks.

def _mm_pre_post_kernel(x_ref, ps_ref, pb_ref, w_ref, eb_ref, o_ref):
    """o = relu( relu(x*ps + pb) @ w + eb )   (BN+ReLU prologue, BN+ReLU epilogue)."""
    x = x_ref[...].astype(jnp.float32)
    h = jnp.maximum(x * ps_ref[...] + pb_ref[...], 0.0)
    acc = jnp.dot(h.astype(jnp.bfloat16), w_ref[...],
                  preferred_element_type=jnp.float32)
    o_ref[...] = jnp.maximum(acc + eb_ref[...], 0.0).astype(o_ref.dtype)


def _mm_pre_kernel(x_ref, ps_ref, pb_ref, w_ref, o_ref):
    """o = relu(x*ps + pb) @ w   (projection conv4 path)."""
    x = x_ref[...].astype(jnp.float32)
    h = jnp.maximum(x * ps_ref[...] + pb_ref[...], 0.0)
    o_ref[...] = jnp.dot(h.astype(jnp.bfloat16), w_ref[...],
                         preferred_element_type=jnp.float32).astype(o_ref.dtype)


def _mm_post_relu_kernel(x_ref, w_ref, eb_ref, o_ref):
    """o = relu(x @ w + eb)   (im2col convs, first linear layer)."""
    acc = jnp.dot(x_ref[...].astype(jnp.bfloat16), w_ref[...],
                  preferred_element_type=jnp.float32)
    o_ref[...] = jnp.maximum(acc + eb_ref[...], 0.0).astype(o_ref.dtype)


def _mm_residual_kernel(x_ref, w_ref, res_ref, o_ref):
    """o = x @ w + residual   (conv3 with fused residual add)."""
    acc = jnp.dot(x_ref[...].astype(jnp.bfloat16), w_ref[...],
                  preferred_element_type=jnp.float32)
    o_ref[...] = (acc + res_ref[...].astype(jnp.float32)).astype(o_ref.dtype)


def _mm_mask_kernel(x_ref, w_ref, trunk_ref, o_ref):
    """o = (1 + sigmoid(x @ w)) * trunk   (block6 conv_b with fused mask apply)."""
    acc = jnp.dot(x_ref[...].astype(jnp.bfloat16), w_ref[...],
                  preferred_element_type=jnp.float32)
    mask = 1.0 + jax.nn.sigmoid(acc)
    o_ref[...] = (mask * trunk_ref[...].astype(jnp.float32)).astype(o_ref.dtype)


def _mm_softmax_kernel(x_ref, w_ref, b_ref, o_ref):
    """o = softmax(x @ w + b, axis=-1)   (final linear layer)."""
    acc = jnp.dot(x_ref[...].astype(jnp.bfloat16), w_ref[...],
                  preferred_element_type=jnp.float32) + b_ref[...]
    acc = acc - jnp.max(acc, axis=-1, keepdims=True)
    e = jnp.exp(acc)
    o_ref[...] = (e / jnp.sum(e, axis=-1, keepdims=True)).astype(o_ref.dtype)


# ------------------------------------------------------------------ pallas_call plumbing

_MAX_TILE_ROWS = 512            # largest row tile; keeps double-buffered VMEM small
_VMEM_LIMIT = 64 * 1024 * 1024  # <= physical VMEM on v5e/v6e (128 MiB) and v7x (64 MiB)


def _pick_row_tile(rows, max_tile=_MAX_TILE_ROWS):
    """Largest row tile <= max_tile that divides `rows` and satisfies the (8,128) rule."""
    if rows <= max_tile:
        return rows
    t = max_tile - (max_tile % 8)
    while t >= 8:
        if rows % t == 0:
            return t
        t -= 8
    return rows


def _rowwise_pallas(kernel, args, row_flags, out_cols, out_dtype=jnp.float32):
    """Run `kernel` with a 1-D grid over the row axis of the row-tiled operands."""
    rows = args[0].shape[0]
    tile = _pick_row_tile(rows)
    grid = (rows // tile,)
    in_specs = []
    for a, is_row in zip(args, row_flags):
        if is_row:
            in_specs.append(pl.BlockSpec((tile, a.shape[1]), lambda i: (i, 0)))
        else:
            in_specs.append(pl.BlockSpec(a.shape, lambda i: (0, 0)))
    return pl.pallas_call(
        kernel,
        out_shape=jax.ShapeDtypeStruct((rows, out_cols), out_dtype),
        grid=grid,
        in_specs=in_specs,
        out_specs=pl.BlockSpec((tile, out_cols), lambda i: (i, 0)),
        compiler_params=pltpu.CompilerParams(
            dimension_semantics=("parallel",),
            vmem_limit_bytes=_VMEM_LIMIT,
        ),
    )(*args)


def conv1x1_pre_post(x2, pre_s, pre_b, w, post_b):
    return _rowwise_pallas(_mm_pre_post_kernel, [x2, pre_s, pre_b, w, post_b],
                           [True, False, False, False, False], w.shape[1])


def conv1x1_pre(x2, pre_s, pre_b, w):
    return _rowwise_pallas(_mm_pre_kernel, [x2, pre_s, pre_b, w],
                           [True, False, False, False], w.shape[1])


def matmul_post_relu(x2, w, post_b):
    return _rowwise_pallas(_mm_post_relu_kernel, [x2, w, post_b],
                           [True, False, False], w.shape[1])


def conv1x1_residual(x2, w, res2):
    return _rowwise_pallas(_mm_residual_kernel, [x2, w, res2],
                           [True, False, True], w.shape[1])


def conv1x1_mask(x2, w, trunk2):
    return _rowwise_pallas(_mm_mask_kernel, [x2, w, trunk2],
                           [True, False, True], w.shape[1])


def matmul_softmax(x2, w, b2):
    return _rowwise_pallas(_mm_softmax_kernel, [x2, w, b2],
                           [True, False, False], w.shape[1])


# ------------------------------------------------------------------ XLA glue helpers

def _im2col_3x3x3(x, stride=(1, 1, 1), padding=(1, 1, 1)):
    """Build bf16 im2col patches for a 3x3x3 conv. x: (N, D, H, W, C) -> (rows, 27*C)."""
    # TODO(synk): replace with in-kernel 27-tap accumulation to avoid the HBM blowup.
    n, d, h, w, cin = x.shape
    sd, sh, sw = stride
    pd, ph, pw = padding
    xp = jnp.pad(x, ((0, 0), (pd, pd), (ph, ph), (pw, pw), (0, 0))).astype(jnp.bfloat16)
    do = (d + 2 * pd - 3) // sd + 1
    ho = (h + 2 * ph - 3) // sh + 1
    wo = (w + 2 * pw - 3) // sw + 1
    cols = []
    for a in range(3):
        for b in range(3):
            for c in range(3):
                cols.append(xp[:, a:a + (do - 1) * sd + 1:sd,
                               b:b + (ho - 1) * sh + 1:sh,
                               c:c + (wo - 1) * sw + 1:sw, :])
    patches = jnp.concatenate(cols, axis=-1).reshape(-1, 27 * cin)
    return patches, (do, ho, wo)


def maxpool3d(x, kernel, stride, padding=(0, 0, 0)):
    return lax.reduce_window(
        x, -jnp.inf, lax.max,
        window_dimensions=(1, kernel[0], kernel[1], kernel[2], 1),
        window_strides=(1, stride[0], stride[1], stride[2], 1),
        padding=((0, 0), (padding[0], padding[0]), (padding[1], padding[1]),
                 (padding[2], padding[2]), (0, 0)))


def trilinear_resize(x, out_size):
    """F.interpolate(..., mode='trilinear', align_corners=True) on NDHWC input."""
    def axis_interp(x, out_sz, axis):
        in_sz = x.shape[axis]
        if out_sz == in_sz:
            return x
        if in_sz == 1:
            return jnp.repeat(x, out_sz, axis=axis)
        if out_sz == 1:
            src = jnp.zeros((1,), jnp.float32)
        else:
            src = jnp.arange(out_sz, dtype=jnp.float32) * ((in_sz - 1) / (out_sz - 1))
        lo = jnp.clip(jnp.floor(src).astype(jnp.int32), 0, in_sz - 1)
        hi = jnp.clip(lo + 1, 0, in_sz - 1)
        frac = src - lo.astype(jnp.float32)
        xlo = jnp.take(x, lo, axis=axis)
        xhi = jnp.take(x, hi, axis=axis)
        shape = [1] * x.ndim
        shape[axis] = out_sz
        frac = frac.reshape(shape)
        return xlo * (1.0 - frac) + xhi * frac

    x = axis_interp(x, int(out_size[0]), 1)
    x = axis_interp(x, int(out_size[1]), 2)
    x = axis_interp(x, int(out_size[2]), 3)
    return x


# ------------------------------------------------------------------ module forwards

def residual_block(p, x):
    """ResidualBlock3D with fused BN prologue/epilogue and fused residual add."""
    n, d, h, w, cin = x.shape
    x2 = x.reshape(-1, cin)
    # conv1: bn1+relu prologue, bn2(scale folded into w1)+relu epilogue
    act1 = conv1x1_pre_post(x2, p["pre_s"], p["pre_b"], p["w1"], p["shift1"])
    dc = p["w1"].shape[1]
    # conv2: 3x3x3 (im2col in XLA, bf16), bn3(scale folded)+relu epilogue
    patches, (do, ho, wo) = _im2col_3x3x3(act1.reshape(n, d, h, w, dc),
                                          stride=(p["stride"],) * 3, padding=(1, 1, 1))
    act2 = matmul_post_relu(patches, p["w2"], p["shift2"])
    cout = p["w3"].shape[1]
    # residual path
    if p["need_proj"]:
        s = p["stride"]
        xs = x[:, ::s, ::s, ::s, :]
        res2 = conv1x1_pre(xs.reshape(-1, cin), p["pre_s"], p["pre_b"], p["w4"])
    else:
        res2 = x2
    # conv3 with the residual add fused in the epilogue
    out = conv1x1_residual(act2, p["w3"], res2)
    return out.reshape(n, do, ho, wo, cout)


def attention_module(p, x):
    x = residual_block(p["first"], x)
    out_trunk = x
    for rp in p["trunk"]:
        out_trunk = residual_block(rp, out_trunk)
    out_pool1 = maxpool3d(x, (3, 3, 3), (2, 2, 2), (1, 1, 1))
    out_block1 = residual_block(p["block1"], out_pool1)
    out_skip1 = residual_block(p["skip1"], out_block1)
    out_pool2 = maxpool3d(out_block1, (3, 3, 3), (2, 2, 2), (1, 1, 1))
    out_block2 = residual_block(p["block2"], out_pool2)
    out_skip2 = residual_block(p["skip2"], out_block2)
    out_pool3 = maxpool3d(out_block2, (3, 3, 3), (2, 2, 2), (1, 1, 1))
    out_block3 = out_pool3
    for rp in p["block3"]:
        out_block3 = residual_block(rp, out_block3)
    out_interp3 = trilinear_resize(out_block3, p["size3"])
    # these small adds are fused by XLA with the interpolation producer (single jit)
    out = out_interp3 + out_skip2
    out_block4 = residual_block(p["block4"], out)
    out_interp2 = trilinear_resize(out_block4, p["size2"])
    out = out_interp2 + out_skip1
    out_block5 = residual_block(p["block5"], out)
    out_interp1 = trilinear_resize(out_block5, p["size1"])
    # block6: bn_a+relu prologue, conv_a (bn_b scale folded) + shift + relu epilogue,
    # then conv_b with fused sigmoid-mask application onto the trunk.
    b6 = p["block6"]
    c = out_trunk.shape[-1]
    hid = conv1x1_pre_post(out_interp1.reshape(-1, c), b6["pre_s"], b6["pre_b"],
                           b6["wa"], b6["shift_a"])
    out = conv1x1_mask(hid, b6["wb"], out_trunk.reshape(-1, c)).reshape(out_trunk.shape)
    return residual_block(p["final"], out)


def cnn_attention_net_forward(plan, x_ncdhw):
    x = jnp.transpose(x_ncdhw.astype(jnp.float32), (0, 2, 3, 4, 1))  # NCDHW -> NDHWC
    for layer in plan["layers"]:
        if layer["type"] == "block_conv_relu_pool":
            n = x.shape[0]
            patches, (do, ho, wo) = _im2col_3x3x3(x, (1, 1, 1), (1, 1, 1))
            cout = layer["w"].shape[1]
            y = matmul_post_relu(patches, layer["w"], layer["bias"])
            y = y.reshape(n, do, ho, wo, cout)
            x = maxpool3d(y, layer["pool_size"], layer["pool_stride"])
        else:
            x = attention_module(layer, x)
    n = x.shape[0]
    # match torch flatten order (N, C, D, H, W) -> (N, C*D*H*W)
    feat = jnp.transpose(x, (0, 4, 1, 2, 3)).reshape(n, -1)
    hid = matmul_post_relu(feat, plan["lin1_w"], plan["lin1_b"])
    return matmul_softmax(hid, plan["lin2_w"], plan["lin2_b"])


# ------------------------------------------------------------------ parameter prep
# One-time conversion of torch-layout parameters to the fused inference plan:
# BN scale folded into following conv weights, weights pre-transposed and cast
# to bf16, scales/shifts/biases pre-reshaped to (1, C) f32 rows.

def _bn_scale_shift(bn, eps=1e-5):
    scale = bn["weight"] / jnp.sqrt(bn["running_var"] + eps)
    shift = bn["bias"] - bn["running_mean"] * scale
    return scale, shift


def _prep_residual(p):
    in_dim, out_dim, stride = p["in_dim"], p["out_dim"], p["stride"]
    dc = p["conv1"].shape[0]
    s1, b1 = _bn_scale_shift(p["bn1"])
    s2, b2 = _bn_scale_shift(p["bn2"])
    s3, b3 = _bn_scale_shift(p["bn3"])
    w1 = p["conv1"].reshape(dc, in_dim).T * s2[None, :]                     # fold bn2 scale
    w2 = jnp.transpose(p["conv2"], (2, 3, 4, 1, 0)).reshape(27 * dc, dc) * s3[None, :]
    w3 = p["conv3"].reshape(out_dim, dc).T
    plan = {
        "stride": int(stride),
        "need_proj": (in_dim != out_dim) or (stride != 1),
        "pre_s": s1.reshape(1, in_dim).astype(jnp.float32),
        "pre_b": b1.reshape(1, in_dim).astype(jnp.float32),
        "w1": w1.astype(jnp.bfloat16), "shift1": b2.reshape(1, dc).astype(jnp.float32),
        "w2": w2.astype(jnp.bfloat16), "shift2": b3.reshape(1, dc).astype(jnp.float32),
        "w3": w3.astype(jnp.bfloat16),
    }
    if plan["need_proj"]:
        plan["w4"] = p["conv4"].reshape(out_dim, in_dim).T.astype(jnp.bfloat16)
    return plan


def _prep_block6(p):
    sa, ba = _bn_scale_shift(p["bn_a"])
    sb, bb = _bn_scale_shift(p["bn_b"])
    c = sa.shape[0]
    wa = p["conv_a"].reshape(c, c).T * sb[None, :]     # fold bn_b scale
    wb = p["conv_b"].reshape(c, c).T
    return {
        "pre_s": sa.reshape(1, c).astype(jnp.float32),
        "pre_b": ba.reshape(1, c).astype(jnp.float32),
        "wa": wa.astype(jnp.bfloat16),
        "shift_a": bb.reshape(1, c).astype(jnp.float32),
        "wb": wb.astype(jnp.bfloat16),
    }


def _prep_attention(p):
    return {
        "type": "attention",
        "size1": p["size1"], "size2": p["size2"], "size3": p["size3"],
        "first": _prep_residual(p["first"]),
        "trunk": [_prep_residual(r) for r in p["trunk"]],
        "block1": _prep_residual(p["block1"]),
        "skip1": _prep_residual(p["skip1"]),
        "block2": _prep_residual(p["block2"]),
        "skip2": _prep_residual(p["skip2"]),
        "block3": [_prep_residual(r) for r in p["block3"]],
        "block4": _prep_residual(p["block4"]),
        "block5": _prep_residual(p["block5"]),
        "block6": _prep_block6(p["block6"]),
        "final": _prep_residual(p["final"]),
    }


def _prep_block_conv(p):
    cout, cin = p["conv_w"].shape[0], p["conv_w"].shape[1]
    w = jnp.transpose(p["conv_w"], (2, 3, 4, 1, 0)).reshape(27 * cin, cout)
    return {
        "type": "block_conv_relu_pool",
        "w": w.astype(jnp.bfloat16),
        "bias": p["conv_b"].reshape(1, cout).astype(jnp.float32),
        "pool_size": p["pool_size"], "pool_stride": p["pool_stride"],
    }


def prepare_plan(params):
    layers = []
    for layer in params["layers"]:
        if layer["type"] == "block_conv_relu_pool":
            layers.append(_prep_block_conv(layer))
        else:
            layers.append(_prep_attention(layer))
    return {
        "layers": layers,
        "lin1_w": params["lin1_w"].T.astype(jnp.bfloat16),
        "lin1_b": params["lin1_b"].reshape(1, -1).astype(jnp.float32),
        "lin2_w": params["lin2_w"].T.astype(jnp.bfloat16),
        "lin2_b": params["lin2_b"].reshape(1, -1).astype(jnp.float32),
    }


# ------------------------------------------------------------------ deterministic init
# (same structure as the PyTorch module; torch weight layouts, eval-mode BN stats)

class KeyGen:
    def __init__(self, seed):
        self._key = jax.random.PRNGKey(seed)

    def __call__(self):
        self._key, sub = jax.random.split(self._key)
        return sub


def init_bn(kg, c):
    return {
        "weight": jax.random.uniform(kg(), (c,), jnp.float32, 0.5, 1.5),
        "bias": 0.1 * jax.random.normal(kg(), (c,), jnp.float32),
        "running_mean": 0.1 * jax.random.normal(kg(), (c,), jnp.float32),
        "running_var": jax.random.uniform(kg(), (c,), jnp.float32, 0.5, 1.5),
    }


def init_conv(kg, cout, cin, k):
    fan_in = cin * k[0] * k[1] * k[2]
    return (1.0 / math.sqrt(fan_in)) * jax.random.normal(
        kg(), (cout, cin) + tuple(k), jnp.float32)


def init_residual(kg, in_dim, out_dim, stride=1):
    dim_conv = math.ceil(out_dim / 4)
    return {
        "in_dim": in_dim, "out_dim": out_dim, "stride": stride,
        "bn1": init_bn(kg, in_dim),
        "conv1": init_conv(kg, dim_conv, in_dim, (1, 1, 1)),
        "bn2": init_bn(kg, dim_conv),
        "conv2": init_conv(kg, dim_conv, dim_conv, (3, 3, 3)),
        "bn3": init_bn(kg, dim_conv),
        "conv3": init_conv(kg, out_dim, dim_conv, (1, 1, 1)),
        "conv4": init_conv(kg, out_dim, in_dim, (1, 1, 1)),
    }


def init_attention(kg, in_dim, out_dim, size1, size2, size3):
    return {
        "type": "attention",
        "size1": tuple(int(s) for s in size1),
        "size2": tuple(int(s) for s in size2),
        "size3": tuple(int(s) for s in size3),
        "first": init_residual(kg, in_dim, out_dim),
        "trunk": [init_residual(kg, in_dim, out_dim), init_residual(kg, in_dim, out_dim)],
        "block1": init_residual(kg, in_dim, out_dim),
        "skip1": init_residual(kg, in_dim, out_dim),
        "block2": init_residual(kg, in_dim, out_dim),
        "skip2": init_residual(kg, in_dim, out_dim),
        "block3": [init_residual(kg, in_dim, out_dim), init_residual(kg, in_dim, out_dim)],
        "block4": init_residual(kg, in_dim, out_dim),
        "block5": init_residual(kg, in_dim, out_dim),
        "block6": {
            "bn_a": init_bn(kg, out_dim),
            "conv_a": init_conv(kg, out_dim, out_dim, (1, 1, 1)),
            "bn_b": init_bn(kg, out_dim),
            "conv_b": init_conv(kg, out_dim, out_dim, (1, 1, 1)),
        },
        "final": init_residual(kg, in_dim, out_dim),
    }


def init_block_conv_relu_pool(kg, in_dim, out_dim, pool_size, pool_stride):
    fan_in = in_dim * 27
    return {
        "type": "block_conv_relu_pool",
        "conv_w": init_conv(kg, out_dim, in_dim, (3, 3, 3)),
        "conv_b": (1.0 / math.sqrt(fan_in)) * jax.random.normal(kg(), (out_dim,), jnp.float32),
        "pool_size": tuple(pool_size),
        "pool_stride": tuple(pool_stride),
    }


def init_model(kg, size_data, n_classes, in_dim=3, filters=(8, 16, 32, 64, 128, 256)):
    size_data = np.array(size_data, dtype=np.int64)
    layers = []
    for idx, out_dim in enumerate(filters):
        pool = [2, 2, 1] if idx == 0 else [2, 2, 2]
        layers.append(init_block_conv_relu_pool(kg, in_dim, out_dim, pool, pool))
        size_data = size_data // np.array(pool)
        in_dim = out_dim
        if idx >= len(filters) - 2:
            layers.append(init_attention(
                kg, in_dim, in_dim,
                size_data.copy(),
                np.ceil(size_data / 2).astype(int),
                np.ceil(size_data / 4).astype(int)))
    feat = int(size_data[0] * size_data[1] * size_data[2] * in_dim)
    hidden = feat // 4
    s1 = 1.0 / math.sqrt(feat)
    s2 = 1.0 / math.sqrt(hidden)
    return {
        "layers": layers,
        "lin1_w": jax.random.uniform(kg(), (hidden, feat), jnp.float32, -s1, s1),
        "lin1_b": jax.random.uniform(kg(), (hidden,), jnp.float32, -s1, s1),
        "lin2_w": jax.random.uniform(kg(), (n_classes, hidden), jnp.float32, -s2, s2),
        "lin2_b": jax.random.uniform(kg(), (n_classes,), jnp.float32, -s2, s2),
    }


# ------------------------------------------------------------------ main

if __name__ == "__main__":
    batch = 2
    in_dim = 3
    n_classes = 5
    size_data = np.array([8, 8, 4], dtype=np.int64)   # (D, H, W)
    filters = [4, 8]                                  # small filter stack, same structure

    raw_params = init_model(KeyGen(1), size_data, n_classes, in_dim=in_dim, filters=filters)
    plan = prepare_plan(raw_params)                   # one-time BN folding / weight prep

    # one jit around the whole forward; `plan` arrays are baked in as constants
    forward = jax.jit(functools.partial(cnn_attention_net_forward, plan))

    x = jax.random.normal(jax.random.PRNGKey(0),
                          (batch, in_dim, int(size_data[0]), int(size_data[1]), int(size_data[2])),
                          dtype=jnp.float32)          # NCDHW, like the PyTorch module

    out = jax.block_until_ready(forward(x))

    assert out.shape == (batch, n_classes)
    assert bool(jnp.all(jnp.isfinite(out)))
    # softmax rows sum to 1
    assert bool(jnp.allclose(jnp.sum(out, axis=1), 1.0, atol=1e-4))
    print("KERNEL_OK")
</pallas_src>

<mosaic_0001>
module attributes {stable_mosaic.version = 11 : i64} {
  func.func @_mm_post_relu_kernel(%arg0: i32, %arg1: memref<512x81xbf16, #tpu.memory_space<vmem>>, %arg2: memref<81x4xbf16, #tpu.memory_space<vmem>>, %arg3: memref<1x4xf32, #tpu.memory_space<vmem>>, %arg4: memref<512x4xf32, #tpu.memory_space<vmem>>) attributes {dimension_semantics = [#tpu.dimension_semantics<parallel>], iteration_bounds = array<i64: 1>, scalar_prefetch = 0 : i64, scratch_operands = 0 : i64, tpu.core_type = #tpu.core_type<tc>, window_params = [{transform_indices = @transform_0, window_bounds = array<i64: 512, 81>}, {pipeline_mode = #tpu.pipeline_mode<synchronous>, transform_indices = @transform_1, window_bounds = array<i64: 81, 4>}, {pipeline_mode = #tpu.pipeline_mode<synchronous>, transform_indices = @transform_2, window_bounds = array<i64: 1, 4>}, {transform_indices = @transform_3, window_bounds = array<i64: 512, 4>}]} {
    %c0 = arith.constant 0 : index
    %c0_0 = arith.constant 0 : index
    %0 = vector.load %arg1[%c0, %c0_0] : memref<512x81xbf16, #tpu.memory_space<vmem>>, vector<512x81xbf16>
    %c0_1 = arith.constant 0 : index
    %c0_2 = arith.constant 0 : index
    %1 = vector.load %arg2[%c0_1, %c0_2] : memref<81x4xbf16, #tpu.memory_space<vmem>>, vector<81x4xbf16>
    %cst = arith.constant dense<0.000000e+00> : vector<512x4xf32>
    %2 = tpu.matmul %0, %1, %cst {dimension_numbers = #tpu.dot_dimension_numbers<[1], [0], [0], [1], [0, 0, 1, 1], [], []>} : vector<512x81xbf16>, vector<81x4xbf16>, vector<512x4xf32> -> vector<512x4xf32>
    %c0_3 = arith.constant 0 : index
    %c0_4 = arith.constant 0 : index
    %3 = vector.load %arg3[%c0_3, %c0_4] : memref<1x4xf32, #tpu.memory_space<vmem>>, vector<1x4xf32>
    %4 = vector.broadcast %3 : vector<1x4xf32> to vector<512x4xf32>
    %5 = arith.addf %2, %4 : vector<512x4xf32>
    %cst_5 = arith.constant 0.000000e+00 : f32
    %6 = vector.broadcast %cst_5 : f32 to vector<512x4xf32>
    %7 = arith.maximumf %5, %6 : vector<512x4xf32>
    %c0_6 = arith.constant 0 : index
    %c0_7 = arith.constant 0 : index
    %8 = vector.load %arg4[%c0_6, %c0_7] : memref<512x4xf32, #tpu.memory_space<vmem>>, vector<512x4xf32>
    tpu.vector_store %arg4[%c0_6, %c0_7], %7 {strides = array<i32>} : memref<512x4xf32, #tpu.memory_space<vmem>>, vector<512x4xf32>,
    return
  }
  func.func @transform_0(%arg0: i32) -> (i32, i32) {
    %c0_i32 = arith.constant 0 : i32
    %c0_i32_0 = arith.constant 0 : i32
    return %arg0, %c0_i32 : i32, i32
  }
  func.func @transform_1(%arg0: i32) -> (i32, i32) {
    %c0_i32 = arith.constant 0 : i32
    %c0_i32_0 = arith.constant 0 : i32
    %c0_i32_1 = arith.constant 0 : i32
    return %c0_i32, %c0_i32_0 : i32, i32
  }
  func.func @transform_2(%arg0: i32) -> (i32, i32) {
    %c0_i32 = arith.constant 0 : i32
    %c0_i32_0 = arith.constant 0 : i32
    %c0_i32_1 = arith.constant 0 : i32
    return %c0_i32, %c0_i32_0 : i32, i32
  }
  func.func @transform_3(%arg0: i32) -> (i32, i32) {
    %c0_i32 = arith.constant 0 : i32
    %c0_i32_0 = arith.constant 0 : i32
    return %arg0, %c0_i32 : i32, i32
  }
}

module attributes {stable_mosaic.version = 11 : i64} {
  func.func @_mm_pre_post_kernel(%arg0: i32, %arg1: memref<128x4xf32, #tpu.memory_space<vmem>>, %arg2: memref<1x4xf32, #tpu.memory_space<vmem>>, %arg3: memref<1x4xf32, #tpu.memory_space<vmem>>, %arg4: memref<4x1xbf16, #tpu.memory_space<vmem>>, %arg5: memref<1x1xf32, #tpu.memory_space<vmem>>, %arg6: memref<128x1xf32, #tpu.memory_space<vmem>>) attributes {dimension_semantics = [#tpu.dimension_semantics<parallel>], iteration_bounds = array<i64: 1>, scalar_prefetch = 0 : i64, scratch_operands = 0 : i64, tpu.core_type = #tpu.core_type<tc>, window_params = [{transform_indices = @transform_0, window_bounds = array<i64: 128, 4>}, {pipeline_mode = #tpu.pipeline_mode<synchronous>, transform_indices = @transform_1, window_bounds = array<i64: 1, 4>}, {pipeline_mode = #tpu.pipeline_mode<synchronous>, transform_indices = @transform_2, window_bounds = array<i64: 1, 4>}, {pipeline_mode = #tpu.pipeline_mode<synchronous>, transform_indices = @transform_3, window_bounds = array<i64: 4, 1>}, {pipeline_mode = #tpu.pipeline_mode<synchronous>, transform_indices = @transform_4, window_bounds = array<i64: 1, 1>}, {transform_indices = @transform_5, window_bounds = array<i64: 128, 1>}]} {
    %c0 = arith.constant 0 : index
    %c0_0 = arith.constant 0 : index
    %0 = vector.load %arg1[%c0, %c0_0] : memref<128x4xf32, #tpu.memory_space<vmem>>, vector<128x4xf32>
    %c0_1 = arith.constant 0 : index
    %c0_2 = arith.constant 0 : index
    %1 = vector.load %arg2[%c0_1, %c0_2] : memref<1x4xf32, #tpu.memory_space<vmem>>, vector<1x4xf32>
    %2 = vector.broadcast %1 : vector<1x4xf32> to vector<128x4xf32>
    %3 = arith.mulf %0, %2 : vector<128x4xf32>
    %c0_3 = arith.constant 0 : index
    %c0_4 = arith.constant 0 : index
    %4 = vector.load %arg3[%c0_3, %c0_4] : memref<1x4xf32, #tpu.memory_space<vmem>>, vector<1x4xf32>
    %5 = vector.broadcast %4 : vector<1x4xf32> to vector<128x4xf32>
    %6 = arith.addf %3, %5 : vector<128x4xf32>
    %cst = arith.constant 0.000000e+00 : f32
    %7 = vector.broadcast %cst : f32 to vector<128x4xf32>
    %8 = arith.maximumf %6, %7 : vector<128x4xf32>
    %9 = arith.truncf %8 : vector<128x4xf32> to vector<128x4xbf16>
    %c0_5 = arith.constant 0 : index
    %c0_6 = arith.constant 0 : index
    %10 = vector.load %arg4[%c0_5, %c0_6] : memref<4x1xbf16, #tpu.memory_space<vmem>>, vector<4x1xbf16>
    %cst_7 = arith.constant dense<0.000000e+00> : vector<128x1xf32>
    %11 = tpu.matmul %9, %10, %cst_7 {dimension_numbers = #tpu.dot_dimension_numbers<[1], [0], [0], [1], [0, 0, 1, 1], [], []>} : vector<128x4xbf16>, vector<4x1xbf16>, vector<128x1xf32> -> vector<128x1xf32>
    %c0_8 = arith.constant 0 : index
    %c0_9 = arith.constant 0 : index
    %12 = vector.load %arg5[%c0_8, %c0_9] : memref<1x1xf32, #tpu.memory_space<vmem>>, vector<1x1xf32>
    %13 = vector.broadcast %12 : vector<1x1xf32> to vector<128x1xf32>
    %14 = arith.addf %11, %13 : vector<128x1xf32>
    %cst_10 = arith.constant 0.000000e+00 : f32
    %15 = vector.broadcast %cst_10 : f32 to vector<128x1xf32>
    %16 = arith.maximumf %14, %15 : vector<128x1xf32>
    %c0_11 = arith.constant 0 : index
    %c0_12 = arith.constant 0 : index
    %17 = vector.load %arg6[%c0_11, %c0_12] : memref<128x1xf32, #tpu.memory_space<vmem>>, vector<128x1xf32>
    tpu.vector_store %arg6[%c0_11, %c0_12], %16 {strides = array<i32>} : memref<128x1xf32, #tpu.memory_space<vmem>>, vector<128x1xf32>,
    return
  }
  func.func @transform_0(%arg0: i32) -> (i32, i32) {
    %c0_i32 = arith.constant 0 : i32
    %c0_i32_0 = arith.constant 0 : i32
    return %arg0, %c0_i32 : i32, i32
  }
  func.func @transform_1(%arg0: i32) -> (i32, i32) {
    %c0_i32 = arith.constant 0 : i32
    %c0_i32_0 = arith.constant 0 : i32
    %c0_i32_1 = arith.constant 0 : i32
    return %c0_i32, %c0_i32_0 : i32, i32
  }
  func.func @transform_2(%arg0: i32) -> (i32, i32) {
    %c0_i32 = arith.constant 0 : i32
    %c0_i32_0 = arith.constant 0 : i32
    %c0_i32_1 = arith.constant 0 : i32
    return %c0_i32, %c0_i32_0 : i32, i32
  }
  func.func @transform_3(%arg0: i32) -> (i32, i32) {
    %c0_i32 = arith.constant 0 : i32
    %c0_i32_0 = arith.constant 0 : i32
    %c0_i32_1 = arith.constant 0 : i32
    return %c0_i32, %c0_i32_0 : i32, i32
  }
  func.func @transform_4(%arg0: i32) -> (i32, i32) {
    %c0_i32 = arith.constant 0 : i32
    %c0_i32_0 = arith.constant 0 : i32
    %c0_i32_1 = arith.constant 0 : i32
    return %c0_i32, %c0_i32_0 : i32, i32
  }
  func.func @transform_5(%arg0: i32) -> (i32, i32) {
    %c0_i32 = arith.constant 0 : i32
    %c0_i32_0 = arith.constant 0 : i32
    return %arg0, %c0_i32 : i32, i32
  }
}

module attributes {stable_mosaic.version = 11 : i64} {
  func.func @_mm_residual_kernel(%arg0: i32, %arg1: memref<128x1xf32, #tpu.memory_space<vmem>>, %arg2: memref<1x4xbf16, #tpu.memory_space<vmem>>, %arg3: memref<128x4xf32, #tpu.memory_space<vmem>>, %arg4: memref<128x4xf32, #tpu.memory_space<vmem>>) attributes {dimension_semantics = [#tpu.dimension_semantics<parallel>], iteration_bounds = array<i64: 1>, scalar_prefetch = 0 : i64, scratch_operands = 0 : i64, tpu.core_type = #tpu.core_type<tc>, window_params = [{transform_indices = @transform_0, window_bounds = array<i64: 128, 1>}, {pipeline_mode = #tpu.pipeline_mode<synchronous>, transform_indices = @transform_1, window_bounds = array<i64: 1, 4>}, {transform_indices = @transform_2, window_bounds = array<i64: 128, 4>}, {transform_indices = @transform_3, window_bounds = array<i64: 128, 4>}]} {
    %c0 = arith.constant 0 : index
    %c0_0 = arith.constant 0 : index
    %0 = vector.load %arg1[%c0, %c0_0] : memref<128x1xf32, #tpu.memory_space<vmem>>, vector<128x1xf32>
    %1 = arith.truncf %0 : vector<128x1xf32> to vector<128x1xbf16>
    %c0_1 = arith.constant 0 : index
    %c0_2 = arith.constant 0 : index
    %2 = vector.load %arg2[%c0_1, %c0_2] : memref<1x4xbf16, #tpu.memory_space<vmem>>, vector<1x4xbf16>
    %cst = arith.constant dense<0.000000e+00> : vector<128x4xf32>
    %3 = tpu.matmul %1, %2, %cst {dimension_numbers = #tpu.dot_dimension_numbers<[1], [0], [0], [1], [0, 0, 1, 1], [], []>} : vector<128x1xbf16>, vector<1x4xbf16>, vector<128x4xf32> -> vector<128x4xf32>
    %c0_3 = arith.constant 0 : index
    %c0_4 = arith.constant 0 : index
    %4 = vector.load %arg3[%c0_3, %c0_4] : memref<128x4xf32, #tpu.memory_space<vmem>>, vector<128x4xf32>
    %5 = arith.addf %3, %4 : vector<128x4xf32>
    %c0_5 = arith.constant 0 : index
    %c0_6 = arith.constant 0 : index
    %6 = vector.load %arg4[%c0_5, %c0_6] : memref<128x4xf32, #tpu.memory_space<vmem>>, vector<128x4xf32>
    tpu.vector_store %arg4[%c0_5, %c0_6], %5 {strides = array<i32>} : memref<128x4xf32, #tpu.memory_space<vmem>>, vector<128x4xf32>,
    return
  }
  func.func @transform_0(%arg0: i32) -> (i32, i32) {
    %c0_i32 = arith.constant 0 : i32
    %c0_i32_0 = arith.constant 0 : i32
    return %arg0, %c0_i32 : i32, i32
  }
  func.func @transform_1(%arg0: i32) -> (i32, i32) {
    %c0_i32 = arith.constant 0 : i32
    %c0_i32_0 = arith.constant 0 : i32
    %c0_i32_1 = arith.constant 0 : i32
    return %c0_i32, %c0_i32_0 : i32, i32
  }
  func.func @transform_2(%arg0: i32) -> (i32, i32) {
    %c0_i32 = arith.constant 0 : i32
    %c0_i32_0 = arith.constant 0 : i32
    return %arg0, %c0_i32 : i32, i32
  }
  func.func @transform_3(%arg0: i32) -> (i32, i32) {
    %c0_i32 = arith.constant 0 : i32
    %c0_i32_0 = arith.constant 0 : i32
    return %arg0, %c0_i32 : i32, i32
  }
}

module attributes {stable_mosaic.version = 11 : i64} {
  func.func @_mm_post_relu_kernel(%arg0: i32, %arg1: memref<128x27xbf16, #tpu.memory_space<vmem>>, %arg2: memref<27x1xbf16, #tpu.memory_space<vmem>>, %arg3: memref<1x1xf32, #tpu.memory_space<vmem>>, %arg4: memref<128x1xf32, #tpu.memory_space<vmem>>) attributes {dimension_semantics = [#tpu.dimension_semantics<parallel>], iteration_bounds = array<i64: 1>, scalar_prefetch = 0 : i64, scratch_operands = 0 : i64, tpu.core_type = #tpu.core_type<tc>, window_params = [{transform_indices = @transform_0, window_bounds = array<i64: 128, 27>}, {pipeline_mode = #tpu.pipeline_mode<synchronous>, transform_indices = @transform_1, window_bounds = array<i64: 27, 1>}, {pipeline_mode = #tpu.pipeline_mode<synchronous>, transform_indices = @transform_2, window_bounds = array<i64: 1, 1>}, {transform_indices = @transform_3, window_bounds = array<i64: 128, 1>}]} {
    %c0 = arith.constant 0 : index
    %c0_0 = arith.constant 0 : index
    %0 = vector.load %arg1[%c0, %c0_0] : memref<128x27xbf16, #tpu.memory_space<vmem>>, vector<128x27xbf16>
    %c0_1 = arith.constant 0 : index
    %c0_2 = arith.constant 0 : index
    %1 = vector.load %arg2[%c0_1, %c0_2] : memref<27x1xbf16, #tpu.memory_space<vmem>>, vector<27x1xbf16>
    %cst = arith.constant dense<0.000000e+00> : vector<128x1xf32>
    %2 = tpu.matmul %0, %1, %cst {dimension_numbers = #tpu.dot_dimension_numbers<[1], [0], [0], [1], [0, 0, 1, 1], [], []>} : vector<128x27xbf16>, vector<27x1xbf16>, vector<128x1xf32> -> vector<128x1xf32>
    %c0_3 = arith.constant 0 : index
    %c0_4 = arith.constant 0 : index
    %3 = vector.load %arg3[%c0_3, %c0_4] : memref<1x1xf32, #tpu.memory_space<vmem>>, vector<1x1xf32>
    %4 = vector.broadcast %3 : vector<1x1xf32> to vector<128x1xf32>
    %5 = arith.addf %2, %4 : vector<128x1xf32>
    %cst_5 = arith.constant 0.000000e+00 : f32
    %6 = vector.broadcast %cst_5 : f32 to vector<128x1xf32>
    %7 = arith.maximumf %5, %6 : vector<128x1xf32>
    %c0_6 = arith.constant 0 : index
    %c0_7 = arith.constant 0 : index
    %8 = vector.load %arg4[%c0_6, %c0_7] : memref<128x1xf32, #tpu.memory_space<vmem>>, vector<128x1xf32>
    tpu.vector_store %arg4[%c0_6, %c0_7], %7 {strides = array<i32>} : memref<128x1xf32, #tpu.memory_space<vmem>>, vector<128x1xf32>,
    return
  }
  func.func @transform_0(%arg0: i32) -> (i32, i32) {
    %c0_i32 = arith.constant 0 : i32
    %c0_i32_0 = arith.constant 0 : i32
    return %arg0, %c0_i32 : i32, i32
  }
  func.func @transform_1(%arg0: i32) -> (i32, i32) {
    %c0_i32 = arith.constant 0 : i32
    %c0_i32_0 = arith.constant 0 : i32
    %c0_i32_1 = arith.constant 0 : i32
    return %c0_i32, %c0_i32_0 : i32, i32
  }
  func.func @transform_2(%arg0: i32) -> (i32, i32) {
    %c0_i32 = arith.constant 0 : i32
    %c0_i32_0 = arith.constant 0 : i32
    %c0_i32_1 = arith.constant 0 : i32
    return %c0_i32, %c0_i32_0 : i32, i32
  }
  func.func @transform_3(%arg0: i32) -> (i32, i32) {
    %c0_i32 = arith.constant 0 : i32
    %c0_i32_0 = arith.constant 0 : i32
    return %arg0, %c0_i32 : i32, i32
  }
}

module attributes {stable_mosaic.version = 11 : i64} {
  func.func @_mm_pre_post_kernel(%arg0: i32, %arg1: memref<16x4xf32, #tpu.memory_space<vmem>>, %arg2: memref<1x4xf32, #tpu.memory_space<vmem>>, %arg3: memref<1x4xf32, #tpu.memory_space<vmem>>, %arg4: memref<4x1xbf16, #tpu.memory_space<vmem>>, %arg5: memref<1x1xf32, #tpu.memory_space<vmem>>, %arg6: memref<16x1xf32, #tpu.memory_space<vmem>>) attributes {dimension_semantics = [#tpu.dimension_semantics<parallel>], iteration_bounds = array<i64: 1>, scalar_prefetch = 0 : i64, scratch_operands = 0 : i64, tpu.core_type = #tpu.core_type<tc>, window_params = [{transform_indices = @transform_0, window_bounds = array<i64: 16, 4>}, {pipeline_mode = #tpu.pipeline_mode<synchronous>, transform_indices = @transform_1, window_bounds = array<i64: 1, 4>}, {pipeline_mode = #tpu.pipeline_mode<synchronous>, transform_indices = @transform_2, window_bounds = array<i64: 1, 4>}, {pipeline_mode = #tpu.pipeline_mode<synchronous>, transform_indices = @transform_3, window_bounds = array<i64: 4, 1>}, {pipeline_mode = #tpu.pipeline_mode<synchronous>, transform_indices = @transform_4, window_bounds = array<i64: 1, 1>}, {transform_indices = @transform_5, window_bounds = array<i64: 16, 1>}]} {
    %c0 = arith.constant 0 : index
    %c0_0 = arith.constant 0 : index
    %0 = vector.load %arg1[%c0, %c0_0] : memref<16x4xf32, #tpu.memory_space<vmem>>, vector<16x4xf32>
    %c0_1 = arith.constant 0 : index
    %c0_2 = arith.constant 0 : index
    %1 = vector.load %arg2[%c0_1, %c0_2] : memref<1x4xf32, #tpu.memory_space<vmem>>, vector<1x4xf32>
    %2 = vector.broadcast %1 : vector<1x4xf32> to vector<16x4xf32>
    %3 = arith.mulf %0, %2 : vector<16x4xf32>
    %c0_3 = arith.constant 0 : index
    %c0_4 = arith.constant 0 : index
    %4 = vector.load %arg3[%c0_3, %c0_4] : memref<1x4xf32, #tpu.memory_space<vmem>>, vector<1x4xf32>
    %5 = vector.broadcast %4 : vector<1x4xf32> to vector<16x4xf32>
    %6 = arith.addf %3, %5 : vector<16x4xf32>
    %cst = arith.constant 0.000000e+00 : f32
    %7 = vector.broadcast %cst : f32 to vector<16x4xf32>
    %8 = arith.maximumf %6, %7 : vector<16x4xf32>
    %9 = arith.truncf %8 : vector<16x4xf32> to vector<16x4xbf16>
    %c0_5 = arith.constant 0 : index
    %c0_6 = arith.constant 0 : index
    %10 = vector.load %arg4[%c0_5, %c0_6] : memref<4x1xbf16, #tpu.memory_space<vmem>>, vector<4x1xbf16>
    %cst_7 = arith.constant dense<0.000000e+00> : vector<16x1xf32>
    %11 = tpu.matmul %9, %10, %cst_7 {dimension_numbers = #tpu.dot_dimension_numbers<[1], [0], [0], [1], [0, 0, 1, 1], [], []>} : vector<16x4xbf16>, vector<4x1xbf16>, vector<16x1xf32> -> vector<16x1xf32>
    %c0_8 = arith.constant 0 : index
    %c0_9 = arith.constant 0 : index
    %12 = vector.load %arg5[%c0_8, %c0_9] : memref<1x1xf32, #tpu.memory_space<vmem>>, vector<1x1xf32>
    %13 = vector.broadcast %12 : vector<1x1xf32> to vector<16x1xf32>
    %14 = arith.addf %11, %13 : vector<16x1xf32>
    %cst_10 = arith.constant 0.000000e+00 : f32
    %15 = vector.broadcast %cst_10 : f32 to vector<16x1xf32>
    %16 = arith.maximumf %14, %15 : vector<16x1xf32>
    %c0_11 = arith.constant 0 : index
    %c0_12 = arith.constant 0 : index
    %17 = vector.load %arg6[%c0_11, %c0_12] : memref<16x1xf32, #tpu.memory_space<vmem>>, vector<16x1xf32>
    tpu.vector_store %arg6[%c0_11, %c0_12], %16 {strides = array<i32>} : memref<16x1xf32, #tpu.memory_space<vmem>>, vector<16x1xf32>,
    return
  }
  func.func @transform_0(%arg0: i32) -> (i32, i32) {
    %c0_i32 = arith.constant 0 : i32
    %c0_i32_0 = arith.constant 0 : i32
    return %arg0, %c0_i32 : i32, i32
  }
  func.func @transform_1(%arg0: i32) -> (i32, i32) {
    %c0_i32 = arith.constant 0 : i32
    %c0_i32_0 = arith.constant 0 : i32
    %c0_i32_1 = arith.constant 0 : i32
    return %c0_i32, %c0_i32_0 : i32, i32
  }
  func.func @transform_2(%arg0: i32) -> (i32, i32) {
    %c0_i32 = arith.constant 0 : i32
    %c0_i32_0 = arith.constant 0 : i32
    %c0_i32_1 = arith.constant 0 : i32
    return %c0_i32, %c0_i32_0 : i32, i32
  }
  func.func @transform_3(%arg0: i32) -> (i32, i32) {
    %c0_i32 = arith.constant 0 : i32
    %c0_i32_0 = arith.constant 0 : i32
    %c0_i32_1 = arith.constant 0 : i32
    return %c0_i32, %c0_i32_0 : i32, i32
  }
  func.func @transform_4(%arg0: i32) -> (i32, i32) {
    %c0_i32 = arith.constant 0 : i32
    %c0_i32_0 = arith.constant 0 : i32
    %c0_i32_1 = arith.constant 0 : i32
    return %c0_i32, %c0_i32_0 : i32, i32
  }
  func.func @transform_5(%arg0: i32) -> (i32, i32) {
    %c0_i32 = arith.constant 0 : i32
    %c0_i32_0 = arith.constant 0 : i32
    return %arg0, %c0_i32 : i32, i32
  }
}

module attributes {stable_mosaic.version = 11 : i64} {
  func.func @_mm_post_relu_kernel(%arg0: i32, %arg1: memref<16x27xbf16, #tpu.memory_space<vmem>>, %arg2: memref<27x1xbf16, #tpu.memory_space<vmem>>, %arg3: memref<1x1xf32, #tpu.memory_space<vmem>>, %arg4: memref<16x1xf32, #tpu.memory_space<vmem>>) attributes {dimension_semantics = [#tpu.dimension_semantics<parallel>], iteration_bounds = array<i64: 1>, scalar_prefetch = 0 : i64, scratch_operands = 0 : i64, tpu.core_type = #tpu.core_type<tc>, window_params = [{transform_indices = @transform_0, window_bounds = array<i64: 16, 27>}, {pipeline_mode = #tpu.pipeline_mode<synchronous>, transform_indices = @transform_1, window_bounds = array<i64: 27, 1>}, {pipeline_mode = #tpu.pipeline_mode<synchronous>, transform_indices = @transform_2, window_bounds = array<i64: 1, 1>}, {transform_indices = @transform_3, window_bounds = array<i64: 16, 1>}]} {
    %c0 = arith.constant 0 : index
    %c0_0 = arith.constant 0 : index
    %0 = vector.load %arg1[%c0, %c0_0] : memref<16x27xbf16, #tpu.memory_space<vmem>>, vector<16x27xbf16>
    %c0_1 = arith.constant 0 : index
    %c0_2 = arith.constant 0 : index
    %1 = vector.load %arg2[%c0_1, %c0_2] : memref<27x1xbf16, #tpu.memory_space<vmem>>, vector<27x1xbf16>
    %cst = arith.constant dense<0.000000e+00> : vector<16x1xf32>
    %2 = tpu.matmul %0, %1, %cst {dimension_numbers = #tpu.dot_dimension_numbers<[1], [0], [0], [1], [0, 0, 1, 1], [], []>} : vector<16x27xbf16>, vector<27x1xbf16>, vector<16x1xf32> -> vector<16x1xf32>
    %c0_3 = arith.constant 0 : index
    %c0_4 = arith.constant 0 : index
    %3 = vector.load %arg3[%c0_3, %c0_4] : memref<1x1xf32, #tpu.memory_space<vmem>>, vector<1x1xf32>
    %4 = vector.broadcast %3 : vector<1x1xf32> to vector<16x1xf32>
    %5 = arith.addf %2, %4 : vector<16x1xf32>
    %cst_5 = arith.constant 0.000000e+00 : f32
    %6 = vector.broadcast %cst_5 : f32 to vector<16x1xf32>
    %7 = arith.maximumf %5, %6 : vector<16x1xf32>
    %c0_6 = arith.constant 0 : index
    %c0_7 = arith.constant 0 : index
    %8 = vector.load %arg4[%c0_6, %c0_7] : memref<16x1xf32, #tpu.memory_space<vmem>>, vector<16x1xf32>
    tpu.vector_store %arg4[%c0_6, %c0_7], %7 {strides = array<i32>} : memref<16x1xf32, #tpu.memory_space<vmem>>, vector<16x1xf32>,
    return
  }
  func.func @transform_0(%arg0: i32) -> (i32, i32) {
    %c0_i32 = arith.constant 0 : i32
    %c0_i32_0 = arith.constant 0 : i32
    return %arg0, %c0_i32 : i32, i32
  }
  func.func @transform_1(%arg0: i32) -> (i32, i32) {
    %c0_i32 = arith.constant 0 : i32
    %c0_i32_0 = arith.constant 0 : i32
    %c0_i32_1 = arith.constant 0 : i32
    return %c0_i32, %c0_i32_0 : i32, i32
  }
  func.func @transform_2(%arg0: i32) -> (i32, i32) {
    %c0_i32 = arith.constant 0 : i32
    %c0_i32_0 = arith.constant 0 : i32
    %c0_i32_1 = arith.constant 0 : i32
    return %c0_i32, %c0_i32_0 : i32, i32
  }
  func.func @transform_3(%arg0: i32) -> (i32, i32) {
    %c0_i32 = arith.constant 0 : i32
    %c0_i32_0 = arith.constant 0 : i32
    return %arg0, %c0_i32 : i32, i32
  }
}

module attributes {stable_mosaic.version = 11 : i64} {
  func.func @_mm_residual_kernel(%arg0: i32, %arg1: memref<16x1xf32, #tpu.memory_space<vmem>>, %arg2: memref<1x4xbf16, #tpu.memory_space<vmem>>, %arg3: memref<16x4xf32, #tpu.memory_space<vmem>>, %arg4: memref<16x4xf32, #tpu.memory_space<vmem>>) attributes {dimension_semantics = [#tpu.dimension_semantics<parallel>], iteration_bounds = array<i64: 1>, scalar_prefetch = 0 : i64, scratch_operands = 0 : i64, tpu.core_type = #tpu.core_type<tc>, window_params = [{transform_indices = @transform_0, window_bounds = array<i64: 16, 1>}, {pipeline_mode = #tpu.pipeline_mode<synchronous>, transform_indices = @transform_1, window_bounds = array<i64: 1, 4>}, {transform_indices = @transform_2, window_bounds = array<i64: 16, 4>}, {transform_indices = @transform_3, window_bounds = array<i64: 16, 4>}]} {
    %c0 = arith.constant 0 : index
    %c0_0 = arith.constant 0 : index
    %0 = vector.load %arg1[%c0, %c0_0] : memref<16x1xf32, #tpu.memory_space<vmem>>, vector<16x1xf32>
    %1 = arith.truncf %0 : vector<16x1xf32> to vector<16x1xbf16>
    %c0_1 = arith.constant 0 : index
    %c0_2 = arith.constant 0 : index
    %2 = vector.load %arg2[%c0_1, %c0_2] : memref<1x4xbf16, #tpu.memory_space<vmem>>, vector<1x4xbf16>
    %cst = arith.constant dense<0.000000e+00> : vector<16x4xf32>
    %3 = tpu.matmul %1, %2, %cst {dimension_numbers = #tpu.dot_dimension_numbers<[1], [0], [0], [1], [0, 0, 1, 1], [], []>} : vector<16x1xbf16>, vector<1x4xbf16>, vector<16x4xf32> -> vector<16x4xf32>
    %c0_3 = arith.constant 0 : index
    %c0_4 = arith.constant 0 : index
    %4 = vector.load %arg3[%c0_3, %c0_4] : memref<16x4xf32, #tpu.memory_space<vmem>>, vector<16x4xf32>
    %5 = arith.addf %3, %4 : vector<16x4xf32>
    %c0_5 = arith.constant 0 : index
    %c0_6 = arith.constant 0 : index
    %6 = vector.load %arg4[%c0_5, %c0_6] : memref<16x4xf32, #tpu.memory_space<vmem>>, vector<16x4xf32>
    tpu.vector_store %arg4[%c0_5, %c0_6], %5 {strides = array<i32>} : memref<16x4xf32, #tpu.memory_space<vmem>>, vector<16x4xf32>,
    return
  }
  func.func @transform_0(%arg0: i32) -> (i32, i32) {
    %c0_i32 = arith.constant 0 : i32
    %c0_i32_0 = arith.constant 0 : i32
    return %arg0, %c0_i32 : i32, i32
  }
  func.func @transform_1(%arg0: i32) -> (i32, i32) {
    %c0_i32 = arith.constant 0 : i32
    %c0_i32_0 = arith.constant 0 : i32
    %c0_i32_1 = arith.constant 0 : i32
    return %c0_i32, %c0_i32_0 : i32, i32
  }
  func.func @transform_2(%arg0: i32) -> (i32, i32) {
    %c0_i32 = arith.constant 0 : i32
    %c0_i32_0 = arith.constant 0 : i32
    return %arg0, %c0_i32 : i32, i32
  }
  func.func @transform_3(%arg0: i32) -> (i32, i32) {
    %c0_i32 = arith.constant 0 : i32
    %c0_i32_0 = arith.constant 0 : i32
    return %arg0, %c0_i32 : i32, i32
  }
}

module attributes {stable_mosaic.version = 11 : i64} {
  func.func @_mm_pre_post_kernel(%arg0: i32, %arg1: memref<16x4xf32, #tpu.memory_space<vmem>>, %arg2: memref<1x4xf32, #tpu.memory_space<vmem>>, %arg3: memref<1x4xf32, #tpu.memory_space<vmem>>, %arg4: memref<4x1xbf16, #tpu.memory_space<vmem>>, %arg5: memref<1x1xf32, #tpu.memory_space<vmem>>, %arg6: memref<16x1xf32, #tpu.memory_space<vmem>>) attributes {dimension_semantics = [#tpu.dimension_semantics<parallel>], iteration_bounds = array<i64: 1>, scalar_prefetch = 0 : i64, scratch_operands = 0 : i64, tpu.core_type = #tpu.core_type<tc>, window_params = [{transform_indices = @transform_0, window_bounds = array<i64: 16, 4>}, {pipeline_mode = #tpu.pipeline_mode<synchronous>, transform_indices = @transform_1, window_bounds = array<i64: 1, 4>}, {pipeline_mode = #tpu.pipeline_mode<synchronous>, transform_indices = @transform_2, window_bounds = array<i64: 1, 4>}, {pipeline_mode = #tpu.pipeline_mode<synchronous>, transform_indices = @transform_3, window_bounds = array<i64: 4, 1>}, {pipeline_mode = #tpu.pipeline_mode<synchronous>, transform_indices = @transform_4, window_bounds = array<i64: 1, 1>}, {transform_indices = @transform_5, window_bounds = array<i64: 16, 1>}]} {
    %c0 = arith.constant 0 : index
    %c0_0 = arith.constant 0 : index
    %0 = vector.load %arg1[%c0, %c0_0] : memref<16x4xf32, #tpu.memory_space<vmem>>, vector<16x4xf32>
    %c0_1 = arith.constant 0 : index
    %c0_2 = arith.constant 0 : index
    %1 = vector.load %arg2[%c0_1, %c0_2] : memref<1x4xf32, #tpu.memory_space<vmem>>, vector<1x4xf32>
    %2 = vector.broadcast %1 : vector<1x4xf32> to vector<16x4xf32>
    %3 = arith.mulf %0, %2 : vector<16x4xf32>
    %c0_3 = arith.constant 0 : index
    %c0_4 = arith.constant 0 : index
    %4 = vector.load %arg3[%c0_3, %c0_4] : memref<1x4xf32, #tpu.memory_space<vmem>>, vector<1x4xf32>
    %5 = vector.broadcast %4 : vector<1x4xf32> to vector<16x4xf32>
    %6 = arith.addf %3, %5 : vector<16x4xf32>
    %cst = arith.constant 0.000000e+00 : f32
    %7 = vector.broadcast %cst : f32 to vector<16x4xf32>
    %8 = arith.maximumf %6, %7 : vector<16x4xf32>
    %9 = arith.truncf %8 : vector<16x4xf32> to vector<16x4xbf16>
    %c0_5 = arith.constant 0 : index
    %c0_6 = arith.constant 0 : index
    %10 = vector.load %arg4[%c0_5, %c0_6] : memref<4x1xbf16, #tpu.memory_space<vmem>>, vector<4x1xbf16>
    %cst_7 = arith.constant dense<0.000000e+00> : vector<16x1xf32>
    %11 = tpu.matmul %9, %10, %cst_7 {dimension_numbers = #tpu.dot_dimension_numbers<[1], [0], [0], [1], [0, 0, 1, 1], [], []>} : vector<16x4xbf16>, vector<4x1xbf16>, vector<16x1xf32> -> vector<16x1xf32>
    %c0_8 = arith.constant 0 : index
    %c0_9 = arith.constant 0 : index
    %12 = vector.load %arg5[%c0_8, %c0_9] : memref<1x1xf32, #tpu.memory_space<vmem>>, vector<1x1xf32>
    %13 = vector.broadcast %12 : vector<1x1xf32> to vector<16x1xf32>
    %14 = arith.addf %11, %13 : vector<16x1xf32>
    %cst_10 = arith.constant 0.000000e+00 : f32
    %15 = vector.broadcast %cst_10 : f32 to vector<16x1xf32>
    %16 = arith.maximumf %14, %15 : vector<16x1xf32>
    %c0_11 = arith.constant 0 : index
    %c0_12 = arith.constant 0 : index
    %17 = vector.load %arg6[%c0_11, %c0_12] : memref<16x1xf32, #tpu.memory_space<vmem>>, vector<16x1xf32>
    tpu.vector_store %arg6[%c0_11, %c0_12], %16 {strides = array<i32>} : memref<16x1xf32, #tpu.memory_space<vmem>>, vector<16x1xf32>,
    return
  }
  func.func @transform_0(%arg0: i32) -> (i32, i32) {
    %c0_i32 = arith.constant 0 : i32
    %c0_i32_0 = arith.constant 0 : i32
    return %arg0, %c0_i32 : i32, i32
  }
  func.func @transform_1(%arg0: i32) -> (i32, i32) {
    %c0_i32 = arith.constant 0 : i32
    %c0_i32_0 = arith.constant 0 : i32
    %c0_i32_1 = arith.constant 0 : i32
    return %c0_i32, %c0_i32_0 : i32, i32
  }
  func.func @transform_2(%arg0: i32) -> (i32, i32) {
    %c0_i32 = arith.constant 0 : i32
    %c0_i32_0 = arith.constant 0 : i32
    %c0_i32_1 = arith.constant 0 : i32
    return %c0_i32, %c0_i32_0 : i32, i32
  }
  func.func @transform_3(%arg0: i32) -> (i32, i32) {
    %c0_i32 = arith.constant 0 : i32
    %c0_i32_0 = arith.constant 0 : i32
    %c0_i32_1 = arith.constant 0 : i32
    return %c0_i32, %c0_i32_0 : i32, i32
  }
  func.func @transform_4(%arg0: i32) -> (i32, i32) {
    %c0_i32 = arith.constant 0 : i32
    %c0_i32_0 = arith.constant 0 : i32
    %c0_i32_1 = arith.constant 0 : i32
    return %c0_i32, %c0_i32_0 : i32, i32
  }
  func.func @transform_5(%arg0: i32) -> (i32, i32) {
    %c0_i32 = arith.constant 0 : i32
    %c0_i32_0 = arith.constant 0 : i32
    return %arg0, %c0_i32 : i32, i32
  }
}

module attributes {stable_mosaic.version = 11 : i64} {
  func.func @_mm_pre_post_kernel(%arg0: i32, %arg1: memref<2x4xf32, #tpu.memory_space<vmem>>, %arg2: memref<1x4xf32, #tpu.memory_space<vmem>>, %arg3: memref<1x4xf32, #tpu.memory_space<vmem>>, %arg4: memref<4x1xbf16, #tpu.memory_space<vmem>>, %arg5: memref<1x1xf32, #tpu.memory_space<vmem>>, %arg6: memref<2x1xf32, #tpu.memory_space<vmem>>) attributes {dimension_semantics = [#tpu.dimension_semantics<parallel>], iteration_bounds = array<i64: 1>, scalar_prefetch = 0 : i64, scratch_operands = 0 : i64, tpu.core_type = #tpu.core_type<tc>, window_params = [{transform_indices = @transform_0, window_bounds = array<i64: 2, 4>}, {pipeline_mode = #tpu.pipeline_mode<synchronous>, transform_indices = @transform_1, window_bounds = array<i64: 1, 4>}, {pipeline_mode = #tpu.pipeline_mode<synchronous>, transform_indices = @transform_2, window_bounds = array<i64: 1, 4>}, {pipeline_mode = #tpu.pipeline_mode<synchronous>, transform_indices = @transform_3, window_bounds = array<i64: 4, 1>}, {pipeline_mode = #tpu.pipeline_mode<synchronous>, transform_indices = @transform_4, window_bounds = array<i64: 1, 1>}, {transform_indices = @transform_5, window_bounds = array<i64: 2, 1>}]} {
    %c0 = arith.constant 0 : index
    %c0_0 = arith.constant 0 : index
    %0 = vector.load %arg1[%c0, %c0_0] : memref<2x4xf32, #tpu.memory_space<vmem>>, vector<2x4xf32>
    %c0_1 = arith.constant 0 : index
    %c0_2 = arith.constant 0 : index
    %1 = vector.load %arg2[%c0_1, %c0_2] : memref<1x4xf32, #tpu.memory_space<vmem>>, vector<1x4xf32>
    %2 = vector.broadcast %1 : vector<1x4xf32> to vector<2x4xf32>
    %3 = arith.mulf %0, %2 : vector<2x4xf32>
    %c0_3 = arith.constant 0 : index
    %c0_4 = arith.constant 0 : index
    %4 = vector.load %arg3[%c0_3, %c0_4] : memref<1x4xf32, #tpu.memory_space<vmem>>, vector<1x4xf32>
    %5 = vector.broadcast %4 : vector<1x4xf32> to vector<2x4xf32>
    %6 = arith.addf %3, %5 : vector<2x4xf32>
    %cst = arith.constant 0.000000e+00 : f32
    %7 = vector.broadcast %cst : f32 to vector<2x4xf32>
    %8 = arith.maximumf %6, %7 : vector<2x4xf32>
    %9 = arith.truncf %8 : vector<2x4xf32> to vector<2x4xbf16>
    %c0_5 = arith.constant 0 : index
    %c0_6 = arith.constant 0 : index
    %10 = vector.load %arg4[%c0_5, %c0_6] : memref<4x1xbf16, #tpu.memory_space<vmem>>, vector<4x1xbf16>
    %cst_7 = arith.constant dense<0.000000e+00> : vector<2x1xf32>
    %11 = tpu.matmul %9, %10, %cst_7 {dimension_numbers = #tpu.dot_dimension_numbers<[1], [0], [0], [1], [0, 0, 1, 1], [], []>} : vector<2x4xbf16>, vector<4x1xbf16>, vector<2x1xf32> -> vector<2x1xf32>
    %c0_8 = arith.constant 0 : index
    %c0_9 = arith.constant 0 : index
    %12 = vector.load %arg5[%c0_8, %c0_9] : memref<1x1xf32, #tpu.memory_space<vmem>>, vector<1x1xf32>
    %13 = vector.broadcast %12 : vector<1x1xf32> to vector<2x1xf32>
    %14 = arith.addf %11, %13 : vector<2x1xf32>
    %cst_10 = arith.constant 0.000000e+00 : f32
    %15 = vector.broadcast %cst_10 : f32 to vector<2x1xf32>
    %16 = arith.maximumf %14, %15 : vector<2x1xf32>
    %c0_11 = arith.constant 0 : index
    %c0_12 = arith.constant 0 : index
    %17 = vector.load %arg6[%c0_11, %c0_12] : memref<2x1xf32, #tpu.memory_space<vmem>>, vector<2x1xf32>
    tpu.vector_store %arg6[%c0_11, %c0_12], %16 {strides = array<i32>} : memref<2x1xf32, #tpu.memory_space<vmem>>, vector<2x1xf32>,
    return
  }
  func.func @transform_0(%arg0: i32) -> (i32, i32) {
    %c0_i32 = arith.constant 0 : i32
    %c0_i32_0 = arith.constant 0 : i32
    return %arg0, %c0_i32 : i32, i32
  }
  func.func @transform_1(%arg0: i32) -> (i32, i32) {
    %c0_i32 = arith.constant 0 : i32
    %c0_i32_0 = arith.constant 0 : i32
    %c0_i32_1 = arith.constant 0 : i32
    return %c0_i32, %c0_i32_0 : i32, i32
  }
  func.func @transform_2(%arg0: i32) -> (i32, i32) {
    %c0_i32 = arith.constant 0 : i32
    %c0_i32_0 = arith.constant 0 : i32
    %c0_i32_1 = arith.constant 0 : i32
    return %c0_i32, %c0_i32_0 : i32, i32
  }
  func.func @transform_3(%arg0: i32) -> (i32, i32) {
    %c0_i32 = arith.constant 0 : i32
    %c0_i32_0 = arith.constant 0 : i32
    %c0_i32_1 = arith.constant 0 : i32
    return %c0_i32, %c0_i32_0 : i32, i32
  }
  func.func @transform_4(%arg0: i32) -> (i32, i32) {
    %c0_i32 = arith.constant 0 : i32
    %c0_i32_0 = arith.constant 0 : i32
    %c0_i32_1 = arith.constant 0 : i32
    return %c0_i32, %c0_i32_0 : i32, i32
  }
  func.func @transform_5(%arg0: i32) -> (i32, i32) {
    %c0_i32 = arith.constant 0 : i32
    %c0_i32_0 = arith.constant 0 : i32
    return %arg0, %c0_i32 : i32, i32
  }
}

module attributes {stable_mosaic.version = 11 : i64} {
  func.func @_mm_post_relu_kernel(%arg0: i32, %arg1: memref<2x27xbf16, #tpu.memory_space<vmem>>, %arg2: memref<27x1xbf16, #tpu.memory_space<vmem>>, %arg3: memref<1x1xf32, #tpu.memory_space<vmem>>, %arg4: memref<2x1xf32, #tpu.memory_space<vmem>>) attributes {dimension_semantics = [#tpu.dimension_semantics<parallel>], iteration_bounds = array<i64: 1>, scalar_prefetch = 0 : i64, scratch_operands = 0 : i64, tpu.core_type = #tpu.core_type<tc>, window_params = [{transform_indices = @transform_0, window_bounds = array<i64: 2, 27>}, {pipeline_mode = #tpu.pipeline_mode<synchronous>, transform_indices = @transform_1, window_bounds = array<i64: 27, 1>}, {pipeline_mode = #tpu.pipeline_mode<synchronous>, transform_indices = @transform_2, window_bounds = array<i64: 1, 1>}, {transform_indices = @transform_3, window_bounds = array<i64: 2, 1>}]} {
    %c0 = arith.constant 0 : index
    %c0_0 = arith.constant 0 : index
    %0 = vector.load %arg1[%c0, %c0_0] : memref<2x27xbf16, #tpu.memory_space<vmem>>, vector<2x27xbf16>
    %c0_1 = arith.constant 0 : index
    %c0_2 = arith.constant 0 : index
    %1 = vector.load %arg2[%c0_1, %c0_2] : memref<27x1xbf16, #tpu.memory_space<vmem>>, vector<27x1xbf16>
    %cst = arith.constant dense<0.000000e+00> : vector<2x1xf32>
    %2 = tpu.matmul %0, %1, %cst {dimension_numbers = #tpu.dot_dimension_numbers<[1], [0], [0], [1], [0, 0, 1, 1], [], []>} : vector<2x27xbf16>, vector<27x1xbf16>, vector<2x1xf32> -> vector<2x1xf32>
    %c0_3 = arith.constant 0 : index
    %c0_4 = arith.constant 0 : index
    %3 = vector.load %arg3[%c0_3, %c0_4] : memref<1x1xf32, #tpu.memory_space<vmem>>, vector<1x1xf32>
    %4 = vector.broadcast %3 : vector<1x1xf32> to vector<2x1xf32>
    %5 = arith.addf %2, %4 : vector<2x1xf32>
    %cst_5 = arith.constant 0.000000e+00 : f32
    %6 = vector.broadcast %cst_5 : f32 to vector<2x1xf32>
    %7 = arith.maximumf %5, %6 : vector<2x1xf32>
    %c0_6 = arith.constant 0 : index
    %c0_7 = arith.constant 0 : index
    %8 = vector.load %arg4[%c0_6, %c0_7] : memref<2x1xf32, #tpu.memory_space<vmem>>, vector<2x1xf32>
    tpu.vector_store %arg4[%c0_6, %c0_7], %7 {strides = array<i32>} : memref<2x1xf32, #tpu.memory_space<vmem>>, vector<2x1xf32>,
    return
  }
  func.func @transform_0(%arg0: i32) -> (i32, i32) {
    %c0_i32 = arith.constant 0 : i32
    %c0_i32_0 = arith.constant 0 : i32
    return %arg0, %c0_i32 : i32, i32
  }
  func.func @transform_1(%arg0: i32) -> (i32, i32) {
    %c0_i32 = arith.constant 0 : i32
    %c0_i32_0 = arith.constant 0 : i32
    %c0_i32_1 = arith.constant 0 : i32
    return %c0_i32, %c0_i32_0 : i32, i32
  }
  func.func @transform_2(%arg0: i32) -> (i32, i32) {
    %c0_i32 = arith.constant 0 : i32
    %c0_i32_0 = arith.constant 0 : i32
    %c0_i32_1 = arith.constant 0 : i32
    return %c0_i32, %c0_i32_0 : i32, i32
  }
  func.func @transform_3(%arg0: i32) -> (i32, i32) {
    %c0_i32 = arith.constant 0 : i32
    %c0_i32_0 = arith.constant 0 : i32
    return %arg0, %c0_i32 : i32, i32
  }
}

module attributes {stable_mosaic.version = 11 : i64} {
  func.func @_mm_residual_kernel(%arg0: i32, %arg1: memref<2x1xf32, #tpu.memory_space<vmem>>, %arg2: memref<1x4xbf16, #tpu.memory_space<vmem>>, %arg3: memref<2x4xf32, #tpu.memory_space<vmem>>, %arg4: memref<2x4xf32, #tpu.memory_space<vmem>>) attributes {dimension_semantics = [#tpu.dimension_semantics<parallel>], iteration_bounds = array<i64: 1>, scalar_prefetch = 0 : i64, scratch_operands = 0 : i64, tpu.core_type = #tpu.core_type<tc>, window_params = [{transform_indices = @transform_0, window_bounds = array<i64: 2, 1>}, {pipeline_mode = #tpu.pipeline_mode<synchronous>, transform_indices = @transform_1, window_bounds = array<i64: 1, 4>}, {transform_indices = @transform_2, window_bounds = array<i64: 2, 4>}, {transform_indices = @transform_3, window_bounds = array<i64: 2, 4>}]} {
    %c0 = arith.constant 0 : index
    %c0_0 = arith.constant 0 : index
    %0 = vector.load %arg1[%c0, %c0_0] : memref<2x1xf32, #tpu.memory_space<vmem>>, vector<2x1xf32>
    %1 = arith.truncf %0 : vector<2x1xf32> to vector<2x1xbf16>
    %c0_1 = arith.constant 0 : index
    %c0_2 = arith.constant 0 : index
    %2 = vector.load %arg2[%c0_1, %c0_2] : memref<1x4xbf16, #tpu.memory_space<vmem>>, vector<1x4xbf16>
    %cst = arith.constant dense<0.000000e+00> : vector<2x4xf32>
    %3 = tpu.matmul %1, %2, %cst {dimension_numbers = #tpu.dot_dimension_numbers<[1], [0], [0], [1], [0, 0, 1, 1], [], []>} : vector<2x1xbf16>, vector<1x4xbf16>, vector<2x4xf32> -> vector<2x4xf32>
    %c0_3 = arith.constant 0 : index
    %c0_4 = arith.constant 0 : index
    %4 = vector.load %arg3[%c0_3, %c0_4] : memref<2x4xf32, #tpu.memory_space<vmem>>, vector<2x4xf32>
    %5 = arith.addf %3, %4 : vector<2x4xf32>
    %c0_5 = arith.constant 0 : index
    %c0_6 = arith.constant 0 : index
    %6 = vector.load %arg4[%c0_5, %c0_6] : memref<2x4xf32, #tpu.memory_space<vmem>>, vector<2x4xf32>
    tpu.vector_store %arg4[%c0_5, %c0_6], %5 {strides = array<i32>} : memref<2x4xf32, #tpu.memory_space<vmem>>, vector<2x4xf32>,
    return
  }
  func.func @transform_0(%arg0: i32) -> (i32, i32) {
    %c0_i32 = arith.constant 0 : i32
    %c0_i32_0 = arith.constant 0 : i32
    return %arg0, %c0_i32 : i32, i32
  }
  func.func @transform_1(%arg0: i32) -> (i32, i32) {
    %c0_i32 = arith.constant 0 : i32
    %c0_i32_0 = arith.constant 0 : i32
    %c0_i32_1 = arith.constant 0 : i32
    return %c0_i32, %c0_i32_0 : i32, i32
  }
  func.func @transform_2(%arg0: i32) -> (i32, i32) {
    %c0_i32 = arith.constant 0 : i32
    %c0_i32_0 = arith.constant 0 : i32
    return %arg0, %c0_i32 : i32, i32
  }
  func.func @transform_3(%arg0: i32) -> (i32, i32) {
    %c0_i32 = arith.constant 0 : i32
    %c0_i32_0 = arith.constant 0 : i32
    return %arg0, %c0_i32 : i32, i32
  }
}

module attributes {stable_mosaic.version = 11 : i64} {
  func.func @_mm_pre_post_kernel(%arg0: i32, %arg1: memref<2x4xf32, #tpu.memory_space<vmem>>, %arg2: memref<1x4xf32, #tpu.memory_space<vmem>>, %arg3: memref<1x4xf32, #tpu.memory_space<vmem>>, %arg4: memref<4x1xbf16, #tpu.memory_space<vmem>>, %arg5: memref<1x1xf32, #tpu.memory_space<vmem>>, %arg6: memref<2x1xf32, #tpu.memory_space<vmem>>) attributes {dimension_semantics = [#tpu.dimension_semantics<parallel>], iteration_bounds = array<i64: 1>, scalar_prefetch = 0 : i64, scratch_operands = 0 : i64, tpu.core_type = #tpu.core_type<tc>, window_params = [{transform_indices = @transform_0, window_bounds = array<i64: 2, 4>}, {pipeline_mode = #tpu.pipeline_mode<synchronous>, transform_indices = @transform_1, window_bounds = array<i64: 1, 4>}, {pipeline_mode = #tpu.pipeline_mode<synchronous>, transform_indices = @transform_2, window_bounds = array<i64: 1, 4>}, {pipeline_mode = #tpu.pipeline_mode<synchronous>, transform_indices = @transform_3, window_bounds = array<i64: 4, 1>}, {pipeline_mode = #tpu.pipeline_mode<synchronous>, transform_indices = @transform_4, window_bounds = array<i64: 1, 1>}, {transform_indices = @transform_5, window_bounds = array<i64: 2, 1>}]} {
    %c0 = arith.constant 0 : index
    %c0_0 = arith.constant 0 : index
    %0 = vector.load %arg1[%c0, %c0_0] : memref<2x4xf32, #tpu.memory_space<vmem>>, vector<2x4xf32>
    %c0_1 = arith.constant 0 : index
    %c0_2 = arith.constant 0 : index
    %1 = vector.load %arg2[%c0_1, %c0_2] : memref<1x4xf32, #tpu.memory_space<vmem>>, vector<1x4xf32>
    %2 = vector.broadcast %1 : vector<1x4xf32> to vector<2x4xf32>
    %3 = arith.mulf %0, %2 : vector<2x4xf32>
    %c0_3 = arith.constant 0 : index
    %c0_4 = arith.constant 0 : index
    %4 = vector.load %arg3[%c0_3, %c0_4] : memref<1x4xf32, #tpu.memory_space<vmem>>, vector<1x4xf32>
    %5 = vector.broadcast %4 : vector<1x4xf32> to vector<2x4xf32>
    %6 = arith.addf %3, %5 : vector<2x4xf32>
    %cst = arith.constant 0.000000e+00 : f32
    %7 = vector.broadcast %cst : f32 to vector<2x4xf32>
    %8 = arith.maximumf %6, %7 : vector<2x4xf32>
    %9 = arith.truncf %8 : vector<2x4xf32> to vector<2x4xbf16>
    %c0_5 = arith.constant 0 : index
    %c0_6 = arith.constant 0 : index
    %10 = vector.load %arg4[%c0_5, %c0_6] : memref<4x1xbf16, #tpu.memory_space<vmem>>, vector<4x1xbf16>
    %cst_7 = arith.constant dense<0.000000e+00> : vector<2x1xf32>
    %11 = tpu.matmul %9, %10, %cst_7 {dimension_numbers = #tpu.dot_dimension_numbers<[1], [0], [0], [1], [0, 0, 1, 1], [], []>} : vector<2x4xbf16>, vector<4x1xbf16>, vector<2x1xf32> -> vector<2x1xf32>
    %c0_8 = arith.constant 0 : index
    %c0_9 = arith.constant 0 : index
    %12 = vector.load %arg5[%c0_8, %c0_9] : memref<1x1xf32, #tpu.memory_space<vmem>>, vector<1x1xf32>
    %13 = vector.broadcast %12 : vector<1x1xf32> to vector<2x1xf32>
    %14 = arith.addf %11, %13 : vector<2x1xf32>
    %cst_10 = arith.constant 0.000000e+00 : f32
    %15 = vector.broadcast %cst_10 : f32 to vector<2x1xf32>
    %16 = arith.maximumf %14, %15 : vector<2x1xf32>
    %c0_11 = arith.constant 0 : index
    %c0_12 = arith.constant 0 : index
    %17 = vector.load %arg6[%c0_11, %c0_12] : memref<2x1xf32, #tpu.memory_space<vmem>>, vector<2x1xf32>
    tpu.vector_store %arg6[%c0_11, %c0_12], %16 {strides = array<i32>} : memref<2x1xf32, #tpu.memory_space<vmem>>, vector<2x1xf32>,
    return
  }
  func.func @transform_0(%arg0: i32) -> (i32, i32) {
    %c0_i32 = arith.constant 0 : i32
    %c0_i32_0 = arith.constant 0 : i32
    return %arg0, %c0_i32 : i32, i32
  }
  func.func @transform_1(%arg0: i32) -> (i32, i32) {
    %c0_i32 = arith.constant 0 : i32
    %c0_i32_0 = arith.constant 0 : i32
    %c0_i32_1 = arith.constant 0 : i32
    return %c0_i32, %c0_i32_0 : i32, i32
  }
  func.func @transform_2(%arg0: i32) -> (i32, i32) {
    %c0_i32 = arith.constant 0 : i32
    %c0_i32_0 = arith.constant 0 : i32
    %c0_i32_1 = arith.constant 0 : i32
    return %c0_i32, %c0_i32_0 : i32, i32
  }
  func.func @transform_3(%arg0: i32) -> (i32, i32) {
    %c0_i32 = arith.constant 0 : i32
    %c0_i32_0 = arith.constant 0 : i32
    %c0_i32_1 = arith.constant 0 : i32
    return %c0_i32, %c0_i32_0 : i32, i32
  }
  func.func @transform_4(%arg0: i32) -> (i32, i32) {
    %c0_i32 = arith.constant 0 : i32
    %c0_i32_0 = arith.constant 0 : i32
    %c0_i32_1 = arith.constant 0 : i32
    return %c0_i32, %c0_i32_0 : i32, i32
  }
  func.func @transform_5(%arg0: i32) -> (i32, i32) {
    %c0_i32 = arith.constant 0 : i32
    %c0_i32_0 = arith.constant 0 : i32
    return %arg0, %c0_i32 : i32, i32
  }
}

module attributes {stable_mosaic.version = 11 : i64} {
  func.func @_mm_residual_kernel(%arg0: i32, %arg1: memref<16x1xf32, #tpu.memory_space<vmem>>, %arg2: memref<1x4xbf16, #tpu.memory_space<vmem>>, %arg3: memref<16x4xf32, #tpu.memory_space<vmem>>, %arg4: memref<16x4xf32, #tpu.memory_space<vmem>>) attributes {dimension_semantics = [#tpu.dimension_semantics<parallel>], iteration_bounds = array<i64: 1>, scalar_prefetch = 0 : i64, scratch_operands = 0 : i64, tpu.core_type = #tpu.core_type<tc>, window_params = [{transform_indices = @transform_0, window_bounds = array<i64: 16, 1>}, {pipeline_mode = #tpu.pipeline_mode<synchronous>, transform_indices = @transform_1, window_bounds = array<i64: 1, 4>}, {transform_indices = @transform_2, window_bounds = array<i64: 16, 4>}, {transform_indices = @transform_3, window_bounds = array<i64: 16, 4>}]} {
    %c0 = arith.constant 0 : index
    %c0_0 = arith.constant 0 : index
    %0 = vector.load %arg1[%c0, %c0_0] : memref<16x1xf32, #tpu.memory_space<vmem>>, vector<16x1xf32>
    %1 = arith.truncf %0 : vector<16x1xf32> to vector<16x1xbf16>
    %c0_1 = arith.constant 0 : index
    %c0_2 = arith.constant 0 : index
    %2 = vector.load %arg2[%c0_1, %c0_2] : memref<1x4xbf16, #tpu.memory_space<vmem>>, vector<1x4xbf16>
    %cst = arith.constant dense<0.000000e+00> : vector<16x4xf32>
    %3 = tpu.matmul %1, %2, %cst {dimension_numbers = #tpu.dot_dimension_numbers<[1], [0], [0], [1], [0, 0, 1, 1], [], []>} : vector<16x1xbf16>, vector<1x4xbf16>, vector<16x4xf32> -> vector<16x4xf32>
    %c0_3 = arith.constant 0 : index
    %c0_4 = arith.constant 0 : index
    %4 = vector.load %arg3[%c0_3, %c0_4] : memref<16x4xf32, #tpu.memory_space<vmem>>, vector<16x4xf32>
    %5 = arith.addf %3, %4 : vector<16x4xf32>
    %c0_5 = arith.constant 0 : index
    %c0_6 = arith.constant 0 : index
    %6 = vector.load %arg4[%c0_5, %c0_6] : memref<16x4xf32, #tpu.memory_space<vmem>>, vector<16x4xf32>
    tpu.vector_store %arg4[%c0_5, %c0_6], %5 {strides = array<i32>} : memref<16x4xf32, #tpu.memory_space<vmem>>, vector<16x4xf32>,
    return
  }
  func.func @transform_0(%arg0: i32) -> (i32, i32) {
    %c0_i32 = arith.constant 0 : i32
    %c0_i32_0 = arith.constant 0 : i32
    return %arg0, %c0_i32 : i32, i32
  }
  func.func @transform_1(%arg0: i32) -> (i32, i32) {
    %c0_i32 = arith.constant 0 : i32
    %c0_i32_0 = arith.constant 0 : i32
    %c0_i32_1 = arith.constant 0 : i32
    return %c0_i32, %c0_i32_0 : i32, i32
  }
  func.func @transform_2(%arg0: i32) -> (i32, i32) {
    %c0_i32 = arith.constant 0 : i32
    %c0_i32_0 = arith.constant 0 : i32
    return %arg0, %c0_i32 : i32, i32
  }
  func.func @transform_3(%arg0: i32) -> (i32, i32) {
    %c0_i32 = arith.constant 0 : i32
    %c0_i32_0 = arith.constant 0 : i32
    return %arg0, %c0_i32 : i32, i32
  }
}

module attributes {stable_mosaic.version = 11 : i64} {
  func.func @_mm_pre_post_kernel(%arg0: i32, %arg1: memref<128x4xf32, #tpu.memory_space<vmem>>, %arg2: memref<1x4xf32, #tpu.memory_space<vmem>>, %arg3: memref<1x4xf32, #tpu.memory_space<vmem>>, %arg4: memref<4x4xbf16, #tpu.memory_space<vmem>>, %arg5: memref<1x4xf32, #tpu.memory_space<vmem>>, %arg6: memref<128x4xf32, #tpu.memory_space<vmem>>) attributes {dimension_semantics = [#tpu.dimension_semantics<parallel>], iteration_bounds = array<i64: 1>, scalar_prefetch = 0 : i64, scratch_operands = 0 : i64, tpu.core_type = #tpu.core_type<tc>, window_params = [{transform_indices = @transform_0, window_bounds = array<i64: 128, 4>}, {pipeline_mode = #tpu.pipeline_mode<synchronous>, transform_indices = @transform_1, window_bounds = array<i64: 1, 4>}, {pipeline_mode = #tpu.pipeline_mode<synchronous>, transform_indices = @transform_2, window_bounds = array<i64: 1, 4>}, {pipeline_mode = #tpu.pipeline_mode<synchronous>, transform_indices = @transform_3, window_bounds = array<i64: 4, 4>}, {pipeline_mode = #tpu.pipeline_mode<synchronous>, transform_indices = @transform_4, window_bounds = array<i64: 1, 4>}, {transform_indices = @transform_5, window_bounds = array<i64: 128, 4>}]} {
    %c0 = arith.constant 0 : index
    %c0_0 = arith.constant 0 : index
    %0 = vector.load %arg1[%c0, %c0_0] : memref<128x4xf32, #tpu.memory_space<vmem>>, vector<128x4xf32>
    %c0_1 = arith.constant 0 : index
    %c0_2 = arith.constant 0 : index
    %1 = vector.load %arg2[%c0_1, %c0_2] : memref<1x4xf32, #tpu.memory_space<vmem>>, vector<1x4xf32>
    %2 = vector.broadcast %1 : vector<1x4xf32> to vector<128x4xf32>
    %3 = arith.mulf %0, %2 : vector<128x4xf32>
    %c0_3 = arith.constant 0 : index
    %c0_4 = arith.constant 0 : index
    %4 = vector.load %arg3[%c0_3, %c0_4] : memref<1x4xf32, #tpu.memory_space<vmem>>, vector<1x4xf32>
    %5 = vector.broadcast %4 : vector<1x4xf32> to vector<128x4xf32>
    %6 = arith.addf %3, %5 : vector<128x4xf32>
    %cst = arith.constant 0.000000e+00 : f32
    %7 = vector.broadcast %cst : f32 to vector<128x4xf32>
    %8 = arith.maximumf %6, %7 : vector<128x4xf32>
    %9 = arith.truncf %8 : vector<128x4xf32> to vector<128x4xbf16>
    %c0_5 = arith.constant 0 : index
    %c0_6 = arith.constant 0 : index
    %10 = vector.load %arg4[%c0_5, %c0_6] : memref<4x4xbf16, #tpu.memory_space<vmem>>, vector<4x4xbf16>
    %cst_7 = arith.constant dense<0.000000e+00> : vector<128x4xf32>
    %11 = tpu.matmul %9, %10, %cst_7 {dimension_numbers = #tpu.dot_dimension_numbers<[1], [0], [0], [1], [0, 0, 1, 1], [], []>} : vector<128x4xbf16>, vector<4x4xbf16>, vector<128x4xf32> -> vector<128x4xf32>
    %c0_8 = arith.constant 0 : index
    %c0_9 = arith.constant 0 : index
    %12 = vector.load %arg5[%c0_8, %c0_9] : memref<1x4xf32, #tpu.memory_space<vmem>>, vector<1x4xf32>
    %13 = vector.broadcast %12 : vector<1x4xf32> to vector<128x4xf32>
    %14 = arith.addf %11, %13 : vector<128x4xf32>
    %cst_10 = arith.constant 0.000000e+00 : f32
    %15 = vector.broadcast %cst_10 : f32 to vector<128x4xf32>
    %16 = arith.maximumf %14, %15 : vector<128x4xf32>
    %c0_11 = arith.constant 0 : index
    %c0_12 = arith.constant 0 : index
    %17 = vector.load %arg6[%c0_11, %c0_12] : memref<128x4xf32, #tpu.memory_space<vmem>>, vector<128x4xf32>
    tpu.vector_store %arg6[%c0_11, %c0_12], %16 {strides = array<i32>} : memref<128x4xf32, #tpu.memory_space<vmem>>, vector<128x4xf32>,
    return
  }
  func.func @transform_0(%arg0: i32) -> (i32, i32) {
    %c0_i32 = arith.constant 0 : i32
    %c0_i32_0 = arith.constant 0 : i32
    return %arg0, %c0_i32 : i32, i32
  }
  func.func @transform_1(%arg0: i32) -> (i32, i32) {
    %c0_i32 = arith.constant 0 : i32
    %c0_i32_0 = arith.constant 0 : i32
    %c0_i32_1 = arith.constant 0 : i32
    return %c0_i32, %c0_i32_0 : i32, i32
  }
  func.func @transform_2(%arg0: i32) -> (i32, i32) {
    %c0_i32 = arith.constant 0 : i32
    %c0_i32_0 = arith.constant 0 : i32
    %c0_i32_1 = arith.constant 0 : i32
    return %c0_i32, %c0_i32_0 : i32, i32
  }
  func.func @transform_3(%arg0: i32) -> (i32, i32) {
    %c0_i32 = arith.constant 0 : i32
    %c0_i32_0 = arith.constant 0 : i32
    %c0_i32_1 = arith.constant 0 : i32
    return %c0_i32, %c0_i32_0 : i32, i32
  }
  func.func @transform_4(%arg0: i32) -> (i32, i32) {
    %c0_i32 = arith.constant 0 : i32
    %c0_i32_0 = arith.constant 0 : i32
    %c0_i32_1 = arith.constant 0 : i32
    return %c0_i32, %c0_i32_0 : i32, i32
  }
  func.func @transform_5(%arg0: i32) -> (i32, i32) {
    %c0_i32 = arith.constant 0 : i32
    %c0_i32_0 = arith.constant 0 : i32
    return %arg0, %c0_i32 : i32, i32
  }
}

module attributes {stable_mosaic.version = 11 : i64} {
  func.func @_mm_mask_kernel(%arg0: i32, %arg1: memref<128x4xf32, #tpu.memory_space<vmem>>, %arg2: memref<4x4xbf16, #tpu.memory_space<vmem>>, %arg3: memref<128x4xf32, #tpu.memory_space<vmem>>, %arg4: memref<128x4xf32, #tpu.memory_space<vmem>>) attributes {dimension_semantics = [#tpu.dimension_semantics<parallel>], iteration_bounds = array<i64: 1>, scalar_prefetch = 0 : i64, scratch_operands = 0 : i64, tpu.core_type = #tpu.core_type<tc>, window_params = [{transform_indices = @transform_0, window_bounds = array<i64: 128, 4>}, {pipeline_mode = #tpu.pipeline_mode<synchronous>, transform_indices = @transform_1, window_bounds = array<i64: 4, 4>}, {transform_indices = @transform_2, window_bounds = array<i64: 128, 4>}, {transform_indices = @transform_3, window_bounds = array<i64: 128, 4>}]} {
    %c0 = arith.constant 0 : index
    %c0_0 = arith.constant 0 : index
    %0 = vector.load %arg1[%c0, %c0_0] : memref<128x4xf32, #tpu.memory_space<vmem>>, vector<128x4xf32>
    %1 = arith.truncf %0 : vector<128x4xf32> to vector<128x4xbf16>
    %c0_1 = arith.constant 0 : index
    %c0_2 = arith.constant 0 : index
    %2 = vector.load %arg2[%c0_1, %c0_2] : memref<4x4xbf16, #tpu.memory_space<vmem>>, vector<4x4xbf16>
    %cst = arith.constant dense<0.000000e+00> : vector<128x4xf32>
    %3 = tpu.matmul %1, %2, %cst {dimension_numbers = #tpu.dot_dimension_numbers<[1], [0], [0], [1], [0, 0, 1, 1], [], []>} : vector<128x4xbf16>, vector<4x4xbf16>, vector<128x4xf32> -> vector<128x4xf32>
    %4 = arith.negf %3 : vector<128x4xf32>
    %5 = math.exp %4 : vector<128x4xf32>
    %cst_3 = arith.constant 1.000000e+00 : f32
    %6 = vector.broadcast %cst_3 : f32 to vector<128x4xf32>
    %7 = arith.addf %6, %5 : vector<128x4xf32>
    %8 = arith.divf %6, %7 : vector<128x4xf32>
    %cst_4 = arith.constant 1.000000e+00 : f32
    %9 = vector.broadcast %cst_4 : f32 to vector<128x4xf32>
    %10 = arith.addf %9, %8 : vector<128x4xf32>
    %c0_5 = arith.constant 0 : index
    %c0_6 = arith.constant 0 : index
    %11 = vector.load %arg3[%c0_5, %c0_6] : memref<128x4xf32, #tpu.memory_space<vmem>>, vector<128x4xf32>
    %12 = arith.mulf %10, %11 : vector<128x4xf32>
    %c0_7 = arith.constant 0 : index
    %c0_8 = arith.constant 0 : index
    %13 = vector.load %arg4[%c0_7, %c0_8] : memref<128x4xf32, #tpu.memory_space<vmem>>, vector<128x4xf32>
    tpu.vector_store %arg4[%c0_7, %c0_8], %12 {strides = array<i32>} : memref<128x4xf32, #tpu.memory_space<vmem>>, vector<128x4xf32>,
    return
  }
  func.func @transform_0(%arg0: i32) -> (i32, i32) {
    %c0_i32 = arith.constant 0 : i32
    %c0_i32_0 = arith.constant 0 : i32
    return %arg0, %c0_i32 : i32, i32
  }
  func.func @transform_1(%arg0: i32) -> (i32, i32) {
    %c0_i32 = arith.constant 0 : i32
    %c0_i32_0 = arith.constant 0 : i32
    %c0_i32_1 = arith.constant 0 : i32
    return %c0_i32, %c0_i32_0 : i32, i32
  }
  func.func @transform_2(%arg0: i32) -> (i32, i32) {
    %c0_i32 = arith.constant 0 : i32
    %c0_i32_0 = arith.constant 0 : i32
    return %arg0, %c0_i32 : i32, i32
  }
  func.func @transform_3(%arg0: i32) -> (i32, i32) {
    %c0_i32 = arith.constant 0 : i32
    %c0_i32_0 = arith.constant 0 : i32
    return %arg0, %c0_i32 : i32, i32
  }
}

module attributes {stable_mosaic.version = 11 : i64} {
  func.func @_mm_post_relu_kernel(%arg0: i32, %arg1: memref<128x108xbf16, #tpu.memory_space<vmem>>, %arg2: memref<108x8xbf16, #tpu.memory_space<vmem>>, %arg3: memref<1x8xf32, #tpu.memory_space<vmem>>, %arg4: memref<128x8xf32, #tpu.memory_space<vmem>>) attributes {dimension_semantics = [#tpu.dimension_semantics<parallel>], iteration_bounds = array<i64: 1>, scalar_prefetch = 0 : i64, scratch_operands = 0 : i64, tpu.core_type = #tpu.core_type<tc>, window_params = [{transform_indices = @transform_0, window_bounds = array<i64: 128, 108>}, {pipeline_mode = #tpu.pipeline_mode<synchronous>, transform_indices = @transform_1, window_bounds = array<i64: 108, 8>}, {pipeline_mode = #tpu.pipeline_mode<synchronous>, transform_indices = @transform_2, window_bounds = array<i64: 1, 8>}, {transform_indices = @transform_3, window_bounds = array<i64: 128, 8>}]} {
    %c0 = arith.constant 0 : index
    %c0_0 = arith.constant 0 : index
    %0 = vector.load %arg1[%c0, %c0_0] : memref<128x108xbf16, #tpu.memory_space<vmem>>, vector<128x108xbf16>
    %c0_1 = arith.constant 0 : index
    %c0_2 = arith.constant 0 : index
    %1 = vector.load %arg2[%c0_1, %c0_2] : memref<108x8xbf16, #tpu.memory_space<vmem>>, vector<108x8xbf16>
    %cst = arith.constant dense<0.000000e+00> : vector<128x8xf32>
    %2 = tpu.matmul %0, %1, %cst {dimension_numbers = #tpu.dot_dimension_numbers<[1], [0], [0], [1], [0, 0, 1, 1], [], []>} : vector<128x108xbf16>, vector<108x8xbf16>, vector<128x8xf32> -> vector<128x8xf32>
    %c0_3 = arith.constant 0 : index
    %c0_4 = arith.constant 0 : index
    %3 = vector.load %arg3[%c0_3, %c0_4] : memref<1x8xf32, #tpu.memory_space<vmem>>, vector<1x8xf32>
    %4 = vector.broadcast %3 : vector<1x8xf32> to vector<128x8xf32>
    %5 = arith.addf %2, %4 : vector<128x8xf32>
    %cst_5 = arith.constant 0.000000e+00 : f32
    %6 = vector.broadcast %cst_5 : f32 to vector<128x8xf32>
    %7 = arith.maximumf %5, %6 : vector<128x8xf32>
    %c0_6 = arith.constant 0 : index
    %c0_7 = arith.constant 0 : index
    %8 = vector.load %arg4[%c0_6, %c0_7] : memref<128x8xf32, #tpu.memory_space<vmem>>, vector<128x8xf32>
    tpu.vector_store %arg4[%c0_6, %c0_7], %7 {strides = array<i32>} : memref<128x8xf32, #tpu.memory_space<vmem>>, vector<128x8xf32>,
    return
  }
  func.func @transform_0(%arg0: i32) -> (i32, i32) {
    %c0_i32 = arith.constant 0 : i32
    %c0_i32_0 = arith.constant 0 : i32
    return %arg0, %c0_i32 : i32, i32
  }
  func.func @transform_1(%arg0: i32) -> (i32, i32) {
    %c0_i32 = arith.constant 0 : i32
    %c0_i32_0 = arith.constant 0 : i32
    %c0_i32_1 = arith.constant 0 : i32
    return %c0_i32, %c0_i32_0 : i32, i32
  }
  func.func @transform_2(%arg0: i32) -> (i32, i32) {
    %c0_i32 = arith.constant 0 : i32
    %c0_i32_0 = arith.constant 0 : i32
    %c0_i32_1 = arith.constant 0 : i32
    return %c0_i32, %c0_i32_0 : i32, i32
  }
  func.func @transform_3(%arg0: i32) -> (i32, i32) {
    %c0_i32 = arith.constant 0 : i32
    %c0_i32_0 = arith.constant 0 : i32
    return %arg0, %c0_i32 : i32, i32
  }
}

module attributes {stable_mosaic.version = 11 : i64} {
  func.func @_mm_pre_post_kernel(%arg0: i32, %arg1: memref<16x8xf32, #tpu.memory_space<vmem>>, %arg2: memref<1x8xf32, #tpu.memory_space<vmem>>, %arg3: memref<1x8xf32, #tpu.memory_space<vmem>>, %arg4: memref<8x2xbf16, #tpu.memory_space<vmem>>, %arg5: memref<1x2xf32, #tpu.memory_space<vmem>>, %arg6: memref<16x2xf32, #tpu.memory_space<vmem>>) attributes {dimension_semantics = [#tpu.dimension_semantics<parallel>], iteration_bounds = array<i64: 1>, scalar_prefetch = 0 : i64, scratch_operands = 0 : i64, tpu.core_type = #tpu.core_type<tc>, window_params = [{transform_indices = @transform_0, window_bounds = array<i64: 16, 8>}, {pipeline_mode = #tpu.pipeline_mode<synchronous>, transform_indices = @transform_1, window_bounds = array<i64: 1, 8>}, {pipeline_mode = #tpu.pipeline_mode<synchronous>, transform_indices = @transform_2, window_bounds = array<i64: 1, 8>}, {pipeline_mode = #tpu.pipeline_mode<synchronous>, transform_indices = @transform_3, window_bounds = array<i64: 8, 2>}, {pipeline_mode = #tpu.pipeline_mode<synchronous>, transform_indices = @transform_4, window_bounds = array<i64: 1, 2>}, {transform_indices = @transform_5, window_bounds = array<i64: 16, 2>}]} {
    %c0 = arith.constant 0 : index
    %c0_0 = arith.constant 0 : index
    %0 = vector.load %arg1[%c0, %c0_0] : memref<16x8xf32, #tpu.memory_space<vmem>>, vector<16x8xf32>
    %c0_1 = arith.constant 0 : index
    %c0_2 = arith.constant 0 : index
    %1 = vector.load %arg2[%c0_1, %c0_2] : memref<1x8xf32, #tpu.memory_space<vmem>>, vector<1x8xf32>
    %2 = vector.broadcast %1 : vector<1x8xf32> to vector<16x8xf32>
    %3 = arith.mulf %0, %2 : vector<16x8xf32>
    %c0_3 = arith.constant 0 : index
    %c0_4 = arith.constant 0 : index
    %4 = vector.load %arg3[%c0_3, %c0_4] : memref<1x8xf32, #tpu.memory_space<vmem>>, vector<1x8xf32>
    %5 = vector.broadcast %4 : vector<1x8xf32> to vector<16x8xf32>
    %6 = arith.addf %3, %5 : vector<16x8xf32>
    %cst = arith.constant 0.000000e+00 : f32
    %7 = vector.broadcast %cst : f32 to vector<16x8xf32>
    %8 = arith.maximumf %6, %7 : vector<16x8xf32>
    %9 = arith.truncf %8 : vector<16x8xf32> to vector<16x8xbf16>
    %c0_5 = arith.constant 0 : index
    %c0_6 = arith.constant 0 : index
    %10 = vector.load %arg4[%c0_5, %c0_6] : memref<8x2xbf16, #tpu.memory_space<vmem>>, vector<8x2xbf16>
    %cst_7 = arith.constant dense<0.000000e+00> : vector<16x2xf32>
    %11 = tpu.matmul %9, %10, %cst_7 {dimension_numbers = #tpu.dot_dimension_numbers<[1], [0], [0], [1], [0, 0, 1, 1], [], []>} : vector<16x8xbf16>, vector<8x2xbf16>, vector<16x2xf32> -> vector<16x2xf32>
    %c0_8 = arith.constant 0 : index
    %c0_9 = arith.constant 0 : index
    %12 = vector.load %arg5[%c0_8, %c0_9] : memref<1x2xf32, #tpu.memory_space<vmem>>, vector<1x2xf32>
    %13 = vector.broadcast %12 : vector<1x2xf32> to vector<16x2xf32>
    %14 = arith.addf %11, %13 : vector<16x2xf32>
    %cst_10 = arith.constant 0.000000e+00 : f32
    %15 = vector.broadcast %cst_10 : f32 to vector<16x2xf32>
    %16 = arith.maximumf %14, %15 : vector<16x2xf32>
    %c0_11 = arith.constant 0 : index
    %c0_12 = arith.constant 0 : index
    %17 = vector.load %arg6[%c0_11, %c0_12] : memref<16x2xf32, #tpu.memory_space<vmem>>, vector<16x2xf32>
    tpu.vector_store %arg6[%c0_11, %c0_12], %16 {strides = array<i32>} : memref<16x2xf32, #tpu.memory_space<vmem>>, vector<16x2xf32>,
    return
  }
  func.func @transform_0(%arg0: i32) -> (i32, i32) {
    %c0_i32 = arith.constant 0 : i32
    %c0_i32_0 = arith.constant 0 : i32
    return %arg0, %c0_i32 : i32, i32
  }
  func.func @transform_1(%arg0: i32) -> (i32, i32) {
    %c0_i32 = arith.constant 0 : i32
    %c0_i32_0 = arith.constant 0 : i32
    %c0_i32_1 = arith.constant 0 : i32
    return %c0_i32, %c0_i32_0 : i32, i32
  }
  func.func @transform_2(%arg0: i32) -> (i32, i32) {
    %c0_i32 = arith.constant 0 : i32
    %c0_i32_0 = arith.constant 0 : i32
    %c0_i32_1 = arith.constant 0 : i32
    return %c0_i32, %c0_i32_0 : i32, i32
  }
  func.func @transform_3(%arg0: i32) -> (i32, i32) {
    %c0_i32 = arith.constant 0 : i32
    %c0_i32_0 = arith.constant 0 : i32
    %c0_i32_1 = arith.constant 0 : i32
    return %c0_i32, %c0_i32_0 : i32, i32
  }
  func.func @transform_4(%arg0: i32) -> (i32, i32) {
    %c0_i32 = arith.constant 0 : i32
    %c0_i32_0 = arith.constant 0 : i32
    %c0_i32_1 = arith.constant 0 : i32
    return %c0_i32, %c0_i32_0 : i32, i32
  }
  func.func @transform_5(%arg0: i32) -> (i32, i32) {
    %c0_i32 = arith.constant 0 : i32
    %c0_i32_0 = arith.constant 0 : i32
    return %arg0, %c0_i32 : i32, i32
  }
}

module attributes {stable_mosaic.version = 11 : i64} {
  func.func @_mm_post_relu_kernel(%arg0: i32, %arg1: memref<16x54xbf16, #tpu.memory_space<vmem>>, %arg2: memref<54x2xbf16, #tpu.memory_space<vmem>>, %arg3: memref<1x2xf32, #tpu.memory_space<vmem>>, %arg4: memref<16x2xf32, #tpu.memory_space<vmem>>) attributes {dimension_semantics = [#tpu.dimension_semantics<parallel>], iteration_bounds = array<i64: 1>, scalar_prefetch = 0 : i64, scratch_operands = 0 : i64, tpu.core_type = #tpu.core_type<tc>, window_params = [{transform_indices = @transform_0, window_bounds = array<i64: 16, 54>}, {pipeline_mode = #tpu.pipeline_mode<synchronous>, transform_indices = @transform_1, window_bounds = array<i64: 54, 2>}, {pipeline_mode = #tpu.pipeline_mode<synchronous>, transform_indices = @transform_2, window_bounds = array<i64: 1, 2>}, {transform_indices = @transform_3, window_bounds = array<i64: 16, 2>}]} {
    %c0 = arith.constant 0 : index
    %c0_0 = arith.constant 0 : index
    %0 = vector.load %arg1[%c0, %c0_0] : memref<16x54xbf16, #tpu.memory_space<vmem>>, vector<16x54xbf16>
    %c0_1 = arith.constant 0 : index
    %c0_2 = arith.constant 0 : index
    %1 = vector.load %arg2[%c0_1, %c0_2] : memref<54x2xbf16, #tpu.memory_space<vmem>>, vector<54x2xbf16>
    %cst = arith.constant dense<0.000000e+00> : vector<16x2xf32>
    %2 = tpu.matmul %0, %1, %cst {dimension_numbers = #tpu.dot_dimension_numbers<[1], [0], [0], [1], [0, 0, 1, 1], [], []>} : vector<16x54xbf16>, vector<54x2xbf16>, vector<16x2xf32> -> vector<16x2xf32>
    %c0_3 = arith.constant 0 : index
    %c0_4 = arith.constant 0 : index
    %3 = vector.load %arg3[%c0_3, %c0_4] : memref<1x2xf32, #tpu.memory_space<vmem>>, vector<1x2xf32>
    %4 = vector.broadcast %3 : vector<1x2xf32> to vector<16x2xf32>
    %5 = arith.addf %2, %4 : vector<16x2xf32>
    %cst_5 = arith.constant 0.000000e+00 : f32
    %6 = vector.broadcast %cst_5 : f32 to vector<16x2xf32>
    %7 = arith.maximumf %5, %6 : vector<16x2xf32>
    %c0_6 = arith.constant 0 : index
    %c0_7 = arith.constant 0 : index
    %8 = vector.load %arg4[%c0_6, %c0_7] : memref<16x2xf32, #tpu.memory_space<vmem>>, vector<16x2xf32>
    tpu.vector_store %arg4[%c0_6, %c0_7], %7 {strides = array<i32>} : memref<16x2xf32, #tpu.memory_space<vmem>>, vector<16x2xf32>,
    return
  }
  func.func @transform_0(%arg0: i32) -> (i32, i32) {
    %c0_i32 = arith.constant 0 : i32
    %c0_i32_0 = arith.constant 0 : i32
    return %arg0, %c0_i32 : i32, i32
  }
  func.func @transform_1(%arg0: i32) -> (i32, i32) {
    %c0_i32 = arith.constant 0 : i32
    %c0_i32_0 = arith.constant 0 : i32
    %c0_i32_1 = arith.constant 0 : i32
    return %c0_i32, %c0_i32_0 : i32, i32
  }
  func.func @transform_2(%arg0: i32) -> (i32, i32) {
    %c0_i32 = arith.constant 0 : i32
    %c0_i32_0 = arith.constant 0 : i32
    %c0_i32_1 = arith.constant 0 : i32
    return %c0_i32, %c0_i32_0 : i32, i32
  }
  func.func @transform_3(%arg0: i32) -> (i32, i32) {
    %c0_i32 = arith.constant 0 : i32
    %c0_i32_0 = arith.constant 0 : i32
    return %arg0, %c0_i32 : i32, i32
  }
}

module attributes {stable_mosaic.version = 11 : i64} {
  func.func @_mm_residual_kernel(%arg0: i32, %arg1: memref<16x2xf32, #tpu.memory_space<vmem>>, %arg2: memref<2x8xbf16, #tpu.memory_space<vmem>>, %arg3: memref<16x8xf32, #tpu.memory_space<vmem>>, %arg4: memref<16x8xf32, #tpu.memory_space<vmem>>) attributes {dimension_semantics = [#tpu.dimension_semantics<parallel>], iteration_bounds = array<i64: 1>, scalar_prefetch = 0 : i64, scratch_operands = 0 : i64, tpu.core_type = #tpu.core_type<tc>, window_params = [{transform_indices = @transform_0, window_bounds = array<i64: 16, 2>}, {pipeline_mode = #tpu.pipeline_mode<synchronous>, transform_indices = @transform_1, window_bounds = array<i64: 2, 8>}, {transform_indices = @transform_2, window_bounds = array<i64: 16, 8>}, {transform_indices = @transform_3, window_bounds = array<i64: 16, 8>}]} {
    %c0 = arith.constant 0 : index
    %c0_0 = arith.constant 0 : index
    %0 = vector.load %arg1[%c0, %c0_0] : memref<16x2xf32, #tpu.memory_space<vmem>>, vector<16x2xf32>
    %1 = arith.truncf %0 : vector<16x2xf32> to vector<16x2xbf16>
    %c0_1 = arith.constant 0 : index
    %c0_2 = arith.constant 0 : index
    %2 = vector.load %arg2[%c0_1, %c0_2] : memref<2x8xbf16, #tpu.memory_space<vmem>>, vector<2x8xbf16>
    %cst = arith.constant dense<0.000000e+00> : vector<16x8xf32>
    %3 = tpu.matmul %1, %2, %cst {dimension_numbers = #tpu.dot_dimension_numbers<[1], [0], [0], [1], [0, 0, 1, 1], [], []>} : vector<16x2xbf16>, vector<2x8xbf16>, vector<16x8xf32> -> vector<16x8xf32>
    %c0_3 = arith.constant 0 : index
    %c0_4 = arith.constant 0 : index
    %4 = vector.load %arg3[%c0_3, %c0_4] : memref<16x8xf32, #tpu.memory_space<vmem>>, vector<16x8xf32>
    %5 = arith.addf %3, %4 : vector<16x8xf32>
    %c0_5 = arith.constant 0 : index
    %c0_6 = arith.constant 0 : index
    %6 = vector.load %arg4[%c0_5, %c0_6] : memref<16x8xf32, #tpu.memory_space<vmem>>, vector<16x8xf32>
    tpu.vector_store %arg4[%c0_5, %c0_6], %5 {strides = array<i32>} : memref<16x8xf32, #tpu.memory_space<vmem>>, vector<16x8xf32>,
    return
  }
  func.func @transform_0(%arg0: i32) -> (i32, i32) {
    %c0_i32 = arith.constant 0 : i32
    %c0_i32_0 = arith.constant 0 : i32
    return %arg0, %c0_i32 : i32, i32
  }
  func.func @transform_1(%arg0: i32) -> (i32, i32) {
    %c0_i32 = arith.constant 0 : i32
    %c0_i32_0 = arith.constant 0 : i32
    %c0_i32_1 = arith.constant 0 : i32
    return %c0_i32, %c0_i32_0 : i32, i32
  }
  func.func @transform_2(%arg0: i32) -> (i32, i32) {
    %c0_i32 = arith.constant 0 : i32
    %c0_i32_0 = arith.constant 0 : i32
    return %arg0, %c0_i32 : i32, i32
  }
  func.func @transform_3(%arg0: i32) -> (i32, i32) {
    %c0_i32 = arith.constant 0 : i32
    %c0_i32_0 = arith.constant 0 : i32
    return %arg0, %c0_i32 : i32, i32
  }
}

module attributes {stable_mosaic.version = 11 : i64} {
  func.func @_mm_pre_post_kernel(%arg0: i32, %arg1: memref<16x8xf32, #tpu.memory_space<vmem>>, %arg2: memref<1x8xf32, #tpu.memory_space<vmem>>, %arg3: memref<1x8xf32, #tpu.memory_space<vmem>>, %arg4: memref<8x2xbf16, #tpu.memory_space<vmem>>, %arg5: memref<1x2xf32, #tpu.memory_space<vmem>>, %arg6: memref<16x2xf32, #tpu.memory_space<vmem>>) attributes {dimension_semantics = [#tpu.dimension_semantics<parallel>], iteration_bounds = array<i64: 1>, scalar_prefetch = 0 : i64, scratch_operands = 0 : i64, tpu.core_type = #tpu.core_type<tc>, window_params = [{transform_indices = @transform_0, window_bounds = array<i64: 16, 8>}, {pipeline_mode = #tpu.pipeline_mode<synchronous>, transform_indices = @transform_1, window_bounds = array<i64: 1, 8>}, {pipeline_mode = #tpu.pipeline_mode<synchronous>, transform_indices = @transform_2, window_bounds = array<i64: 1, 8>}, {pipeline_mode = #tpu.pipeline_mode<synchronous>, transform_indices = @transform_3, window_bounds = array<i64: 8, 2>}, {pipeline_mode = #tpu.pipeline_mode<synchronous>, transform_indices = @transform_4, window_bounds = array<i64: 1, 2>}, {transform_indices = @transform_5, window_bounds = array<i64: 16, 2>}]} {
    %c0 = arith.constant 0 : index
    %c0_0 = arith.constant 0 : index
    %0 = vector.load %arg1[%c0, %c0_0] : memref<16x8xf32, #tpu.memory_space<vmem>>, vector<16x8xf32>
    %c0_1 = arith.constant 0 : index
    %c0_2 = arith.constant 0 : index
    %1 = vector.load %arg2[%c0_1, %c0_2] : memref<1x8xf32, #tpu.memory_space<vmem>>, vector<1x8xf32>
    %2 = vector.broadcast %1 : vector<1x8xf32> to vector<16x8xf32>
    %3 = arith.mulf %0, %2 : vector<16x8xf32>
    %c0_3 = arith.constant 0 : index
    %c0_4 = arith.constant 0 : index
    %4 = vector.load %arg3[%c0_3, %c0_4] : memref<1x8xf32, #tpu.memory_space<vmem>>, vector<1x8xf32>
    %5 = vector.broadcast %4 : vector<1x8xf32> to vector<16x8xf32>
    %6 = arith.addf %3, %5 : vector<16x8xf32>
    %cst = arith.constant 0.000000e+00 : f32
    %7 = vector.broadcast %cst : f32 to vector<16x8xf32>
    %8 = arith.maximumf %6, %7 : vector<16x8xf32>
    %9 = arith.truncf %8 : vector<16x8xf32> to vector<16x8xbf16>
    %c0_5 = arith.constant 0 : index
    %c0_6 = arith.constant 0 : index
    %10 = vector.load %arg4[%c0_5, %c0_6] : memref<8x2xbf16, #tpu.memory_space<vmem>>, vector<8x2xbf16>
    %cst_7 = arith.constant dense<0.000000e+00> : vector<16x2xf32>
    %11 = tpu.matmul %9, %10, %cst_7 {dimension_numbers = #tpu.dot_dimension_numbers<[1], [0], [0], [1], [0, 0, 1, 1], [], []>} : vector<16x8xbf16>, vector<8x2xbf16>, vector<16x2xf32> -> vector<16x2xf32>
    %c0_8 = arith.constant 0 : index
    %c0_9 = arith.constant 0 : index
    %12 = vector.load %arg5[%c0_8, %c0_9] : memref<1x2xf32, #tpu.memory_space<vmem>>, vector<1x2xf32>
    %13 = vector.broadcast %12 : vector<1x2xf32> to vector<16x2xf32>
    %14 = arith.addf %11, %13 : vector<16x2xf32>
    %cst_10 = arith.constant 0.000000e+00 : f32
    %15 = vector.broadcast %cst_10 : f32 to vector<16x2xf32>
    %16 = arith.maximumf %14, %15 : vector<16x2xf32>
    %c0_11 = arith.constant 0 : index
    %c0_12 = arith.constant 0 : index
    %17 = vector.load %arg6[%c0_11, %c0_12] : memref<16x2xf32, #tpu.memory_space<vmem>>, vector<16x2xf32>
    tpu.vector_store %arg6[%c0_11, %c0_12], %16 {strides = array<i32>} : memref<16x2xf32, #tpu.memory_space<vmem>>, vector<16x2xf32>,
    return
  }
  func.func @transform_0(%arg0: i32) -> (i32, i32) {
    %c0_i32 = arith.constant 0 : i32
    %c0_i32_0 = arith.constant 0 : i32
    return %arg0, %c0_i32 : i32, i32
  }
  func.func @transform_1(%arg0: i32) -> (i32, i32) {
    %c0_i32 = arith.constant 0 : i32
    %c0_i32_0 = arith.constant 0 : i32
    %c0_i32_1 = arith.constant 0 : i32
    return %c0_i32, %c0_i32_0 : i32, i32
  }
  func.func @transform_2(%arg0: i32) -> (i32, i32) {
    %c0_i32 = arith.constant 0 : i32
    %c0_i32_0 = arith.constant 0 : i32
    %c0_i32_1 = arith.constant 0 : i32
    return %c0_i32, %c0_i32_0 : i32, i32
  }
  func.func @transform_3(%arg0: i32) -> (i32, i32) {
    %c0_i32 = arith.constant 0 : i32
    %c0_i32_0 = arith.constant 0 : i32
    %c0_i32_1 = arith.constant 0 : i32
    return %c0_i32, %c0_i32_0 : i32, i32
  }
  func.func @transform_4(%arg0: i32) -> (i32, i32) {
    %c0_i32 = arith.constant 0 : i32
    %c0_i32_0 = arith.constant 0 : i32
    %c0_i32_1 = arith.constant 0 : i32
    return %c0_i32, %c0_i32_0 : i32, i32
  }
  func.func @transform_5(%arg0: i32) -> (i32, i32) {
    %c0_i32 = arith.constant 0 : i32
    %c0_i32_0 = arith.constant 0 : i32
    return %arg0, %c0_i32 : i32, i32
  }
}

module attributes {stable_mosaic.version = 11 : i64} {
  func.func @_mm_pre_post_kernel(%arg0: i32, %arg1: memref<2x8xf32, #tpu.memory_space<vmem>>, %arg2: memref<1x8xf32, #tpu.memory_space<vmem>>, %arg3: memref<1x8xf32, #tpu.memory_space<vmem>>, %arg4: memref<8x2xbf16, #tpu.memory_space<vmem>>, %arg5: memref<1x2xf32, #tpu.memory_space<vmem>>, %arg6: memref<2x2xf32, #tpu.memory_space<vmem>>) attributes {dimension_semantics = [#tpu.dimension_semantics<parallel>], iteration_bounds = array<i64: 1>, scalar_prefetch = 0 : i64, scratch_operands = 0 : i64, tpu.core_type = #tpu.core_type<tc>, window_params = [{transform_indices = @transform_0, window_bounds = array<i64: 2, 8>}, {pipeline_mode = #tpu.pipeline_mode<synchronous>, transform_indices = @transform_1, window_bounds = array<i64: 1, 8>}, {pipeline_mode = #tpu.pipeline_mode<synchronous>, transform_indices = @transform_2, window_bounds = array<i64: 1, 8>}, {pipeline_mode = #tpu.pipeline_mode<synchronous>, transform_indices = @transform_3, window_bounds = array<i64: 8, 2>}, {pipeline_mode = #tpu.pipeline_mode<synchronous>, transform_indices = @transform_4, window_bounds = array<i64: 1, 2>}, {transform_indices = @transform_5, window_bounds = array<i64: 2, 2>}]} {
    %c0 = arith.constant 0 : index
    %c0_0 = arith.constant 0 : index
    %0 = vector.load %arg1[%c0, %c0_0] : memref<2x8xf32, #tpu.memory_space<vmem>>, vector<2x8xf32>
    %c0_1 = arith.constant 0 : index
    %c0_2 = arith.constant 0 : index
    %1 = vector.load %arg2[%c0_1, %c0_2] : memref<1x8xf32, #tpu.memory_space<vmem>>, vector<1x8xf32>
    %2 = vector.broadcast %1 : vector<1x8xf32> to vector<2x8xf32>
    %3 = arith.mulf %0, %2 : vector<2x8xf32>
    %c0_3 = arith.constant 0 : index
    %c0_4 = arith.constant 0 : index
    %4 = vector.load %arg3[%c0_3, %c0_4] : memref<1x8xf32, #tpu.memory_space<vmem>>, vector<1x8xf32>
    %5 = vector.broadcast %4 : vector<1x8xf32> to vector<2x8xf32>
    %6 = arith.addf %3, %5 : vector<2x8xf32>
    %cst = arith.constant 0.000000e+00 : f32
    %7 = vector.broadcast %cst : f32 to vector<2x8xf32>
    %8 = arith.maximumf %6, %7 : vector<2x8xf32>
    %9 = arith.truncf %8 : vector<2x8xf32> to vector<2x8xbf16>
    %c0_5 = arith.constant 0 : index
    %c0_6 = arith.constant 0 : index
    %10 = vector.load %arg4[%c0_5, %c0_6] : memref<8x2xbf16, #tpu.memory_space<vmem>>, vector<8x2xbf16>
    %cst_7 = arith.constant dense<0.000000e+00> : vector<2x2xf32>
    %11 = tpu.matmul %9, %10, %cst_7 {dimension_numbers = #tpu.dot_dimension_numbers<[1], [0], [0], [1], [0, 0, 1, 1], [], []>} : vector<2x8xbf16>, vector<8x2xbf16>, vector<2x2xf32> -> vector<2x2xf32>
    %c0_8 = arith.constant 0 : index
    %c0_9 = arith.constant 0 : index
    %12 = vector.load %arg5[%c0_8, %c0_9] : memref<1x2xf32, #tpu.memory_space<vmem>>, vector<1x2xf32>
    %13 = vector.broadcast %12 : vector<1x2xf32> to vector<2x2xf32>
    %14 = arith.addf %11, %13 : vector<2x2xf32>
    %cst_10 = arith.constant 0.000000e+00 : f32
    %15 = vector.broadcast %cst_10 : f32 to vector<2x2xf32>
    %16 = arith.maximumf %14, %15 : vector<2x2xf32>
    %c0_11 = arith.constant 0 : index
    %c0_12 = arith.constant 0 : index
    %17 = vector.load %arg6[%c0_11, %c0_12] : memref<2x2xf32, #tpu.memory_space<vmem>>, vector<2x2xf32>
    tpu.vector_store %arg6[%c0_11, %c0_12], %16 {strides = array<i32>} : memref<2x2xf32, #tpu.memory_space<vmem>>, vector<2x2xf32>,
    return
  }
  func.func @transform_0(%arg0: i32) -> (i32, i32) {
    %c0_i32 = arith.constant 0 : i32
    %c0_i32_0 = arith.constant 0 : i32
    return %arg0, %c0_i32 : i32, i32
  }
  func.func @transform_1(%arg0: i32) -> (i32, i32) {
    %c0_i32 = arith.constant 0 : i32
    %c0_i32_0 = arith.constant 0 : i32
    %c0_i32_1 = arith.constant 0 : i32
    return %c0_i32, %c0_i32_0 : i32, i32
  }
  func.func @transform_2(%arg0: i32) -> (i32, i32) {
    %c0_i32 = arith.constant 0 : i32
    %c0_i32_0 = arith.constant 0 : i32
    %c0_i32_1 = arith.constant 0 : i32
    return %c0_i32, %c0_i32_0 : i32, i32
  }
  func.func @transform_3(%arg0: i32) -> (i32, i32) {
    %c0_i32 = arith.constant 0 : i32
    %c0_i32_0 = arith.constant 0 : i32
    %c0_i32_1 = arith.constant 0 : i32
    return %c0_i32, %c0_i32_0 : i32, i32
  }
  func.func @transform_4(%arg0: i32) -> (i32, i32) {
    %c0_i32 = arith.constant 0 : i32
    %c0_i32_0 = arith.constant 0 : i32
    %c0_i32_1 = arith.constant 0 : i32
    return %c0_i32, %c0_i32_0 : i32, i32
  }
  func.func @transform_5(%arg0: i32) -> (i32, i32) {
    %c0_i32 = arith.constant 0 : i32
    %c0_i32_0 = arith.constant 0 : i32
    return %arg0, %c0_i32 : i32, i32
  }
}

module attributes {stable_mosaic.version = 11 : i64} {
  func.func @_mm_post_relu_kernel(%arg0: i32, %arg1: memref<2x54xbf16, #tpu.memory_space<vmem>>, %arg2: memref<54x2xbf16, #tpu.memory_space<vmem>>, %arg3: memref<1x2xf32, #tpu.memory_space<vmem>>, %arg4: memref<2x2xf32, #tpu.memory_space<vmem>>) attributes {dimension_semantics = [#tpu.dimension_semantics<parallel>], iteration_bounds = array<i64: 1>, scalar_prefetch = 0 : i64, scratch_operands = 0 : i64, tpu.core_type = #tpu.core_type<tc>, window_params = [{transform_indices = @transform_0, window_bounds = array<i64: 2, 54>}, {pipeline_mode = #tpu.pipeline_mode<synchronous>, transform_indices = @transform_1, window_bounds = array<i64: 54, 2>}, {pipeline_mode = #tpu.pipeline_mode<synchronous>, transform_indices = @transform_2, window_bounds = array<i64: 1, 2>}, {transform_indices = @transform_3, window_bounds = array<i64: 2, 2>}]} {
    %c0 = arith.constant 0 : index
    %c0_0 = arith.constant 0 : index
    %0 = vector.load %arg1[%c0, %c0_0] : memref<2x54xbf16, #tpu.memory_space<vmem>>, vector<2x54xbf16>
    %c0_1 = arith.constant 0 : index
    %c0_2 = arith.constant 0 : index
    %1 = vector.load %arg2[%c0_1, %c0_2] : memref<54x2xbf16, #tpu.memory_space<vmem>>, vector<54x2xbf16>
    %cst = arith.constant dense<0.000000e+00> : vector<2x2xf32>
    %2 = tpu.matmul %0, %1, %cst {dimension_numbers = #tpu.dot_dimension_numbers<[1], [0], [0], [1], [0, 0, 1, 1], [], []>} : vector<2x54xbf16>, vector<54x2xbf16>, vector<2x2xf32> -> vector<2x2xf32>
    %c0_3 = arith.constant 0 : index
    %c0_4 = arith.constant 0 : index
    %3 = vector.load %arg3[%c0_3, %c0_4] : memref<1x2xf32, #tpu.memory_space<vmem>>, vector<1x2xf32>
    %4 = vector.broadcast %3 : vector<1x2xf32> to vector<2x2xf32>
    %5 = arith.addf %2, %4 : vector<2x2xf32>
    %cst_5 = arith.constant 0.000000e+00 : f32
    %6 = vector.broadcast %cst_5 : f32 to vector<2x2xf32>
    %7 = arith.maximumf %5, %6 : vector<2x2xf32>
    %c0_6 = arith.constant 0 : index
    %c0_7 = arith.constant 0 : index
    %8 = vector.load %arg4[%c0_6, %c0_7] : memref<2x2xf32, #tpu.memory_space<vmem>>, vector<2x2xf32>
    tpu.vector_store %arg4[%c0_6, %c0_7], %7 {strides = array<i32>} : memref<2x2xf32, #tpu.memory_space<vmem>>, vector<2x2xf32>,
    return
  }
  func.func @transform_0(%arg0: i32) -> (i32, i32) {
    %c0_i32 = arith.constant 0 : i32
    %c0_i32_0 = arith.constant 0 : i32
    return %arg0, %c0_i32 : i32, i32
  }
  func.func @transform_1(%arg0: i32) -> (i32, i32) {
    %c0_i32 = arith.constant 0 : i32
    %c0_i32_0 = arith.constant 0 : i32
    %c0_i32_1 = arith.constant 0 : i32
    return %c0_i32, %c0_i32_0 : i32, i32
  }
  func.func @transform_2(%arg0: i32) -> (i32, i32) {
    %c0_i32 = arith.constant 0 : i32
    %c0_i32_0 = arith.constant 0 : i32
    %c0_i32_1 = arith.constant 0 : i32
    return %c0_i32, %c0_i32_0 : i32, i32
  }
  func.func @transform_3(%arg0: i32) -> (i32, i32) {
    %c0_i32 = arith.constant 0 : i32
    %c0_i32_0 = arith.constant 0 : i32
    return %arg0, %c0_i32 : i32, i32
  }
}

module attributes {stable_mosaic.version = 11 : i64} {
  func.func @_mm_mask_kernel(%arg0: i32, %arg1: memref<16x8xf32, #tpu.memory_space<vmem>>, %arg2: memref<8x8xbf16, #tpu.memory_space<vmem>>, %arg3: memref<16x8xf32, #tpu.memory_space<vmem>>, %arg4: memref<16x8xf32, #tpu.memory_space<vmem>>) attributes {dimension_semantics = [#tpu.dimension_semantics<parallel>], iteration_bounds = array<i64: 1>, scalar_prefetch = 0 : i64, scratch_operands = 0 : i64, tpu.core_type = #tpu.core_type<tc>, window_params = [{transform_indices = @transform_0, window_bounds = array<i64: 16, 8>}, {pipeline_mode = #tpu.pipeline_mode<synchronous>, transform_indices = @transform_1, window_bounds = array<i64: 8, 8>}, {transform_indices = @transform_2, window_bounds = array<i64: 16, 8>}, {transform_indices = @transform_3, window_bounds = array<i64: 16, 8>}]} {
    %c0 = arith.constant 0 : index
    %c0_0 = arith.constant 0 : index
    %0 = vector.load %arg1[%c0, %c0_0] : memref<16x8xf32, #tpu.memory_space<vmem>>, vector<16x8xf32>
    %1 = arith.truncf %0 : vector<16x8xf32> to vector<16x8xbf16>
    %c0_1 = arith.constant 0 : index
    %c0_2 = arith.constant 0 : index
    %2 = vector.load %arg2[%c0_1, %c0_2] : memref<8x8xbf16, #tpu.memory_space<vmem>>, vector<8x8xbf16>
    %cst = arith.constant dense<0.000000e+00> : vector<16x8xf32>
    %3 = tpu.matmul %1, %2, %cst {dimension_numbers = #tpu.dot_dimension_numbers<[1], [0], [0], [1], [0, 0, 1, 1], [], []>} : vector<16x8xbf16>, vector<8x8xbf16>, vector<16x8xf32> -> vector<16x8xf32>
    %4 = arith.negf %3 : vector<16x8xf32>
    %5 = math.exp %4 : vector<16x8xf32>
    %cst_3 = arith.constant 1.000000e+00 : f32
    %6 = vector.broadcast %cst_3 : f32 to vector<16x8xf32>
    %7 = arith.addf %6, %5 : vector<16x8xf32>
    %8 = arith.divf %6, %7 : vector<16x8xf32>
    %cst_4 = arith.constant 1.000000e+00 : f32
    %9 = vector.broadcast %cst_4 : f32 to vector<16x8xf32>
    %10 = arith.addf %9, %8 : vector<16x8xf32>
    %c0_5 = arith.constant 0 : index
    %c0_6 = arith.constant 0 : index
    %11 = vector.load %arg3[%c0_5, %c0_6] : memref<16x8xf32, #tpu.memory_space<vmem>>, vector<16x8xf32>
    %12 = arith.mulf %10, %11 : vector<16x8xf32>
    %c0_7 = arith.constant 0 : index
    %c0_8 = arith.constant 0 : index
    %13 = vector.load %arg4[%c0_7, %c0_8] : memref<16x8xf32, #tpu.memory_space<vmem>>, vector<16x8xf32>
    tpu.vector_store %arg4[%c0_7, %c0_8], %12 {strides = array<i32>} : memref<16x8xf32, #tpu.memory_space<vmem>>, vector<16x8xf32>,
    return
  }
  func.func @transform_0(%arg0: i32) -> (i32, i32) {
    %c0_i32 = arith.constant 0 : i32
    %c0_i32_0 = arith.constant 0 : i32
    return %arg0, %c0_i32 : i32, i32
  }
  func.func @transform_1(%arg0: i32) -> (i32, i32) {
    %c0_i32 = arith.constant 0 : i32
    %c0_i32_0 = arith.constant 0 : i32
    %c0_i32_1 = arith.constant 0 : i32
    return %c0_i32, %c0_i32_0 : i32, i32
  }
  func.func @transform_2(%arg0: i32) -> (i32, i32) {
    %c0_i32 = arith.constant 0 : i32
    %c0_i32_0 = arith.constant 0 : i32
    return %arg0, %c0_i32 : i32, i32
  }
  func.func @transform_3(%arg0: i32) -> (i32, i32) {
    %c0_i32 = arith.constant 0 : i32
    %c0_i32_0 = arith.constant 0 : i32
    return %arg0, %c0_i32 : i32, i32
  }
}

module attributes {stable_mosaic.version = 11 : i64} {
  func.func @_mm_residual_kernel(%arg0: i32, %arg1: memref<2x2xf32, #tpu.memory_space<vmem>>, %arg2: memref<2x8xbf16, #tpu.memory_space<vmem>>, %arg3: memref<2x8xf32, #tpu.memory_space<vmem>>, %arg4: memref<2x8xf32, #tpu.memory_space<vmem>>) attributes {dimension_semantics = [#tpu.dimension_semantics<parallel>], iteration_bounds = array<i64: 1>, scalar_prefetch = 0 : i64, scratch_operands = 0 : i64, tpu.core_type = #tpu.core_type<tc>, window_params = [{transform_indices = @transform_0, window_bounds = array<i64: 2, 2>}, {pipeline_mode = #tpu.pipeline_mode<synchronous>, transform_indices = @transform_1, window_bounds = array<i64: 2, 8>}, {transform_indices = @transform_2, window_bounds = array<i64: 2, 8>}, {transform_indices = @transform_3, window_bounds = array<i64: 2, 8>}]} {
    %c0 = arith.constant 0 : index
    %c0_0 = arith.constant 0 : index
    %0 = vector.load %arg1[%c0, %c0_0] : memref<2x2xf32, #tpu.memory_space<vmem>>, vector<2x2xf32>
    %1 = arith.truncf %0 : vector<2x2xf32> to vector<2x2xbf16>
    %c0_1 = arith.constant 0 : index
    %c0_2 = arith.constant 0 : index
    %2 = vector.load %arg2[%c0_1, %c0_2] : memref<2x8xbf16, #tpu.memory_space<vmem>>, vector<2x8xbf16>
    %cst = arith.constant dense<0.000000e+00> : vector<2x8xf32>
    %3 = tpu.matmul %1, %2, %cst {dimension_numbers = #tpu.dot_dimension_numbers<[1], [0], [0], [1], [0, 0, 1, 1], [], []>} : vector<2x2xbf16>, vector<2x8xbf16>, vector<2x8xf32> -> vector<2x8xf32>
    %c0_3 = arith.constant 0 : index
    %c0_4 = arith.constant 0 : index
    %4 = vector.load %arg3[%c0_3, %c0_4] : memref<2x8xf32, #tpu.memory_space<vmem>>, vector<2x8xf32>
    %5 = arith.addf %3, %4 : vector<2x8xf32>
    %c0_5 = arith.constant 0 : index
    %c0_6 = arith.constant 0 : index
    %6 = vector.load %arg4[%c0_5, %c0_6] : memref<2x8xf32, #tpu.memory_space<vmem>>, vector<2x8xf32>
    tpu.vector_store %arg4[%c0_5, %c0_6], %5 {strides = array<i32>} : memref<2x8xf32, #tpu.memory_space<vmem>>, vector<2x8xf32>,
    return
  }
  func.func @transform_0(%arg0: i32) -> (i32, i32) {
    %c0_i32 = arith.constant 0 : i32
    %c0_i32_0 = arith.constant 0 : i32
    return %arg0, %c0_i32 : i32, i32
  }
  func.func @transform_1(%arg0: i32) -> (i32, i32) {
    %c0_i32 = arith.constant 0 : i32
    %c0_i32_0 = arith.constant 0 : i32
    %c0_i32_1 = arith.constant 0 : i32
    return %c0_i32, %c0_i32_0 : i32, i32
  }
  func.func @transform_2(%arg0: i32) -> (i32, i32) {
    %c0_i32 = arith.constant 0 : i32
    %c0_i32_0 = arith.constant 0 : i32
    return %arg0, %c0_i32 : i32, i32
  }
  func.func @transform_3(%arg0: i32) -> (i32, i32) {
    %c0_i32 = arith.constant 0 : i32
    %c0_i32_0 = arith.constant 0 : i32
    return %arg0, %c0_i32 : i32, i32
  }
}

module attributes {stable_mosaic.version = 11 : i64} {
  func.func @_mm_pre_post_kernel(%arg0: i32, %arg1: memref<16x8xf32, #tpu.memory_space<vmem>>, %arg2: memref<1x8xf32, #tpu.memory_space<vmem>>, %arg3: memref<1x8xf32, #tpu.memory_space<vmem>>, %arg4: memref<8x8xbf16, #tpu.memory_space<vmem>>, %arg5: memref<1x8xf32, #tpu.memory_space<vmem>>, %arg6: memref<16x8xf32, #tpu.memory_space<vmem>>) attributes {dimension_semantics = [#tpu.dimension_semantics<parallel>], iteration_bounds = array<i64: 1>, scalar_prefetch = 0 : i64, scratch_operands = 0 : i64, tpu.core_type = #tpu.core_type<tc>, window_params = [{transform_indices = @transform_0, window_bounds = array<i64: 16, 8>}, {pipeline_mode = #tpu.pipeline_mode<synchronous>, transform_indices = @transform_1, window_bounds = array<i64: 1, 8>}, {pipeline_mode = #tpu.pipeline_mode<synchronous>, transform_indices = @transform_2, window_bounds = array<i64: 1, 8>}, {pipeline_mode = #tpu.pipeline_mode<synchronous>, transform_indices = @transform_3, window_bounds = array<i64: 8, 8>}, {pipeline_mode = #tpu.pipeline_mode<synchronous>, transform_indices = @transform_4, window_bounds = array<i64: 1, 8>}, {transform_indices = @transform_5, window_bounds = array<i64: 16, 8>}]} {
    %c0 = arith.constant 0 : index
    %c0_0 = arith.constant 0 : index
    %0 = vector.load %arg1[%c0, %c0_0] : memref<16x8xf32, #tpu.memory_space<vmem>>, vector<16x8xf32>
    %c0_1 = arith.constant 0 : index
    %c0_2 = arith.constant 0 : index
    %1 = vector.load %arg2[%c0_1, %c0_2] : memref<1x8xf32, #tpu.memory_space<vmem>>, vector<1x8xf32>
    %2 = vector.broadcast %1 : vector<1x8xf32> to vector<16x8xf32>
    %3 = arith.mulf %0, %2 : vector<16x8xf32>
    %c0_3 = arith.constant 0 : index
    %c0_4 = arith.constant 0 : index
    %4 = vector.load %arg3[%c0_3, %c0_4] : memref<1x8xf32, #tpu.memory_space<vmem>>, vector<1x8xf32>
    %5 = vector.broadcast %4 : vector<1x8xf32> to vector<16x8xf32>
    %6 = arith.addf %3, %5 : vector<16x8xf32>
    %cst = arith.constant 0.000000e+00 : f32
    %7 = vector.broadcast %cst : f32 to vector<16x8xf32>
    %8 = arith.maximumf %6, %7 : vector<16x8xf32>
    %9 = arith.truncf %8 : vector<16x8xf32> to vector<16x8xbf16>
    %c0_5 = arith.constant 0 : index
    %c0_6 = arith.constant 0 : index
    %10 = vector.load %arg4[%c0_5, %c0_6] : memref<8x8xbf16, #tpu.memory_space<vmem>>, vector<8x8xbf16>
    %cst_7 = arith.constant dense<0.000000e+00> : vector<16x8xf32>
    %11 = tpu.matmul %9, %10, %cst_7 {dimension_numbers = #tpu.dot_dimension_numbers<[1], [0], [0], [1], [0, 0, 1, 1], [], []>} : vector<16x8xbf16>, vector<8x8xbf16>, vector<16x8xf32> -> vector<16x8xf32>
    %c0_8 = arith.constant 0 : index
    %c0_9 = arith.constant 0 : index
    %12 = vector.load %arg5[%c0_8, %c0_9] : memref<1x8xf32, #tpu.memory_space<vmem>>, vector<1x8xf32>
    %13 = vector.broadcast %12 : vector<1x8xf32> to vector<16x8xf32>
    %14 = arith.addf %11, %13 : vector<16x8xf32>
    %cst_10 = arith.constant 0.000000e+00 : f32
    %15 = vector.broadcast %cst_10 : f32 to vector<16x8xf32>
    %16 = arith.maximumf %14, %15 : vector<16x8xf32>
    %c0_11 = arith.constant 0 : index
    %c0_12 = arith.constant 0 : index
    %17 = vector.load %arg6[%c0_11, %c0_12] : memref<16x8xf32, #tpu.memory_space<vmem>>, vector<16x8xf32>
    tpu.vector_store %arg6[%c0_11, %c0_12], %16 {strides = array<i32>} : memref<16x8xf32, #tpu.memory_space<vmem>>, vector<16x8xf32>,
    return
  }
  func.func @transform_0(%arg0: i32) -> (i32, i32) {
    %c0_i32 = arith.constant 0 : i32
    %c0_i32_0 = arith.constant 0 : i32
    return %arg0, %c0_i32 : i32, i32
  }
  func.func @transform_1(%arg0: i32) -> (i32, i32) {
    %c0_i32 = arith.constant 0 : i32
    %c0_i32_0 = arith.constant 0 : i32
    %c0_i32_1 = arith.constant 0 : i32
    return %c0_i32, %c0_i32_0 : i32, i32
  }
  func.func @transform_2(%arg0: i32) -> (i32, i32) {
    %c0_i32 = arith.constant 0 : i32
    %c0_i32_0 = arith.constant 0 : i32
    %c0_i32_1 = arith.constant 0 : i32
    return %c0_i32, %c0_i32_0 : i32, i32
  }
  func.func @transform_3(%arg0: i32) -> (i32, i32) {
    %c0_i32 = arith.constant 0 : i32
    %c0_i32_0 = arith.constant 0 : i32
    %c0_i32_1 = arith.constant 0 : i32
    return %c0_i32, %c0_i32_0 : i32, i32
  }
  func.func @transform_4(%arg0: i32) -> (i32, i32) {
    %c0_i32 = arith.constant 0 : i32
    %c0_i32_0 = arith.constant 0 : i32
    %c0_i32_1 = arith.constant 0 : i32
    return %c0_i32, %c0_i32_0 : i32, i32
  }
  func.func @transform_5(%arg0: i32) -> (i32, i32) {
    %c0_i32 = arith.constant 0 : i32
    %c0_i32_0 = arith.constant 0 : i32
    return %arg0, %c0_i32 : i32, i32
  }
}

module attributes {stable_mosaic.version = 11 : i64} {
  func.func @_mm_post_relu_kernel(%arg0: i32, %arg1: memref<16x54xbf16, #tpu.memory_space<vmem>>, %arg2: memref<54x2xbf16, #tpu.memory_space<vmem>>, %arg3: memref<1x2xf32, #tpu.memory_space<vmem>>, %arg4: memref<16x2xf32, #tpu.memory_space<vmem>>) attributes {dimension_semantics = [#tpu.dimension_semantics<parallel>], iteration_bounds = array<i64: 1>, scalar_prefetch = 0 : i64, scratch_operands = 0 : i64, tpu.core_type = #tpu.core_type<tc>, window_params = [{transform_indices = @transform_0, window_bounds = array<i64: 16, 54>}, {pipeline_mode = #tpu.pipeline_mode<synchronous>, transform_indices = @transform_1, window_bounds = array<i64: 54, 2>}, {pipeline_mode = #tpu.pipeline_mode<synchronous>, transform_indices = @transform_2, window_bounds = array<i64: 1, 2>}, {transform_indices = @transform_3, window_bounds = array<i64: 16, 2>}]} {
    %c0 = arith.constant 0 : index
    %c0_0 = arith.constant 0 : index
    %0 = vector.load %arg1[%c0, %c0_0] : memref<16x54xbf16, #tpu.memory_space<vmem>>, vector<16x54xbf16>
    %c0_1 = arith.constant 0 : index
    %c0_2 = arith.constant 0 : index
    %1 = vector.load %arg2[%c0_1, %c0_2] : memref<54x2xbf16, #tpu.memory_space<vmem>>, vector<54x2xbf16>
    %cst = arith.constant dense<0.000000e+00> : vector<16x2xf32>
    %2 = tpu.matmul %0, %1, %cst {dimension_numbers = #tpu.dot_dimension_numbers<[1], [0], [0], [1], [0, 0, 1, 1], [], []>} : vector<16x54xbf16>, vector<54x2xbf16>, vector<16x2xf32> -> vector<16x2xf32>
    %c0_3 = arith.constant 0 : index
    %c0_4 = arith.constant 0 : index
    %3 = vector.load %arg3[%c0_3, %c0_4] : memref<1x2xf32, #tpu.memory_space<vmem>>, vector<1x2xf32>
    %4 = vector.broadcast %3 : vector<1x2xf32> to vector<16x2xf32>
    %5 = arith.addf %2, %4 : vector<16x2xf32>
    %cst_5 = arith.constant 0.000000e+00 : f32
    %6 = vector.broadcast %cst_5 : f32 to vector<16x2xf32>
    %7 = arith.maximumf %5, %6 : vector<16x2xf32>
    %c0_6 = arith.constant 0 : index
    %c0_7 = arith.constant 0 : index
    %8 = vector.load %arg4[%c0_6, %c0_7] : memref<16x2xf32, #tpu.memory_space<vmem>>, vector<16x2xf32>
    tpu.vector_store %arg4[%c0_6, %c0_7], %7 {strides = array<i32>} : memref<16x2xf32, #tpu.memory_space<vmem>>, vector<16x2xf32>,
    return
  }
  func.func @transform_0(%arg0: i32) -> (i32, i32) {
    %c0_i32 = arith.constant 0 : i32
    %c0_i32_0 = arith.constant 0 : i32
    return %arg0, %c0_i32 : i32, i32
  }
  func.func @transform_1(%arg0: i32) -> (i32, i32) {
    %c0_i32 = arith.constant 0 : i32
    %c0_i32_0 = arith.constant 0 : i32
    %c0_i32_1 = arith.constant 0 : i32
    return %c0_i32, %c0_i32_0 : i32, i32
  }
  func.func @transform_2(%arg0: i32) -> (i32, i32) {
    %c0_i32 = arith.constant 0 : i32
    %c0_i32_0 = arith.constant 0 : i32
    %c0_i32_1 = arith.constant 0 : i32
    return %c0_i32, %c0_i32_0 : i32, i32
  }
  func.func @transform_3(%arg0: i32) -> (i32, i32) {
    %c0_i32 = arith.constant 0 : i32
    %c0_i32_0 = arith.constant 0 : i32
    return %arg0, %c0_i32 : i32, i32
  }
}

module attributes {stable_mosaic.version = 11 : i64} {
  func.func @_mm_residual_kernel(%arg0: i32, %arg1: memref<16x2xf32, #tpu.memory_space<vmem>>, %arg2: memref<2x8xbf16, #tpu.memory_space<vmem>>, %arg3: memref<16x8xf32, #tpu.memory_space<vmem>>, %arg4: memref<16x8xf32, #tpu.memory_space<vmem>>) attributes {dimension_semantics = [#tpu.dimension_semantics<parallel>], iteration_bounds = array<i64: 1>, scalar_prefetch = 0 : i64, scratch_operands = 0 : i64, tpu.core_type = #tpu.core_type<tc>, window_params = [{transform_indices = @transform_0, window_bounds = array<i64: 16, 2>}, {pipeline_mode = #tpu.pipeline_mode<synchronous>, transform_indices = @transform_1, window_bounds = array<i64: 2, 8>}, {transform_indices = @transform_2, window_bounds = array<i64: 16, 8>}, {transform_indices = @transform_3, window_bounds = array<i64: 16, 8>}]} {
    %c0 = arith.constant 0 : index
    %c0_0 = arith.constant 0 : index
    %0 = vector.load %arg1[%c0, %c0_0] : memref<16x2xf32, #tpu.memory_space<vmem>>, vector<16x2xf32>
    %1 = arith.truncf %0 : vector<16x2xf32> to vector<16x2xbf16>
    %c0_1 = arith.constant 0 : index
    %c0_2 = arith.constant 0 : index
    %2 = vector.load %arg2[%c0_1, %c0_2] : memref<2x8xbf16, #tpu.memory_space<vmem>>, vector<2x8xbf16>
    %cst = arith.constant dense<0.000000e+00> : vector<16x8xf32>
    %3 = tpu.matmul %1, %2, %cst {dimension_numbers = #tpu.dot_dimension_numbers<[1], [0], [0], [1], [0, 0, 1, 1], [], []>} : vector<16x2xbf16>, vector<2x8xbf16>, vector<16x8xf32> -> vector<16x8xf32>
    %c0_3 = arith.constant 0 : index
    %c0_4 = arith.constant 0 : index
    %4 = vector.load %arg3[%c0_3, %c0_4] : memref<16x8xf32, #tpu.memory_space<vmem>>, vector<16x8xf32>
    %5 = arith.addf %3, %4 : vector<16x8xf32>
    %c0_5 = arith.constant 0 : index
    %c0_6 = arith.constant 0 : index
    %6 = vector.load %arg4[%c0_5, %c0_6] : memref<16x8xf32, #tpu.memory_space<vmem>>, vector<16x8xf32>
    tpu.vector_store %arg4[%c0_5, %c0_6], %5 {strides = array<i32>} : memref<16x8xf32, #tpu.memory_space<vmem>>, vector<16x8xf32>,
    return
  }
  func.func @transform_0(%arg0: i32) -> (i32, i32) {
    %c0_i32 = arith.constant 0 : i32
    %c0_i32_0 = arith.constant 0 : i32
    return %arg0, %c0_i32 : i32, i32
  }
  func.func @transform_1(%arg0: i32) -> (i32, i32) {
    %c0_i32 = arith.constant 0 : i32
    %c0_i32_0 = arith.constant 0 : i32
    %c0_i32_1 = arith.constant 0 : i32
    return %c0_i32, %c0_i32_0 : i32, i32
  }
  func.func @transform_2(%arg0: i32) -> (i32, i32) {
    %c0_i32 = arith.constant 0 : i32
    %c0_i32_0 = arith.constant 0 : i32
    return %arg0, %c0_i32 : i32, i32
  }
  func.func @transform_3(%arg0: i32) -> (i32, i32) {
    %c0_i32 = arith.constant 0 : i32
    %c0_i32_0 = arith.constant 0 : i32
    return %arg0, %c0_i32 : i32, i32
  }
}

module attributes {stable_mosaic.version = 11 : i64} {
  func.func @_mm_post_relu_kernel(%arg0: i32, %arg1: memref<2x64xf32, #tpu.memory_space<vmem>>, %arg2: memref<64x16xbf16, #tpu.memory_space<vmem>>, %arg3: memref<1x16xf32, #tpu.memory_space<vmem>>, %arg4: memref<2x16xf32, #tpu.memory_space<vmem>>) attributes {dimension_semantics = [#tpu.dimension_semantics<parallel>], iteration_bounds = array<i64: 1>, scalar_prefetch = 0 : i64, scratch_operands = 0 : i64, tpu.core_type = #tpu.core_type<tc>, window_params = [{transform_indices = @transform_0, window_bounds = array<i64: 2, 64>}, {pipeline_mode = #tpu.pipeline_mode<synchronous>, transform_indices = @transform_1, window_bounds = array<i64: 64, 16>}, {pipeline_mode = #tpu.pipeline_mode<synchronous>, transform_indices = @transform_2, window_bounds = array<i64: 1, 16>}, {transform_indices = @transform_3, window_bounds = array<i64: 2, 16>}]} {
    %c0 = arith.constant 0 : index
    %c0_0 = arith.constant 0 : index
    %0 = vector.load %arg1[%c0, %c0_0] : memref<2x64xf32, #tpu.memory_space<vmem>>, vector<2x64xf32>
    %1 = arith.truncf %0 : vector<2x64xf32> to vector<2x64xbf16>
    %c0_1 = arith.constant 0 : index
    %c0_2 = arith.constant 0 : index
    %2 = vector.load %arg2[%c0_1, %c0_2] : memref<64x16xbf16, #tpu.memory_space<vmem>>, vector<64x16xbf16>
    %cst = arith.constant dense<0.000000e+00> : vector<2x16xf32>
    %3 = tpu.matmul %1, %2, %cst {dimension_numbers = #tpu.dot_dimension_numbers<[1], [0], [0], [1], [0, 0, 1, 1], [], []>} : vector<2x64xbf16>, vector<64x16xbf16>, vector<2x16xf32> -> vector<2x16xf32>
    %c0_3 = arith.constant 0 : index
    %c0_4 = arith.constant 0 : index
    %4 = vector.load %arg3[%c0_3, %c0_4] : memref<1x16xf32, #tpu.memory_space<vmem>>, vector<1x16xf32>
    %5 = vector.broadcast %4 : vector<1x16xf32> to vector<2x16xf32>
    %6 = arith.addf %3, %5 : vector<2x16xf32>
    %cst_5 = arith.constant 0.000000e+00 : f32
    %7 = vector.broadcast %cst_5 : f32 to vector<2x16xf32>
    %8 = arith.maximumf %6, %7 : vector<2x16xf32>
    %c0_6 = arith.constant 0 : index
    %c0_7 = arith.constant 0 : index
    %9 = vector.load %arg4[%c0_6, %c0_7] : memref<2x16xf32, #tpu.memory_space<vmem>>, vector<2x16xf32>
    tpu.vector_store %arg4[%c0_6, %c0_7], %8 {strides = array<i32>} : memref<2x16xf32, #tpu.memory_space<vmem>>, vector<2x16xf32>,
    return
  }
  func.func @transform_0(%arg0: i32) -> (i32, i32) {
    %c0_i32 = arith.constant 0 : i32
    %c0_i32_0 = arith.constant 0 : i32
    return %arg0, %c0_i32 : i32, i32
  }
  func.func @transform_1(%arg0: i32) -> (i32, i32) {
    %c0_i32 = arith.constant 0 : i32
    %c0_i32_0 = arith.constant 0 : i32
    %c0_i32_1 = arith.constant 0 : i32
    return %c0_i32, %c0_i32_0 : i32, i32
  }
  func.func @transform_2(%arg0: i32) -> (i32, i32) {
    %c0_i32 = arith.constant 0 : i32
    %c0_i32_0 = arith.constant 0 : i32
    %c0_i32_1 = arith.constant 0 : i32
    return %c0_i32, %c0_i32_0 : i32, i32
  }
  func.func @transform_3(%arg0: i32) -> (i32, i32) {
    %c0_i32 = arith.constant 0 : i32
    %c0_i32_0 = arith.constant 0 : i32
    return %arg0, %c0_i32 : i32, i32
  }
}

module attributes {stable_mosaic.version = 11 : i64} {
  func.func @_mm_softmax_kernel(%arg0: i32, %arg1: memref<2x16xf32, #tpu.memory_space<vmem>>, %arg2: memref<16x5xbf16, #tpu.memory_space<vmem>>, %arg3: memref<1x5xf32, #tpu.memory_space<vmem>>, %arg4: memref<2x5xf32, #tpu.memory_space<vmem>>) attributes {dimension_semantics = [#tpu.dimension_semantics<parallel>], iteration_bounds = array<i64: 1>, scalar_prefetch = 0 : i64, scratch_operands = 0 : i64, tpu.core_type = #tpu.core_type<tc>, window_params = [{transform_indices = @transform_0, window_bounds = array<i64: 2, 16>}, {pipeline_mode = #tpu.pipeline_mode<synchronous>, transform_indices = @transform_1, window_bounds = array<i64: 16, 5>}, {pipeline_mode = #tpu.pipeline_mode<synchronous>, transform_indices = @transform_2, window_bounds = array<i64: 1, 5>}, {transform_indices = @transform_3, window_bounds = array<i64: 2, 5>}]} {
    %c0 = arith.constant 0 : index
    %c0_0 = arith.constant 0 : index
    %0 = vector.load %arg1[%c0, %c0_0] : memref<2x16xf32, #tpu.memory_space<vmem>>, vector<2x16xf32>
    %1 = arith.truncf %0 : vector<2x16xf32> to vector<2x16xbf16>
    %c0_1 = arith.constant 0 : index
    %c0_2 = arith.constant 0 : index
    %2 = vector.load %arg2[%c0_1, %c0_2] : memref<16x5xbf16, #tpu.memory_space<vmem>>, vector<16x5xbf16>
    %cst = arith.constant dense<0.000000e+00> : vector<2x5xf32>
    %3 = tpu.matmul %1, %2, %cst {dimension_numbers = #tpu.dot_dimension_numbers<[1], [0], [0], [1], [0, 0, 1, 1], [], []>} : vector<2x16xbf16>, vector<16x5xbf16>, vector<2x5xf32> -> vector<2x5xf32>
    %c0_3 = arith.constant 0 : index
    %c0_4 = arith.constant 0 : index
    %4 = vector.load %arg3[%c0_3, %c0_4] : memref<1x5xf32, #tpu.memory_space<vmem>>, vector<1x5xf32>
    %5 = vector.broadcast %4 : vector<1x5xf32> to vector<2x5xf32>
    %6 = arith.addf %3, %5 : vector<2x5xf32>
    %cst_5 = arith.constant dense<0xFF800000> : vector<2xf32>
    %7 = vector.multi_reduction <maximumf>, %6, %cst_5 [1] : vector<2x5xf32> to vector<2xf32>
    %8 = vector.shape_cast %7 : vector<2xf32> to vector<2x1xf32>
    %9 = vector.broadcast %8 : vector<2x1xf32> to vector<2x5xf32>
    %10 = arith.subf %6, %9 : vector<2x5xf32>
    %11 = math.exp %10 : vector<2x5xf32>
    %cst_6 = arith.constant dense<0.000000e+00> : vector<2xf32>
    %12 = vector.multi_reduction <add>, %11, %cst_6 [1] : vector<2x5xf32> to vector<2xf32>
    %13 = vector.shape_cast %12 : vector<2xf32> to vector<2x1xf32>
    %14 = vector.broadcast %13 : vector<2x1xf32> to vector<2x5xf32>
    %15 = arith.divf %11, %14 : vector<2x5xf32>
    %c0_7 = arith.constant 0 : index
    %c0_8 = arith.constant 0 : index
    %16 = vector.load %arg4[%c0_7, %c0_8] : memref<2x5xf32, #tpu.memory_space<vmem>>, vector<2x5xf32>
    tpu.vector_store %arg4[%c0_7, %c0_8], %15 {strides = array<i32>} : memref<2x5xf32, #tpu.memory_space<vmem>>, vector<2x5xf32>,
    return
  }
  func.func @transform_0(%arg0: i32) -> (i32, i32) {
    %c0_i32 = arith.constant 0 : i32
    %c0_i32_0 = arith.constant 0 : i32
    return %arg0, %c0_i32 : i32, i32
  }
  func.func @transform_1(%arg0: i32) -> (i32, i32) {
    %c0_i32 = arith.constant 0 : i32
    %c0_i32_0 = arith.constant 0 : i32
    %c0_i32_1 = arith.constant 0 : i32
    return %c0_i32, %c0_i32_0 : i32, i32
  }
  func.func @transform_2(%arg0: i32) -> (i32, i32) {
    %c0_i32 = arith.constant 0 : i32
    %c0_i32_0 = arith.constant 0 : i32
    %c0_i32_1 = arith.constant 0 : i32
    return %c0_i32, %c0_i32_0 : i32, i32
  }
  func.func @transform_3(%arg0: i32) -> (i32, i32) {
    %c0_i32 = arith.constant 0 : i32
    %c0_i32_0 = arith.constant 0 : i32
    return %arg0, %c0_i32 : i32, i32
  }
}

</mosaic_0001>

<llo_original>
// kernel: cnn_attention_net_forward.81
$region0: #{cnn_attention_net_forward.81}
  #allocation0 [shape = 'u32[]', space=smem, size = 0x4, offset = 0x4, fixed_abs, tag = 'smem constant byte address 0x4 - core index']
  #allocation1 [shape = 'u32[144,128]{1,0:T(1,128)}', space=vmem, size = 0x12000, scoped, tag = 'internal scratch']
  #allocation2 [shape = 'f32[1,1]{1,0:T(1,128)S(1)}', space=vmem, size = 0x200, scoped, tag = 'scoped memory for cnn_attention_net_forward.81']
  %s0 = inlined_call_operand.vmem [shape: f32[128,4], index: 0, kind: input, shape index: {}]
  %s1 = inlined_call_operand.vmem [shape: f32[1,4], index: 1, kind: input, shape index: {}]
  %s2 = inlined_call_operand.vmem [shape: f32[1,4], index: 2, kind: input, shape index: {}]
  %s3 = inlined_call_operand.vmem [shape: bf16[4,1], index: 3, kind: input, shape index: {}]
  %s4 = inlined_call_operand.<no memory space> [shape: f32[1,1], index: 4, kind: input, shape index: {}]
  %s5 = inlined_call_operand.vmem [shape: f32[128,1], index: 5, kind: output, shape index: {}]
  %s6 = sld [smem:[#allocation0]]
  $region30: #{cnn_attention_net_forward.81} parent=0
    _
  %s8 = ssub.s32 1, %s6
  %s9 = scalar_select 0, %s8, %s6
  %v10 = vstv %s4
  %11 = vst [vmem:[#allocation2] sm:$0x1] %v10
  // Predicated region
  $region2: #{cnn_attention_net_forward.81} parent=0 // pred_check
    _
  $region3: #{cnn_attention_net_forward.81} parent=0 // pred_check_branch
    %13 = sbr.rel (0) target = $region5
  $region4: #{cnn_attention_net_forward.81} parent=0 // pred_region
    _
  $region5: #{cnn_attention_net_forward.81} parent=0 // pred_fallthru
    _
  // Predicated region
  $region6: #{cnn_attention_net_forward.81} parent=0 // pred_check
    _
  $region7: #{cnn_attention_net_forward.81} parent=0 // pred_check_branch
    %15 = sbr.rel (0) target = $region9
  $region8: #{cnn_attention_net_forward.81} parent=0 // pred_region
    _
  $region9: #{cnn_attention_net_forward.81} parent=0 // pred_fallthru
    _
  // Predicated region
  $region10: #{cnn_attention_net_forward.81} parent=0 // pred_check
    _
  $region11: #{cnn_attention_net_forward.81} parent=0 // pred_check_branch
    %17 = sbr.rel (0) target = $region13
  $region12: #{cnn_attention_net_forward.81} parent=0 // pred_region
    _
  $region13: #{cnn_attention_net_forward.81} parent=0 // pred_fallthru
    _
  // Predicated region
  $region14: #{cnn_attention_net_forward.81} parent=0 // pred_check
    _
  $region15: #{cnn_attention_net_forward.81} parent=0 // pred_check_branch
    %19 = sbr.rel (0) target = $region17
  $region16: #{cnn_attention_net_forward.81} parent=0 // pred_region
    _
  $region17: #{cnn_attention_net_forward.81} parent=0 // pred_fallthru
    _
  // Predicated region
  $region18: #{cnn_attention_net_forward.81} parent=0 // pred_check
    _
  $region19: #{cnn_attention_net_forward.81} parent=0 // pred_check_branch
    %21 = sbr.rel (0) target = $region21
  $region20: #{cnn_attention_net_forward.81} parent=0 // pred_region
    _
  $region21: #{cnn_attention_net_forward.81} parent=0 // pred_fallthru
    _
  %v23 = vld [vmem:[%s0] sm:$0xff]
  %v24 = vld [vmem:[%s0 + $0x8] sm:$0xff]
  %v25 = vld [vmem:[%s0 + $0x10] sm:$0xff]
  %v26 = vld [vmem:[%s0 + $0x18] sm:$0xff]
  %v27 = vld [vmem:[%s0 + $0x20] sm:$0xff]
  %v28 = vld [vmem:[%s0 + $0x28] sm:$0xff]
  %v29 = vld [vmem:[%s0 + $0x30] sm:$0xff]
  %v30 = vld [vmem:[%s0 + $0x38] sm:$0xff]
  %v31 = vld [vmem:[%s0 + $0x40] sm:$0xff]
  %v32 = vld [vmem:[%s0 + $0x48] sm:$0xff]
  %v33 = vld [vmem:[%s0 + $0x50] sm:$0xff]
  %v34 = vld [vmem:[%s0 + $0x58] sm:$0xff]
  %v35 = vld [vmem:[%s0 + $0x60] sm:$0xff]
  %v36 = vld [vmem:[%s0 + $0x68] sm:$0xff]
  %v37 = vld [vmem:[%s0 + $0x70] sm:$0xff]
  %v38 = vld [vmem:[%s0 + $0x78] sm:$0xff]
  %v39 = vld [vmem:[%s1] sm:$0x1]
  %v41 = vlaneseq
  %v42 = vshrl.u32 %v41, 7
  %v43 = vsub.s32 0, %v42
  %v44 = vrot.slane %v39, %v43
  %v46 = vmul.f32 %v23, %v44
  %v47 = vmul.f32 %v24, %v44
  %v48 = vmul.f32 %v25, %v44
  %v49 = vmul.f32 %v26, %v44
  %v50 = vmul.f32 %v27, %v44
  %v51 = vmul.f32 %v28, %v44
  %v52 = vmul.f32 %v29, %v44
  %v53 = vmul.f32 %v30, %v44
  %v54 = vmul.f32 %v31, %v44
  %v55 = vmul.f32 %v32, %v44
  %v56 = vmul.f32 %v33, %v44
  %v57 = vmul.f32 %v34, %v44
  %v58 = vmul.f32 %v35, %v44
  %v59 = vmul.f32 %v36, %v44
  %v60 = vmul.f32 %v37, %v44
  %v61 = vmul.f32 %v38, %v44
  %v62 = vld [vmem:[%s2] sm:$0x1]
  %v64 = vlaneseq
  %v65 = vshrl.u32 %v64, 7
  %v66 = vsub.s32 0, %v65
  %v67 = vrot.slane %v62, %v66
  %v69 = vadd.f32 %v46, %v67
  %v70 = vadd.f32 %v47, %v67
  %v71 = vadd.f32 %v48, %v67
  %v72 = vadd.f32 %v49, %v67
  %v73 = vadd.f32 %v50, %v67
  %v74 = vadd.f32 %v51, %v67
  %v75 = vadd.f32 %v52, %v67
  %v76 = vadd.f32 %v53, %v67
  %v77 = vadd.f32 %v54, %v67
  %v78 = vadd.f32 %v55, %v67
  %v79 = vadd.f32 %v56, %v67
  %v80 = vadd.f32 %v57, %v67
  %v81 = vadd.f32 %v58, %v67
  %v82 = vadd.f32 %v59, %v67
  %v83 = vadd.f32 %v60, %v67
  %v84 = vadd.f32 %v61, %v67
  %v85 = vmax.f32 %v69, 0.0
  %v86 = vmax.f32 %v70, 0.0
  %v87 = vmax.f32 %v71, 0.0
  %v88 = vmax.f32 %v72, 0.0
  %v89 = vmax.f32 %v73, 0.0
  %v90 = vmax.f32 %v74, 0.0
  %v91 = vmax.f32 %v75, 0.0
  %v92 = vmax.f32 %v76, 0.0
  %v93 = vmax.f32 %v77, 0.0
  %v94 = vmax.f32 %v78, 0.0
  %v95 = vmax.f32 %v79, 0.0
  %v96 = vmax.f32 %v80, 0.0
  %v97 = vmax.f32 %v81, 0.0
  %v98 = vmax.f32 %v82, 0.0
  %v99 = vmax.f32 %v83, 0.0
  %v100 = vmax.f32 %v84, 0.0
  %v101 = vpack.c.bf16 %v86, %v85
  %v102 = vpack.c.bf16 %v88, %v87
  %v103 = vpack.c.bf16 %v90, %v89
  %v104 = vpack.c.bf16 %v92, %v91
  %v105 = vpack.c.bf16 %v94, %v93
  %v106 = vpack.c.bf16 %v96, %v95
  %v107 = vpack.c.bf16 %v98, %v97
  %v108 = vpack.c.bf16 %v100, %v99
  %v109 = vld [vmem:[%s3] sm:$0x3]
  %v110 = vld [vmem:[#allocation2] sm:$0x1]
  %v112 = vlaneseq
  %v113 = vshrl.u32 %v112, 7
  %v114 = vsub.s32 0, %v113
  %v115 = vrot.slane %v110, %v114
  %vm117 = vcmask 31744
  %v119 = vsel %vm117, %v101, 0
  %v122 = vsel %vm117, %v102, 0
  %v125 = vsel %vm117, %v103, 0
  %v128 = vsel %vm117, %v104, 0
  %v131 = vsel %vm117, %v105, 0
  %v134 = vsel %vm117, %v106, 0
  %v137 = vsel %vm117, %v107, 0
  %v140 = vsel %vm117, %v108, 0
  %vm142 = vcmask 1041408
  %v144 = vsel %vm142, %v109, 0
  %146 = vmatprep.subr.bf16.mxu0 0
  %147 = vmatpush1.bf16.msra.mxu0 0
  %148 = vmatprep.subr.bf16.mxu0 0
  %149 = vmatpush1.bf16.msra.mxu0 0
  %150 = vmatprep.subr.bf16.mxu0 0
  %151 = vmatpush1.bf16.msra.mxu0 0
  %152 = vmatprep.subr.bf16.mxu0 0
  %153 = vmatpush1.bf16.msra.mxu0 0
  %154 = vmatprep.subr.bf16.mxu0 0
  %155 = vmatpush1.bf16.msra.mxu0 0
  %156 = vmatprep.subr.bf16.mxu0 0
  %157 = vmatpush1.bf16.msra.mxu0 0
  %158 = vmatprep.subr.bf16.mxu0 0
  %159 = vmatpush1.bf16.msra.mxu0 0
  %160 = vmatprep.subr.bf16.mxu0 0
  %161 = vmatpush1.bf16.msra.mxu0 %v144
  %162 = vmatprep.subr.bf16.mxu0 0
  %163 = vmatpush2.bf16.msra.mxu0 0
  %164 = vmatprep.subr.bf16.mxu0 0
  %165 = vmatpush2.bf16.msra.mxu0 0
  %166 = vmatprep.subr.bf16.mxu0 0
  %167 = vmatpush2.bf16.msra.mxu0 0
  %168 = vmatprep.subr.bf16.mxu0 0
  %169 = vmatpush2.bf16.msra.mxu0 0
  %170 = vmatprep.subr.bf16.mxu0 0
  %171 = vmatpush2.bf16.msra.mxu0 0
  %172 = vmatprep.subr.bf16.mxu0 0
  %173 = vmatpush2.bf16.msra.mxu0 0
  %174 = vmatprep.subr.bf16.mxu0 0
  %175 = vmatpush2.bf16.msra.mxu0 0
  %176 = vmatprep.subr.bf16.mxu0 0
  %177 = vmatpush2.bf16.msra.mxu0 0
  %178 = vmatprep.mubr.bf16.mxu0 0
  %179 = vmatmul.mubr.bf16.gmra.mxu0 %v119
  %v180 = vpop.f32.mrf.mxu0
  %v181 = vadd.f32 %v115, %v180
  %v182 = vpop.f32.mrf.mxu0
  %v183 = vpop.f32.mrf.mxu0
  %v184 = vadd.f32 %v115, %v183
  %v185 = vpop.f32.mrf.mxu0
  %186 = vmatprep.mubr.bf16.mxu0 0
  %187 = vmatmul.mubr.bf16.gmra.mxu0 %v122
  %v188 = vpop.f32.mrf.mxu0
  %v189 = vadd.f32 %v115, %v188
  %v190 = vpop.f32.mrf.mxu0
  %v191 = vpop.f32.mrf.mxu0
  %v192 = vadd.f32 %v115, %v191
  %v193 = vpop.f32.mrf.mxu0
  %194 = vmatprep.mubr.bf16.mxu0 0
  %195 = vmatmul.mubr.bf16.gmra.mxu0 %v125
  %v196 = vpop.f32.mrf.mxu0
  %v197 = vadd.f32 %v115, %v196
  %v198 = vpop.f32.mrf.mxu0
  %v199 = vpop.f32.mrf.mxu0
  %v200 = vadd.f32 %v115, %v199
  %v201 = vpop.f32.mrf.mxu0
  %202 = vmatprep.mubr.bf16.mxu0 0
  %203 = vmatmul.mubr.bf16.gmra.mxu0 %v128
  %v204 = vpop.f32.mrf.mxu0
  %v205 = vadd.f32 %v115, %v204
  %v206 = vpop.f32.mrf.mxu0
  %v207 = vpop.f32.mrf.mxu0
  %v208 = vadd.f32 %v115, %v207
  %v209 = vpop.f32.mrf.mxu0
  %210 = vmatprep.mubr.bf16.mxu0 0
  %211 = vmatmul.mubr.bf16.gmra.mxu0 %v131
  %v212 = vpop.f32.mrf.mxu0
  %v213 = vadd.f32 %v115, %v212
  %v214 = vpop.f32.mrf.mxu0
  %v215 = vpop.f32.mrf.mxu0
  %v216 = vadd.f32 %v115, %v215
  %v217 = vpop.f32.mrf.mxu0
  %218 = vmatprep.mubr.bf16.mxu0 0
  %219 = vmatmul.mubr.bf16.gmra.mxu0 %v134
  %v220 = vpop.f32.mrf.mxu0
  %v221 = vadd.f32 %v115, %v220
  %v222 = vpop.f32.mrf.mxu0
  %v223 = vpop.f32.mrf.mxu0
  %v224 = vadd.f32 %v115, %v223
  %v225 = vpop.f32.mrf.mxu0
  %226 = vmatprep.mubr.bf16.mxu0 0
  %227 = vmatmul.mubr.bf16.gmra.mxu0 %v137
  %v228 = vpop.f32.mrf.mxu0
  %v229 = vadd.f32 %v115, %v228
  %v230 = vpop.f32.mrf.mxu0
  %v231 = vpop.f32.mrf.mxu0
  %v232 = vadd.f32 %v115, %v231
  %v233 = vpop.f32.mrf.mxu0
  %234 = vmatprep.mubr.bf16.mxu0 0
  %235 = vmatmul.mubr.bf16.gmra.mxu0 %v140
  %v236 = vpop.f32.mrf.mxu0
  %v237 = vadd.f32 %v115, %v236
  %v238 = vpop.f32.mrf.mxu0
  %v239 = vpop.f32.mrf.mxu0
  %v240 = vadd.f32 %v115, %v239
  %v241 = vpop.f32.mrf.mxu0
  %242 = vdwg.mxu0
  %v243 = vmax.f32 %v181, 0.0
  %v244 = vmax.f32 %v184, 0.0
  %v245 = vmax.f32 %v189, 0.0
  %v246 = vmax.f32 %v192, 0.0
  %v247 = vmax.f32 %v197, 0.0
  %v248 = vmax.f32 %v200, 0.0
  %v249 = vmax.f32 %v205, 0.0
  %v250 = vmax.f32 %v208, 0.0
  %v251 = vmax.f32 %v213, 0.0
  %v252 = vmax.f32 %v216, 0.0
  %v253 = vmax.f32 %v221, 0.0
  %v254 = vmax.f32 %v224, 0.0
  %v255 = vmax.f32 %v229, 0.0
  %v256 = vmax.f32 %v232, 0.0
  %v257 = vmax.f32 %v237, 0.0
  %v258 = vmax.f32 %v240, 0.0
  %vm259 = vcmask 7168
  %260 = vst.msk [vmem:[%s5] sm:$0xff] %vm259, %v243
  %261 = vst.msk [vmem:[%s5 + $0x8] sm:$0xff] %vm259, %v244
  %262 = vst.msk [vmem:[%s5 + $0x10] sm:$0xff] %vm259, %v245
  %263 = vst.msk [vmem:[%s5 + $0x18] sm:$0xff] %vm259, %v246
  %264 = vst.msk [vmem:[%s5 + $0x20] sm:$0xff] %vm259, %v247
  %265 = vst.msk [vmem:[%s5 + $0x28] sm:$0xff] %vm259, %v248
  %266 = vst.msk [vmem:[%s5 + $0x30] sm:$0xff] %vm259, %v249
  %267 = vst.msk [vmem:[%s5 + $0x38] sm:$0xff] %vm259, %v250
  %268 = vst.msk [vmem:[%s5 + $0x40] sm:$0xff] %vm259, %v251
  %269 = vst.msk [vmem:[%s5 + $0x48] sm:$0xff] %vm259, %v252
  %270 = vst.msk [vmem:[%s5 + $0x50] sm:$0xff] %vm259, %v253
  %271 = vst.msk [vmem:[%s5 + $0x58] sm:$0xff] %vm259, %v254
  %272 = vst.msk [vmem:[%s5 + $0x60] sm:$0xff] %vm259, %v255
  %273 = vst.msk [vmem:[%s5 + $0x68] sm:$0xff] %vm259, %v256
  %274 = vst.msk [vmem:[%s5 + $0x70] sm:$0xff] %vm259, %v257
  %275 = vst.msk [vmem:[%s5 + $0x78] sm:$0xff] %vm259, %v258
  // Predicated region
  $region22: #{cnn_attention_net_forward.81} parent=0 // pred_check
    _
  $region23: #{cnn_attention_net_forward.81} parent=0 // pred_check_branch
    %277 = sbr.rel (0) target = $region25
  $region24: #{cnn_attention_net_forward.81} parent=0 // pred_region
    _
  $region25: #{cnn_attention_net_forward.81} parent=0 // pred_fallthru
    _
  // Predicated region
  $region26: #{cnn_attention_net_forward.81} parent=0 // pred_check
    _
  $region27: #{cnn_attention_net_forward.81} parent=0 // pred_check_branch
    %279 = sbr.rel (0) target = $region29
  $region28: #{cnn_attention_net_forward.81} parent=0 // pred_region
    _
  $region29: #{cnn_attention_net_forward.81} parent=0 // pred_fallthru
    _

// kernel: cnn_attention_net_forward.80
$region0: #{cnn_attention_net_forward.80}
  #allocation0 [shape = 'u32[]', space=smem, size = 0x4, offset = 0x4, fixed_abs, tag = 'smem constant byte address 0x4 - core index']
  #allocation1 [shape = 'u32[144,128]{1,0:T(1,128)}', space=vmem, size = 0x12000, scoped, tag = 'internal scratch']
  %s0 = inlined_call_operand.vmem [shape: bf16[512,81], index: 0, kind: input, shape index: {}]
  %s1 = inlined_call_operand.vmem [shape: bf16[81,4], index: 1, kind: input, shape index: {}]
  %s2 = inlined_call_operand.vmem [shape: f32[1,4], index: 2, kind: input, shape index: {}]
  %s3 = inlined_call_operand.vmem [shape: f32[512,4], index: 3, kind: output, shape index: {}]
  %s4 = sld [smem:[#allocation0]]
  $region22: #{cnn_attention_net_forward.80} parent=0
    _
  %s6 = ssub.s32 1, %s4
  %s7 = scalar_select 0, %s6, %s4
  // Predicated region
  $region2: #{cnn_attention_net_forward.80} parent=0 // pred_check
    _
  $region3: #{cnn_attention_net_forward.80} parent=0 // pred_check_branch
    %9 = sbr.rel (0) target = $region5
  $region4: #{cnn_attention_net_forward.80} parent=0 // pred_region
    _
  $region5: #{cnn_attention_net_forward.80} parent=0 // pred_fallthru
    _
  // Predicated region
  $region6: #{cnn_attention_net_forward.80} parent=0 // pred_check
    _
  $region7: #{cnn_attention_net_forward.80} parent=0 // pred_check_branch
    %11 = sbr.rel (0) target = $region9
  $region8: #{cnn_attention_net_forward.80} parent=0 // pred_region
    _
  $region9: #{cnn_attention_net_forward.80} parent=0 // pred_fallthru
    _
  // Predicated region
  $region10: #{cnn_attention_net_forward.80} parent=0 // pred_check
    _
  $region11: #{cnn_attention_net_forward.80} parent=0 // pred_check_branch
    %13 = sbr.rel (0) target = $region13
  $region12: #{cnn_attention_net_forward.80} parent=0 // pred_region
    _
  $region13: #{cnn_attention_net_forward.80} parent=0 // pred_fallthru
    _
  %v15 = vld [vmem:[%s0] sm:$0xf]
  %v16 = vld [vmem:[%s0 + $0x4] sm:$0xf]
  %v17 = vld [vmem:[%s0 + $0x8] sm:$0xf]
  %v18 = vld [vmem:[%s0 + $0xc] sm:$0xf]
  %v19 = vld [vmem:[%s0 + $0x10] sm:$0xf]
  %v20 = vld [vmem:[%s0 + $0x14] sm:$0xf]
  %v21 = vld [vmem:[%s0 + $0x18] sm:$0xf]
  %v22 = vld [vmem:[%s0 + $0x1c] sm:$0xf]
  %v23 = vld [vmem:[%s0 + $0x20] sm:$0xf]
  %v24 = vld [vmem:[%s0 + $0x24] sm:$0xf]
  %v25 = vld [vmem:[%s0 + $0x28] sm:$0xf]
  %v26 = vld [vmem:[%s0 + $0x2c] sm:$0xf]
  %v27 = vld [vmem:[%s0 + $0x30] sm:$0xf]
  %v28 = vld [vmem:[%s0 + $0x34] sm:$0xf]
  %v29 = vld [vmem:[%s0 + $0x38] sm:$0xf]
  %v30 = vld [vmem:[%s0 + $0x3c] sm:$0xf]
  %v31 = vld [vmem:[%s0 + $0x40] sm:$0xf]
  %v32 = vld [vmem:[%s0 + $0x44] sm:$0xf]
  %v33 = vld [vmem:[%s0 + $0x48] sm:$0xf]
  %v34 = vld [vmem:[%s0 + $0x4c] sm:$0xf]
  %v35 = vld [vmem:[%s0 + $0x50] sm:$0xf]
  %v36 = vld [vmem:[%s0 + $0x54] sm:$0xf]
  %v37 = vld [vmem:[%s0 + $0x58] sm:$0xf]
  %v38 = vld [vmem:[%s0 + $0x5c] sm:$0xf]
  %v39 = vld [vmem:[%s0 + $0x60] sm:$0xf]
  %v40 = vld [vmem:[%s0 + $0x64] sm:$0xf]
  %v41 = vld [vmem:[%s0 + $0x68] sm:$0xf]
  %v42 = vld [vmem:[%s0 + $0x6c] sm:$0xf]
  %v43 = vld [vmem:[%s0 + $0x70] sm:$0xf]
  %v44 = vld [vmem:[%s0 + $0x74] sm:$0xf]
  %v45 = vld [vmem:[%s0 + $0x78] sm:$0xf]
  %v46 = vld [vmem:[%s0 + $0x7c] sm:$0xf]
  %v47 = vld [vmem:[%s0 + $0x80] sm:$0xf]
  %v48 = vld [vmem:[%s0 + $0x84] sm:$0xf]
  %v49 = vld [vmem:[%s0 + $0x88] sm:$0xf]
  %v50 = vld [vmem:[%s0 + $0x8c] sm:$0xf]
  %v51 = vld [vmem:[%s0 + $0x90] sm:$0xf]
  %v52 = vld [vmem:[%s0 + $0x94] sm:$0xf]
  %v53 = vld [vmem:[%s0 + $0x98] sm:$0xf]
  %v54 = vld [vmem:[%s0 + $0x9c] sm:$0xf]
  %v55 = vld [vmem:[%s0 + $0xa0] sm:$0xf]
  %v56 = vld [vmem:[%s0 + $0xa4] sm:$0xf]
  %v57 = vld [vmem:[%s0 + $0xa8] sm:$0xf]
  %v58 = vld [vmem:[%s0 + $0xac] sm:$0xf]
  %v59 = vld [vmem:[%s0 + $0xb0] sm:$0xf]
  %v60 = vld [vmem:[%s0 + $0xb4] sm:$0xf]
  %v61 = vld [vmem:[%s0 + $0xb8] sm:$0xf]
  %v62 = vld [vmem:[%s0 + $0xbc] sm:$0xf]
  %v63 = vld [vmem:[%s0 + $0xc0] sm:$0xf]
  %v64 = vld [vmem:[%s0 + $0xc4] sm:$0xf]
  %v65 = vld [vmem:[%s0 + $0xc8] sm:$0xf]
  %v66 = vld [vmem:[%s0 + $0xcc] sm:$0xf]
  %v67 = vld [vmem:[%s0 + $0xd0] sm:$0xf]
  %v68 = vld [vmem:[%s0 + $0xd4] sm:$0xf]
  %v69 = vld [vmem:[%s0 + $0xd8] sm:$0xf]
  %v70 = vld [vmem:[%s0 + $0xdc] sm:$0xf]
  %v71 = vld [vmem:[%s0 + $0xe0] sm:$0xf]
  %v72 = vld [vmem:[%s0 + $0xe4] sm:$0xf]
  %v73 = vld [vmem:[%s0 + $0xe8] sm:$0xf]
  %v74 = vld [vmem:[%s0 + $0xec] sm:$0xf]
  %v75 = vld [vmem:[%s0 + $0xf0] sm:$0xf]
  %v76 = vld [vmem:[%s0 + $0xf4] sm:$0xf]
  %v77 = vld [vmem:[%s0 + $0xf8] sm:$0xf]
  %v78 = vld [vmem:[%s0 + $0xfc] sm:$0xf]
  %v79 = vld [vmem:[%s1] sm:$0xf]
  %v80 = vld [vmem:[%s1 + $0x4] sm:$0xf]
  %v81 = vld [vmem:[%s1 + $0x8] sm:$0xf]
  %v82 = vld [vmem:[%s1 + $0xc] sm:$0xf]
  %v83 = vld [vmem:[%s1 + $0x10] sm:$0xf]
  %v84 = vld [vmem:[%s1 + $0x14] sm:$0xf]
  %v85 = vld [vmem:[%s1 + $0x18] sm:$0xf]
  %v86 = vld [vmem:[%s1 + $0x1c] sm:$0xf]
  %v87 = vld [vmem:[%s1 + $0x20] sm:$0xf]
  %v88 = vld [vmem:[%s1 + $0x24] sm:$0xf]
  %v89 = vld [vmem:[%s1 + $0x28] sm:$0x1]
  %v90 = vld [vmem:[%s2] sm:$0x1]
  %v92 = vlaneseq
  %v93 = vshrl.u32 %v92, 7
  %v94 = vsub.s32 0, %v93
  %v95 = vrot.slane %v90, %v94
  %v161 = vunpack.c.l.b16 %v15
  %v162 = vunpack.c.l.b16 %v16
  %v163 = vunpack.c.l.b16 %v17
  %v164 = vunpack.c.l.b16 %v18
  %v165 = vunpack.c.l.b16 %v19
  %v166 = vunpack.c.l.b16 %v20
  %v167 = vunpack.c.l.b16 %v21
  %v168 = vunpack.c.l.b16 %v22
  %v169 = vunpack.c.l.b16 %v23
  %v170 = vunpack.c.l.b16 %v24
  %v171 = vunpack.c.l.b16 %v25
  %v172 = vunpack.c.l.b16 %v26
  %v173 = vunpack.c.l.b16 %v27
  %v174 = vunpack.c.l.b16 %v28
  %v175 = vunpack.c.l.b16 %v29
  %v176 = vunpack.c.l.b16 %v30
  %v177 = vunpack.c.l.b16 %v31
  %v178 = vunpack.c.l.b16 %v32
  %v179 = vunpack.c.l.b16 %v33
  %v180 = vunpack.c.l.b16 %v34
  %v181 = vunpack.c.l.b16 %v35
  %v182 = vunpack.c.l.b16 %v36
  %v183 = vunpack.c.l.b16 %v37
  %v184 = vunpack.c.l.b16 %v38
  %v185 = vunpack.c.l.b16 %v39
  %v186 = vunpack.c.l.b16 %v40
  %v187 = vunpack.c.l.b16 %v41
  %v188 = vunpack.c.l.b16 %v42
  %v189 = vunpack.c.l.b16 %v43
  %v190 = vunpack.c.l.b16 %v44
  %v191 = vunpack.c.l.b16 %v45
  %v192 = vunpack.c.l.b16 %v46
  %v193 = vunpack.c.l.b16 %v47
  %v194 = vunpack.c.l.b16 %v48
  %v195 = vunpack.c.l.b16 %v49
  %v196 = vunpack.c.l.b16 %v50
  %v197 = vunpack.c.l.b16 %v51
  %v198 = vunpack.c.l.b16 %v52
  %v199 = vunpack.c.l.b16 %v53
  %v200 = vunpack.c.l.b16 %v54
  %v201 = vunpack.c.l.b16 %v55
  %v202 = vunpack.c.l.b16 %v56
  %v203 = vunpack.c.l.b16 %v57
  %v204 = vunpack.c.l.b16 %v58
  %v205 = vunpack.c.l.b16 %v59
  %v206 = vunpack.c.l.b16 %v60
  %v207 = vunpack.c.l.b16 %v61
  %v208 = vunpack.c.l.b16 %v62
  %v209 = vunpack.c.l.b16 %v63
  %v210 = vunpack.c.l.b16 %v64
  %v211 = vunpack.c.l.b16 %v65
  %v212 = vunpack.c.l.b16 %v66
  %v213 = vunpack.c.l.b16 %v67
  %v214 = vunpack.c.l.b16 %v68
  %v215 = vunpack.c.l.b16 %v69
  %v216 = vunpack.c.l.b16 %v70
  %v217 = vunpack.c.l.b16 %v71
  %v218 = vunpack.c.l.b16 %v72
  %v219 = vunpack.c.l.b16 %v73
  %v220 = vunpack.c.l.b16 %v74
  %v221 = vunpack.c.l.b16 %v75
  %v222 = vunpack.c.l.b16 %v76
  %v223 = vunpack.c.l.b16 %v77
  %v224 = vunpack.c.l.b16 %v78
  %v225 = vpack.c.b16 %v162, %v161
  %v226 = vpack.c.b16 %v164, %v163
  %v227 = vpack.c.b16 %v166, %v165
  %v228 = vpack.c.b16 %v168, %v167
  %v229 = vpack.c.b16 %v170, %v169
  %v230 = vpack.c.b16 %v172, %v171
  %v231 = vpack.c.b16 %v174, %v173
  %v232 = vpack.c.b16 %v176, %v175
  %v233 = vpack.c.b16 %v178, %v177
  %v234 = vpack.c.b16 %v180, %v179
  %v235 = vpack.c.b16 %v182, %v181
  %v236 = vpack.c.b16 %v184, %v183
  %v237 = vpack.c.b16 %v186, %v185
  %v238 = vpack.c.b16 %v188, %v187
  %v239 = vpack.c.b16 %v190, %v189
  %v240 = vpack.c.b16 %v192, %v191
  %v241 = vpack.c.b16 %v194, %v193
  %v242 = vpack.c.b16 %v196, %v195
  %v243 = vpack.c.b16 %v198, %v197
  %v244 = vpack.c.b16 %v200, %v199
  %v245 = vpack.c.b16 %v202, %v201
  %v246 = vpack.c.b16 %v204, %v203
  %v247 = vpack.c.b16 %v206, %v205
  %v248 = vpack.c.b16 %v208, %v207
  %v249 = vpack.c.b16 %v210, %v209
  %v250 = vpack.c.b16 %v212, %v211
  %v251 = vpack.c.b16 %v214, %v213
  %v252 = vpack.c.b16 %v216, %v215
  %v253 = vpack.c.b16 %v218, %v217
  %v254 = vpack.c.b16 %v220, %v219
  %v255 = vpack.c.b16 %v222, %v221
  %v256 = vpack.c.b16 %v224, %v223
  %v268 = vunpack.c.l.b16 %v79
  %v269 = vunpack.c.l.b16 %v80
  %v270 = vunpack.c.l.b16 %v81
  %v271 = vunpack.c.l.b16 %v82
  %v272 = vunpack.c.l.b16 %v83
  %v273 = vunpack.c.l.b16 %v84
  %v274 = vunpack.c.l.b16 %v85
  %v275 = vunpack.c.l.b16 %v86
  %v276 = vunpack.c.l.b16 %v87
  %v277 = vunpack.c.l.b16 %v88
  %v278 = vunpack.c.l.b16 %v89
  %v279 = vpack.c.b16 %v269, %v268
  %v280 = vpack.c.b16 %v271, %v270
  %v281 = vpack.c.b16 %v273, %v272
  %v282 = vpack.c.b16 %v275, %v274
  %v283 = vpack.c.b16 %v277, %v276
  %v284 = vpack.c.b16 %v278, %v278
  %vm290 = vcmask 662528
  %v292 = vsel %vm290, %v225, 0
  %v295 = vsel %vm290, %v226, 0
  %v298 = vsel %vm290, %v227, 0
  %v301 = vsel %vm290, %v228, 0
  %v304 = vsel %vm290, %v229, 0
  %v307 = vsel %vm290, %v230, 0
  %v310 = vsel %vm290, %v231, 0
  %v313 = vsel %vm290, %v232, 0
  %v316 = vsel %vm290, %v233, 0
  %v319 = vsel %vm290, %v234, 0
  %v322 = vsel %vm290, %v235, 0
  %v325 = vsel %vm290, %v236, 0
  %v328 = vsel %vm290, %v237, 0
  %v331 = vsel %vm290, %v238, 0
  %v334 = vsel %vm290, %v239, 0
  %v337 = vsel %vm290, %v240, 0
  %v340 = vsel %vm290, %v241, 0
  %v343 = vsel %vm290, %v242, 0
  %v346 = vsel %vm290, %v243, 0
  %v349 = vsel %vm290, %v244, 0
  %v352 = vsel %vm290, %v245, 0
  %v355 = vsel %vm290, %v246, 0
  %v358 = vsel %vm290, %v247, 0
  %v361 = vsel %vm290, %v248, 0
  %v364 = vsel %vm290, %v249, 0
  %v367 = vsel %vm290, %v250, 0
  %v370 = vsel %vm290, %v251, 0
  %v373 = vsel %vm290, %v252, 0
  %v376 = vsel %vm290, %v253, 0
  %v379 = vsel %vm290, %v254, 0
  %v382 = vsel %vm290, %v255, 0
  %v385 = vsel %vm290, %v256, 0
  %vm387 = vcmask 1040384
  %v388 = vsel 0, 4294967295, 65535
  %v389 = vsel %vm387, %v388, 0
  %v391 = vand.u32 %v284, %v389
  %393 = vmatprep.subr.bf16.mxu0 0
  %394 = vmatpush1.bf16.msra.mxu0 0
  %395 = vmatprep.subr.bf16.mxu0 0
  %396 = vmatpush1.bf16.msra.mxu0 0
  %397 = vmatprep.subr.bf16.mxu0 0
  %398 = vmatpush1.bf16.msra.mxu0 %v391
  %399 = vmatprep.subr.bf16.mxu0 0
  %400 = vmatpush1.bf16.msra.mxu0 %v283
  %401 = vmatprep.subr.bf16.mxu0 0
  %402 = vmatpush1.bf16.msra.mxu0 %v282
  %403 = vmatprep.subr.bf16.mxu0 0
  %404 = vmatpush1.bf16.msra.mxu0 %v281
  %405 = vmatprep.subr.bf16.mxu0 0
  %406 = vmatpush1.bf16.msra.mxu0 %v280
  %407 = vmatprep.subr.bf16.mxu0 0
  %408 = vmatpush1.bf16.msra.mxu0 %v279
  %409 = vmatprep.subr.bf16.mxu0 0
  %410 = vmatpush2.bf16.msra.mxu0 0
  %411 = vmatprep.subr.bf16.mxu0 0
  %412 = vmatpush2.bf16.msra.mxu0 0
  %413 = vmatprep.subr.bf16.mxu0 0
  %414 = vmatpush2.bf16.msra.mxu0 0
  %415 = vmatprep.subr.bf16.mxu0 0
  %416 = vmatpush2.bf16.msra.mxu0 0
  %417 = vmatprep.subr.bf16.mxu0 0
  %418 = vmatpush2.bf16.msra.mxu0 0
  %419 = vmatprep.subr.bf16.mxu0 0
  %420 = vmatpush2.bf16.msra.mxu0 0
  %421 = vmatprep.subr.bf16.mxu0 0
  %422 = vmatpush2.bf16.msra.mxu0 0
  %423 = vmatprep.subr.bf16.mxu0 0
  %424 = vmatpush2.bf16.msra.mxu0 0
  %425 = vmatprep.mubr.bf16.mxu0 0
  %426 = vmatmul.mubr.bf16.gmra.mxu0 %v292
  %v427 = vpop.f32.mrf.mxu0
  %v428 = vadd.f32 %v95, %v427
  %v429 = vpop.f32.mrf.mxu0
  %v430 = vpop.f32.mrf.mxu0
  %v431 = vadd.f32 %v95, %v430
  %v432 = vpop.f32.mrf.mxu0
  %433 = vmatprep.mubr.bf16.mxu0 0
  %434 = vmatmul.mubr.bf16.gmra.mxu0 %v295
  %v435 = vpop.f32.mrf.mxu0
  %v436 = vadd.f32 %v95, %v435
  %v437 = vpop.f32.mrf.mxu0
  %v438 = vpop.f32.mrf.mxu0
  %v439 = vadd.f32 %v95, %v438
  %v440 = vpop.f32.mrf.mxu0
  %441 = vmatprep.mubr.bf16.mxu0 0
  %442 = vmatmul.mubr.bf16.gmra.mxu0 %v298
  %v443 = vpop.f32.mrf.mxu0
  %v444 = vadd.f32 %v95, %v443
  %v445 = vpop.f32.mrf.mxu0
  %v446 = vpop.f32.mrf.mxu0
  %v447 = vadd.f32 %v95, %v446
  %v448 = vpop.f32.mrf.mxu0
  %449 = vmatprep.mubr.bf16.mxu0 0
  %450 = vmatmul.mubr.bf16.gmra.mxu0 %v301
  %v451 = vpop.f32.mrf.mxu0
  %v452 = vadd.f32 %v95, %v451
  %v453 = vpop.f32.mrf.mxu0
  %v454 = vpop.f32.mrf.mxu0
  %v455 = vadd.f32 %v95, %v454
  %v456 = vpop.f32.mrf.mxu0
  %457 = vmatprep.mubr.bf16.mxu0 0
  %458 = vmatmul.mubr.bf16.gmra.mxu0 %v304
  %v459 = vpop.f32.mrf.mxu0
  %v460 = vadd.f32 %v95, %v459
  %v461 = vpop.f32.mrf.mxu0
  %v462 = vpop.f32.mrf.mxu0
  %v463 = vadd.f32 %v95, %v462
  %v464 = vpop.f32.mrf.mxu0
  %465 = vmatprep.mubr.bf16.mxu0 0
  %466 = vmatmul.mubr.bf16.gmra.mxu0 %v307
  %v467 = vpop.f32.mrf.mxu0
  %v468 = vadd.f32 %v95, %v467
  %v469 = vpop.f32.mrf.mxu0
  %v470 = vpop.f32.mrf.mxu0
  %v471 = vadd.f32 %v95, %v470
  %v472 = vpop.f32.mrf.mxu0
  %473 = vmatprep.mubr.bf16.mxu0 0
  %474 = vmatmul.mubr.bf16.gmra.mxu0 %v310
  %v475 = vpop.f32.mrf.mxu0
  %v476 = vadd.f32 %v95, %v475
  %v477 = vpop.f32.mrf.mxu0
  %v478 = vpop.f32.mrf.mxu0
  %v479 = vadd.f32 %v95, %v478
  %v480 = vpop.f32.mrf.mxu0
  %481 = vmatprep.mubr.bf16.mxu0 0
  %482 = vmatmul.mubr.bf16.gmra.mxu0 %v313
  %v483 = vpop.f32.mrf.mxu0
  %v484 = vadd.f32 %v95, %v483
  %v485 = vpop.f32.mrf.mxu0
  %v486 = vpop.f32.mrf.mxu0
  %v487 = vadd.f32 %v95, %v486
  %v488 = vpop.f32.mrf.mxu0
  %489 = vmatprep.mubr.bf16.mxu0 0
  %490 = vmatmul.mubr.bf16.gmra.mxu0 %v316
  %v491 = vpop.f32.mrf.mxu0
  %v492 = vadd.f32 %v95, %v491
  %v493 = vpop.f32.mrf.mxu0
  %v494 = vpop.f32.mrf.mxu0
  %v495 = vadd.f32 %v95, %v494
  %v496 = vpop.f32.mrf.mxu0
  %497 = vmatprep.mubr.bf16.mxu0 0
  %498 = vmatmul.mubr.bf16.gmra.mxu0 %v319
  %v499 = vpop.f32.mrf.mxu0
  %v500 = vadd.f32 %v95, %v499
  %v501 = vpop.f32.mrf.mxu0
  %v502 = vpop.f32.mrf.mxu0
  %v503 = vadd.f32 %v95, %v502
  %v504 = vpop.f32.mrf.mxu0
  %505 = vmatprep.mubr.bf16.mxu0 0
  %506 = vmatmul.mubr.bf16.gmra.mxu0 %v322
  %v507 = vpop.f32.mrf.mxu0
  %v508 = vadd.f32 %v95, %v507
  %v509 = vpop.f32.mrf.mxu0
  %v510 = vpop.f32.mrf.mxu0
  %v511 = vadd.f32 %v95, %v510
  %v512 = vpop.f32.mrf.mxu0
  %513 = vmatprep.mubr.bf16.mxu0 0
  %514 = vmatmul.mubr.bf16.gmra.mxu0 %v325
  %v515 = vpop.f32.mrf.mxu0
  %v516 = vadd.f32 %v95, %v515
  %v517 = vpop.f32.mrf.mxu0
  %v518 = vpop.f32.mrf.mxu0
  %v519 = vadd.f32 %v95, %v518
  %v520 = vpop.f32.mrf.mxu0
  %521 = vmatprep.mubr.bf16.mxu0 0
  %522 = vmatmul.mubr.bf16.gmra.mxu0 %v328
  %v523 = vpop.f32.mrf.mxu0
  %v524 = vadd.f32 %v95, %v523
  %v525 = vpop.f32.mrf.mxu0
  %v526 = vpop.f32.mrf.mxu0
  %v527 = vadd.f32 %v95, %v526
  %v528 = vpop.f32.mrf.mxu0
  %529 = vmatprep.mubr.bf16.mxu0 0
  %530 = vmatmul.mubr.bf16.gmra.mxu0 %v331
  %v531 = vpop.f32.mrf.mxu0
  %v532 = vadd.f32 %v95, %v531
  %v533 = vpop.f32.mrf.mxu0
  %v534 = vpop.f32.mrf.mxu0
  %v535 = vadd.f32 %v95, %v534
  %v536 = vpop.f32.mrf.mxu0
  %537 = vmatprep.mubr.bf16.mxu0 0
  %538 = vmatmul.mubr.bf16.gmra.mxu0 %v334
  %v539 = vpop.f32.mrf.mxu0
  %v540 = vadd.f32 %v95, %v539
  %v541 = vpop.f32.mrf.mxu0
  %v542 = vpop.f32.mrf.mxu0
  %v543 = vadd.f32 %v95, %v542
  %v544 = vpop.f32.mrf.mxu0
  %545 = vmatprep.mubr.bf16.mxu0 0
  %546 = vmatmul.mubr.bf16.gmra.mxu0 %v337
  %v547 = vpop.f32.mrf.mxu0
  %v548 = vadd.f32 %v95, %v547
  %v549 = vpop.f32.mrf.mxu0
  %v550 = vpop.f32.mrf.mxu0
  %v551 = vadd.f32 %v95, %v550
  %v552 = vpop.f32.mrf.mxu0
  %553 = vmatprep.mubr.bf16.mxu0 0
  %554 = vmatmul.mubr.bf16.gmra.mxu0 %v340
  %v555 = vpop.f32.mrf.mxu0
  %v556 = vadd.f32 %v95, %v555
  %v557 = vpop.f32.mrf.mxu0
  %v558 = vpop.f32.mrf.mxu0
  %v559 = vadd.f32 %v95, %v558
  %v560 = vpop.f32.mrf.mxu0
  %561 = vmatprep.mubr.bf16.mxu0 0
  %562 = vmatmul.mubr.bf16.gmra.mxu0 %v343
  %v563 = vpop.f32.mrf.mxu0
  %v564 = vadd.f32 %v95, %v563
  %v565 = vpop.f32.mrf.mxu0
  %v566 = vpop.f32.mrf.mxu0
  %v567 = vadd.f32 %v95, %v566
  %v568 = vpop.f32.mrf.mxu0
  %569 = vmatprep.mubr.bf16.mxu0 0
  %570 = vmatmul.mubr.bf16.gmra.mxu0 %v346
  %v571 = vpop.f32.mrf.mxu0
  %v572 = vadd.f32 %v95, %v571
  %v573 = vpop.f32.mrf.mxu0
  %v574 = vpop.f32.mrf.mxu0
  %v575 = vadd.f32 %v95, %v574
  %v576 = vpop.f32.mrf.mxu0
  %577 = vmatprep.mubr.bf16.mxu0 0
  %578 = vmatmul.mubr.bf16.gmra.mxu0 %v349
  %v579 = vpop.f32.mrf.mxu0
  %v580 = vadd.f32 %v95, %v579
  %v581 = vpop.f32.mrf.mxu0
  %v582 = vpop.f32.mrf.mxu0
  %v583 = vadd.f32 %v95, %v582
  %v584 = vpop.f32.mrf.mxu0
  %585 = vmatprep.mubr.bf16.mxu0 0
  %586 = vmatmul.mubr.bf16.gmra.mxu0 %v352
  %v587 = vpop.f32.mrf.mxu0
  %v588 = vadd.f32 %v95, %v587
  %v589 = vpop.f32.mrf.mxu0
  %v590 = vpop.f32.mrf.mxu0
  %v591 = vadd.f32 %v95, %v590
  %v592 = vpop.f32.mrf.mxu0
  %593 = vmatprep.mubr.bf16.mxu0 0
  %594 = vmatmul.mubr.bf16.gmra.mxu0 %v355
  %v595 = vpop.f32.mrf.mxu0
  %v596 = vadd.f32 %v95, %v595
  %v597 = vpop.f32.mrf.mxu0
  %v598 = vpop.f32.mrf.mxu0
  %v599 = vadd.f32 %v95, %v598
  %v600 = vpop.f32.mrf.mxu0
  %601 = vmatprep.mubr.bf16.mxu0 0
  %602 = vmatmul.mubr.bf16.gmra.mxu0 %v358
  %v603 = vpop.f32.mrf.mxu0
  %v604 = vadd.f32 %v95, %v603
  %v605 = vpop.f32.mrf.mxu0
  %v606 = vpop.f32.mrf.mxu0
  %v607 = vadd.f32 %v95, %v606
  %v608 = vpop.f32.mrf.mxu0
  %609 = vmatprep.mubr.bf16.mxu0 0
  %610 = vmatmul.mubr.bf16.gmra.mxu0 %v361
  %v611 = vpop.f32.mrf.mxu0
  %v612 = vadd.f32 %v95, %v611
  %v613 = vpop.f32.mrf.mxu0
  %v614 = vpop.f32.mrf.mxu0
  %v615 = vadd.f32 %v95, %v614
  %v616 = vpop.f32.mrf.mxu0
  %617 = vmatprep.mubr.bf16.mxu0 0
  %618 = vmatmul.mubr.bf16.gmra.mxu0 %v364
  %v619 = vpop.f32.mrf.mxu0
  %v620 = vadd.f32 %v95, %v619
  %v621 = vpop.f32.mrf.mxu0
  %v622 = vpop.f32.mrf.mxu0
  %v623 = vadd.f32 %v95, %v622
  %v624 = vpop.f32.mrf.mxu0
  %625 = vmatprep.mubr.bf16.mxu0 0
  %626 = vmatmul.mubr.bf16.gmra.mxu0 %v367
  %v627 = vpop.f32.mrf.mxu0
  %v628 = vadd.f32 %v95, %v627
  %v629 = vpop.f32.mrf.mxu0
  %v630 = vpop.f32.mrf.mxu0
  %v631 = vadd.f32 %v95, %v630
  %v632 = vpop.f32.mrf.mxu0
  %633 = vmatprep.mubr.bf16.mxu0 0
  %634 = vmatmul.mubr.bf16.gmra.mxu0 %v370
  %v635 = vpop.f32.mrf.mxu0
  %v636 = vadd.f32 %v95, %v635
  %v637 = vpop.f32.mrf.mxu0
  %v638 = vpop.f32.mrf.mxu0
  %v639 = vadd.f32 %v95, %v638
  %v640 = vpop.f32.mrf.mxu0
  %641 = vmatprep.mubr.bf16.mxu0 0
  %642 = vmatmul.mubr.bf16.gmra.mxu0 %v373
  %v643 = vpop.f32.mrf.mxu0
  %v644 = vadd.f32 %v95, %v643
  %v645 = vpop.f32.mrf.mxu0
  %v646 = vpop.f32.mrf.mxu0
  %v647 = vadd.f32 %v95, %v646
  %v648 = vpop.f32.mrf.mxu0
  %649 = vmatprep.mubr.bf16.mxu0 0
  %650 = vmatmul.mubr.bf16.gmra.mxu0 %v376
  %v651 = vpop.f32.mrf.mxu0
  %v652 = vadd.f32 %v95, %v651
  %v653 = vpop.f32.mrf.mxu0
  %v654 = vpop.f32.mrf.mxu0
  %v655 = vadd.f32 %v95, %v654
  %v656 = vpop.f32.mrf.mxu0
  %657 = vmatprep.mubr.bf16.mxu0 0
  %658 = vmatmul.mubr.bf16.gmra.mxu0 %v379
  %v659 = vpop.f32.mrf.mxu0
  %v660 = vadd.f32 %v95, %v659
  %v661 = vpop.f32.mrf.mxu0
  %v662 = vpop.f32.mrf.mxu0
  %v663 = vadd.f32 %v95, %v662
  %v664 = vpop.f32.mrf.mxu0
  %665 = vmatprep.mubr.bf16.mxu0 0
  %666 = vmatmul.mubr.bf16.gmra.mxu0 %v382
  %v667 = vpop.f32.mrf.mxu0
  %v668 = vadd.f32 %v95, %v667
  %v669 = vpop.f32.mrf.mxu0
  %v670 = vpop.f32.mrf.mxu0
  %v671 = vadd.f32 %v95, %v670
  %v672 = vpop.f32.mrf.mxu0
  %673 = vmatprep.mubr.bf16.mxu0 0
  %674 = vmatmul.mubr.bf16.gmra.mxu0 %v385
  %v675 = vpop.f32.mrf.mxu0
  %v676 = vadd.f32 %v95, %v675
  %v677 = vpop.f32.mrf.mxu0
  %v678 = vpop.f32.mrf.mxu0
  %v679 = vadd.f32 %v95, %v678
  %v680 = vpop.f32.mrf.mxu0
  %681 = vdwg.mxu0
  %v682 = vmax.f32 %v428, 0.0
  %v683 = vmax.f32 %v431, 0.0
  %v684 = vmax.f32 %v436, 0.0
  %v685 = vmax.f32 %v439, 0.0
  %v686 = vmax.f32 %v444, 0.0
  %v687 = vmax.f32 %v447, 0.0
  %v688 = vmax.f32 %v452, 0.0
  %v689 = vmax.f32 %v455, 0.0
  %v690 = vmax.f32 %v460, 0.0
  %v691 = vmax.f32 %v463, 0.0
  %v692 = vmax.f32 %v468, 0.0
  %v693 = vmax.f32 %v471, 0.0
  %v694 = vmax.f32 %v476, 0.0
  %v695 = vmax.f32 %v479, 0.0
  %v696 = vmax.f32 %v484, 0.0
  %v697 = vmax.f32 %v487, 0.0
  %v698 = vmax.f32 %v492, 0.0
  %v699 = vmax.f32 %v495, 0.0
  %v700 = vmax.f32 %v500, 0.0
  %v701 = vmax.f32 %v503, 0.0
  %v702 = vmax.f32 %v508, 0.0
  %v703 = vmax.f32 %v511, 0.0
  %v704 = vmax.f32 %v516, 0.0
  %v705 = vmax.f32 %v519, 0.0
  %v706 = vmax.f32 %v524, 0.0
  %v707 = vmax.f32 %v527, 0.0
  %v708 = vmax.f32 %v532, 0.0
  %v709 = vmax.f32 %v535, 0.0
  %v710 = vmax.f32 %v540, 0.0
  %v711 = vmax.f32 %v543, 0.0
  %v712 = vmax.f32 %v548, 0.0
  %v713 = vmax.f32 %v551, 0.0
  %v714 = vmax.f32 %v556, 0.0
  %v715 = vmax.f32 %v559, 0.0
  %v716 = vmax.f32 %v564, 0.0
  %v717 = vmax.f32 %v567, 0.0
  %v718 = vmax.f32 %v572, 0.0
  %v719 = vmax.f32 %v575, 0.0
  %v720 = vmax.f32 %v580, 0.0
  %v721 = vmax.f32 %v583, 0.0
  %v722 = vmax.f32 %v588, 0.0
  %v723 = vmax.f32 %v591, 0.0
  %v724 = vmax.f32 %v596, 0.0
  %v725 = vmax.f32 %v599, 0.0
  %v726 = vmax.f32 %v604, 0.0
  %v727 = vmax.f32 %v607, 0.0
  %v728 = vmax.f32 %v612, 0.0
  %v729 = vmax.f32 %v615, 0.0
  %v730 = vmax.f32 %v620, 0.0
  %v731 = vmax.f32 %v623, 0.0
  %v732 = vmax.f32 %v628, 0.0
  %v733 = vmax.f32 %v631, 0.0
  %v734 = vmax.f32 %v636, 0.0
  %v735 = vmax.f32 %v639, 0.0
  %v736 = vmax.f32 %v644, 0.0
  %v737 = vmax.f32 %v647, 0.0
  %v738 = vmax.f32 %v652, 0.0
  %v739 = vmax.f32 %v655, 0.0
  %v740 = vmax.f32 %v660, 0.0
  %v741 = vmax.f32 %v663, 0.0
  %v742 = vmax.f32 %v668, 0.0
  %v743 = vmax.f32 %v671, 0.0
  %v744 = vmax.f32 %v676, 0.0
  %v745 = vmax.f32 %v679, 0.0
  %vm746 = vcmask 31744
  %747 = vst.msk [vmem:[%s3] sm:$0xff] %vm746, %v682
  %748 = vst.msk [vmem:[%s3 + $0x8] sm:$0xff] %vm746, %v683
  %749 = vst.msk [vmem:[%s3 + $0x10] sm:$0xff] %vm746, %v684
  %750 = vst.msk [vmem:[%s3 + $0x18] sm:$0xff] %vm746, %v685
  %751 = vst.msk [vmem:[%s3 + $0x20] sm:$0xff] %vm746, %v686
  %752 = vst.msk [vmem:[%s3 + $0x28] sm:$0xff] %vm746, %v687
  %753 = vst.msk [vmem:[%s3 + $0x30] sm:$0xff] %vm746, %v688
  %754 = vst.msk [vmem:[%s3 + $0x38] sm:$0xff] %vm746, %v689
  %755 = vst.msk [vmem:[%s3 + $0x40] sm:$0xff] %vm746, %v690
  %756 = vst.msk [vmem:[%s3 + $0x48] sm:$0xff] %vm746, %v691
  %757 = vst.msk [vmem:[%s3 + $0x50] sm:$0xff] %vm746, %v692
  %758 = vst.msk [vmem:[%s3 + $0x58] sm:$0xff] %vm746, %v693
  %759 = vst.msk [vmem:[%s3 + $0x60] sm:$0xff] %vm746, %v694
  %760 = vst.msk [vmem:[%s3 + $0x68] sm:$0xff] %vm746, %v695
  %761 = vst.msk [vmem:[%s3 + $0x70] sm:$0xff] %vm746, %v696
  %762 = vst.msk [vmem:[%s3 + $0x78] sm:$0xff] %vm746, %v697
  %763 = vst.msk [vmem:[%s3 + $0x80] sm:$0xff] %vm746, %v698
  %764 = vst.msk [vmem:[%s3 + $0x88] sm:$0xff] %vm746, %v699
  %765 = vst.msk [vmem:[%s3 + $0x90] sm:$0xff] %vm746, %v700
  %766 = vst.msk [vmem:[%s3 + $0x98] sm:$0xff] %vm746, %v701
  %767 = vst.msk [vmem:[%s3 + $0xa0] sm:$0xff] %vm746, %v702
  %768 = vst.msk [vmem:[%s3 + $0xa8] sm:$0xff] %vm746, %v703
  %769 = vst.msk [vmem:[%s3 + $0xb0] sm:$0xff] %vm746, %v704
  %770 = vst.msk [vmem:[%s3 + $0xb8] sm:$0xff] %vm746, %v705
  %771 = vst.msk [vmem:[%s3 + $0xc0] sm:$0xff] %vm746, %v706
  %772 = vst.msk [vmem:[%s3 + $0xc8] sm:$0xff] %vm746, %v707
  %773 = vst.msk [vmem:[%s3 + $0xd0] sm:$0xff] %vm746, %v708
  %774 = vst.msk [vmem:[%s3 + $0xd8] sm:$0xff] %vm746, %v709
  %775 = vst.msk [vmem:[%s3 + $0xe0] sm:$0xff] %vm746, %v710
  %776 = vst.msk [vmem:[%s3 + $0xe8] sm:$0xff] %vm746, %v711
  %777 = vst.msk [vmem:[%s3 + $0xf0] sm:$0xff] %vm746, %v712
  %778 = vst.msk [vmem:[%s3 + $0xf8] sm:$0xff] %vm746, %v713
  %779 = vst.msk [vmem:[%s3 + $0x100] sm:$0xff] %vm746, %v714
  %780 = vst.msk [vmem:[%s3 + $0x108] sm:$0xff] %vm746, %v715
  %781 = vst.msk [vmem:[%s3 + $0x110] sm:$0xff] %vm746, %v716
  %782 = vst.msk [vmem:[%s3 + $0x118] sm:$0xff] %vm746, %v717
  %783 = vst.msk [vmem:[%s3 + $0x120] sm:$0xff] %vm746, %v718
  %784 = vst.msk [vmem:[%s3 + $0x128] sm:$0xff] %vm746, %v719
  %785 = vst.msk [vmem:[%s3 + $0x130] sm:$0xff] %vm746, %v720
  %786 = vst.msk [vmem:[%s3 + $0x138] sm:$0xff] %vm746, %v721
  %787 = vst.msk [vmem:[%s3 + $0x140] sm:$0xff] %vm746, %v722
  %788 = vst.msk [vmem:[%s3 + $0x148] sm:$0xff] %vm746, %v723
  %789 = vst.msk [vmem:[%s3 + $0x150] sm:$0xff] %vm746, %v724
  %790 = vst.msk [vmem:[%s3 + $0x158] sm:$0xff] %vm746, %v725
  %791 = vst.msk [vmem:[%s3 + $0x160] sm:$0xff] %vm746, %v726
  %792 = vst.msk [vmem:[%s3 + $0x168] sm:$0xff] %vm746, %v727
  %793 = vst.msk [vmem:[%s3 + $0x170] sm:$0xff] %vm746, %v728
  %794 = vst.msk [vmem:[%s3 + $0x178] sm:$0xff] %vm746, %v729
  %795 = vst.msk [vmem:[%s3 + $0x180] sm:$0xff] %vm746, %v730
  %796 = vst.msk [vmem:[%s3 + $0x188] sm:$0xff] %vm746, %v731
  %797 = vst.msk [vmem:[%s3 + $0x190] sm:$0xff] %vm746, %v732
  %798 = vst.msk [vmem:[%s3 + $0x198] sm:$0xff] %vm746, %v733
  %799 = vst.msk [vmem:[%s3 + $0x1a0] sm:$0xff] %vm746, %v734
  %800 = vst.msk [vmem:[%s3 + $0x1a8] sm:$0xff] %vm746, %v735
  %801 = vst.msk [vmem:[%s3 + $0x1b0] sm:$0xff] %vm746, %v736
  %802 = vst.msk [vmem:[%s3 + $0x1b8] sm:$0xff] %vm746, %v737
  %803 = vst.msk [vmem:[%s3 + $0x1c0] sm:$0xff] %vm746, %v738
  %804 = vst.msk [vmem:[%s3 + $0x1c8] sm:$0xff] %vm746, %v739
  %805 = vst.msk [vmem:[%s3 + $0x1d0] sm:$0xff] %vm746, %v740
  %806 = vst.msk [vmem:[%s3 + $0x1d8] sm:$0xff] %vm746, %v741
  %807 = vst.msk [vmem:[%s3 + $0x1e0] sm:$0xff] %vm746, %v742
  %808 = vst.msk [vmem:[%s3 + $0x1e8] sm:$0xff] %vm746, %v743
  %809 = vst.msk [vmem:[%s3 + $0x1f0] sm:$0xff] %vm746, %v744
  %810 = vst.msk [vmem:[%s3 + $0x1f8] sm:$0xff] %vm746, %v745
  // Predicated region
  $region14: #{cnn_attention_net_forward.80} parent=0 // pred_check
    _
  $region15: #{cnn_attention_net_forward.80} parent=0 // pred_check_branch
    %812 = sbr.rel (0) target = $region17
  $region16: #{cnn_attention_net_forward.80} parent=0 // pred_region
    _
  $region17: #{cnn_attention_net_forward.80} parent=0 // pred_fallthru
    _
  // Predicated region
  $region18: #{cnn_attention_net_forward.80} parent=0 // pred_check
    _
  $region19: #{cnn_attention_net_forward.80} parent=0 // pred_check_branch
    %814 = sbr.rel (0) target = $region21
  $region20: #{cnn_attention_net_forward.80} parent=0 // pred_region
    _
  $region21: #{cnn_attention_net_forward.80} parent=0 // pred_fallthru
    _

// kernel: cnn_attention_net_forward.83
$region0: #{cnn_attention_net_forward.83}
  #allocation0 [shape = 'u32[]', space=smem, size = 0x4, offset = 0x4, fixed_abs, tag = 'smem constant byte address 0x4 - core index']
  #allocation1 [shape = 'u32[144,128]{1,0:T(1,128)}', space=vmem, size = 0x12000, scoped, tag = 'internal scratch']
  %s0 = inlined_call_operand.vmem [shape: f32[128,1], index: 0, kind: input, shape index: {}]
  %s1 = inlined_call_operand.vmem [shape: bf16[1,4], index: 1, kind: input, shape index: {}]
  %s2 = inlined_call_operand.vmem [shape: f32[128,4], index: 2, kind: input, shape index: {}]
  %s3 = inlined_call_operand.vmem [shape: f32[128,4], index: 3, kind: output, shape index: {}]
  %s4 = sld [smem:[#allocation0]]
  $region22: #{cnn_attention_net_forward.83} parent=0
    _
  %s6 = ssub.s32 1, %s4
  %s7 = scalar_select 0, %s6, %s4
  // Predicated region
  $region2: #{cnn_attention_net_forward.83} parent=0 // pred_check
    _
  $region3: #{cnn_attention_net_forward.83} parent=0 // pred_check_branch
    %9 = sbr.rel (0) target = $region5
  $region4: #{cnn_attention_net_forward.83} parent=0 // pred_region
    _
  $region5: #{cnn_attention_net_forward.83} parent=0 // pred_fallthru
    _
  // Predicated region
  $region6: #{cnn_attention_net_forward.83} parent=0 // pred_check
    _
  $region7: #{cnn_attention_net_forward.83} parent=0 // pred_check_branch
    %11 = sbr.rel (0) target = $region9
  $region8: #{cnn_attention_net_forward.83} parent=0 // pred_region
    _
  $region9: #{cnn_attention_net_forward.83} parent=0 // pred_fallthru
    _
  // Predicated region
  $region10: #{cnn_attention_net_forward.83} parent=0 // pred_check
    _
  $region11: #{cnn_attention_net_forward.83} parent=0 // pred_check_branch
    %13 = sbr.rel (0) target = $region13
  $region12: #{cnn_attention_net_forward.83} parent=0 // pred_region
    _
  $region13: #{cnn_attention_net_forward.83} parent=0 // pred_fallthru
    _
  %v15 = vld [vmem:[%s0] sm:$0xff]
  %v16 = vld [vmem:[%s0 + $0x8] sm:$0xff]
  %v17 = vld [vmem:[%s0 + $0x10] sm:$0xff]
  %v18 = vld [vmem:[%s0 + $0x18] sm:$0xff]
  %v19 = vld [vmem:[%s0 + $0x20] sm:$0xff]
  %v20 = vld [vmem:[%s0 + $0x28] sm:$0xff]
  %v21 = vld [vmem:[%s0 + $0x30] sm:$0xff]
  %v22 = vld [vmem:[%s0 + $0x38] sm:$0xff]
  %v23 = vld [vmem:[%s0 + $0x40] sm:$0xff]
  %v24 = vld [vmem:[%s0 + $0x48] sm:$0xff]
  %v25 = vld [vmem:[%s0 + $0x50] sm:$0xff]
  %v26 = vld [vmem:[%s0 + $0x58] sm:$0xff]
  %v27 = vld [vmem:[%s0 + $0x60] sm:$0xff]
  %v28 = vld [vmem:[%s0 + $0x68] sm:$0xff]
  %v29 = vld [vmem:[%s0 + $0x70] sm:$0xff]
  %v30 = vld [vmem:[%s0 + $0x78] sm:$0xff]
  %v31 = vpack.c.bf16 %v16, %v15
  %v32 = vpack.c.bf16 %v18, %v17
  %v33 = vpack.c.bf16 %v20, %v19
  %v34 = vpack.c.bf16 %v22, %v21
  %v35 = vpack.c.bf16 %v24, %v23
  %v36 = vpack.c.bf16 %v26, %v25
  %v37 = vpack.c.bf16 %v28, %v27
  %v38 = vpack.c.bf16 %v30, %v29
  %v39 = vld [vmem:[%s1] sm:$0x1]
  %v40 = vld [vmem:[%s2] sm:$0xff]
  %v41 = vld [vmem:[%s2 + $0x8] sm:$0xff]
  %v42 = vld [vmem:[%s2 + $0x10] sm:$0xff]
  %v43 = vld [vmem:[%s2 + $0x18] sm:$0xff]
  %v44 = vld [vmem:[%s2 + $0x20] sm:$0xff]
  %v45 = vld [vmem:[%s2 + $0x28] sm:$0xff]
  %v46 = vld [vmem:[%s2 + $0x30] sm:$0xff]
  %v47 = vld [vmem:[%s2 + $0x38] sm:$0xff]
  %v48 = vld [vmem:[%s2 + $0x40] sm:$0xff]
  %v49 = vld [vmem:[%s2 + $0x48] sm:$0xff]
  %v50 = vld [vmem:[%s2 + $0x50] sm:$0xff]
  %v51 = vld [vmem:[%s2 + $0x58] sm:$0xff]
  %v52 = vld [vmem:[%s2 + $0x60] sm:$0xff]
  %v53 = vld [vmem:[%s2 + $0x68] sm:$0xff]
  %v54 = vld [vmem:[%s2 + $0x70] sm:$0xff]
  %v55 = vld [vmem:[%s2 + $0x78] sm:$0xff]
  %vm56 = vcmask 7168
  %v58 = vsel %vm56, %v31, 0
  %v61 = vsel %vm56, %v32, 0
  %v64 = vsel %vm56, %v33, 0
  %v67 = vsel %vm56, %v34, 0
  %v70 = vsel %vm56, %v35, 0
  %v73 = vsel %vm56, %v36, 0
  %v76 = vsel %vm56, %v37, 0
  %v79 = vsel %vm56, %v38, 0
  %vm81 = vcmask 1040384
  %v82 = vsel 0, 4294967295, 65535
  %v83 = vsel %vm81, %v82, 0
  %v85 = vand.u32 %v39, %v83
  %87 = vmatprep.subr.bf16.mxu0 0
  %88 = vmatpush1.bf16.msra.mxu0 0
  %89 = vmatprep.subr.bf16.mxu0 0
  %90 = vmatpush1.bf16.msra.mxu0 0
  %91 = vmatprep.subr.bf16.mxu0 0
  %92 = vmatpush1.bf16.msra.mxu0 0
  %93 = vmatprep.subr.bf16.mxu0 0
  %94 = vmatpush1.bf16.msra.mxu0 0
  %95 = vmatprep.subr.bf16.mxu0 0
  %96 = vmatpush1.bf16.msra.mxu0 0
  %97 = vmatprep.subr.bf16.mxu0 0
  %98 = vmatpush1.bf16.msra.mxu0 0
  %99 = vmatprep.subr.bf16.mxu0 0
  %100 = vmatpush1.bf16.msra.mxu0 0
  %101 = vmatprep.subr.bf16.mxu0 0
  %102 = vmatpush1.bf16.msra.mxu0 %v85
  %103 = vmatprep.subr.bf16.mxu0 0
  %104 = vmatpush2.bf16.msra.mxu0 0
  %105 = vmatprep.subr.bf16.mxu0 0
  %106 = vmatpush2.bf16.msra.mxu0 0
  %107 = vmatprep.subr.bf16.mxu0 0
  %108 = vmatpush2.bf16.msra.mxu0 0
  %109 = vmatprep.subr.bf16.mxu0 0
  %110 = vmatpush2.bf16.msra.mxu0 0
  %111 = vmatprep.subr.bf16.mxu0 0
  %112 = vmatpush2.bf16.msra.mxu0 0
  %113 = vmatprep.subr.bf16.mxu0 0
  %114 = vmatpush2.bf16.msra.mxu0 0
  %115 = vmatprep.subr.bf16.mxu0 0
  %116 = vmatpush2.bf16.msra.mxu0 0
  %117 = vmatprep.subr.bf16.mxu0 0
  %118 = vmatpush2.bf16.msra.mxu0 0
  %119 = vmatprep.mubr.bf16.mxu0 0
  %120 = vmatmul.mubr.bf16.gmra.mxu0 %v58
  %v121 = vpop.f32.mrf.mxu0
  %v122 = vadd.f32 %v40, %v121
  %v123 = vpop.f32.mrf.mxu0
  %v124 = vpop.f32.mrf.mxu0
  %v125 = vadd.f32 %v41, %v124
  %v126 = vpop.f32.mrf.mxu0
  %127 = vmatprep.mubr.bf16.mxu0 0
  %128 = vmatmul.mubr.bf16.gmra.mxu0 %v61
  %v129 = vpop.f32.mrf.mxu0
  %v130 = vadd.f32 %v42, %v129
  %v131 = vpop.f32.mrf.mxu0
  %v132 = vpop.f32.mrf.mxu0
  %v133 = vadd.f32 %v43, %v132
  %v134 = vpop.f32.mrf.mxu0
  %135 = vmatprep.mubr.bf16.mxu0 0
  %136 = vmatmul.mubr.bf16.gmra.mxu0 %v64
  %v137 = vpop.f32.mrf.mxu0
  %v138 = vadd.f32 %v44, %v137
  %v139 = vpop.f32.mrf.mxu0
  %v140 = vpop.f32.mrf.mxu0
  %v141 = vadd.f32 %v45, %v140
  %v142 = vpop.f32.mrf.mxu0
  %143 = vmatprep.mubr.bf16.mxu0 0
  %144 = vmatmul.mubr.bf16.gmra.mxu0 %v67
  %v145 = vpop.f32.mrf.mxu0
  %v146 = vadd.f32 %v46, %v145
  %v147 = vpop.f32.mrf.mxu0
  %v148 = vpop.f32.mrf.mxu0
  %v149 = vadd.f32 %v47, %v148
  %v150 = vpop.f32.mrf.mxu0
  %151 = vmatprep.mubr.bf16.mxu0 0
  %152 = vmatmul.mubr.bf16.gmra.mxu0 %v70
  %v153 = vpop.f32.mrf.mxu0
  %v154 = vadd.f32 %v48, %v153
  %v155 = vpop.f32.mrf.mxu0
  %v156 = vpop.f32.mrf.mxu0
  %v157 = vadd.f32 %v49, %v156
  %v158 = vpop.f32.mrf.mxu0
  %159 = vmatprep.mubr.bf16.mxu0 0
  %160 = vmatmul.mubr.bf16.gmra.mxu0 %v73
  %v161 = vpop.f32.mrf.mxu0
  %v162 = vadd.f32 %v50, %v161
  %v163 = vpop.f32.mrf.mxu0
  %v164 = vpop.f32.mrf.mxu0
  %v165 = vadd.f32 %v51, %v164
  %v166 = vpop.f32.mrf.mxu0
  %167 = vmatprep.mubr.bf16.mxu0 0
  %168 = vmatmul.mubr.bf16.gmra.mxu0 %v76
  %v169 = vpop.f32.mrf.mxu0
  %v170 = vadd.f32 %v52, %v169
  %v171 = vpop.f32.mrf.mxu0
  %v172 = vpop.f32.mrf.mxu0
  %v173 = vadd.f32 %v53, %v172
  %v174 = vpop.f32.mrf.mxu0
  %175 = vmatprep.mubr.bf16.mxu0 0
  %176 = vmatmul.mubr.bf16.gmra.mxu0 %v79
  %v177 = vpop.f32.mrf.mxu0
  %v178 = vadd.f32 %v54, %v177
  %v179 = vpop.f32.mrf.mxu0
  %v180 = vpop.f32.mrf.mxu0
  %v181 = vadd.f32 %v55, %v180
  %v182 = vpop.f32.mrf.mxu0
  %183 = vdwg.mxu0
  %vm184 = vcmask 31744
  %185 = vst.msk [vmem:[%s3] sm:$0xff] %vm184, %v122
  %186 = vst.msk [vmem:[%s3 + $0x8] sm:$0xff] %vm184, %v125
  %187 = vst.msk [vmem:[%s3 + $0x10] sm:$0xff] %vm184, %v130
  %188 = vst.msk [vmem:[%s3 + $0x18] sm:$0xff] %vm184, %v133
  %189 = vst.msk [vmem:[%s3 + $0x20] sm:$0xff] %vm184, %v138
  %190 = vst.msk [vmem:[%s3 + $0x28] sm:$0xff] %vm184, %v141
  %191 = vst.msk [vmem:[%s3 + $0x30] sm:$0xff] %vm184, %v146
  %192 = vst.msk [vmem:[%s3 + $0x38] sm:$0xff] %vm184, %v149
  %193 = vst.msk [vmem:[%s3 + $0x40] sm:$0xff] %vm184, %v154
  %194 = vst.msk [vmem:[%s3 + $0x48] sm:$0xff] %vm184, %v157
  %195 = vst.msk [vmem:[%s3 + $0x50] sm:$0xff] %vm184, %v162
  %196 = vst.msk [vmem:[%s3 + $0x58] sm:$0xff] %vm184, %v165
  %197 = vst.msk [vmem:[%s3 + $0x60] sm:$0xff] %vm184, %v170
  %198 = vst.msk [vmem:[%s3 + $0x68] sm:$0xff] %vm184, %v173
  %199 = vst.msk [vmem:[%s3 + $0x70] sm:$0xff] %vm184, %v178
  %200 = vst.msk [vmem:[%s3 + $0x78] sm:$0xff] %vm184, %v181
  // Predicated region
  $region14: #{cnn_attention_net_forward.83} parent=0 // pred_check
    _
  $region15: #{cnn_attention_net_forward.83} parent=0 // pred_check_branch
    %202 = sbr.rel (0) target = $region17
  $region16: #{cnn_attention_net_forward.83} parent=0 // pred_region
    _
  $region17: #{cnn_attention_net_forward.83} parent=0 // pred_fallthru
    _
  // Predicated region
  $region18: #{cnn_attention_net_forward.83} parent=0 // pred_check
    _
  $region19: #{cnn_attention_net_forward.83} parent=0 // pred_check_branch
    %204 = sbr.rel (0) target = $region21
  $region20: #{cnn_attention_net_forward.83} parent=0 // pred_region
    _
  $region21: #{cnn_attention_net_forward.83} parent=0 // pred_fallthru
    _

// kernel: cnn_attention_net_forward.82
$region0: #{cnn_attention_net_forward.82}
  #allocation0 [shape = 'u32[]', space=smem, size = 0x4, offset = 0x4, fixed_abs, tag = 'smem constant byte address 0x4 - core index']
  #allocation1 [shape = 'u32[144,128]{1,0:T(1,128)}', space=vmem, size = 0x12000, scoped, tag = 'internal scratch']
  #allocation2 [shape = 'f32[1,1]{1,0:T(1,128)S(1)}', space=vmem, size = 0x200, scoped, tag = 'scoped memory for cnn_attention_net_forward.82']
  %s0 = inlined_call_operand.vmem [shape: bf16[128,27], index: 0, kind: input, shape index: {}]
  %s1 = inlined_call_operand.vmem [shape: bf16[27,1], index: 1, kind: input, shape index: {}]
  %s2 = inlined_call_operand.<no memory space> [shape: f32[1,1], index: 2, kind: input, shape index: {}]
  %s3 = inlined_call_operand.vmem [shape: f32[128,1], index: 3, kind: output, shape index: {}]
  %s4 = sld [smem:[#allocation0]]
  $region22: #{cnn_attention_net_forward.82} parent=0
    _
  %s6 = ssub.s32 1, %s4
  %s7 = scalar_select 0, %s6, %s4
  %v8 = vstv %s2
  %9 = vst [vmem:[#allocation2] sm:$0x1] %v8
  // Predicated region
  $region2: #{cnn_attention_net_forward.82} parent=0 // pred_check
    _
  $region3: #{cnn_attention_net_forward.82} parent=0 // pred_check_branch
    %11 = sbr.rel (0) target = $region5
  $region4: #{cnn_attention_net_forward.82} parent=0 // pred_region
    _
  $region5: #{cnn_attention_net_forward.82} parent=0 // pred_fallthru
    _
  // Predicated region
  $region6: #{cnn_attention_net_forward.82} parent=0 // pred_check
    _
  $region7: #{cnn_attention_net_forward.82} parent=0 // pred_check_branch
    %13 = sbr.rel (0) target = $region9
  $region8: #{cnn_attention_net_forward.82} parent=0 // pred_region
    _
  $region9: #{cnn_attention_net_forward.82} parent=0 // pred_fallthru
    _
  // Predicated region
  $region10: #{cnn_attention_net_forward.82} parent=0 // pred_check
    _
  $region11: #{cnn_attention_net_forward.82} parent=0 // pred_check_branch
    %15 = sbr.rel (0) target = $region13
  $region12: #{cnn_attention_net_forward.82} parent=0 // pred_region
    _
  $region13: #{cnn_attention_net_forward.82} parent=0 // pred_fallthru
    _
  %v17 = vld [vmem:[%s0] sm:$0xf]
  %v18 = vld [vmem:[%s0 + $0x4] sm:$0xf]
  %v19 = vld [vmem:[%s0 + $0x8] sm:$0xf]
  %v20 = vld [vmem:[%s0 + $0xc] sm:$0xf]
  %v21 = vld [vmem:[%s0 + $0x10] sm:$0xf]
  %v22 = vld [vmem:[%s0 + $0x14] sm:$0xf]
  %v23 = vld [vmem:[%s0 + $0x18] sm:$0xf]
  %v24 = vld [vmem:[%s0 + $0x1c] sm:$0xf]
  %v25 = vld [vmem:[%s0 + $0x20] sm:$0xf]
  %v26 = vld [vmem:[%s0 + $0x24] sm:$0xf]
  %v27 = vld [vmem:[%s0 + $0x28] sm:$0xf]
  %v28 = vld [vmem:[%s0 + $0x2c] sm:$0xf]
  %v29 = vld [vmem:[%s0 + $0x30] sm:$0xf]
  %v30 = vld [vmem:[%s0 + $0x34] sm:$0xf]
  %v31 = vld [vmem:[%s0 + $0x38] sm:$0xf]
  %v32 = vld [vmem:[%s0 + $0x3c] sm:$0xf]
  %v33 = vld [vmem:[%s1] sm:$0xf]
  %v34 = vld [vmem:[%s1 + $0x4] sm:$0xf]
  %v35 = vld [vmem:[%s1 + $0x8] sm:$0xf]
  %v36 = vld [vmem:[%s1 + $0xc] sm:$0x3]
  %v37 = vld [vmem:[#allocation2] sm:$0x1]
  %v39 = vlaneseq
  %v40 = vshrl.u32 %v39, 7
  %v41 = vsub.s32 0, %v40
  %v42 = vrot.slane %v37, %v41
  %v60 = vunpack.c.l.b16 %v17
  %v61 = vunpack.c.l.b16 %v18
  %v62 = vunpack.c.l.b16 %v19
  %v63 = vunpack.c.l.b16 %v20
  %v64 = vunpack.c.l.b16 %v21
  %v65 = vunpack.c.l.b16 %v22
  %v66 = vunpack.c.l.b16 %v23
  %v67 = vunpack.c.l.b16 %v24
  %v68 = vunpack.c.l.b16 %v25
  %v69 = vunpack.c.l.b16 %v26
  %v70 = vunpack.c.l.b16 %v27
  %v71 = vunpack.c.l.b16 %v28
  %v72 = vunpack.c.l.b16 %v29
  %v73 = vunpack.c.l.b16 %v30
  %v74 = vunpack.c.l.b16 %v31
  %v75 = vunpack.c.l.b16 %v32
  %v76 = vpack.c.b16 %v61, %v60
  %v77 = vpack.c.b16 %v63, %v62
  %v78 = vpack.c.b16 %v65, %v64
  %v79 = vpack.c.b16 %v67, %v66
  %v80 = vpack.c.b16 %v69, %v68
  %v81 = vpack.c.b16 %v71, %v70
  %v82 = vpack.c.b16 %v73, %v72
  %v83 = vpack.c.b16 %v75, %v74
  %v88 = vunpack.c.l.b16 %v33
  %v89 = vunpack.c.l.b16 %v34
  %v90 = vunpack.c.l.b16 %v35
  %v91 = vunpack.c.l.b16 %v36
  %v92 = vpack.c.b16 %v89, %v88
  %v93 = vpack.c.b16 %v91, %v90
  %vm95 = vcmask 220160
  %v97 = vsel %vm95, %v76, 0
  %v100 = vsel %vm95, %v77, 0
  %v103 = vsel %vm95, %v78, 0
  %v106 = vsel %vm95, %v79, 0
  %v109 = vsel %vm95, %v80, 0
  %v112 = vsel %vm95, %v81, 0
  %v115 = vsel %vm95, %v82, 0
  %v118 = vsel %vm95, %v83, 0
  %vm120 = vcmask 1044480
  %vm121 = vcmask 1045504
  %v122 = vsel %vm120, 4294967295, 65535
  %v123 = vsel %vm121, %v122, 0
  %v125 = vand.u32 %v93, %v123
  %127 = vmatprep.subr.bf16.mxu0 0
  %128 = vmatpush1.bf16.msra.mxu0 0
  %129 = vmatprep.subr.bf16.mxu0 0
  %130 = vmatpush1.bf16.msra.mxu0 0
  %131 = vmatprep.subr.bf16.mxu0 0
  %132 = vmatpush1.bf16.msra.mxu0 0
  %133 = vmatprep.subr.bf16.mxu0 0
  %134 = vmatpush1.bf16.msra.mxu0 0
  %135 = vmatprep.subr.bf16.mxu0 0
  %136 = vmatpush1.bf16.msra.mxu0 0
  %137 = vmatprep.subr.bf16.mxu0 0
  %138 = vmatpush1.bf16.msra.mxu0 0
  %139 = vmatprep.subr.bf16.mxu0 0
  %140 = vmatpush1.bf16.msra.mxu0 %v125
  %141 = vmatprep.subr.bf16.mxu0 0
  %142 = vmatpush1.bf16.msra.mxu0 %v92
  %143 = vmatprep.subr.bf16.mxu0 0
  %144 = vmatpush2.bf16.msra.mxu0 0
  %145 = vmatprep.subr.bf16.mxu0 0
  %146 = vmatpush2.bf16.msra.mxu0 0
  %147 = vmatprep.subr.bf16.mxu0 0
  %148 = vmatpush2.bf16.msra.mxu0 0
  %149 = vmatprep.subr.bf16.mxu0 0
  %150 = vmatpush2.bf16.msra.mxu0 0
  %151 = vmatprep.subr.bf16.mxu0 0
  %152 = vmatpush2.bf16.msra.mxu0 0
  %153 = vmatprep.subr.bf16.mxu0 0
  %154 = vmatpush2.bf16.msra.mxu0 0
  %155 = vmatprep.subr.bf16.mxu0 0
  %156 = vmatpush2.bf16.msra.mxu0 0
  %157 = vmatprep.subr.bf16.mxu0 0
  %158 = vmatpush2.bf16.msra.mxu0 0
  %159 = vmatprep.mubr.bf16.mxu0 0
  %160 = vmatmul.mubr.bf16.gmra.mxu0 %v97
  %v161 = vpop.f32.mrf.mxu0
  %v162 = vadd.f32 %v42, %v161
  %v163 = vpop.f32.mrf.mxu0
  %v164 = vpop.f32.mrf.mxu0
  %v165 = vadd.f32 %v42, %v164
  %v166 = vpop.f32.mrf.mxu0
  %167 = vmatprep.mubr.bf16.mxu0 0
  %168 = vmatmul.mubr.bf16.gmra.mxu0 %v100
  %v169 = vpop.f32.mrf.mxu0
  %v170 = vadd.f32 %v42, %v169
  %v171 = vpop.f32.mrf.mxu0
  %v172 = vpop.f32.mrf.mxu0
  %v173 = vadd.f32 %v42, %v172
  %v174 = vpop.f32.mrf.mxu0
  %175 = vmatprep.mubr.bf16.mxu0 0
  %176 = vmatmul.mubr.bf16.gmra.mxu0 %v103
  %v177 = vpop.f32.mrf.mxu0
  %v178 = vadd.f32 %v42, %v177
  %v179 = vpop.f32.mrf.mxu0
  %v180 = vpop.f32.mrf.mxu0
  %v181 = vadd.f32 %v42, %v180
  %v182 = vpop.f32.mrf.mxu0
  %183 = vmatprep.mubr.bf16.mxu0 0
  %184 = vmatmul.mubr.bf16.gmra.mxu0 %v106
  %v185 = vpop.f32.mrf.mxu0
  %v186 = vadd.f32 %v42, %v185
  %v187 = vpop.f32.mrf.mxu0
  %v188 = vpop.f32.mrf.mxu0
  %v189 = vadd.f32 %v42, %v188
  %v190 = vpop.f32.mrf.mxu0
  %191 = vmatprep.mubr.bf16.mxu0 0
  %192 = vmatmul.mubr.bf16.gmra.mxu0 %v109
  %v193 = vpop.f32.mrf.mxu0
  %v194 = vadd.f32 %v42, %v193
  %v195 = vpop.f32.mrf.mxu0
  %v196 = vpop.f32.mrf.mxu0
  %v197 = vadd.f32 %v42, %v196
  %v198 = vpop.f32.mrf.mxu0
  %199 = vmatprep.mubr.bf16.mxu0 0
  %200 = vmatmul.mubr.bf16.gmra.mxu0 %v112
  %v201 = vpop.f32.mrf.mxu0
  %v202 = vadd.f32 %v42, %v201
  %v203 = vpop.f32.mrf.mxu0
  %v204 = vpop.f32.mrf.mxu0
  %v205 = vadd.f32 %v42, %v204
  %v206 = vpop.f32.mrf.mxu0
  %207 = vmatprep.mubr.bf16.mxu0 0
  %208 = vmatmul.mubr.bf16.gmra.mxu0 %v115
  %v209 = vpop.f32.mrf.mxu0
  %v210 = vadd.f32 %v42, %v209
  %v211 = vpop.f32.mrf.mxu0
  %v212 = vpop.f32.mrf.mxu0
  %v213 = vadd.f32 %v42, %v212
  %v214 = vpop.f32.mrf.mxu0
  %215 = vmatprep.mubr.bf16.mxu0 0
  %216 = vmatmul.mubr.bf16.gmra.mxu0 %v118
  %v217 = vpop.f32.mrf.mxu0
  %v218 = vadd.f32 %v42, %v217
  %v219 = vpop.f32.mrf.mxu0
  %v220 = vpop.f32.mrf.mxu0
  %v221 = vadd.f32 %v42, %v220
  %v222 = vpop.f32.mrf.mxu0
  %223 = vdwg.mxu0
  %v224 = vmax.f32 %v162, 0.0
  %v225 = vmax.f32 %v165, 0.0
  %v226 = vmax.f32 %v170, 0.0
  %v227 = vmax.f32 %v173, 0.0
  %v228 = vmax.f32 %v178, 0.0
  %v229 = vmax.f32 %v181, 0.0
  %v230 = vmax.f32 %v186, 0.0
  %v231 = vmax.f32 %v189, 0.0
  %v232 = vmax.f32 %v194, 0.0
  %v233 = vmax.f32 %v197, 0.0
  %v234 = vmax.f32 %v202, 0.0
  %v235 = vmax.f32 %v205, 0.0
  %v236 = vmax.f32 %v210, 0.0
  %v237 = vmax.f32 %v213, 0.0
  %v238 = vmax.f32 %v218, 0.0
  %v239 = vmax.f32 %v221, 0.0
  %vm240 = vcmask 7168
  %241 = vst.msk [vmem:[%s3] sm:$0xff] %vm240, %v224
  %242 = vst.msk [vmem:[%s3 + $0x8] sm:$0xff] %vm240, %v225
  %243 = vst.msk [vmem:[%s3 + $0x10] sm:$0xff] %vm240, %v226
  %244 = vst.msk [vmem:[%s3 + $0x18] sm:$0xff] %vm240, %v227
  %245 = vst.msk [vmem:[%s3 + $0x20] sm:$0xff] %vm240, %v228
  %246 = vst.msk [vmem:[%s3 + $0x28] sm:$0xff] %vm240, %v229
  %247 = vst.msk [vmem:[%s3 + $0x30] sm:$0xff] %vm240, %v230
  %248 = vst.msk [vmem:[%s3 + $0x38] sm:$0xff] %vm240, %v231
  %249 = vst.msk [vmem:[%s3 + $0x40] sm:$0xff] %vm240, %v232
  %250 = vst.msk [vmem:[%s3 + $0x48] sm:$0xff] %vm240, %v233
  %251 = vst.msk [vmem:[%s3 + $0x50] sm:$0xff] %vm240, %v234
  %252 = vst.msk [vmem:[%s3 + $0x58] sm:$0xff] %vm240, %v235
  %253 = vst.msk [vmem:[%s3 + $0x60] sm:$0xff] %vm240, %v236
  %254 = vst.msk [vmem:[%s3 + $0x68] sm:$0xff] %vm240, %v237
  %255 = vst.msk [vmem:[%s3 + $0x70] sm:$0xff] %vm240, %v238
  %256 = vst.msk [vmem:[%s3 + $0x78] sm:$0xff] %vm240, %v239
  // Predicated region
  $region14: #{cnn_attention_net_forward.82} parent=0 // pred_check
    _
  $region15: #{cnn_attention_net_forward.82} parent=0 // pred_check_branch
    %258 = sbr.rel (0) target = $region17
  $region16: #{cnn_attention_net_forward.82} parent=0 // pred_region
    _
  $region17: #{cnn_attention_net_forward.82} parent=0 // pred_fallthru
    _
  // Predicated region
  $region18: #{cnn_attention_net_forward.82} parent=0 // pred_check
    _
  $region19: #{cnn_attention_net_forward.82} parent=0 // pred_check_branch
    %260 = sbr.rel (0) target = $region21
  $region20: #{cnn_attention_net_forward.82} parent=0 // pred_region
    _
  $region21: #{cnn_attention_net_forward.82} parent=0 // pred_fallthru
    _

// kernel: cnn_attention_net_forward.90
$region0: #{cnn_attention_net_forward.90}
  #allocation0 [shape = 'u32[]', space=smem, size = 0x4, offset = 0x4, fixed_abs, tag = 'smem constant byte address 0x4 - core index']
  #allocation1 [shape = 'u32[144,128]{1,0:T(1,128)}', space=vmem, size = 0x12000, scoped, tag = 'internal scratch']
  #allocation2 [shape = 'f32[1,1]{1,0:T(1,128)S(1)}', space=vmem, size = 0x200, scoped, tag = 'scoped memory for cnn_attention_net_forward.90']
  %s0 = inlined_call_operand.vmem [shape: f32[16,4], index: 0, kind: input, shape index: {}]
  %s1 = inlined_call_operand.vmem [shape: f32[1,4], index: 1, kind: input, shape index: {}]
  %s2 = inlined_call_operand.vmem [shape: f32[1,4], index: 2, kind: input, shape index: {}]
  %s3 = inlined_call_operand.vmem [shape: bf16[4,1], index: 3, kind: input, shape index: {}]
  %s4 = inlined_call_operand.<no memory space> [shape: f32[1,1], index: 4, kind: input, shape index: {}]
  %s5 = inlined_call_operand.vmem [shape: f32[16,1], index: 5, kind: output, shape index: {}]
  %s6 = sld [smem:[#allocation0]]
  $region30: #{cnn_attention_net_forward.90} parent=0
    _
  %s8 = ssub.s32 1, %s6
  %s9 = scalar_select 0, %s8, %s6
  %v10 = vstv %s4
  %11 = vst [vmem:[#allocation2] sm:$0x1] %v10
  // Predicated region
  $region2: #{cnn_attention_net_forward.90} parent=0 // pred_check
    _
  $region3: #{cnn_attention_net_forward.90} parent=0 // pred_check_branch
    %13 = sbr.rel (0) target = $region5
  $region4: #{cnn_attention_net_forward.90} parent=0 // pred_region
    _
  $region5: #{cnn_attention_net_forward.90} parent=0 // pred_fallthru
    _
  // Predicated region
  $region6: #{cnn_attention_net_forward.90} parent=0 // pred_check
    _
  $region7: #{cnn_attention_net_forward.90} parent=0 // pred_check_branch
    %15 = sbr.rel (0) target = $region9
  $region8: #{cnn_attention_net_forward.90} parent=0 // pred_region
    _
  $region9: #{cnn_attention_net_forward.90} parent=0 // pred_fallthru
    _
  // Predicated region
  $region10: #{cnn_attention_net_forward.90} parent=0 // pred_check
    _
  $region11: #{cnn_attention_net_forward.90} parent=0 // pred_check_branch
    %17 = sbr.rel (0) target = $region13
  $region12: #{cnn_attention_net_forward.90} parent=0 // pred_region
    _
  $region13: #{cnn_attention_net_forward.90} parent=0 // pred_fallthru
    _
  // Predicated region
  $region14: #{cnn_attention_net_forward.90} parent=0 // pred_check
    _
  $region15: #{cnn_attention_net_forward.90} parent=0 // pred_check_branch
    %19 = sbr.rel (0) target = $region17
  $region16: #{cnn_attention_net_forward.90} parent=0 // pred_region
    _
  $region17: #{cnn_attention_net_forward.90} parent=0 // pred_fallthru
    _
  // Predicated region
  $region18: #{cnn_attention_net_forward.90} parent=0 // pred_check
    _
  $region19: #{cnn_attention_net_forward.90} parent=0 // pred_check_branch
    %21 = sbr.rel (0) target = $region21
  $region20: #{cnn_attention_net_forward.90} parent=0 // pred_region
    _
  $region21: #{cnn_attention_net_forward.90} parent=0 // pred_fallthru
    _
  %v23 = vld [vmem:[%s0] sm:$0xff]
  %v24 = vld [vmem:[%s0 + $0x8] sm:$0xff]
  %v25 = vld [vmem:[%s1] sm:$0x1]
  %v27 = vlaneseq
  %v28 = vshrl.u32 %v27, 7
  %v29 = vsub.s32 0, %v28
  %v30 = vrot.slane %v25, %v29
  %v32 = vmul.f32 %v23, %v30
  %v33 = vmul.f32 %v24, %v30
  %v34 = vld [vmem:[%s2] sm:$0x1]
  %v36 = vlaneseq
  %v37 = vshrl.u32 %v36, 7
  %v38 = vsub.s32 0, %v37
  %v39 = vrot.slane %v34, %v38
  %v41 = vadd.f32 %v32, %v39
  %v42 = vadd.f32 %v33, %v39
  %v43 = vmax.f32 %v41, 0.0
  %v44 = vmax.f32 %v42, 0.0
  %v45 = vpack.c.bf16 %v44, %v43
  %v46 = vld [vmem:[%s3] sm:$0x3]
  %v47 = vld [vmem:[#allocation2] sm:$0x1]
  %v49 = vlaneseq
  %v50 = vshrl.u32 %v49, 7
  %v51 = vsub.s32 0, %v50
  %v52 = vrot.slane %v47, %v51
  %vm54 = vcmask 31744
  %v56 = vsel %vm54, %v45, 0
  %vm58 = vcmask 1041408
  %v60 = vsel %vm58, %v46, 0
  %62 = vmatprep.subr.bf16.mxu0 0
  %63 = vmatpush1.bf16.msra.mxu0 0
  %64 = vmatprep.subr.bf16.mxu0 0
  %65 = vmatpush1.bf16.msra.mxu0 0
  %66 = vmatprep.subr.bf16.mxu0 0
  %67 = vmatpush1.bf16.msra.mxu0 0
  %68 = vmatprep.subr.bf16.mxu0 0
  %69 = vmatpush1.bf16.msra.mxu0 0
  %70 = vmatprep.subr.bf16.mxu0 0
  %71 = vmatpush1.bf16.msra.mxu0 0
  %72 = vmatprep.subr.bf16.mxu0 0
  %73 = vmatpush1.bf16.msra.mxu0 0
  %74 = vmatprep.subr.bf16.mxu0 0
  %75 = vmatpush1.bf16.msra.mxu0 0
  %76 = vmatprep.subr.bf16.mxu0 0
  %77 = vmatpush1.bf16.msra.mxu0 %v60
  %78 = vmatprep.subr.bf16.mxu0 0
  %79 = vmatpush2.bf16.msra.mxu0 0
  %80 = vmatprep.subr.bf16.mxu0 0
  %81 = vmatpush2.bf16.msra.mxu0 0
  %82 = vmatprep.subr.bf16.mxu0 0
  %83 = vmatpush2.bf16.msra.mxu0 0
  %84 = vmatprep.subr.bf16.mxu0 0
  %85 = vmatpush2.bf16.msra.mxu0 0
  %86 = vmatprep.subr.bf16.mxu0 0
  %87 = vmatpush2.bf16.msra.mxu0 0
  %88 = vmatprep.subr.bf16.mxu0 0
  %89 = vmatpush2.bf16.msra.mxu0 0
  %90 = vmatprep.subr.bf16.mxu0 0
  %91 = vmatpush2.bf16.msra.mxu0 0
  %92 = vmatprep.subr.bf16.mxu0 0
  %93 = vmatpush2.bf16.msra.mxu0 0
  %94 = vmatprep.mubr.bf16.mxu0 0
  %95 = vmatmul.mubr.bf16.gmra.mxu0 %v56
  %v96 = vpop.f32.mrf.mxu0
  %v97 = vadd.f32 %v52, %v96
  %v98 = vpop.f32.mrf.mxu0
  %v99 = vpop.f32.mrf.mxu0
  %v100 = vadd.f32 %v52, %v99
  %v101 = vpop.f32.mrf.mxu0
  %102 = vdwg.mxu0
  %v103 = vmax.f32 %v97, 0.0
  %v104 = vmax.f32 %v100, 0.0
  %vm105 = vcmask 7168
  %106 = vst.msk [vmem:[%s5] sm:$0xff] %vm105, %v103
  %107 = vst.msk [vmem:[%s5 + $0x8] sm:$0xff] %vm105, %v104
  // Predicated region
  $region22: #{cnn_attention_net_forward.90} parent=0 // pred_check
    _
  $region23: #{cnn_attention_net_forward.90} parent=0 // pred_check_branch
    %109 = sbr.rel (0) target = $region25
  $region24: #{cnn_attention_net_forward.90} parent=0 // pred_region
    _
  $region25: #{cnn_attention_net_forward.90} parent=0 // pred_fallthru
    _
  // Predicated region
  $region26: #{cnn_attention_net_forward.90} parent=0 // pred_check
    _
  $region27: #{cnn_attention_net_forward.90} parent=0 // pred_check_branch
    %111 = sbr.rel (0) target = $region29
  $region28: #{cnn_attention_net_forward.90} parent=0 // pred_region
    _
  $region29: #{cnn_attention_net_forward.90} parent=0 // pred_fallthru
    _

// kernel: cnn_attention_net_forward.91
$region0: #{cnn_attention_net_forward.91}
  #allocation0 [shape = 'u32[]', space=smem, size = 0x4, offset = 0x4, fixed_abs, tag = 'smem constant byte address 0x4 - core index']
  #allocation1 [shape = 'u32[144,128]{1,0:T(1,128)}', space=vmem, size = 0x12000, scoped, tag = 'internal scratch']
  #allocation2 [shape = 'f32[1,1]{1,0:T(1,128)S(1)}', space=vmem, size = 0x200, scoped, tag = 'scoped memory for cnn_attention_net_forward.91']
  %s0 = inlined_call_operand.vmem [shape: bf16[16,27], index: 0, kind: input, shape index: {}]
  %s1 = inlined_call_operand.vmem [shape: bf16[27,1], index: 1, kind: input, shape index: {}]
  %s2 = inlined_call_operand.<no memory space> [shape: f32[1,1], index: 2, kind: input, shape index: {}]
  %s3 = inlined_call_operand.vmem [shape: f32[16,1], index: 3, kind: output, shape index: {}]
  %s4 = sld [smem:[#allocation0]]
  $region22: #{cnn_attention_net_forward.91} parent=0
    _
  %s6 = ssub.s32 1, %s4
  %s7 = scalar_select 0, %s6, %s4
  %v8 = vstv %s2
  %9 = vst [vmem:[#allocation2] sm:$0x1] %v8
  // Predicated region
  $region2: #{cnn_attention_net_forward.91} parent=0 // pred_check
    _
  $region3: #{cnn_attention_net_forward.91} parent=0 // pred_check_branch
    %11 = sbr.rel (0) target = $region5
  $region4: #{cnn_attention_net_forward.91} parent=0 // pred_region
    _
  $region5: #{cnn_attention_net_forward.91} parent=0 // pred_fallthru
    _
  // Predicated region
  $region6: #{cnn_attention_net_forward.91} parent=0 // pred_check
    _
  $region7: #{cnn_attention_net_forward.91} parent=0 // pred_check_branch
    %13 = sbr.rel (0) target = $region9
  $region8: #{cnn_attention_net_forward.91} parent=0 // pred_region
    _
  $region9: #{cnn_attention_net_forward.91} parent=0 // pred_fallthru
    _
  // Predicated region
  $region10: #{cnn_attention_net_forward.91} parent=0 // pred_check
    _
  $region11: #{cnn_attention_net_forward.91} parent=0 // pred_check_branch
    %15 = sbr.rel (0) target = $region13
  $region12: #{cnn_attention_net_forward.91} parent=0 // pred_region
    _
  $region13: #{cnn_attention_net_forward.91} parent=0 // pred_fallthru
    _
  %v17 = vld [vmem:[%s0] sm:$0xf]
  %v18 = vld [vmem:[%s0 + $0x4] sm:$0xf]
  %v19 = vld [vmem:[%s1] sm:$0xf]
  %v20 = vld [vmem:[%s1 + $0x4] sm:$0xf]
  %v21 = vld [vmem:[%s1 + $0x8] sm:$0xf]
  %v22 = vld [vmem:[%s1 + $0xc] sm:$0x3]
  %v23 = vld [vmem:[#allocation2] sm:$0x1]
  %v25 = vlaneseq
  %v26 = vshrl.u32 %v25, 7
  %v27 = vsub.s32 0, %v26
  %v28 = vrot.slane %v23, %v27
  %v32 = vunpack.c.l.b16 %v17
  %v33 = vunpack.c.l.b16 %v18
  %v34 = vpack.c.b16 %v33, %v32
  %v39 = vunpack.c.l.b16 %v19
  %v40 = vunpack.c.l.b16 %v20
  %v41 = vunpack.c.l.b16 %v21
  %v42 = vunpack.c.l.b16 %v22
  %v43 = vpack.c.b16 %v40, %v39
  %v44 = vpack.c.b16 %v42, %v41
  %vm46 = vcmask 220160
  %v48 = vsel %vm46, %v34, 0
  %vm50 = vcmask 1044480
  %vm51 = vcmask 1045504
  %v52 = vsel %vm50, 4294967295, 65535
  %v53 = vsel %vm51, %v52, 0
  %v55 = vand.u32 %v44, %v53
  %57 = vmatprep.subr.bf16.mxu0 0
  %58 = vmatpush1.bf16.msra.mxu0 0
  %59 = vmatprep.subr.bf16.mxu0 0
  %60 = vmatpush1.bf16.msra.mxu0 0
  %61 = vmatprep.subr.bf16.mxu0 0
  %62 = vmatpush1.bf16.msra.mxu0 0
  %63 = vmatprep.subr.bf16.mxu0 0
  %64 = vmatpush1.bf16.msra.mxu0 0
  %65 = vmatprep.subr.bf16.mxu0 0
  %66 = vmatpush1.bf16.msra.mxu0 0
  %67 = vmatprep.subr.bf16.mxu0 0
  %68 = vmatpush1.bf16.msra.mxu0 0
  %69 = vmatprep.subr.bf16.mxu0 0
  %70 = vmatpush1.bf16.msra.mxu0 %v55
  %71 = vmatprep.subr.bf16.mxu0 0
  %72 = vmatpush1.bf16.msra.mxu0 %v43
  %73 = vmatprep.subr.bf16.mxu0 0
  %74 = vmatpush2.bf16.msra.mxu0 0
  %75 = vmatprep.subr.bf16.mxu0 0
  %76 = vmatpush2.bf16.msra.mxu0 0
  %77 = vmatprep.subr.bf16.mxu0 0
  %78 = vmatpush2.bf16.msra.mxu0 0
  %79 = vmatprep.subr.bf16.mxu0 0
  %80 = vmatpush2.bf16.msra.mxu0 0
  %81 = vmatprep.subr.bf16.mxu0 0
  %82 = vmatpush2.bf16.msra.mxu0 0
  %83 = vmatprep.subr.bf16.mxu0 0
  %84 = vmatpush2.bf16.msra.mxu0 0
  %85 = vmatprep.subr.bf16.mxu0 0
  %86 = vmatpush2.bf16.msra.mxu0 0
  %87 = vmatprep.subr.bf16.mxu0 0
  %88 = vmatpush2.bf16.msra.mxu0 0
  %89 = vmatprep.mubr.bf16.mxu0 0
  %90 = vmatmul.mubr.bf16.gmra.mxu0 %v48
  %v91 = vpop.f32.mrf.mxu0
  %v92 = vadd.f32 %v28, %v91
  %v93 = vpop.f32.mrf.mxu0
  %v94 = vpop.f32.mrf.mxu0
  %v95 = vadd.f32 %v28, %v94
  %v96 = vpop.f32.mrf.mxu0
  %97 = vdwg.mxu0
  %v98 = vmax.f32 %v92, 0.0
  %v99 = vmax.f32 %v95, 0.0
  %vm100 = vcmask 7168
  %101 = vst.msk [vmem:[%s3] sm:$0xff] %vm100, %v98
  %102 = vst.msk [vmem:[%s3 + $0x8] sm:$0xff] %vm100, %v99
  // Predicated region
  $region14: #{cnn_attention_net_forward.91} parent=0 // pred_check
    _
  $region15: #{cnn_attention_net_forward.91} parent=0 // pred_check_branch
    %104 = sbr.rel (0) target = $region17
  $region16: #{cnn_attention_net_forward.91} parent=0 // pred_region
    _
  $region17: #{cnn_attention_net_forward.91} parent=0 // pred_fallthru
    _
  // Predicated region
  $region18: #{cnn_attention_net_forward.91} parent=0 // pred_check
    _
  $region19: #{cnn_attention_net_forward.91} parent=0 // pred_check_branch
    %106 = sbr.rel (0) target = $region21
  $region20: #{cnn_attention_net_forward.91} parent=0 // pred_region
    _
  $region21: #{cnn_attention_net_forward.91} parent=0 // pred_fallthru
    _

// kernel: cnn_attention_net_forward.92
$region0: #{cnn_attention_net_forward.92}
  #allocation0 [shape = 'u32[]', space=smem, size = 0x4, offset = 0x4, fixed_abs, tag = 'smem constant byte address 0x4 - core index']
  #allocation1 [shape = 'u32[144,128]{1,0:T(1,128)}', space=vmem, size = 0x12000, scoped, tag = 'internal scratch']
  %s0 = inlined_call_operand.vmem [shape: f32[16,1], index: 0, kind: input, shape index: {}]
  %s1 = inlined_call_operand.hbm [shape: bf16[1,4], index: 1, kind: input, shape index: {}]
  %s2 = inlined_call_operand.vmem [shape: f32[16,4], index: 2, kind: input, shape index: {}]
  %s3 = inlined_call_operand.vmem [shape: f32[16,4], index: 3, kind: output, shape index: {}]
  %s4 = sld [smem:[#allocation0]]
  $region26: #{cnn_attention_net_forward.92} parent=0
    _
  %s6 = ssub.s32 1, %s4
  %s7 = scalar_select 0, %s6, %s4
  $region1: #{cnn_attention_net_forward.92} parent=0
    #allocation2 [shape = 'u8[512]{0}', space=vmem, size = 0x400, scoped, tag = 'input window, operand 1, single buffered']
    #allocation3 [shape = 's32[1]{0}', space=sflag, size = 0x4, scoped, tag = 'scoped memory for cnn_attention_net_forward.92']
    %8 = vsyncpa [#allocation3], 0
    // Predicated region
    $region2: #{cnn_attention_net_forward.92} parent=1 // pred_check
      _
    $region3: #{cnn_attention_net_forward.92} parent=1 // pred_check_branch
      %10 = sbr.rel (0) target = $region5
    $region4: #{cnn_attention_net_forward.92} parent=1 // pred_region
      _
    $region5: #{cnn_attention_net_forward.92} parent=1 // pred_fallthru
      _
    // Predicated region
    $region6: #{cnn_attention_net_forward.92} parent=1 // pred_check
      _
    $region7: #{cnn_attention_net_forward.92} parent=1 // pred_check_branch
      %12 = sbr.rel (0) target = $region9
    $region8: #{cnn_attention_net_forward.92} parent=1 // pred_region
      %s14 = ssub.s32 16, 16
      %15 = vsyncadd [#allocation3], %s14
      %s17 = sshll.u32 [#allocation2], 4
      %s18 = int_to_ptr.vmem [resolvable:$true] %s17
      %20 = dma.hbm_to_vmem [thread:$0]  %s1, 16, %s18, [#allocation3]
    $region9: #{cnn_attention_net_forward.92} parent=1 // pred_fallthru
      _
    // Predicated region
    $region10: #{cnn_attention_net_forward.92} parent=1 // pred_check
      _
    $region11: #{cnn_attention_net_forward.92} parent=1 // pred_check_branch
      %22 = sbr.rel (0) target = $region13
    $region12: #{cnn_attention_net_forward.92} parent=1 // pred_region
      _
    $region13: #{cnn_attention_net_forward.92} parent=1 // pred_fallthru
      _
    // Predicated region
    $region14: #{cnn_attention_net_forward.92} parent=1 // pred_check
      _
    $region15: #{cnn_attention_net_forward.92} parent=1 // pred_check_branch
      %24 = sbr.rel (0) target = $region17
    $region16: #{cnn_attention_net_forward.92} parent=1 // pred_region
      %25 = dma.done [#allocation3], 16
    $region17: #{cnn_attention_net_forward.92} parent=1 // pred_fallthru
      _
    %v27 = vld [vmem:[%s0] sm:$0xff]
    %v28 = vld [vmem:[%s0 + $0x8] sm:$0xff]
    %v29 = vpack.c.bf16 %v28, %v27
    %v30 = vld [vmem:[#allocation2] sm:$0x1]
    %v31 = vld [vmem:[%s2] sm:$0xff]
    %v32 = vld [vmem:[%s2 + $0x8] sm:$0xff]
    %vm33 = vcmask 7168
    %v35 = vsel %vm33, %v29, 0
    %vm37 = vcmask 1040384
    %v38 = vsel 0, 4294967295, 65535
    %v39 = vsel %vm37, %v38, 0
    %v41 = vand.u32 %v30, %v39
    %43 = vmatprep.subr.bf16.mxu0 0
    %44 = vmatpush1.bf16.msra.mxu0 0
    %45 = vmatprep.subr.bf16.mxu0 0
    %46 = vmatpush1.bf16.msra.mxu0 0
    %47 = vmatprep.subr.bf16.mxu0 0
    %48 = vmatpush1.bf16.msra.mxu0 0
    %49 = vmatprep.subr.bf16.mxu0 0
    %50 = vmatpush1.bf16.msra.mxu0 0
    %51 = vmatprep.subr.bf16.mxu0 0
    %52 = vmatpush1.bf16.msra.mxu0 0
    %53 = vmatprep.subr.bf16.mxu0 0
    %54 = vmatpush1.bf16.msra.mxu0 0
    %55 = vmatprep.subr.bf16.mxu0 0
    %56 = vmatpush1.bf16.msra.mxu0 0
    %57 = vmatprep.subr.bf16.mxu0 0
    %58 = vmatpush1.bf16.msra.mxu0 %v41
    %59 = vmatprep.subr.bf16.mxu0 0
    %60 = vmatpush2.bf16.msra.mxu0 0
    %61 = vmatprep.subr.bf16.mxu0 0
    %62 = vmatpush2.bf16.msra.mxu0 0
    %63 = vmatprep.subr.bf16.mxu0 0
    %64 = vmatpush2.bf16.msra.mxu0 0
    %65 = vmatprep.subr.bf16.mxu0 0
    %66 = vmatpush2.bf16.msra.mxu0 0
    %67 = vmatprep.subr.bf16.mxu0 0
    %68 = vmatpush2.bf16.msra.mxu0 0
    %69 = vmatprep.subr.bf16.mxu0 0
    %70 = vmatpush2.bf16.msra.mxu0 0
    %71 = vmatprep.subr.bf16.mxu0 0
    %72 = vmatpush2.bf16.msra.mxu0 0
    %73 = vmatprep.subr.bf16.mxu0 0
    %74 = vmatpush2.bf16.msra.mxu0 0
    %75 = vmatprep.mubr.bf16.mxu0 0
    %76 = vmatmul.mubr.bf16.gmra.mxu0 %v35
    %v77 = vpop.f32.mrf.mxu0
    %v78 = vadd.f32 %v31, %v77
    %v79 = vpop.f32.mrf.mxu0
    %v80 = vpop.f32.mrf.mxu0
    %v81 = vadd.f32 %v32, %v80
    %v82 = vpop.f32.mrf.mxu0
    %83 = vdwg.mxu0
    %vm84 = vcmask 31744
    %85 = vst.msk [vmem:[%s3] sm:$0xff] %vm84, %v78
    %86 = vst.msk [vmem:[%s3 + $0x8] sm:$0xff] %vm84, %v81
    // Predicated region
    $region18: #{cnn_attention_net_forward.92} parent=1 // pred_check
      _
    $region19: #{cnn_attention_net_forward.92} parent=1 // pred_check_branch
      %88 = sbr.rel (0) target = $region21
    $region20: #{cnn_attention_net_forward.92} parent=1 // pred_region
      _
    $region21: #{cnn_attention_net_forward.92} parent=1 // pred_fallthru
      _
    // Predicated region
    $region22: #{cnn_attention_net_forward.92} parent=1 // pred_check
      _
    $region23: #{cnn_attention_net_forward.92} parent=1 // pred_check_branch
      %90 = sbr.rel (0) target = $region25
    $region24: #{cnn_attention_net_forward.92} parent=1 // pred_region
      _
    $region25: #{cnn_attention_net_forward.92} parent=1 // pred_fallthru
      _
    %91 = vsyncpa [#allocation3], 1

// kernel: cnn_attention_net_forward.93
$region0: #{cnn_attention_net_forward.93}
  #allocation0 [shape = 'u32[]', space=smem, size = 0x4, offset = 0x4, fixed_abs, tag = 'smem constant byte address 0x4 - core index']
  #allocation1 [shape = 'u32[144,128]{1,0:T(1,128)}', space=vmem, size = 0x12000, scoped, tag = 'internal scratch']
  #allocation2 [shape = 'f32[1,1]{1,0:T(1,128)S(1)}', space=vmem, size = 0x200, scoped, tag = 'scoped memory for cnn_attention_net_forward.93']
  %s0 = inlined_call_operand.vmem [shape: f32[16,4], index: 0, kind: input, shape index: {}]
  %s1 = inlined_call_operand.hbm [shape: f32[1,4], index: 1, kind: input, shape index: {}]
  %s2 = inlined_call_operand.hbm [shape: f32[1,4], index: 2, kind: input, shape index: {}]
  %s3 = inlined_call_operand.vmem [shape: bf16[4,1], index: 3, kind: input, shape index: {}]
  %s4 = inlined_call_operand.<no memory space> [shape: f32[1,1], index: 4, kind: input, shape index: {}]
  %s5 = inlined_call_operand.vmem [shape: f32[16,1], index: 5, kind: output, shape index: {}]
  %s6 = sld [smem:[#allocation0]]
  $region38: #{cnn_attention_net_forward.93} parent=0
    _
  %s8 = ssub.s32 1, %s6
  %s9 = scalar_select 0, %s8, %s6
  %v10 = vstv %s4
  %11 = vst [vmem:[#allocation2] sm:$0x1] %v10
  $region1: #{cnn_attention_net_forward.93} parent=0
    #allocation3 [shape = 'u8[512]{0}', space=vmem, size = 0x400, scoped, tag = 'input window, operand 1, single buffered']
    #allocation4 [shape = 's32[1]{0}', space=sflag, size = 0x4, scoped, tag = 'scoped memory for cnn_attention_net_forward.93']
    #allocation5 [shape = 'u8[512]{0}', space=vmem, size = 0x400, scoped, tag = 'input window, operand 2, single buffered']
    #allocation6 [shape = 's32[1]{0}', space=sflag, size = 0x4, scoped, tag = 'scoped memory for cnn_attention_net_forward.93']
    %12 = vsyncpa [#allocation4], 0
    %13 = vsyncpa [#allocation6], 0
    // Predicated region
    $region2: #{cnn_attention_net_forward.93} parent=1 // pred_check
      _
    $region3: #{cnn_attention_net_forward.93} parent=1 // pred_check_branch
      %15 = sbr.rel (0) target = $region5
    $region4: #{cnn_attention_net_forward.93} parent=1 // pred_region
      _
    $region5: #{cnn_attention_net_forward.93} parent=1 // pred_fallthru
      _
    // Predicated region
    $region6: #{cnn_attention_net_forward.93} parent=1 // pred_check
      _
    $region7: #{cnn_attention_net_forward.93} parent=1 // pred_check_branch
      %17 = sbr.rel (0) target = $region9
    $region8: #{cnn_attention_net_forward.93} parent=1 // pred_region
      %s19 = ssub.s32 16, 16
      %20 = vsyncadd [#allocation4], %s19
      %s22 = sshll.u32 [#allocation3], 4
      %s23 = int_to_ptr.vmem [resolvable:$true] %s22
      %25 = dma.hbm_to_vmem [thread:$0]  %s1, 16, %s23, [#allocation4]
    $region9: #{cnn_attention_net_forward.93} parent=1 // pred_fallthru
      _
    // Predicated region
    $region10: #{cnn_attention_net_forward.93} parent=1 // pred_check
      _
    $region11: #{cnn_attention_net_forward.93} parent=1 // pred_check_branch
      %27 = sbr.rel (0) target = $region13
    $region12: #{cnn_attention_net_forward.93} parent=1 // pred_region
      %s29 = ssub.s32 16, 16
      %30 = vsyncadd [#allocation6], %s29
      %s32 = sshll.u32 [#allocation5], 4
      %s33 = int_to_ptr.vmem [resolvable:$true] %s32
      %35 = dma.hbm_to_vmem [thread:$0]  %s2, 16, %s33, [#allocation6]
    $region13: #{cnn_attention_net_forward.93} parent=1 // pred_fallthru
      _
    // Predicated region
    $region14: #{cnn_attention_net_forward.93} parent=1 // pred_check
      _
    $region15: #{cnn_attention_net_forward.93} parent=1 // pred_check_branch
      %37 = sbr.rel (0) target = $region17
    $region16: #{cnn_attention_net_forward.93} parent=1 // pred_region
      _
    $region17: #{cnn_attention_net_forward.93} parent=1 // pred_fallthru
      _
    // Predicated region
    $region18: #{cnn_attention_net_forward.93} parent=1 // pred_check
      _
    $region19: #{cnn_attention_net_forward.93} parent=1 // pred_check_branch
      %39 = sbr.rel (0) target = $region21
    $region20: #{cnn_attention_net_forward.93} parent=1 // pred_region
      _
    $region21: #{cnn_attention_net_forward.93} parent=1 // pred_fallthru
      _
    // Predicated region
    $region22: #{cnn_attention_net_forward.93} parent=1 // pred_check
      _
    $region23: #{cnn_attention_net_forward.93} parent=1 // pred_check_branch
      %41 = sbr.rel (0) target = $region25
    $region24: #{cnn_attention_net_forward.93} parent=1 // pred_region
      %42 = dma.done [#allocation4], 16
    $region25: #{cnn_attention_net_forward.93} parent=1 // pred_fallthru
      _
    // Predicated region
    $region26: #{cnn_attention_net_forward.93} parent=1 // pred_check
      _
    $region27: #{cnn_attention_net_forward.93} parent=1 // pred_check_branch
      %44 = sbr.rel (0) target = $region29
    $region28: #{cnn_attention_net_forward.93} parent=1 // pred_region
      %45 = dma.done [#allocation6], 16
    $region29: #{cnn_attention_net_forward.93} parent=1 // pred_fallthru
      _
    %v47 = vld [vmem:[%s0] sm:$0xff]
    %v48 = vld [vmem:[%s0 + $0x8] sm:$0xff]
    %v49 = vld [vmem:[#allocation3] sm:$0x1]
    %v51 = vlaneseq
    %v52 = vshrl.u32 %v51, 7
    %v53 = vsub.s32 0, %v52
    %v54 = vrot.slane %v49, %v53
    %v56 = vmul.f32 %v47, %v54
    %v57 = vmul.f32 %v48, %v54
    %v58 = vld [vmem:[#allocation5] sm:$0x1]
    %v60 = vlaneseq
    %v61 = vshrl.u32 %v60, 7
    %v62 = vsub.s32 0, %v61
    %v63 = vrot.slane %v58, %v62
    %v65 = vadd.f32 %v56, %v63
    %v66 = vadd.f32 %v57, %v63
    %v67 = vmax.f32 %v65, 0.0
    %v68 = vmax.f32 %v66, 0.0
    %v69 = vpack.c.bf16 %v68, %v67
    %v70 = vld [vmem:[%s3] sm:$0x3]
    %v71 = vld [vmem:[#allocation2] sm:$0x1]
    %v73 = vlaneseq
    %v74 = vshrl.u32 %v73, 7
    %v75 = vsub.s32 0, %v74
    %v76 = vrot.slane %v71, %v75
    %vm78 = vcmask 31744
    %v80 = vsel %vm78, %v69, 0
    %vm82 = vcmask 1041408
    %v84 = vsel %vm82, %v70, 0
    %86 = vmatprep.subr.bf16.mxu0 0
    %87 = vmatpush1.bf16.msra.mxu0 0
    %88 = vmatprep.subr.bf16.mxu0 0
    %89 = vmatpush1.bf16.msra.mxu0 0
    %90 = vmatprep.subr.bf16.mxu0 0
    %91 = vmatpush1.bf16.msra.mxu0 0
    %92 = vmatprep.subr.bf16.mxu0 0
    %93 = vmatpush1.bf16.msra.mxu0 0
    %94 = vmatprep.subr.bf16.mxu0 0
    %95 = vmatpush1.bf16.msra.mxu0 0
    %96 = vmatprep.subr.bf16.mxu0 0
    %97 = vmatpush1.bf16.msra.mxu0 0
    %98 = vmatprep.subr.bf16.mxu0 0
    %99 = vmatpush1.bf16.msra.mxu0 0
    %100 = vmatprep.subr.bf16.mxu0 0
    %101 = vmatpush1.bf16.msra.mxu0 %v84
    %102 = vmatprep.subr.bf16.mxu0 0
    %103 = vmatpush2.bf16.msra.mxu0 0
    %104 = vmatprep.subr.bf16.mxu0 0
    %105 = vmatpush2.bf16.msra.mxu0 0
    %106 = vmatprep.subr.bf16.mxu0 0
    %107 = vmatpush2.bf16.msra.mxu0 0
    %108 = vmatprep.subr.bf16.mxu0 0
    %109 = vmatpush2.bf16.msra.mxu0 0
    %110 = vmatprep.subr.bf16.mxu0 0
    %111 = vmatpush2.bf16.msra.mxu0 0
    %112 = vmatprep.subr.bf16.mxu0 0
    %113 = vmatpush2.bf16.msra.mxu0 0
    %114 = vmatprep.subr.bf16.mxu0 0
    %115 = vmatpush2.bf16.msra.mxu0 0
    %116 = vmatprep.subr.bf16.mxu0 0
    %117 = vmatpush2.bf16.msra.mxu0 0
    %118 = vmatprep.mubr.bf16.mxu0 0
    %119 = vmatmul.mubr.bf16.gmra.mxu0 %v80
    %v120 = vpop.f32.mrf.mxu0
    %v121 = vadd.f32 %v76, %v120
    %v122 = vpop.f32.mrf.mxu0
    %v123 = vpop.f32.mrf.mxu0
    %v124 = vadd.f32 %v76, %v123
    %v125 = vpop.f32.mrf.mxu0
    %126 = vdwg.mxu0
    %v127 = vmax.f32 %v121, 0.0
    %v128 = vmax.f32 %v124, 0.0
    %vm129 = vcmask 7168
    %130 = vst.msk [vmem:[%s5] sm:$0xff] %vm129, %v127
    %131 = vst.msk [vmem:[%s5 + $0x8] sm:$0xff] %vm129, %v128
    // Predicated region
    $region30: #{cnn_attention_net_forward.93} parent=1 // pred_check
      _
    $region31: #{cnn_attention_net_forward.93} parent=1 // pred_check_branch
      %133 = sbr.rel (0) target = $region33
    $region32: #{cnn_attention_net_forward.93} parent=1 // pred_region
      _
    $region33: #{cnn_attention_net_forward.93} parent=1 // pred_fallthru
      _
    // Predicated region
    $region34: #{cnn_attention_net_forward.93} parent=1 // pred_check
      _
    $region35: #{cnn_attention_net_forward.93} parent=1 // pred_check_branch
      %135 = sbr.rel (0) target = $region37
    $region36: #{cnn_attention_net_forward.93} parent=1 // pred_region
      _
    $region37: #{cnn_attention_net_forward.93} parent=1 // pred_fallthru
      _
    %136 = vsyncpa [#allocation4], 1
    %137 = vsyncpa [#allocation6], 1

// kernel: cnn_attention_net_forward.96
$region0: #{cnn_attention_net_forward.96}
  #allocation0 [shape = 'u32[]', space=smem, size = 0x4, offset = 0x4, fixed_abs, tag = 'smem constant byte address 0x4 - core index']
  #allocation1 [shape = 'u32[144,128]{1,0:T(1,128)}', space=vmem, size = 0x12000, scoped, tag = 'internal scratch']
  #allocation2 [shape = 'f32[1,1]{1,0:T(1,128)S(1)}', space=vmem, size = 0x200, scoped, tag = 'scoped memory for cnn_attention_net_forward.96']
  %s0 = inlined_call_operand.vmem [shape: f32[2,4], index: 0, kind: input, shape index: {}]
  %s1 = inlined_call_operand.hbm [shape: f32[1,4], index: 1, kind: input, shape index: {}]
  %s2 = inlined_call_operand.hbm [shape: f32[1,4], index: 2, kind: input, shape index: {}]
  %s3 = inlined_call_operand.vmem [shape: bf16[4,1], index: 3, kind: input, shape index: {}]
  %s4 = inlined_call_operand.<no memory space> [shape: f32[1,1], index: 4, kind: input, shape index: {}]
  %s5 = inlined_call_operand.vmem [shape: f32[2,1], index: 5, kind: output, shape index: {}]
  %s6 = sld [smem:[#allocation0]]
  $region38: #{cnn_attention_net_forward.96} parent=0
    _
  %s8 = ssub.s32 1, %s6
  %s9 = scalar_select 0, %s8, %s6
  %v10 = vstv %s4
  %11 = vst [vmem:[#allocation2] sm:$0x1] %v10
  $region1: #{cnn_attention_net_forward.96} parent=0
    #allocation3 [shape = 'u8[512]{0}', space=vmem, size = 0x400, scoped, tag = 'input window, operand 1, single buffered']
    #allocation4 [shape = 's32[1]{0}', space=sflag, size = 0x4, scoped, tag = 'scoped memory for cnn_attention_net_forward.96']
    #allocation5 [shape = 'u8[512]{0}', space=vmem, size = 0x400, scoped, tag = 'input window, operand 2, single buffered']
    #allocation6 [shape = 's32[1]{0}', space=sflag, size = 0x4, scoped, tag = 'scoped memory for cnn_attention_net_forward.96']
    %12 = vsyncpa [#allocation4], 0
    %13 = vsyncpa [#allocation6], 0
    // Predicated region
    $region2: #{cnn_attention_net_forward.96} parent=1 // pred_check
      _
    $region3: #{cnn_attention_net_forward.96} parent=1 // pred_check_branch
      %15 = sbr.rel (0) target = $region5
    $region4: #{cnn_attention_net_forward.96} parent=1 // pred_region
      _
    $region5: #{cnn_attention_net_forward.96} parent=1 // pred_fallthru
      _
    // Predicated region
    $region6: #{cnn_attention_net_forward.96} parent=1 // pred_check
      _
    $region7: #{cnn_attention_net_forward.96} parent=1 // pred_check_branch
      %17 = sbr.rel (0) target = $region9
    $region8: #{cnn_attention_net_forward.96} parent=1 // pred_region
      %s19 = ssub.s32 16, 16
      %20 = vsyncadd [#allocation4], %s19
      %s22 = sshll.u32 [#allocation3], 4
      %s23 = int_to_ptr.vmem [resolvable:$true] %s22
      %25 = dma.hbm_to_vmem [thread:$0]  %s1, 16, %s23, [#allocation4]
    $region9: #{cnn_attention_net_forward.96} parent=1 // pred_fallthru
      _
    // Predicated region
    $region10: #{cnn_attention_net_forward.96} parent=1 // pred_check
      _
    $region11: #{cnn_attention_net_forward.96} parent=1 // pred_check_branch
      %27 = sbr.rel (0) target = $region13
    $region12: #{cnn_attention_net_forward.96} parent=1 // pred_region
      %s29 = ssub.s32 16, 16
      %30 = vsyncadd [#allocation6], %s29
      %s32 = sshll.u32 [#allocation5], 4
      %s33 = int_to_ptr.vmem [resolvable:$true] %s32
      %35 = dma.hbm_to_vmem [thread:$0]  %s2, 16, %s33, [#allocation6]
    $region13: #{cnn_attention_net_forward.96} parent=1 // pred_fallthru
      _
    // Predicated region
    $region14: #{cnn_attention_net_forward.96} parent=1 // pred_check
      _
    $region15: #{cnn_attention_net_forward.96} parent=1 // pred_check_branch
      %37 = sbr.rel (0) target = $region17
    $region16: #{cnn_attention_net_forward.96} parent=1 // pred_region
      _
    $region17: #{cnn_attention_net_forward.96} parent=1 // pred_fallthru
      _
    // Predicated region
    $region18: #{cnn_attention_net_forward.96} parent=1 // pred_check
      _
    $region19: #{cnn_attention_net_forward.96} parent=1 // pred_check_branch
      %39 = sbr.rel (0) target = $region21
    $region20: #{cnn_attention_net_forward.96} parent=1 // pred_region
      _
    $region21: #{cnn_attention_net_forward.96} parent=1 // pred_fallthru
      _
    // Predicated region
    $region22: #{cnn_attention_net_forward.96} parent=1 // pred_check
      _
    $region23: #{cnn_attention_net_forward.96} parent=1 // pred_check_branch
      %41 = sbr.rel (0) target = $region25
    $region24: #{cnn_attention_net_forward.96} parent=1 // pred_region
      %42 = dma.done [#allocation4], 16
    $region25: #{cnn_attention_net_forward.96} parent=1 // pred_fallthru
      _
    // Predicated region
    $region26: #{cnn_attention_net_forward.96} parent=1 // pred_check
      _
    $region27: #{cnn_attention_net_forward.96} parent=1 // pred_check_branch
      %44 = sbr.rel (0) target = $region29
    $region28: #{cnn_attention_net_forward.96} parent=1 // pred_region
      %45 = dma.done [#allocation6], 16
    $region29: #{cnn_attention_net_forward.96} parent=1 // pred_fallthru
      _
    %v47 = vld [vmem:[%s0] sm:$0x3]
    %v48 = vld [vmem:[#allocation3] sm:$0x1]
    %v50 = vlaneseq
    %v51 = vshrl.u32 %v50, 7
    %v52 = vsub.s32 0, %v51
    %v53 = vrot.slane %v48, %v52
    %v55 = vmul.f32 %v47, %v53
    %v56 = vld [vmem:[#allocation5] sm:$0x1]
    %v58 = vlaneseq
    %v59 = vshrl.u32 %v58, 7
    %v60 = vsub.s32 0, %v59
    %v61 = vrot.slane %v56, %v60
    %v63 = vadd.f32 %v55, %v61
    %v64 = vmax.f32 %v63, 0.0
    %v65 = vpack.c.bf16 %v64, %v64
    %v66 = vld [vmem:[%s3] sm:$0x3]
    %v67 = vld [vmem:[#allocation2] sm:$0x1]
    %v69 = vlaneseq
    %v70 = vshrl.u32 %v69, 7
    %v71 = vsub.s32 0, %v70
    %v72 = vrot.slane %v67, %v71
    %vm74 = vcmask 31744
    %v76 = vsel %vm74, %v65, 0
    %vm78 = vcmask 1041408
    %v80 = vsel %vm78, %v66, 0
    %82 = vmatprep.subr.bf16.mxu0 0
    %83 = vmatpush1.bf16.msra.mxu0 0
    %84 = vmatprep.subr.bf16.mxu0 0
    %85 = vmatpush1.bf16.msra.mxu0 0
    %86 = vmatprep.subr.bf16.mxu0 0
    %87 = vmatpush1.bf16.msra.mxu0 0
    %88 = vmatprep.subr.bf16.mxu0 0
    %89 = vmatpush1.bf16.msra.mxu0 0
    %90 = vmatprep.subr.bf16.mxu0 0
    %91 = vmatpush1.bf16.msra.mxu0 0
    %92 = vmatprep.subr.bf16.mxu0 0
    %93 = vmatpush1.bf16.msra.mxu0 0
    %94 = vmatprep.subr.bf16.mxu0 0
    %95 = vmatpush1.bf16.msra.mxu0 0
    %96 = vmatprep.subr.bf16.mxu0 0
    %97 = vmatpush1.bf16.msra.mxu0 %v80
    %98 = vmatprep.subr.bf16.mxu0 0
    %99 = vmatpush2.bf16.msra.mxu0 0
    %100 = vmatprep.subr.bf16.mxu0 0
    %101 = vmatpush2.bf16.msra.mxu0 0
    %102 = vmatprep.subr.bf16.mxu0 0
    %103 = vmatpush2.bf16.msra.mxu0 0
    %104 = vmatprep.subr.bf16.mxu0 0
    %105 = vmatpush2.bf16.msra.mxu0 0
    %106 = vmatprep.subr.bf16.mxu0 0
    %107 = vmatpush2.bf16.msra.mxu0 0
    %108 = vmatprep.subr.bf16.mxu0 0
    %109 = vmatpush2.bf16.msra.mxu0 0
    %110 = vmatprep.subr.bf16.mxu0 0
    %111 = vmatpush2.bf16.msra.mxu0 0
    %112 = vmatprep.subr.bf16.mxu0 0
    %113 = vmatpush2.bf16.msra.mxu0 0
    %114 = vmatprep.mubr.bf16.mxu0 0
    %115 = vmatmul.mubr.bf16.gmra.mxu0 %v76
    %v116 = vpop.f32.mrf.mxu0
    %v117 = vadd.f32 %v72, %v116
    %v118 = vpop.f32.mrf.mxu0
    %v119 = vpop.f32.mrf.mxu0
    %v120 = vpop.f32.mrf.mxu0
    %121 = vdwg.mxu0
    %v122 = vmax.f32 %v117, 0.0
    %vm123 = vcmask 1024
    %124 = vst.msk [vmem:[%s5] sm:$0x3] %vm123, %v122
    // Predicated region
    $region30: #{cnn_attention_net_forward.96} parent=1 // pred_check
      _
    $region31: #{cnn_attention_net_forward.96} parent=1 // pred_check_branch
      %126 = sbr.rel (0) target = $region33
    $region32: #{cnn_attention_net_forward.96} parent=1 // pred_region
      _
    $region33: #{cnn_attention_net_forward.96} parent=1 // pred_fallthru
      _
    // Predicated region
    $region34: #{cnn_attention_net_forward.96} parent=1 // pred_check
      _
    $region35: #{cnn_attention_net_forward.96} parent=1 // pred_check_branch
      %128 = sbr.rel (0) target = $region37
    $region36: #{cnn_attention_net_forward.96} parent=1 // pred_region
      _
    $region37: #{cnn_attention_net_forward.96} parent=1 // pred_fallthru
      _
    %129 = vsyncpa [#allocation4], 1
    %130 = vsyncpa [#allocation6], 1

// kernel: cnn_attention_net_forward.97
$region0: #{cnn_attention_net_forward.97}
  #allocation0 [shape = 'u32[]', space=smem, size = 0x4, offset = 0x4, fixed_abs, tag = 'smem constant byte address 0x4 - core index']
  #allocation1 [shape = 'u32[144,128]{1,0:T(1,128)}', space=vmem, size = 0x12000, scoped, tag = 'internal scratch']
  #allocation2 [shape = 'f32[1,1]{1,0:T(1,128)S(1)}', space=vmem, size = 0x200, scoped, tag = 'scoped memory for cnn_attention_net_forward.97']
  %s0 = inlined_call_operand.vmem [shape: bf16[2,27], index: 0, kind: input, shape index: {}]
  %s1 = inlined_call_operand.vmem [shape: bf16[27,1], index: 1, kind: input, shape index: {}]
  %s2 = inlined_call_operand.<no memory space> [shape: f32[1,1], index: 2, kind: input, shape index: {}]
  %s3 = inlined_call_operand.vmem [shape: f32[2,1], index: 3, kind: output, shape index: {}]
  %s4 = sld [smem:[#allocation0]]
  $region22: #{cnn_attention_net_forward.97} parent=0
    _
  %s6 = ssub.s32 1, %s4
  %s7 = scalar_select 0, %s6, %s4
  %v8 = vstv %s2
  %9 = vst [vmem:[#allocation2] sm:$0x1] %v8
  // Predicated region
  $region2: #{cnn_attention_net_forward.97} parent=0 // pred_check
    _
  $region3: #{cnn_attention_net_forward.97} parent=0 // pred_check_branch
    %11 = sbr.rel (0) target = $region5
  $region4: #{cnn_attention_net_forward.97} parent=0 // pred_region
    _
  $region5: #{cnn_attention_net_forward.97} parent=0 // pred_fallthru
    _
  // Predicated region
  $region6: #{cnn_attention_net_forward.97} parent=0 // pred_check
    _
  $region7: #{cnn_attention_net_forward.97} parent=0 // pred_check_branch
    %13 = sbr.rel (0) target = $region9
  $region8: #{cnn_attention_net_forward.97} parent=0 // pred_region
    _
  $region9: #{cnn_attention_net_forward.97} parent=0 // pred_fallthru
    _
  // Predicated region
  $region10: #{cnn_attention_net_forward.97} parent=0 // pred_check
    _
  $region11: #{cnn_attention_net_forward.97} parent=0 // pred_check_branch
    %15 = sbr.rel (0) target = $region13
  $region12: #{cnn_attention_net_forward.97} parent=0 // pred_region
    _
  $region13: #{cnn_attention_net_forward.97} parent=0 // pred_fallthru
    _
  %v17 = vld [vmem:[%s0] sm:$0x1]
  %v18 = vld [vmem:[%s1] sm:$0xf]
  %v19 = vld [vmem:[%s1 + $0x4] sm:$0xf]
  %v20 = vld [vmem:[%s1 + $0x8] sm:$0xf]
  %v21 = vld [vmem:[%s1 + $0xc] sm:$0x3]
  %v22 = vld [vmem:[#allocation2] sm:$0x1]
  %v24 = vlaneseq
  %v25 = vshrl.u32 %v24, 7
  %v26 = vsub.s32 0, %v25
  %v27 = vrot.slane %v22, %v26
  %v33 = vunpack.c.l.b16 %v18
  %v34 = vunpack.c.l.b16 %v19
  %v35 = vunpack.c.l.b16 %v20
  %v36 = vunpack.c.l.b16 %v21
  %v37 = vpack.c.b16 %v34, %v33
  %v38 = vpack.c.b16 %v36, %v35
  %vm40 = vcmask 220160
  %v42 = vsel %vm40, %v17, 0
  %vm44 = vcmask 1044480
  %vm45 = vcmask 1045504
  %v46 = vsel %vm44, 4294967295, 65535
  %v47 = vsel %vm45, %v46, 0
  %v49 = vand.u32 %v38, %v47
  %51 = vmatprep.subr.bf16.mxu0 0
  %52 = vmatpush1.bf16.msra.mxu0 0
  %53 = vmatprep.subr.bf16.mxu0 0
  %54 = vmatpush1.bf16.msra.mxu0 0
  %55 = vmatprep.subr.bf16.mxu0 0
  %56 = vmatpush1.bf16.msra.mxu0 0
  %57 = vmatprep.subr.bf16.mxu0 0
  %58 = vmatpush1.bf16.msra.mxu0 0
  %59 = vmatprep.subr.bf16.mxu0 0
  %60 = vmatpush1.bf16.msra.mxu0 0
  %61 = vmatprep.subr.bf16.mxu0 0
  %62 = vmatpush1.bf16.msra.mxu0 0
  %63 = vmatprep.subr.bf16.mxu0 0
  %64 = vmatpush1.bf16.msra.mxu0 %v49
  %65 = vmatprep.subr.bf16.mxu0 0
  %66 = vmatpush1.bf16.msra.mxu0 %v37
  %67 = vmatprep.subr.bf16.mxu0 0
  %68 = vmatpush2.bf16.msra.mxu0 0
  %69 = vmatprep.subr.bf16.mxu0 0
  %70 = vmatpush2.bf16.msra.mxu0 0
  %71 = vmatprep.subr.bf16.mxu0 0
  %72 = vmatpush2.bf16.msra.mxu0 0
  %73 = vmatprep.subr.bf16.mxu0 0
  %74 = vmatpush2.bf16.msra.mxu0 0
  %75 = vmatprep.subr.bf16.mxu0 0
  %76 = vmatpush2.bf16.msra.mxu0 0
  %77 = vmatprep.subr.bf16.mxu0 0
  %78 = vmatpush2.bf16.msra.mxu0 0
  %79 = vmatprep.subr.bf16.mxu0 0
  %80 = vmatpush2.bf16.msra.mxu0 0
  %81 = vmatprep.subr.bf16.mxu0 0
  %82 = vmatpush2.bf16.msra.mxu0 0
  %83 = vmatprep.mubr.bf16.mxu0 0
  %84 = vmatmul.mubr.bf16.gmra.mxu0 %v42
  %v85 = vpop.f32.mrf.mxu0
  %v86 = vadd.f32 %v27, %v85
  %v87 = vpop.f32.mrf.mxu0
  %v88 = vpop.f32.mrf.mxu0
  %v89 = vpop.f32.mrf.mxu0
  %90 = vdwg.mxu0
  %v91 = vmax.f32 %v86, 0.0
  %vm92 = vcmask 1024
  %93 = vst.msk [vmem:[%s3] sm:$0x3] %vm92, %v91
  // Predicated region
  $region14: #{cnn_attention_net_forward.97} parent=0 // pred_check
    _
  $region15: #{cnn_attention_net_forward.97} parent=0 // pred_check_branch
    %95 = sbr.rel (0) target = $region17
  $region16: #{cnn_attention_net_forward.97} parent=0 // pred_region
    _
  $region17: #{cnn_attention_net_forward.97} parent=0 // pred_fallthru
    _
  // Predicated region
  $region18: #{cnn_attention_net_forward.97} parent=0 // pred_check
    _
  $region19: #{cnn_attention_net_forward.97} parent=0 // pred_check_branch
    %97 = sbr.rel (0) target = $region21
  $region20: #{cnn_attention_net_forward.97} parent=0 // pred_region
    _
  $region21: #{cnn_attention_net_forward.97} parent=0 // pred_fallthru
    _

// kernel: cnn_attention_net_forward.98
$region0: #{cnn_attention_net_forward.98}
  #allocation0 [shape = 'u32[]', space=smem, size = 0x4, offset = 0x4, fixed_abs, tag = 'smem constant byte address 0x4 - core index']
  #allocation1 [shape = 'u32[144,128]{1,0:T(1,128)}', space=vmem, size = 0x12000, scoped, tag = 'internal scratch']
  %s0 = inlined_call_operand.vmem [shape: f32[2,1], index: 0, kind: input, shape index: {}]
  %s1 = inlined_call_operand.vmem [shape: bf16[1,4], index: 1, kind: input, shape index: {}]
  %s2 = inlined_call_operand.vmem [shape: f32[2,4], index: 2, kind: input, shape index: {}]
  %s3 = inlined_call_operand.vmem [shape: f32[2,4], index: 3, kind: output, shape index: {}]
  %s4 = sld [smem:[#allocation0]]
  $region22: #{cnn_attention_net_forward.98} parent=0
    _
  %s6 = ssub.s32 1, %s4
  %s7 = scalar_select 0, %s6, %s4
  // Predicated region
  $region2: #{cnn_attention_net_forward.98} parent=0 // pred_check
    _
  $region3: #{cnn_attention_net_forward.98} parent=0 // pred_check_branch
    %9 = sbr.rel (0) target = $region5
  $region4: #{cnn_attention_net_forward.98} parent=0 // pred_region
    _
  $region5: #{cnn_attention_net_forward.98} parent=0 // pred_fallthru
    _
  // Predicated region
  $region6: #{cnn_attention_net_forward.98} parent=0 // pred_check
    _
  $region7: #{cnn_attention_net_forward.98} parent=0 // pred_check_branch
    %11 = sbr.rel (0) target = $region9
  $region8: #{cnn_attention_net_forward.98} parent=0 // pred_region
    _
  $region9: #{cnn_attention_net_forward.98} parent=0 // pred_fallthru
    _
  // Predicated region
  $region10: #{cnn_attention_net_forward.98} parent=0 // pred_check
    _
  $region11: #{cnn_attention_net_forward.98} parent=0 // pred_check_branch
    %13 = sbr.rel (0) target = $region13
  $region12: #{cnn_attention_net_forward.98} parent=0 // pred_region
    _
  $region13: #{cnn_attention_net_forward.98} parent=0 // pred_fallthru
    _
  %v15 = vld [vmem:[%s0] sm:$0x3]
  %v16 = vpack.c.bf16 %v15, %v15
  %v17 = vld [vmem:[%s1] sm:$0x1]
  %v18 = vld [vmem:[%s2] sm:$0x3]
  %vm19 = vcmask 7168
  %v21 = vsel %vm19, %v16, 0
  %vm23 = vcmask 1040384
  %v24 = vsel 0, 4294967295, 65535
  %v25 = vsel %vm23, %v24, 0
  %v27 = vand.u32 %v17, %v25
  %29 = vmatprep.subr.bf16.mxu0 0
  %30 = vmatpush1.bf16.msra.mxu0 0
  %31 = vmatprep.subr.bf16.mxu0 0
  %32 = vmatpush1.bf16.msra.mxu0 0
  %33 = vmatprep.subr.bf16.mxu0 0
  %34 = vmatpush1.bf16.msra.mxu0 0
  %35 = vmatprep.subr.bf16.mxu0 0
  %36 = vmatpush1.bf16.msra.mxu0 0
  %37 = vmatprep.subr.bf16.mxu0 0
  %38 = vmatpush1.bf16.msra.mxu0 0
  %39 = vmatprep.subr.bf16.mxu0 0
  %40 = vmatpush1.bf16.msra.mxu0 0
  %41 = vmatprep.subr.bf16.mxu0 0
  %42 = vmatpush1.bf16.msra.mxu0 0
  %43 = vmatprep.subr.bf16.mxu0 0
  %44 = vmatpush1.bf16.msra.mxu0 %v27
  %45 = vmatprep.subr.bf16.mxu0 0
  %46 = vmatpush2.bf16.msra.mxu0 0
  %47 = vmatprep.subr.bf16.mxu0 0
  %48 = vmatpush2.bf16.msra.mxu0 0
  %49 = vmatprep.subr.bf16.mxu0 0
  %50 = vmatpush2.bf16.msra.mxu0 0
  %51 = vmatprep.subr.bf16.mxu0 0
  %52 = vmatpush2.bf16.msra.mxu0 0
  %53 = vmatprep.subr.bf16.mxu0 0
  %54 = vmatpush2.bf16.msra.mxu0 0
  %55 = vmatprep.subr.bf16.mxu0 0
  %56 = vmatpush2.bf16.msra.mxu0 0
  %57 = vmatprep.subr.bf16.mxu0 0
  %58 = vmatpush2.bf16.msra.mxu0 0
  %59 = vmatprep.subr.bf16.mxu0 0
  %60 = vmatpush2.bf16.msra.mxu0 0
  %61 = vmatprep.mubr.bf16.mxu0 0
  %62 = vmatmul.mubr.bf16.gmra.mxu0 %v21
  %v63 = vpop.f32.mrf.mxu0
  %v64 = vadd.f32 %v18, %v63
  %v65 = vpop.f32.mrf.mxu0
  %v66 = vpop.f32.mrf.mxu0
  %v67 = vpop.f32.mrf.mxu0
  %68 = vdwg.mxu0
  %vm69 = vcmask 25600
  %70 = vst.msk [vmem:[%s3] sm:$0x3] %vm69, %v64
  // Predicated region
  $region14: #{cnn_attention_net_forward.98} parent=0 // pred_check
    _
  $region15: #{cnn_attention_net_forward.98} parent=0 // pred_check_branch
    %72 = sbr.rel (0) target = $region17
  $region16: #{cnn_attention_net_forward.98} parent=0 // pred_region
    _
  $region17: #{cnn_attention_net_forward.98} parent=0 // pred_fallthru
    _
  // Predicated region
  $region18: #{cnn_attention_net_forward.98} parent=0 // pred_check
    _
  $region19: #{cnn_attention_net_forward.98} parent=0 // pred_check_branch
    %74 = sbr.rel (0) target = $region21
  $region20: #{cnn_attention_net_forward.98} parent=0 // pred_region
    _
  $region21: #{cnn_attention_net_forward.98} parent=0 // pred_fallthru
    _

// kernel: cnn_attention_net_forward.102
$region0: #{cnn_attention_net_forward.102}
  #allocation0 [shape = 'u32[]', space=smem, size = 0x4, offset = 0x4, fixed_abs, tag = 'smem constant byte address 0x4 - core index']
  #allocation1 [shape = 'u32[144,128]{1,0:T(1,128)}', space=vmem, size = 0x12000, scoped, tag = 'internal scratch']
  #allocation2 [shape = 'f32[1,1]{1,0:T(1,128)S(1)}', space=vmem, size = 0x200, scoped, tag = 'scoped memory for cnn_attention_net_forward.102']
  %s0 = inlined_call_operand.vmem [shape: f32[2,4], index: 0, kind: input, shape index: {}]
  %s1 = inlined_call_operand.vmem [shape: f32[1,4], index: 1, kind: input, shape index: {}]
  %s2 = inlined_call_operand.vmem [shape: f32[1,4], index: 2, kind: input, shape index: {}]
  %s3 = inlined_call_operand.vmem [shape: bf16[4,1], index: 3, kind: input, shape index: {}]
  %s4 = inlined_call_operand.<no memory space> [shape: f32[1,1], index: 4, kind: input, shape index: {}]
  %s5 = inlined_call_operand.vmem [shape: f32[2,1], index: 5, kind: output, shape index: {}]
  %s6 = sld [smem:[#allocation0]]
  $region30: #{cnn_attention_net_forward.102} parent=0
    _
  %s8 = ssub.s32 1, %s6
  %s9 = scalar_select 0, %s8, %s6
  %v10 = vstv %s4
  %11 = vst [vmem:[#allocation2] sm:$0x1] %v10
  // Predicated region
  $region2: #{cnn_attention_net_forward.102} parent=0 // pred_check
    _
  $region3: #{cnn_attention_net_forward.102} parent=0 // pred_check_branch
    %13 = sbr.rel (0) target = $region5
  $region4: #{cnn_attention_net_forward.102} parent=0 // pred_region
    _
  $region5: #{cnn_attention_net_forward.102} parent=0 // pred_fallthru
    _
  // Predicated region
  $region6: #{cnn_attention_net_forward.102} parent=0 // pred_check
    _
  $region7: #{cnn_attention_net_forward.102} parent=0 // pred_check_branch
    %15 = sbr.rel (0) target = $region9
  $region8: #{cnn_attention_net_forward.102} parent=0 // pred_region
    _
  $region9: #{cnn_attention_net_forward.102} parent=0 // pred_fallthru
    _
  // Predicated region
  $region10: #{cnn_attention_net_forward.102} parent=0 // pred_check
    _
  $region11: #{cnn_attention_net_forward.102} parent=0 // pred_check_branch
    %17 = sbr.rel (0) target = $region13
  $region12: #{cnn_attention_net_forward.102} parent=0 // pred_region
    _
  $region13: #{cnn_attention_net_forward.102} parent=0 // pred_fallthru
    _
  // Predicated region
  $region14: #{cnn_attention_net_forward.102} parent=0 // pred_check
    _
  $region15: #{cnn_attention_net_forward.102} parent=0 // pred_check_branch
    %19 = sbr.rel (0) target = $region17
  $region16: #{cnn_attention_net_forward.102} parent=0 // pred_region
    _
  $region17: #{cnn_attention_net_forward.102} parent=0 // pred_fallthru
    _
  // Predicated region
  $region18: #{cnn_attention_net_forward.102} parent=0 // pred_check
    _
  $region19: #{cnn_attention_net_forward.102} parent=0 // pred_check_branch
    %21 = sbr.rel (0) target = $region21
  $region20: #{cnn_attention_net_forward.102} parent=0 // pred_region
    _
  $region21: #{cnn_attention_net_forward.102} parent=0 // pred_fallthru
    _
  %v23 = vld [vmem:[%s0] sm:$0x3]
  %v24 = vld [vmem:[%s1] sm:$0x1]
  %v26 = vlaneseq
  %v27 = vshrl.u32 %v26, 7
  %v28 = vsub.s32 0, %v27
  %v29 = vrot.slane %v24, %v28
  %v31 = vmul.f32 %v23, %v29
  %v32 = vld [vmem:[%s2] sm:$0x1]
  %v34 = vlaneseq
  %v35 = vshrl.u32 %v34, 7
  %v36 = vsub.s32 0, %v35
  %v37 = vrot.slane %v32, %v36
  %v39 = vadd.f32 %v31, %v37
  %v40 = vmax.f32 %v39, 0.0
  %v41 = vpack.c.bf16 %v40, %v40
  %v42 = vld [vmem:[%s3] sm:$0x3]
  %v43 = vld [vmem:[#allocation2] sm:$0x1]
  %v45 = vlaneseq
  %v46 = vshrl.u32 %v45, 7
  %v47 = vsub.s32 0, %v46
  %v48 = vrot.slane %v43, %v47
  %vm50 = vcmask 31744
  %v52 = vsel %vm50, %v41, 0
  %vm54 = vcmask 1041408
  %v56 = vsel %vm54, %v42, 0
  %58 = vmatprep.subr.bf16.mxu0 0
  %59 = vmatpush1.bf16.msra.mxu0 0
  %60 = vmatprep.subr.bf16.mxu0 0
  %61 = vmatpush1.bf16.msra.mxu0 0
  %62 = vmatprep.subr.bf16.mxu0 0
  %63 = vmatpush1.bf16.msra.mxu0 0
  %64 = vmatprep.subr.bf16.mxu0 0
  %65 = vmatpush1.bf16.msra.mxu0 0
  %66 = vmatprep.subr.bf16.mxu0 0
  %67 = vmatpush1.bf16.msra.mxu0 0
  %68 = vmatprep.subr.bf16.mxu0 0
  %69 = vmatpush1.bf16.msra.mxu0 0
  %70 = vmatprep.subr.bf16.mxu0 0
  %71 = vmatpush1.bf16.msra.mxu0 0
  %72 = vmatprep.subr.bf16.mxu0 0
  %73 = vmatpush1.bf16.msra.mxu0 %v56
  %74 = vmatprep.subr.bf16.mxu0 0
  %75 = vmatpush2.bf16.msra.mxu0 0
  %76 = vmatprep.subr.bf16.mxu0 0
  %77 = vmatpush2.bf16.msra.mxu0 0
  %78 = vmatprep.subr.bf16.mxu0 0
  %79 = vmatpush2.bf16.msra.mxu0 0
  %80 = vmatprep.subr.bf16.mxu0 0
  %81 = vmatpush2.bf16.msra.mxu0 0
  %82 = vmatprep.subr.bf16.mxu0 0
  %83 = vmatpush2.bf16.msra.mxu0 0
  %84 = vmatprep.subr.bf16.mxu0 0
  %85 = vmatpush2.bf16.msra.mxu0 0
  %86 = vmatprep.subr.bf16.mxu0 0
  %87 = vmatpush2.bf16.msra.mxu0 0
  %88 = vmatprep.subr.bf16.mxu0 0
  %89 = vmatpush2.bf16.msra.mxu0 0
  %90 = vmatprep.mubr.bf16.mxu0 0
  %91 = vmatmul.mubr.bf16.gmra.mxu0 %v52
  %v92 = vpop.f32.mrf.mxu0
  %v93 = vadd.f32 %v48, %v92
  %v94 = vpop.f32.mrf.mxu0
  %v95 = vpop.f32.mrf.mxu0
  %v96 = vpop.f32.mrf.mxu0
  %97 = vdwg.mxu0
  %v98 = vmax.f32 %v93, 0.0
  %vm99 = vcmask 1024
  %100 = vst.msk [vmem:[%s5] sm:$0x3] %vm99, %v98
  // Predicated region
  $region22: #{cnn_attention_net_forward.102} parent=0 // pred_check
    _
  $region23: #{cnn_attention_net_forward.102} parent=0 // pred_check_branch
    %102 = sbr.rel (0) target = $region25
  $region24: #{cnn_attention_net_forward.102} parent=0 // pred_region
    _
  $region25: #{cnn_attention_net_forward.102} parent=0 // pred_fallthru
    _
  // Predicated region
  $region26: #{cnn_attention_net_forward.102} parent=0 // pred_check
    _
  $region27: #{cnn_attention_net_forward.102} parent=0 // pred_check_branch
    %104 = sbr.rel (0) target = $region29
  $region28: #{cnn_attention_net_forward.102} parent=0 // pred_region
    _
  $region29: #{cnn_attention_net_forward.102} parent=0 // pred_fallthru
    _

// kernel: cnn_attention_net_forward.113
$region0: #{cnn_attention_net_forward.113}
  #allocation0 [shape = 'u32[]', space=smem, size = 0x4, offset = 0x4, fixed_abs, tag = 'smem constant byte address 0x4 - core index']
  #allocation1 [shape = 'u32[144,128]{1,0:T(1,128)}', space=vmem, size = 0x12000, scoped, tag = 'internal scratch']
  %s0 = inlined_call_operand.vmem [shape: f32[16,1], index: 0, kind: input, shape index: {}]
  %s1 = inlined_call_operand.vmem [shape: bf16[1,4], index: 1, kind: input, shape index: {}]
  %s2 = inlined_call_operand.vmem [shape: f32[16,4], index: 2, kind: input, shape index: {}]
  %s3 = inlined_call_operand.vmem [shape: f32[16,4], index: 3, kind: output, shape index: {}]
  %s4 = sld [smem:[#allocation0]]
  $region22: #{cnn_attention_net_forward.113} parent=0
    _
  %s6 = ssub.s32 1, %s4
  %s7 = scalar_select 0, %s6, %s4
  // Predicated region
  $region2: #{cnn_attention_net_forward.113} parent=0 // pred_check
    _
  $region3: #{cnn_attention_net_forward.113} parent=0 // pred_check_branch
    %9 = sbr.rel (0) target = $region5
  $region4: #{cnn_attention_net_forward.113} parent=0 // pred_region
    _
  $region5: #{cnn_attention_net_forward.113} parent=0 // pred_fallthru
    _
  // Predicated region
  $region6: #{cnn_attention_net_forward.113} parent=0 // pred_check
    _
  $region7: #{cnn_attention_net_forward.113} parent=0 // pred_check_branch
    %11 = sbr.rel (0) target = $region9
  $region8: #{cnn_attention_net_forward.113} parent=0 // pred_region
    _
  $region9: #{cnn_attention_net_forward.113} parent=0 // pred_fallthru
    _
  // Predicated region
  $region10: #{cnn_attention_net_forward.113} parent=0 // pred_check
    _
  $region11: #{cnn_attention_net_forward.113} parent=0 // pred_check_branch
    %13 = sbr.rel (0) target = $region13
  $region12: #{cnn_attention_net_forward.113} parent=0 // pred_region
    _
  $region13: #{cnn_attention_net_forward.113} parent=0 // pred_fallthru
    _
  %v15 = vld [vmem:[%s0] sm:$0xff]
  %v16 = vld [vmem:[%s0 + $0x8] sm:$0xff]
  %v17 = vpack.c.bf16 %v16, %v15
  %v18 = vld [vmem:[%s1] sm:$0x1]
  %v19 = vld [vmem:[%s2] sm:$0xff]
  %v20 = vld [vmem:[%s2 + $0x8] sm:$0xff]
  %vm21 = vcmask 7168
  %v23 = vsel %vm21, %v17, 0
  %vm25 = vcmask 1040384
  %v26 = vsel 0, 4294967295, 65535
  %v27 = vsel %vm25, %v26, 0
  %v29 = vand.u32 %v18, %v27
  %31 = vmatprep.subr.bf16.mxu0 0
  %32 = vmatpush1.bf16.msra.mxu0 0
  %33 = vmatprep.subr.bf16.mxu0 0
  %34 = vmatpush1.bf16.msra.mxu0 0
  %35 = vmatprep.subr.bf16.mxu0 0
  %36 = vmatpush1.bf16.msra.mxu0 0
  %37 = vmatprep.subr.bf16.mxu0 0
  %38 = vmatpush1.bf16.msra.mxu0 0
  %39 = vmatprep.subr.bf16.mxu0 0
  %40 = vmatpush1.bf16.msra.mxu0 0
  %41 = vmatprep.subr.bf16.mxu0 0
  %42 = vmatpush1.bf16.msra.mxu0 0
  %43 = vmatprep.subr.bf16.mxu0 0
  %44 = vmatpush1.bf16.msra.mxu0 0
  %45 = vmatprep.subr.bf16.mxu0 0
  %46 = vmatpush1.bf16.msra.mxu0 %v29
  %47 = vmatprep.subr.bf16.mxu0 0
  %48 = vmatpush2.bf16.msra.mxu0 0
  %49 = vmatprep.subr.bf16.mxu0 0
  %50 = vmatpush2.bf16.msra.mxu0 0
  %51 = vmatprep.subr.bf16.mxu0 0
  %52 = vmatpush2.bf16.msra.mxu0 0
  %53 = vmatprep.subr.bf16.mxu0 0
  %54 = vmatpush2.bf16.msra.mxu0 0
  %55 = vmatprep.subr.bf16.mxu0 0
  %56 = vmatpush2.bf16.msra.mxu0 0
  %57 = vmatprep.subr.bf16.mxu0 0
  %58 = vmatpush2.bf16.msra.mxu0 0
  %59 = vmatprep.subr.bf16.mxu0 0
  %60 = vmatpush2.bf16.msra.mxu0 0
  %61 = vmatprep.subr.bf16.mxu0 0
  %62 = vmatpush2.bf16.msra.mxu0 0
  %63 = vmatprep.mubr.bf16.mxu0 0
  %64 = vmatmul.mubr.bf16.gmra.mxu0 %v23
  %v65 = vpop.f32.mrf.mxu0
  %v66 = vadd.f32 %v19, %v65
  %v67 = vpop.f32.mrf.mxu0
  %v68 = vpop.f32.mrf.mxu0
  %v69 = vadd.f32 %v20, %v68
  %v70 = vpop.f32.mrf.mxu0
  %71 = vdwg.mxu0
  %vm72 = vcmask 31744
  %73 = vst.msk [vmem:[%s3] sm:$0xff] %vm72, %v66
  %74 = vst.msk [vmem:[%s3 + $0x8] sm:$0xff] %vm72, %v69
  // Predicated region
  $region14: #{cnn_attention_net_forward.113} parent=0 // pred_check
    _
  $region15: #{cnn_attention_net_forward.113} parent=0 // pred_check_branch
    %76 = sbr.rel (0) target = $region17
  $region16: #{cnn_attention_net_forward.113} parent=0 // pred_region
    _
  $region17: #{cnn_attention_net_forward.113} parent=0 // pred_fallthru
    _
  // Predicated region
  $region18: #{cnn_attention_net_forward.113} parent=0 // pred_check
    _
  $region19: #{cnn_attention_net_forward.113} parent=0 // pred_check_branch
    %78 = sbr.rel (0) target = $region21
  $region20: #{cnn_attention_net_forward.113} parent=0 // pred_region
    _
  $region21: #{cnn_attention_net_forward.113} parent=0 // pred_fallthru
    _

// kernel: cnn_attention_net_forward.115
$region0: #{cnn_attention_net_forward.115}
  #allocation0 [shape = 'u32[]', space=smem, size = 0x4, offset = 0x4, fixed_abs, tag = 'smem constant byte address 0x4 - core index']
  #allocation1 [shape = 'u32[144,128]{1,0:T(1,128)}', space=vmem, size = 0x12000, scoped, tag = 'internal scratch']
  %s0 = inlined_call_operand.vmem [shape: f32[128,4], index: 0, kind: input, shape index: {}]
  %s1 = inlined_call_operand.vmem [shape: bf16[4,4], index: 1, kind: input, shape index: {}]
  %s2 = inlined_call_operand.vmem [shape: f32[128,4], index: 2, kind: input, shape index: {}]
  %s3 = inlined_call_operand.vmem [shape: f32[128,4], index: 3, kind: output, shape index: {}]
  %s4 = sld [smem:[#allocation0]]
  $region22: #{cnn_attention_net_forward.115} parent=0
    _
  %s6 = ssub.s32 1, %s4
  %s7 = scalar_select 0, %s6, %s4
  // Predicated region
  $region2: #{cnn_attention_net_forward.115} parent=0 // pred_check
    _
  $region3: #{cnn_attention_net_forward.115} parent=0 // pred_check_branch
    %9 = sbr.rel (0) target = $region5
  $region4: #{cnn_attention_net_forward.115} parent=0 // pred_region
    _
  $region5: #{cnn_attention_net_forward.115} parent=0 // pred_fallthru
    _
  // Predicated region
  $region6: #{cnn_attention_net_forward.115} parent=0 // pred_check
    _
  $region7: #{cnn_attention_net_forward.115} parent=0 // pred_check_branch
    %11 = sbr.rel (0) target = $region9
  $region8: #{cnn_attention_net_forward.115} parent=0 // pred_region
    _
  $region9: #{cnn_attention_net_forward.115} parent=0 // pred_fallthru
    _
  // Predicated region
  $region10: #{cnn_attention_net_forward.115} parent=0 // pred_check
    _
  $region11: #{cnn_attention_net_forward.115} parent=0 // pred_check_branch
    %13 = sbr.rel (0) target = $region13
  $region12: #{cnn_attention_net_forward.115} parent=0 // pred_region
    _
  $region13: #{cnn_attention_net_forward.115} parent=0 // pred_fallthru
    _
  %v15 = vld [vmem:[%s0] sm:$0xff]
  %v16 = vld [vmem:[%s0 + $0x8] sm:$0xff]
  %v17 = vld [vmem:[%s0 + $0x10] sm:$0xff]
  %v18 = vld [vmem:[%s0 + $0x18] sm:$0xff]
  %v19 = vld [vmem:[%s0 + $0x20] sm:$0xff]
  %v20 = vld [vmem:[%s0 + $0x28] sm:$0xff]
  %v21 = vld [vmem:[%s0 + $0x30] sm:$0xff]
  %v22 = vld [vmem:[%s0 + $0x38] sm:$0xff]
  %v23 = vld [vmem:[%s0 + $0x40] sm:$0xff]
  %v24 = vld [vmem:[%s0 + $0x48] sm:$0xff]
  %v25 = vld [vmem:[%s0 + $0x50] sm:$0xff]
  %v26 = vld [vmem:[%s0 + $0x58] sm:$0xff]
  %v27 = vld [vmem:[%s0 + $0x60] sm:$0xff]
  %v28 = vld [vmem:[%s0 + $0x68] sm:$0xff]
  %v29 = vld [vmem:[%s0 + $0x70] sm:$0xff]
  %v30 = vld [vmem:[%s0 + $0x78] sm:$0xff]
  %v31 = vpack.c.bf16 %v16, %v15
  %v32 = vpack.c.bf16 %v18, %v17
  %v33 = vpack.c.bf16 %v20, %v19
  %v34 = vpack.c.bf16 %v22, %v21
  %v35 = vpack.c.bf16 %v24, %v23
  %v36 = vpack.c.bf16 %v26, %v25
  %v37 = vpack.c.bf16 %v28, %v27
  %v38 = vpack.c.bf16 %v30, %v29
  %v39 = vld [vmem:[%s1] sm:$0x3]
  %vm40 = vcmask 31744
  %v42 = vsel %vm40, %v31, 0
  %v45 = vsel %vm40, %v32, 0
  %v48 = vsel %vm40, %v33, 0
  %v51 = vsel %vm40, %v34, 0
  %v54 = vsel %vm40, %v35, 0
  %v57 = vsel %vm40, %v36, 0
  %v60 = vsel %vm40, %v37, 0
  %v63 = vsel %vm40, %v38, 0
  %vm65 = vcmask 1041408
  %v67 = vsel %vm65, %v39, 0
  %69 = vmatprep.subr.bf16.mxu0 0
  %70 = vmatpush1.bf16.msra.mxu0 0
  %71 = vmatprep.subr.bf16.mxu0 0
  %72 = vmatpush1.bf16.msra.mxu0 0
  %73 = vmatprep.subr.bf16.mxu0 0
  %74 = vmatpush1.bf16.msra.mxu0 0
  %75 = vmatprep.subr.bf16.mxu0 0
  %76 = vmatpush1.bf16.msra.mxu0 0
  %77 = vmatprep.subr.bf16.mxu0 0
  %78 = vmatpush1.bf16.msra.mxu0 0
  %79 = vmatprep.subr.bf16.mxu0 0
  %80 = vmatpush1.bf16.msra.mxu0 0
  %81 = vmatprep.subr.bf16.mxu0 0
  %82 = vmatpush1.bf16.msra.mxu0 0
  %83 = vmatprep.subr.bf16.mxu0 0
  %84 = vmatpush1.bf16.msra.mxu0 %v67
  %85 = vmatprep.subr.bf16.mxu0 0
  %86 = vmatpush2.bf16.msra.mxu0 0
  %87 = vmatprep.subr.bf16.mxu0 0
  %88 = vmatpush2.bf16.msra.mxu0 0
  %89 = vmatprep.subr.bf16.mxu0 0
  %90 = vmatpush2.bf16.msra.mxu0 0
  %91 = vmatprep.subr.bf16.mxu0 0
  %92 = vmatpush2.bf16.msra.mxu0 0
  %93 = vmatprep.subr.bf16.mxu0 0
  %94 = vmatpush2.bf16.msra.mxu0 0
  %95 = vmatprep.subr.bf16.mxu0 0
  %96 = vmatpush2.bf16.msra.mxu0 0
  %97 = vmatprep.subr.bf16.mxu0 0
  %98 = vmatpush2.bf16.msra.mxu0 0
  %99 = vmatprep.subr.bf16.mxu0 0
  %100 = vmatpush2.bf16.msra.mxu0 0
  %101 = vmatprep.mubr.bf16.mxu0 0
  %102 = vmatmul.mubr.bf16.gmra.mxu0 %v42
  %v103 = vpop.f32.mrf.mxu0
  %v104 = vadd.f32 0.0, %v103
  %v105 = vpop.f32.mrf.mxu0
  %v106 = vpop.f32.mrf.mxu0
  %v107 = vadd.f32 0.0, %v106
  %v108 = vpop.f32.mrf.mxu0
  %109 = vmatprep.mubr.bf16.mxu0 0
  %110 = vmatmul.mubr.bf16.gmra.mxu0 %v45
  %v111 = vpop.f32.mrf.mxu0
  %v112 = vadd.f32 0.0, %v111
  %v113 = vpop.f32.mrf.mxu0
  %v114 = vpop.f32.mrf.mxu0
  %v115 = vadd.f32 0.0, %v114
  %v116 = vpop.f32.mrf.mxu0
  %117 = vmatprep.mubr.bf16.mxu0 0
  %118 = vmatmul.mubr.bf16.gmra.mxu0 %v48
  %v119 = vpop.f32.mrf.mxu0
  %v120 = vadd.f32 0.0, %v119
  %v121 = vpop.f32.mrf.mxu0
  %v122 = vpop.f32.mrf.mxu0
  %v123 = vadd.f32 0.0, %v122
  %v124 = vpop.f32.mrf.mxu0
  %125 = vmatprep.mubr.bf16.mxu0 0
  %126 = vmatmul.mubr.bf16.gmra.mxu0 %v51
  %v127 = vpop.f32.mrf.mxu0
  %v128 = vadd.f32 0.0, %v127
  %v129 = vpop.f32.mrf.mxu0
  %v130 = vpop.f32.mrf.mxu0
  %v131 = vadd.f32 0.0, %v130
  %v132 = vpop.f32.mrf.mxu0
  %133 = vmatprep.mubr.bf16.mxu0 0
  %134 = vmatmul.mubr.bf16.gmra.mxu0 %v54
  %v135 = vpop.f32.mrf.mxu0
  %v136 = vadd.f32 0.0, %v135
  %v137 = vpop.f32.mrf.mxu0
  %v138 = vpop.f32.mrf.mxu0
  %v139 = vadd.f32 0.0, %v138
  %v140 = vpop.f32.mrf.mxu0
  %141 = vmatprep.mubr.bf16.mxu0 0
  %142 = vmatmul.mubr.bf16.gmra.mxu0 %v57
  %v143 = vpop.f32.mrf.mxu0
  %v144 = vadd.f32 0.0, %v143
  %v145 = vpop.f32.mrf.mxu0
  %v146 = vpop.f32.mrf.mxu0
  %v147 = vadd.f32 0.0, %v146
  %v148 = vpop.f32.mrf.mxu0
  %149 = vmatprep.mubr.bf16.mxu0 0
  %150 = vmatmul.mubr.bf16.gmra.mxu0 %v60
  %v151 = vpop.f32.mrf.mxu0
  %v152 = vadd.f32 0.0, %v151
  %v153 = vpop.f32.mrf.mxu0
  %v154 = vpop.f32.mrf.mxu0
  %v155 = vadd.f32 0.0, %v154
  %v156 = vpop.f32.mrf.mxu0
  %157 = vmatprep.mubr.bf16.mxu0 0
  %158 = vmatmul.mubr.bf16.gmra.mxu0 %v63
  %v159 = vpop.f32.mrf.mxu0
  %v160 = vadd.f32 0.0, %v159
  %v161 = vpop.f32.mrf.mxu0
  %v162 = vpop.f32.mrf.mxu0
  %v163 = vadd.f32 0.0, %v162
  %v164 = vpop.f32.mrf.mxu0
  %165 = vdwg.mxu0
  %v166 = vxor.u32 %v104, 2147483648
  %v167 = vxor.u32 %v107, 2147483648
  %v168 = vxor.u32 %v112, 2147483648
  %v169 = vxor.u32 %v115, 2147483648
  %v170 = vxor.u32 %v120, 2147483648
  %v171 = vxor.u32 %v123, 2147483648
  %v172 = vxor.u32 %v128, 2147483648
  %v173 = vxor.u32 %v131, 2147483648
  %v174 = vxor.u32 %v136, 2147483648
  %v175 = vxor.u32 %v139, 2147483648
  %v176 = vxor.u32 %v144, 2147483648
  %v177 = vxor.u32 %v147, 2147483648
  %v178 = vxor.u32 %v152, 2147483648
  %v179 = vxor.u32 %v155, 2147483648
  %v180 = vxor.u32 %v160, 2147483648
  %v181 = vxor.u32 %v163, 2147483648
  %v182 = vmul.f32 %v166, 1.442695
  %v183 = vpow.pop %v182
  %v184 = vmul.f32 %v167, 1.442695
  %v185 = vpow.pop %v184
  %v186 = vmul.f32 %v168, 1.442695
  %v187 = vpow.pop %v186
  %v188 = vmul.f32 %v169, 1.442695
  %v189 = vpow.pop %v188
  %v190 = vmul.f32 %v170, 1.442695
  %v191 = vpow.pop %v190
  %v192 = vmul.f32 %v171, 1.442695
  %v193 = vpow.pop %v192
  %v194 = vmul.f32 %v172, 1.442695
  %v195 = vpow.pop %v194
  %v196 = vmul.f32 %v173, 1.442695
  %v197 = vpow.pop %v196
  %v198 = vmul.f32 %v174, 1.442695
  %v199 = vpow.pop %v198
  %v200 = vmul.f32 %v175, 1.442695
  %v201 = vpow.pop %v200
  %v202 = vmul.f32 %v176, 1.442695
  %v203 = vpow.pop %v202
  %v204 = vmul.f32 %v177, 1.442695
  %v205 = vpow.pop %v204
  %v206 = vmul.f32 %v178, 1.442695
  %v207 = vpow.pop %v206
  %v208 = vmul.f32 %v179, 1.442695
  %v209 = vpow.pop %v208
  %v210 = vmul.f32 %v180, 1.442695
  %v211 = vpow.pop %v210
  %v212 = vmul.f32 %v181, 1.442695
  %v213 = vpow.pop %v212
  %v214 = vadd.f32 %v183, 1.0
  %v215 = vadd.f32 %v185, 1.0
  %v216 = vadd.f32 %v187, 1.0
  %v217 = vadd.f32 %v189, 1.0
  %v218 = vadd.f32 %v191, 1.0
  %v219 = vadd.f32 %v193, 1.0
  %v220 = vadd.f32 %v195, 1.0
  %v221 = vadd.f32 %v197, 1.0
  %v222 = vadd.f32 %v199, 1.0
  %v223 = vadd.f32 %v201, 1.0
  %v224 = vadd.f32 %v203, 1.0
  %v225 = vadd.f32 %v205, 1.0
  %v226 = vadd.f32 %v207, 1.0
  %v227 = vadd.f32 %v209, 1.0
  %v228 = vadd.f32 %v211, 1.0
  %v229 = vadd.f32 %v213, 1.0
  %v230 = vrcp.pop %v214
  %v231 = vmul.f32 1.0, %v230
  %v232 = vrcp.pop %v215
  %v233 = vmul.f32 1.0, %v232
  %v234 = vrcp.pop %v216
  %v235 = vmul.f32 1.0, %v234
  %v236 = vrcp.pop %v217
  %v237 = vmul.f32 1.0, %v236
  %v238 = vrcp.pop %v218
  %v239 = vmul.f32 1.0, %v238
  %v240 = vrcp.pop %v219
  %v241 = vmul.f32 1.0, %v240
  %v242 = vrcp.pop %v220
  %v243 = vmul.f32 1.0, %v242
  %v244 = vrcp.pop %v221
  %v245 = vmul.f32 1.0, %v244
  %v246 = vrcp.pop %v222
  %v247 = vmul.f32 1.0, %v246
  %v248 = vrcp.pop %v223
  %v249 = vmul.f32 1.0, %v248
  %v250 = vrcp.pop %v224
  %v251 = vmul.f32 1.0, %v250
  %v252 = vrcp.pop %v225
  %v253 = vmul.f32 1.0, %v252
  %v254 = vrcp.pop %v226
  %v255 = vmul.f32 1.0, %v254
  %v256 = vrcp.pop %v227
  %v257 = vmul.f32 1.0, %v256
  %v258 = vrcp.pop %v228
  %v259 = vmul.f32 1.0, %v258
  %v260 = vrcp.pop %v229
  %v261 = vmul.f32 1.0, %v260
  %v262 = vadd.f32 %v231, 1.0
  %v263 = vadd.f32 %v233, 1.0
  %v264 = vadd.f32 %v235, 1.0
  %v265 = vadd.f32 %v237, 1.0
  %v266 = vadd.f32 %v239, 1.0
  %v267 = vadd.f32 %v241, 1.0
  %v268 = vadd.f32 %v243, 1.0
  %v269 = vadd.f32 %v245, 1.0
  %v270 = vadd.f32 %v247, 1.0
  %v271 = vadd.f32 %v249, 1.0
  %v272 = vadd.f32 %v251, 1.0
  %v273 = vadd.f32 %v253, 1.0
  %v274 = vadd.f32 %v255, 1.0
  %v275 = vadd.f32 %v257, 1.0
  %v276 = vadd.f32 %v259, 1.0
  %v277 = vadd.f32 %v261, 1.0
  %v278 = vld [vmem:[%s2] sm:$0xff]
  %v279 = vld [vmem:[%s2 + $0x8] sm:$0xff]
  %v280 = vld [vmem:[%s2 + $0x10] sm:$0xff]
  %v281 = vld [vmem:[%s2 + $0x18] sm:$0xff]
  %v282 = vld [vmem:[%s2 + $0x20] sm:$0xff]
  %v283 = vld [vmem:[%s2 + $0x28] sm:$0xff]
  %v284 = vld [vmem:[%s2 + $0x30] sm:$0xff]
  %v285 = vld [vmem:[%s2 + $0x38] sm:$0xff]
  %v286 = vld [vmem:[%s2 + $0x40] sm:$0xff]
  %v287 = vld [vmem:[%s2 + $0x48] sm:$0xff]
  %v288 = vld [vmem:[%s2 + $0x50] sm:$0xff]
  %v289 = vld [vmem:[%s2 + $0x58] sm:$0xff]
  %v290 = vld [vmem:[%s2 + $0x60] sm:$0xff]
  %v291 = vld [vmem:[%s2 + $0x68] sm:$0xff]
  %v292 = vld [vmem:[%s2 + $0x70] sm:$0xff]
  %v293 = vld [vmem:[%s2 + $0x78] sm:$0xff]
  %v294 = vmul.f32 %v262, %v278
  %v295 = vmul.f32 %v263, %v279
  %v296 = vmul.f32 %v264, %v280
  %v297 = vmul.f32 %v265, %v281
  %v298 = vmul.f32 %v266, %v282
  %v299 = vmul.f32 %v267, %v283
  %v300 = vmul.f32 %v268, %v284
  %v301 = vmul.f32 %v269, %v285
  %v302 = vmul.f32 %v270, %v286
  %v303 = vmul.f32 %v271, %v287
  %v304 = vmul.f32 %v272, %v288
  %v305 = vmul.f32 %v273, %v289
  %v306 = vmul.f32 %v274, %v290
  %v307 = vmul.f32 %v275, %v291
  %v308 = vmul.f32 %v276, %v292
  %v309 = vmul.f32 %v277, %v293
  %310 = vst.msk [vmem:[%s3] sm:$0xff] %vm40, %v294
  %311 = vst.msk [vmem:[%s3 + $0x8] sm:$0xff] %vm40, %v295
  %312 = vst.msk [vmem:[%s3 + $0x10] sm:$0xff] %vm40, %v296
  %313 = vst.msk [vmem:[%s3 + $0x18] sm:$0xff] %vm40, %v297
  %314 = vst.msk [vmem:[%s3 + $0x20] sm:$0xff] %vm40, %v298
  %315 = vst.msk [vmem:[%s3 + $0x28] sm:$0xff] %vm40, %v299
  %316 = vst.msk [vmem:[%s3 + $0x30] sm:$0xff] %vm40, %v300
  %317 = vst.msk [vmem:[%s3 + $0x38] sm:$0xff] %vm40, %v301
  %318 = vst.msk [vmem:[%s3 + $0x40] sm:$0xff] %vm40, %v302
  %319 = vst.msk [vmem:[%s3 + $0x48] sm:$0xff] %vm40, %v303
  %320 = vst.msk [vmem:[%s3 + $0x50] sm:$0xff] %vm40, %v304
  %321 = vst.msk [vmem:[%s3 + $0x58] sm:$0xff] %vm40, %v305
  %322 = vst.msk [vmem:[%s3 + $0x60] sm:$0xff] %vm40, %v306
  %323 = vst.msk [vmem:[%s3 + $0x68] sm:$0xff] %vm40, %v307
  %324 = vst.msk [vmem:[%s3 + $0x70] sm:$0xff] %vm40, %v308
  %325 = vst.msk [vmem:[%s3 + $0x78] sm:$0xff] %vm40, %v309
  // Predicated region
  $region14: #{cnn_attention_net_forward.115} parent=0 // pred_check
    _
  $region15: #{cnn_attention_net_forward.115} parent=0 // pred_check_branch
    %327 = sbr.rel (0) target = $region17
  $region16: #{cnn_attention_net_forward.115} parent=0 // pred_region
    _
  $region17: #{cnn_attention_net_forward.115} parent=0 // pred_fallthru
    _
  // Predicated region
  $region18: #{cnn_attention_net_forward.115} parent=0 // pred_check
    _
  $region19: #{cnn_attention_net_forward.115} parent=0 // pred_check_branch
    %329 = sbr.rel (0) target = $region21
  $region20: #{cnn_attention_net_forward.115} parent=0 // pred_region
    _
  $region21: #{cnn_attention_net_forward.115} parent=0 // pred_fallthru
    _

// kernel: cnn_attention_net_forward.114
$region0: #{cnn_attention_net_forward.114}
  #allocation0 [shape = 'u32[]', space=smem, size = 0x4, offset = 0x4, fixed_abs, tag = 'smem constant byte address 0x4 - core index']
  #allocation1 [shape = 'u32[144,128]{1,0:T(1,128)}', space=vmem, size = 0x12000, scoped, tag = 'internal scratch']
  %s0 = inlined_call_operand.vmem [shape: f32[128,4], index: 0, kind: input, shape index: {}]
  %s1 = inlined_call_operand.vmem [shape: f32[1,4], index: 1, kind: input, shape index: {}]
  %s2 = inlined_call_operand.vmem [shape: f32[1,4], index: 2, kind: input, shape index: {}]
  %s3 = inlined_call_operand.vmem [shape: bf16[4,4], index: 3, kind: input, shape index: {}]
  %s4 = inlined_call_operand.vmem [shape: f32[1,4], index: 4, kind: input, shape index: {}]
  %s5 = inlined_call_operand.vmem [shape: f32[128,4], index: 5, kind: output, shape index: {}]
  %s6 = sld [smem:[#allocation0]]
  $region30: #{cnn_attention_net_forward.114} parent=0
    _
  %s8 = ssub.s32 1, %s6
  %s9 = scalar_select 0, %s8, %s6
  // Predicated region
  $region2: #{cnn_attention_net_forward.114} parent=0 // pred_check
    _
  $region3: #{cnn_attention_net_forward.114} parent=0 // pred_check_branch
    %11 = sbr.rel (0) target = $region5
  $region4: #{cnn_attention_net_forward.114} parent=0 // pred_region
    _
  $region5: #{cnn_attention_net_forward.114} parent=0 // pred_fallthru
    _
  // Predicated region
  $region6: #{cnn_attention_net_forward.114} parent=0 // pred_check
    _
  $region7: #{cnn_attention_net_forward.114} parent=0 // pred_check_branch
    %13 = sbr.rel (0) target = $region9
  $region8: #{cnn_attention_net_forward.114} parent=0 // pred_region
    _
  $region9: #{cnn_attention_net_forward.114} parent=0 // pred_fallthru
    _
  // Predicated region
  $region10: #{cnn_attention_net_forward.114} parent=0 // pred_check
    _
  $region11: #{cnn_attention_net_forward.114} parent=0 // pred_check_branch
    %15 = sbr.rel (0) target = $region13
  $region12: #{cnn_attention_net_forward.114} parent=0 // pred_region
    _
  $region13: #{cnn_attention_net_forward.114} parent=0 // pred_fallthru
    _
  // Predicated region
  $region14: #{cnn_attention_net_forward.114} parent=0 // pred_check
    _
  $region15: #{cnn_attention_net_forward.114} parent=0 // pred_check_branch
    %17 = sbr.rel (0) target = $region17
  $region16: #{cnn_attention_net_forward.114} parent=0 // pred_region
    _
  $region17: #{cnn_attention_net_forward.114} parent=0 // pred_fallthru
    _
  // Predicated region
  $region18: #{cnn_attention_net_forward.114} parent=0 // pred_check
    _
  $region19: #{cnn_attention_net_forward.114} parent=0 // pred_check_branch
    %19 = sbr.rel (0) target = $region21
  $region20: #{cnn_attention_net_forward.114} parent=0 // pred_region
    _
  $region21: #{cnn_attention_net_forward.114} parent=0 // pred_fallthru
    _
  %v21 = vld [vmem:[%s0] sm:$0xff]
  %v22 = vld [vmem:[%s0 + $0x8] sm:$0xff]
  %v23 = vld [vmem:[%s0 + $0x10] sm:$0xff]
  %v24 = vld [vmem:[%s0 + $0x18] sm:$0xff]
  %v25 = vld [vmem:[%s0 + $0x20] sm:$0xff]
  %v26 = vld [vmem:[%s0 + $0x28] sm:$0xff]
  %v27 = vld [vmem:[%s0 + $0x30] sm:$0xff]
  %v28 = vld [vmem:[%s0 + $0x38] sm:$0xff]
  %v29 = vld [vmem:[%s0 + $0x40] sm:$0xff]
  %v30 = vld [vmem:[%s0 + $0x48] sm:$0xff]
  %v31 = vld [vmem:[%s0 + $0x50] sm:$0xff]
  %v32 = vld [vmem:[%s0 + $0x58] sm:$0xff]
  %v33 = vld [vmem:[%s0 + $0x60] sm:$0xff]
  %v34 = vld [vmem:[%s0 + $0x68] sm:$0xff]
  %v35 = vld [vmem:[%s0 + $0x70] sm:$0xff]
  %v36 = vld [vmem:[%s0 + $0x78] sm:$0xff]
  %v37 = vld [vmem:[%s1] sm:$0x1]
  %v39 = vlaneseq
  %v40 = vshrl.u32 %v39, 7
  %v41 = vsub.s32 0, %v40
  %v42 = vrot.slane %v37, %v41
  %v44 = vmul.f32 %v21, %v42
  %v45 = vmul.f32 %v22, %v42
  %v46 = vmul.f32 %v23, %v42
  %v47 = vmul.f32 %v24, %v42
  %v48 = vmul.f32 %v25, %v42
  %v49 = vmul.f32 %v26, %v42
  %v50 = vmul.f32 %v27, %v42
  %v51 = vmul.f32 %v28, %v42
  %v52 = vmul.f32 %v29, %v42
  %v53 = vmul.f32 %v30, %v42
  %v54 = vmul.f32 %v31, %v42
  %v55 = vmul.f32 %v32, %v42
  %v56 = vmul.f32 %v33, %v42
  %v57 = vmul.f32 %v34, %v42
  %v58 = vmul.f32 %v35, %v42
  %v59 = vmul.f32 %v36, %v42
  %v60 = vld [vmem:[%s2] sm:$0x1]
  %v62 = vlaneseq
  %v63 = vshrl.u32 %v62, 7
  %v64 = vsub.s32 0, %v63
  %v65 = vrot.slane %v60, %v64
  %v67 = vadd.f32 %v44, %v65
  %v68 = vadd.f32 %v45, %v65
  %v69 = vadd.f32 %v46, %v65
  %v70 = vadd.f32 %v47, %v65
  %v71 = vadd.f32 %v48, %v65
  %v72 = vadd.f32 %v49, %v65
  %v73 = vadd.f32 %v50, %v65
  %v74 = vadd.f32 %v51, %v65
  %v75 = vadd.f32 %v52, %v65
  %v76 = vadd.f32 %v53, %v65
  %v77 = vadd.f32 %v54, %v65
  %v78 = vadd.f32 %v55, %v65
  %v79 = vadd.f32 %v56, %v65
  %v80 = vadd.f32 %v57, %v65
  %v81 = vadd.f32 %v58, %v65
  %v82 = vadd.f32 %v59, %v65
  %v83 = vmax.f32 %v67, 0.0
  %v84 = vmax.f32 %v68, 0.0
  %v85 = vmax.f32 %v69, 0.0
  %v86 = vmax.f32 %v70, 0.0
  %v87 = vmax.f32 %v71, 0.0
  %v88 = vmax.f32 %v72, 0.0
  %v89 = vmax.f32 %v73, 0.0
  %v90 = vmax.f32 %v74, 0.0
  %v91 = vmax.f32 %v75, 0.0
  %v92 = vmax.f32 %v76, 0.0
  %v93 = vmax.f32 %v77, 0.0
  %v94 = vmax.f32 %v78, 0.0
  %v95 = vmax.f32 %v79, 0.0
  %v96 = vmax.f32 %v80, 0.0
  %v97 = vmax.f32 %v81, 0.0
  %v98 = vmax.f32 %v82, 0.0
  %v99 = vpack.c.bf16 %v84, %v83
  %v100 = vpack.c.bf16 %v86, %v85
  %v101 = vpack.c.bf16 %v88, %v87
  %v102 = vpack.c.bf16 %v90, %v89
  %v103 = vpack.c.bf16 %v92, %v91
  %v104 = vpack.c.bf16 %v94, %v93
  %v105 = vpack.c.bf16 %v96, %v95
  %v106 = vpack.c.bf16 %v98, %v97
  %v107 = vld [vmem:[%s3] sm:$0x3]
  %v108 = vld [vmem:[%s4] sm:$0x1]
  %v110 = vlaneseq
  %v111 = vshrl.u32 %v110, 7
  %v112 = vsub.s32 0, %v111
  %v113 = vrot.slane %v108, %v112
  %vm115 = vcmask 31744
  %v117 = vsel %vm115, %v99, 0
  %v120 = vsel %vm115, %v100, 0
  %v123 = vsel %vm115, %v101, 0
  %v126 = vsel %vm115, %v102, 0
  %v129 = vsel %vm115, %v103, 0
  %v132 = vsel %vm115, %v104, 0
  %v135 = vsel %vm115, %v105, 0
  %v138 = vsel %vm115, %v106, 0
  %vm140 = vcmask 1041408
  %v142 = vsel %vm140, %v107, 0
  %144 = vmatprep.subr.bf16.mxu0 0
  %145 = vmatpush1.bf16.msra.mxu0 0
  %146 = vmatprep.subr.bf16.mxu0 0
  %147 = vmatpush1.bf16.msra.mxu0 0
  %148 = vmatprep.subr.bf16.mxu0 0
  %149 = vmatpush1.bf16.msra.mxu0 0
  %150 = vmatprep.subr.bf16.mxu0 0
  %151 = vmatpush1.bf16.msra.mxu0 0
  %152 = vmatprep.subr.bf16.mxu0 0
  %153 = vmatpush1.bf16.msra.mxu0 0
  %154 = vmatprep.subr.bf16.mxu0 0
  %155 = vmatpush1.bf16.msra.mxu0 0
  %156 = vmatprep.subr.bf16.mxu0 0
  %157 = vmatpush1.bf16.msra.mxu0 0
  %158 = vmatprep.subr.bf16.mxu0 0
  %159 = vmatpush1.bf16.msra.mxu0 %v142
  %160 = vmatprep.subr.bf16.mxu0 0
  %161 = vmatpush2.bf16.msra.mxu0 0
  %162 = vmatprep.subr.bf16.mxu0 0
  %163 = vmatpush2.bf16.msra.mxu0 0
  %164 = vmatprep.subr.bf16.mxu0 0
  %165 = vmatpush2.bf16.msra.mxu0 0
  %166 = vmatprep.subr.bf16.mxu0 0
  %167 = vmatpush2.bf16.msra.mxu0 0
  %168 = vmatprep.subr.bf16.mxu0 0
  %169 = vmatpush2.bf16.msra.mxu0 0
  %170 = vmatprep.subr.bf16.mxu0 0
  %171 = vmatpush2.bf16.msra.mxu0 0
  %172 = vmatprep.subr.bf16.mxu0 0
  %173 = vmatpush2.bf16.msra.mxu0 0
  %174 = vmatprep.subr.bf16.mxu0 0
  %175 = vmatpush2.bf16.msra.mxu0 0
  %176 = vmatprep.mubr.bf16.mxu0 0
  %177 = vmatmul.mubr.bf16.gmra.mxu0 %v117
  %v178 = vpop.f32.mrf.mxu0
  %v179 = vadd.f32 %v113, %v178
  %v180 = vpop.f32.mrf.mxu0
  %v181 = vpop.f32.mrf.mxu0
  %v182 = vadd.f32 %v113, %v181
  %v183 = vpop.f32.mrf.mxu0
  %184 = vmatprep.mubr.bf16.mxu0 0
  %185 = vmatmul.mubr.bf16.gmra.mxu0 %v120
  %v186 = vpop.f32.mrf.mxu0
  %v187 = vadd.f32 %v113, %v186
  %v188 = vpop.f32.mrf.mxu0
  %v189 = vpop.f32.mrf.mxu0
  %v190 = vadd.f32 %v113, %v189
  %v191 = vpop.f32.mrf.mxu0
  %192 = vmatprep.mubr.bf16.mxu0 0
  %193 = vmatmul.mubr.bf16.gmra.mxu0 %v123
  %v194 = vpop.f32.mrf.mxu0
  %v195 = vadd.f32 %v113, %v194
  %v196 = vpop.f32.mrf.mxu0
  %v197 = vpop.f32.mrf.mxu0
  %v198 = vadd.f32 %v113, %v197
  %v199 = vpop.f32.mrf.mxu0
  %200 = vmatprep.mubr.bf16.mxu0 0
  %201 = vmatmul.mubr.bf16.gmra.mxu0 %v126
  %v202 = vpop.f32.mrf.mxu0
  %v203 = vadd.f32 %v113, %v202
  %v204 = vpop.f32.mrf.mxu0
  %v205 = vpop.f32.mrf.mxu0
  %v206 = vadd.f32 %v113, %v205
  %v207 = vpop.f32.mrf.mxu0
  %208 = vmatprep.mubr.bf16.mxu0 0
  %209 = vmatmul.mubr.bf16.gmra.mxu0 %v129
  %v210 = vpop.f32.mrf.mxu0
  %v211 = vadd.f32 %v113, %v210
  %v212 = vpop.f32.mrf.mxu0
  %v213 = vpop.f32.mrf.mxu0
  %v214 = vadd.f32 %v113, %v213
  %v215 = vpop.f32.mrf.mxu0
  %216 = vmatprep.mubr.bf16.mxu0 0
  %217 = vmatmul.mubr.bf16.gmra.mxu0 %v132
  %v218 = vpop.f32.mrf.mxu0
  %v219 = vadd.f32 %v113, %v218
  %v220 = vpop.f32.mrf.mxu0
  %v221 = vpop.f32.mrf.mxu0
  %v222 = vadd.f32 %v113, %v221
  %v223 = vpop.f32.mrf.mxu0
  %224 = vmatprep.mubr.bf16.mxu0 0
  %225 = vmatmul.mubr.bf16.gmra.mxu0 %v135
  %v226 = vpop.f32.mrf.mxu0
  %v227 = vadd.f32 %v113, %v226
  %v228 = vpop.f32.mrf.mxu0
  %v229 = vpop.f32.mrf.mxu0
  %v230 = vadd.f32 %v113, %v229
  %v231 = vpop.f32.mrf.mxu0
  %232 = vmatprep.mubr.bf16.mxu0 0
  %233 = vmatmul.mubr.bf16.gmra.mxu0 %v138
  %v234 = vpop.f32.mrf.mxu0
  %v235 = vadd.f32 %v113, %v234
  %v236 = vpop.f32.mrf.mxu0
  %v237 = vpop.f32.mrf.mxu0
  %v238 = vadd.f32 %v113, %v237
  %v239 = vpop.f32.mrf.mxu0
  %240 = vdwg.mxu0
  %v241 = vmax.f32 %v179, 0.0
  %v242 = vmax.f32 %v182, 0.0
  %v243 = vmax.f32 %v187, 0.0
  %v244 = vmax.f32 %v190, 0.0
  %v245 = vmax.f32 %v195, 0.0
  %v246 = vmax.f32 %v198, 0.0
  %v247 = vmax.f32 %v203, 0.0
  %v248 = vmax.f32 %v206, 0.0
  %v249 = vmax.f32 %v211, 0.0
  %v250 = vmax.f32 %v214, 0.0
  %v251 = vmax.f32 %v219, 0.0
  %v252 = vmax.f32 %v222, 0.0
  %v253 = vmax.f32 %v227, 0.0
  %v254 = vmax.f32 %v230, 0.0
  %v255 = vmax.f32 %v235, 0.0
  %v256 = vmax.f32 %v238, 0.0
  %257 = vst.msk [vmem:[%s5] sm:$0xff] %vm115, %v241
  %258 = vst.msk [vmem:[%s5 + $0x8] sm:$0xff] %vm115, %v242
  %259 = vst.msk [vmem:[%s5 + $0x10] sm:$0xff] %vm115, %v243
  %260 = vst.msk [vmem:[%s5 + $0x18] sm:$0xff] %vm115, %v244
  %261 = vst.msk [vmem:[%s5 + $0x20] sm:$0xff] %vm115, %v245
  %262 = vst.msk [vmem:[%s5 + $0x28] sm:$0xff] %vm115, %v246
  %263 = vst.msk [vmem:[%s5 + $0x30] sm:$0xff] %vm115, %v247
  %264 = vst.msk [vmem:[%s5 + $0x38] sm:$0xff] %vm115, %v248
  %265 = vst.msk [vmem:[%s5 + $0x40] sm:$0xff] %vm115, %v249
  %266 = vst.msk [vmem:[%s5 + $0x48] sm:$0xff] %vm115, %v250
  %267 = vst.msk [vmem:[%s5 + $0x50] sm:$0xff] %vm115, %v251
  %268 = vst.msk [vmem:[%s5 + $0x58] sm:$0xff] %vm115, %v252
  %269 = vst.msk [vmem:[%s5 + $0x60] sm:$0xff] %vm115, %v253
  %270 = vst.msk [vmem:[%s5 + $0x68] sm:$0xff] %vm115, %v254
  %271 = vst.msk [vmem:[%s5 + $0x70] sm:$0xff] %vm115, %v255
  %272 = vst.msk [vmem:[%s5 + $0x78] sm:$0xff] %vm115, %v256
  // Predicated region
  $region22: #{cnn_attention_net_forward.114} parent=0 // pred_check
    _
  $region23: #{cnn_attention_net_forward.114} parent=0 // pred_check_branch
    %274 = sbr.rel (0) target = $region25
  $region24: #{cnn_attention_net_forward.114} parent=0 // pred_region
    _
  $region25: #{cnn_attention_net_forward.114} parent=0 // pred_fallthru
    _
  // Predicated region
  $region26: #{cnn_attention_net_forward.114} parent=0 // pred_check
    _
  $region27: #{cnn_attention_net_forward.114} parent=0 // pred_check_branch
    %276 = sbr.rel (0) target = $region29
  $region28: #{cnn_attention_net_forward.114} parent=0 // pred_region
    _
  $region29: #{cnn_attention_net_forward.114} parent=0 // pred_fallthru
    _

// kernel: cnn_attention_net_forward.119
$region0: #{cnn_attention_net_forward.119}
  #allocation0 [shape = 'u32[]', space=smem, size = 0x4, offset = 0x4, fixed_abs, tag = 'smem constant byte address 0x4 - core index']
  #allocation1 [shape = 'u32[144,128]{1,0:T(1,128)}', space=vmem, size = 0x12000, scoped, tag = 'internal scratch']
  %s0 = inlined_call_operand.vmem [shape: bf16[128,108], index: 0, kind: input, shape index: {}]
  %s1 = inlined_call_operand.vmem [shape: bf16[108,8], index: 1, kind: input, shape index: {}]
  %s2 = inlined_call_operand.vmem [shape: f32[1,8], index: 2, kind: input, shape index: {}]
  %s3 = inlined_call_operand.vmem [shape: f32[128,8], index: 3, kind: output, shape index: {}]
  %s4 = sld [smem:[#allocation0]]
  $region22: #{cnn_attention_net_forward.119} parent=0
    _
  %s6 = ssub.s32 1, %s4
  %s7 = scalar_select 0, %s6, %s4
  // Predicated region
  $region2: #{cnn_attention_net_forward.119} parent=0 // pred_check
    _
  $region3: #{cnn_attention_net_forward.119} parent=0 // pred_check_branch
    %9 = sbr.rel (0) target = $region5
  $region4: #{cnn_attention_net_forward.119} parent=0 // pred_region
    _
  $region5: #{cnn_attention_net_forward.119} parent=0 // pred_fallthru
    _
  // Predicated region
  $region6: #{cnn_attention_net_forward.119} parent=0 // pred_check
    _
  $region7: #{cnn_attention_net_forward.119} parent=0 // pred_check_branch
    %11 = sbr.rel (0) target = $region9
  $region8: #{cnn_attention_net_forward.119} parent=0 // pred_region
    _
  $region9: #{cnn_attention_net_forward.119} parent=0 // pred_fallthru
    _
  // Predicated region
  $region10: #{cnn_attention_net_forward.119} parent=0 // pred_check
    _
  $region11: #{cnn_attention_net_forward.119} parent=0 // pred_check_branch
    %13 = sbr.rel (0) target = $region13
  $region12: #{cnn_attention_net_forward.119} parent=0 // pred_region
    _
  $region13: #{cnn_attention_net_forward.119} parent=0 // pred_fallthru
    _
  %v15 = vld [vmem:[%s0] sm:$0xf]
  %v16 = vld [vmem:[%s0 + $0x4] sm:$0xf]
  %v17 = vld [vmem:[%s0 + $0x8] sm:$0xf]
  %v18 = vld [vmem:[%s0 + $0xc] sm:$0xf]
  %v19 = vld [vmem:[%s0 + $0x10] sm:$0xf]
  %v20 = vld [vmem:[%s0 + $0x14] sm:$0xf]
  %v21 = vld [vmem:[%s0 + $0x18] sm:$0xf]
  %v22 = vld [vmem:[%s0 + $0x1c] sm:$0xf]
  %v23 = vld [vmem:[%s0 + $0x20] sm:$0xf]
  %v24 = vld [vmem:[%s0 + $0x24] sm:$0xf]
  %v25 = vld [vmem:[%s0 + $0x28] sm:$0xf]
  %v26 = vld [vmem:[%s0 + $0x2c] sm:$0xf]
  %v27 = vld [vmem:[%s0 + $0x30] sm:$0xf]
  %v28 = vld [vmem:[%s0 + $0x34] sm:$0xf]
  %v29 = vld [vmem:[%s0 + $0x38] sm:$0xf]
  %v30 = vld [vmem:[%s0 + $0x3c] sm:$0xf]
  %v31 = vld [vmem:[%s1] sm:$0xf]
  %v32 = vld [vmem:[%s1 + $0x4] sm:$0xf]
  %v33 = vld [vmem:[%s1 + $0x8] sm:$0xf]
  %v34 = vld [vmem:[%s1 + $0xc] sm:$0xf]
  %v35 = vld [vmem:[%s1 + $0x10] sm:$0xf]
  %v36 = vld [vmem:[%s1 + $0x14] sm:$0xf]
  %v37 = vld [vmem:[%s1 + $0x18] sm:$0xf]
  %v38 = vld [vmem:[%s1 + $0x1c] sm:$0xf]
  %v39 = vld [vmem:[%s1 + $0x20] sm:$0xf]
  %v40 = vld [vmem:[%s1 + $0x24] sm:$0xf]
  %v41 = vld [vmem:[%s1 + $0x28] sm:$0xf]
  %v42 = vld [vmem:[%s1 + $0x2c] sm:$0xf]
  %v43 = vld [vmem:[%s1 + $0x30] sm:$0xf]
  %v44 = vld [vmem:[%s1 + $0x34] sm:$0x3]
  %v45 = vld [vmem:[%s2] sm:$0x1]
  %v47 = vlaneseq
  %v48 = vshrl.u32 %v47, 7
  %v49 = vsub.s32 0, %v48
  %v50 = vrot.slane %v45, %v49
  %v68 = vunpack.c.l.b16 %v15
  %v69 = vunpack.c.l.b16 %v16
  %v70 = vunpack.c.l.b16 %v17
  %v71 = vunpack.c.l.b16 %v18
  %v72 = vunpack.c.l.b16 %v19
  %v73 = vunpack.c.l.b16 %v20
  %v74 = vunpack.c.l.b16 %v21
  %v75 = vunpack.c.l.b16 %v22
  %v76 = vunpack.c.l.b16 %v23
  %v77 = vunpack.c.l.b16 %v24
  %v78 = vunpack.c.l.b16 %v25
  %v79 = vunpack.c.l.b16 %v26
  %v80 = vunpack.c.l.b16 %v27
  %v81 = vunpack.c.l.b16 %v28
  %v82 = vunpack.c.l.b16 %v29
  %v83 = vunpack.c.l.b16 %v30
  %v84 = vpack.c.b16 %v69, %v68
  %v85 = vpack.c.b16 %v71, %v70
  %v86 = vpack.c.b16 %v73, %v72
  %v87 = vpack.c.b16 %v75, %v74
  %v88 = vpack.c.b16 %v77, %v76
  %v89 = vpack.c.b16 %v79, %v78
  %v90 = vpack.c.b16 %v81, %v80
  %v91 = vpack.c.b16 %v83, %v82
  %v106 = vunpack.c.l.b16 %v31
  %v107 = vunpack.c.l.b16 %v32
  %v108 = vunpack.c.l.b16 %v33
  %v109 = vunpack.c.l.b16 %v34
  %v110 = vunpack.c.l.b16 %v35
  %v111 = vunpack.c.l.b16 %v36
  %v112 = vunpack.c.l.b16 %v37
  %v113 = vunpack.c.l.b16 %v38
  %v114 = vunpack.c.l.b16 %v39
  %v115 = vunpack.c.l.b16 %v40
  %v116 = vunpack.c.l.b16 %v41
  %v117 = vunpack.c.l.b16 %v42
  %v118 = vunpack.c.l.b16 %v43
  %v119 = vunpack.c.l.b16 %v44
  %v120 = vpack.c.b16 %v107, %v106
  %v121 = vpack.c.b16 %v109, %v108
  %v122 = vpack.c.b16 %v111, %v110
  %v123 = vpack.c.b16 %v113, %v112
  %v124 = vpack.c.b16 %v115, %v114
  %v125 = vpack.c.b16 %v117, %v116
  %v126 = vpack.c.b16 %v119, %v118
  %vm133 = vcmask 883712
  %v135 = vsel %vm133, %v84, 0
  %v138 = vsel %vm133, %v85, 0
  %v141 = vsel %vm133, %v86, 0
  %v144 = vsel %vm133, %v87, 0
  %v147 = vsel %vm133, %v88, 0
  %v150 = vsel %vm133, %v89, 0
  %v153 = vsel %vm133, %v90, 0
  %v156 = vsel %vm133, %v91, 0
  %vm158 = vcmask 1045504
  %v160 = vsel %vm158, %v126, 0
  %162 = vmatprep.subr.bf16.mxu0 0
  %163 = vmatpush1.bf16.msra.mxu0 0
  %164 = vmatprep.subr.bf16.mxu0 0
  %165 = vmatpush1.bf16.msra.mxu0 %v160
  %166 = vmatprep.subr.bf16.mxu0 0
  %167 = vmatpush1.bf16.msra.mxu0 %v125
  %168 = vmatprep.subr.bf16.mxu0 0
  %169 = vmatpush1.bf16.msra.mxu0 %v124
  %170 = vmatprep.subr.bf16.mxu0 0
  %171 = vmatpush1.bf16.msra.mxu0 %v123
  %172 = vmatprep.subr.bf16.mxu0 0
  %173 = vmatpush1.bf16.msra.mxu0 %v122
  %174 = vmatprep.subr.bf16.mxu0 0
  %175 = vmatpush1.bf16.msra.mxu0 %v121
  %176 = vmatprep.subr.bf16.mxu0 0
  %177 = vmatpush1.bf16.msra.mxu0 %v120
  %178 = vmatprep.subr.bf16.mxu0 0
  %179 = vmatpush2.bf16.msra.mxu0 0
  %180 = vmatprep.subr.bf16.mxu0 0
  %181 = vmatpush2.bf16.msra.mxu0 0
  %182 = vmatprep.subr.bf16.mxu0 0
  %183 = vmatpush2.bf16.msra.mxu0 0
  %184 = vmatprep.subr.bf16.mxu0 0
  %185 = vmatpush2.bf16.msra.mxu0 0
  %186 = vmatprep.subr.bf16.mxu0 0
  %187 = vmatpush2.bf16.msra.mxu0 0
  %188 = vmatprep.subr.bf16.mxu0 0
  %189 = vmatpush2.bf16.msra.mxu0 0
  %190 = vmatprep.subr.bf16.mxu0 0
  %191 = vmatpush2.bf16.msra.mxu0 0
  %192 = vmatprep.subr.bf16.mxu0 0
  %193 = vmatpush2.bf16.msra.mxu0 0
  %194 = vmatprep.mubr.bf16.mxu0 0
  %195 = vmatmul.mubr.bf16.gmra.mxu0 %v135
  %v196 = vpop.f32.mrf.mxu0
  %v197 = vadd.f32 %v50, %v196
  %v198 = vpop.f32.mrf.mxu0
  %v199 = vpop.f32.mrf.mxu0
  %v200 = vadd.f32 %v50, %v199
  %v201 = vpop.f32.mrf.mxu0
  %202 = vmatprep.mubr.bf16.mxu0 0
  %203 = vmatmul.mubr.bf16.gmra.mxu0 %v138
  %v204 = vpop.f32.mrf.mxu0
  %v205 = vadd.f32 %v50, %v204
  %v206 = vpop.f32.mrf.mxu0
  %v207 = vpop.f32.mrf.mxu0
  %v208 = vadd.f32 %v50, %v207
  %v209 = vpop.f32.mrf.mxu0
  %210 = vmatprep.mubr.bf16.mxu0 0
  %211 = vmatmul.mubr.bf16.gmra.mxu0 %v141
  %v212 = vpop.f32.mrf.mxu0
  %v213 = vadd.f32 %v50, %v212
  %v214 = vpop.f32.mrf.mxu0
  %v215 = vpop.f32.mrf.mxu0
  %v216 = vadd.f32 %v50, %v215
  %v217 = vpop.f32.mrf.mxu0
  %218 = vmatprep.mubr.bf16.mxu0 0
  %219 = vmatmul.mubr.bf16.gmra.mxu0 %v144
  %v220 = vpop.f32.mrf.mxu0
  %v221 = vadd.f32 %v50, %v220
  %v222 = vpop.f32.mrf.mxu0
  %v223 = vpop.f32.mrf.mxu0
  %v224 = vadd.f32 %v50, %v223
  %v225 = vpop.f32.mrf.mxu0
  %226 = vmatprep.mubr.bf16.mxu0 0
  %227 = vmatmul.mubr.bf16.gmra.mxu0 %v147
  %v228 = vpop.f32.mrf.mxu0
  %v229 = vadd.f32 %v50, %v228
  %v230 = vpop.f32.mrf.mxu0
  %v231 = vpop.f32.mrf.mxu0
  %v232 = vadd.f32 %v50, %v231
  %v233 = vpop.f32.mrf.mxu0
  %234 = vmatprep.mubr.bf16.mxu0 0
  %235 = vmatmul.mubr.bf16.gmra.mxu0 %v150
  %v236 = vpop.f32.mrf.mxu0
  %v237 = vadd.f32 %v50, %v236
  %v238 = vpop.f32.mrf.mxu0
  %v239 = vpop.f32.mrf.mxu0
  %v240 = vadd.f32 %v50, %v239
  %v241 = vpop.f32.mrf.mxu0
  %242 = vmatprep.mubr.bf16.mxu0 0
  %243 = vmatmul.mubr.bf16.gmra.mxu0 %v153
  %v244 = vpop.f32.mrf.mxu0
  %v245 = vadd.f32 %v50, %v244
  %v246 = vpop.f32.mrf.mxu0
  %v247 = vpop.f32.mrf.mxu0
  %v248 = vadd.f32 %v50, %v247
  %v249 = vpop.f32.mrf.mxu0
  %250 = vmatprep.mubr.bf16.mxu0 0
  %251 = vmatmul.mubr.bf16.gmra.mxu0 %v156
  %v252 = vpop.f32.mrf.mxu0
  %v253 = vadd.f32 %v50, %v252
  %v254 = vpop.f32.mrf.mxu0
  %v255 = vpop.f32.mrf.mxu0
  %v256 = vadd.f32 %v50, %v255
  %v257 = vpop.f32.mrf.mxu0
  %258 = vdwg.mxu0
  %v259 = vmax.f32 %v197, 0.0
  %v260 = vmax.f32 %v200, 0.0
  %v261 = vmax.f32 %v205, 0.0
  %v262 = vmax.f32 %v208, 0.0
  %v263 = vmax.f32 %v213, 0.0
  %v264 = vmax.f32 %v216, 0.0
  %v265 = vmax.f32 %v221, 0.0
  %v266 = vmax.f32 %v224, 0.0
  %v267 = vmax.f32 %v229, 0.0
  %v268 = vmax.f32 %v232, 0.0
  %v269 = vmax.f32 %v237, 0.0
  %v270 = vmax.f32 %v240, 0.0
  %v271 = vmax.f32 %v245, 0.0
  %v272 = vmax.f32 %v248, 0.0
  %v273 = vmax.f32 %v253, 0.0
  %v274 = vmax.f32 %v256, 0.0
  %vm275 = vcmask 64512
  %276 = vst.msk [vmem:[%s3] sm:$0xff] %vm275, %v259
  %277 = vst.msk [vmem:[%s3 + $0x8] sm:$0xff] %vm275, %v260
  %278 = vst.msk [vmem:[%s3 + $0x10] sm:$0xff] %vm275, %v261
  %279 = vst.msk [vmem:[%s3 + $0x18] sm:$0xff] %vm275, %v262
  %280 = vst.msk [vmem:[%s3 + $0x20] sm:$0xff] %vm275, %v263
  %281 = vst.msk [vmem:[%s3 + $0x28] sm:$0xff] %vm275, %v264
  %282 = vst.msk [vmem:[%s3 + $0x30] sm:$0xff] %vm275, %v265
  %283 = vst.msk [vmem:[%s3 + $0x38] sm:$0xff] %vm275, %v266
  %284 = vst.msk [vmem:[%s3 + $0x40] sm:$0xff] %vm275, %v267
  %285 = vst.msk [vmem:[%s3 + $0x48] sm:$0xff] %vm275, %v268
  %286 = vst.msk [vmem:[%s3 + $0x50] sm:$0xff] %vm275, %v269
  %287 = vst.msk [vmem:[%s3 + $0x58] sm:$0xff] %vm275, %v270
  %288 = vst.msk [vmem:[%s3 + $0x60] sm:$0xff] %vm275, %v271
  %289 = vst.msk [vmem:[%s3 + $0x68] sm:$0xff] %vm275, %v272
  %290 = vst.msk [vmem:[%s3 + $0x70] sm:$0xff] %vm275, %v273
  %291 = vst.msk [vmem:[%s3 + $0x78] sm:$0xff] %vm275, %v274
  // Predicated region
  $region14: #{cnn_attention_net_forward.119} parent=0 // pred_check
    _
  $region15: #{cnn_attention_net_forward.119} parent=0 // pred_check_branch
    %293 = sbr.rel (0) target = $region17
  $region16: #{cnn_attention_net_forward.119} parent=0 // pred_region
    _
  $region17: #{cnn_attention_net_forward.119} parent=0 // pred_fallthru
    _
  // Predicated region
  $region18: #{cnn_attention_net_forward.119} parent=0 // pred_check
    _
  $region19: #{cnn_attention_net_forward.119} parent=0 // pred_check_branch
    %295 = sbr.rel (0) target = $region21
  $region20: #{cnn_attention_net_forward.119} parent=0 // pred_region
    _
  $region21: #{cnn_attention_net_forward.119} parent=0 // pred_fallthru
    _

// kernel: cnn_attention_net_forward.120
$region0: #{cnn_attention_net_forward.120}
  #allocation0 [shape = 'u32[]', space=smem, size = 0x4, offset = 0x4, fixed_abs, tag = 'smem constant byte address 0x4 - core index']
  #allocation1 [shape = 'u32[144,128]{1,0:T(1,128)}', space=vmem, size = 0x12000, scoped, tag = 'internal scratch']
  %s0 = inlined_call_operand.vmem [shape: f32[16,8], index: 0, kind: input, shape index: {}]
  %s1 = inlined_call_operand.vmem [shape: f32[1,8], index: 1, kind: input, shape index: {}]
  %s2 = inlined_call_operand.vmem [shape: f32[1,8], index: 2, kind: input, shape index: {}]
  %s3 = inlined_call_operand.vmem [shape: bf16[8,2], index: 3, kind: input, shape index: {}]
  %s4 = inlined_call_operand.vmem [shape: f32[1,2], index: 4, kind: input, shape index: {}]
  %s5 = inlined_call_operand.vmem [shape: f32[16,2], index: 5, kind: output, shape index: {}]
  %s6 = sld [smem:[#allocation0]]
  $region30: #{cnn_attention_net_forward.120} parent=0
    _
  %s8 = ssub.s32 1, %s6
  %s9 = scalar_select 0, %s8, %s6
  // Predicated region
  $region2: #{cnn_attention_net_forward.120} parent=0 // pred_check
    _
  $region3: #{cnn_attention_net_forward.120} parent=0 // pred_check_branch
    %11 = sbr.rel (0) target = $region5
  $region4: #{cnn_attention_net_forward.120} parent=0 // pred_region
    _
  $region5: #{cnn_attention_net_forward.120} parent=0 // pred_fallthru
    _
  // Predicated region
  $region6: #{cnn_attention_net_forward.120} parent=0 // pred_check
    _
  $region7: #{cnn_attention_net_forward.120} parent=0 // pred_check_branch
    %13 = sbr.rel (0) target = $region9
  $region8: #{cnn_attention_net_forward.120} parent=0 // pred_region
    _
  $region9: #{cnn_attention_net_forward.120} parent=0 // pred_fallthru
    _
  // Predicated region
  $region10: #{cnn_attention_net_forward.120} parent=0 // pred_check
    _
  $region11: #{cnn_attention_net_forward.120} parent=0 // pred_check_branch
    %15 = sbr.rel (0) target = $region13
  $region12: #{cnn_attention_net_forward.120} parent=0 // pred_region
    _
  $region13: #{cnn_attention_net_forward.120} parent=0 // pred_fallthru
    _
  // Predicated region
  $region14: #{cnn_attention_net_forward.120} parent=0 // pred_check
    _
  $region15: #{cnn_attention_net_forward.120} parent=0 // pred_check_branch
    %17 = sbr.rel (0) target = $region17
  $region16: #{cnn_attention_net_forward.120} parent=0 // pred_region
    _
  $region17: #{cnn_attention_net_forward.120} parent=0 // pred_fallthru
    _
  // Predicated region
  $region18: #{cnn_attention_net_forward.120} parent=0 // pred_check
    _
  $region19: #{cnn_attention_net_forward.120} parent=0 // pred_check_branch
    %19 = sbr.rel (0) target = $region21
  $region20: #{cnn_attention_net_forward.120} parent=0 // pred_region
    _
  $region21: #{cnn_attention_net_forward.120} parent=0 // pred_fallthru
    _
  %v21 = vld [vmem:[%s0] sm:$0xff]
  %v22 = vld [vmem:[%s0 + $0x8] sm:$0xff]
  %v23 = vld [vmem:[%s1] sm:$0x1]
  %v25 = vlaneseq
  %v26 = vshrl.u32 %v25, 7
  %v27 = vsub.s32 0, %v26
  %v28 = vrot.slane %v23, %v27
  %v30 = vmul.f32 %v21, %v28
  %v31 = vmul.f32 %v22, %v28
  %v32 = vld [vmem:[%s2] sm:$0x1]
  %v34 = vlaneseq
  %v35 = vshrl.u32 %v34, 7
  %v36 = vsub.s32 0, %v35
  %v37 = vrot.slane %v32, %v36
  %v39 = vadd.f32 %v30, %v37
  %v40 = vadd.f32 %v31, %v37
  %v41 = vmax.f32 %v39, 0.0
  %v42 = vmax.f32 %v40, 0.0
  %v43 = vpack.c.bf16 %v42, %v41
  %v44 = vld [vmem:[%s3] sm:$0xf]
  %v45 = vld [vmem:[%s4] sm:$0x1]
  %v47 = vlaneseq
  %v48 = vshrl.u32 %v47, 7
  %v49 = vsub.s32 0, %v48
  %v50 = vrot.slane %v45, %v49
  %vm52 = vcmask 64512
  %v54 = vsel %vm52, %v43, 0
  %vm56 = vcmask 1043456
  %v58 = vsel %vm56, %v44, 0
  %60 = vmatprep.subr.bf16.mxu0 0
  %61 = vmatpush1.bf16.msra.mxu0 0
  %62 = vmatprep.subr.bf16.mxu0 0
  %63 = vmatpush1.bf16.msra.mxu0 0
  %64 = vmatprep.subr.bf16.mxu0 0
  %65 = vmatpush1.bf16.msra.mxu0 0
  %66 = vmatprep.subr.bf16.mxu0 0
  %67 = vmatpush1.bf16.msra.mxu0 0
  %68 = vmatprep.subr.bf16.mxu0 0
  %69 = vmatpush1.bf16.msra.mxu0 0
  %70 = vmatprep.subr.bf16.mxu0 0
  %71 = vmatpush1.bf16.msra.mxu0 0
  %72 = vmatprep.subr.bf16.mxu0 0
  %73 = vmatpush1.bf16.msra.mxu0 0
  %74 = vmatprep.subr.bf16.mxu0 0
  %75 = vmatpush1.bf16.msra.mxu0 %v58
  %76 = vmatprep.subr.bf16.mxu0 0
  %77 = vmatpush2.bf16.msra.mxu0 0
  %78 = vmatprep.subr.bf16.mxu0 0
  %79 = vmatpush2.bf16.msra.mxu0 0
  %80 = vmatprep.subr.bf16.mxu0 0
  %81 = vmatpush2.bf16.msra.mxu0 0
  %82 = vmatprep.subr.bf16.mxu0 0
  %83 = vmatpush2.bf16.msra.mxu0 0
  %84 = vmatprep.subr.bf16.mxu0 0
  %85 = vmatpush2.bf16.msra.mxu0 0
  %86 = vmatprep.subr.bf16.mxu0 0
  %87 = vmatpush2.bf16.msra.mxu0 0
  %88 = vmatprep.subr.bf16.mxu0 0
  %89 = vmatpush2.bf16.msra.mxu0 0
  %90 = vmatprep.subr.bf16.mxu0 0
  %91 = vmatpush2.bf16.msra.mxu0 0
  %92 = vmatprep.mubr.bf16.mxu0 0
  %93 = vmatmul.mubr.bf16.gmra.mxu0 %v54
  %v94 = vpop.f32.mrf.mxu0
  %v95 = vadd.f32 %v50, %v94
  %v96 = vpop.f32.mrf.mxu0
  %v97 = vpop.f32.mrf.mxu0
  %v98 = vadd.f32 %v50, %v97
  %v99 = vpop.f32.mrf.mxu0
  %100 = vdwg.mxu0
  %v101 = vmax.f32 %v95, 0.0
  %v102 = vmax.f32 %v98, 0.0
  %vm103 = vcmask 15360
  %104 = vst.msk [vmem:[%s5] sm:$0xff] %vm103, %v101
  %105 = vst.msk [vmem:[%s5 + $0x8] sm:$0xff] %vm103, %v102
  // Predicated region
  $region22: #{cnn_attention_net_forward.120} parent=0 // pred_check
    _
  $region23: #{cnn_attention_net_forward.120} parent=0 // pred_check_branch
    %107 = sbr.rel (0) target = $region25
  $region24: #{cnn_attention_net_forward.120} parent=0 // pred_region
    _
  $region25: #{cnn_attention_net_forward.120} parent=0 // pred_fallthru
    _
  // Predicated region
  $region26: #{cnn_attention_net_forward.120} parent=0 // pred_check
    _
  $region27: #{cnn_attention_net_forward.120} parent=0 // pred_check_branch
    %109 = sbr.rel (0) target = $region29
  $region28: #{cnn_attention_net_forward.120} parent=0 // pred_region
    _
  $region29: #{cnn_attention_net_forward.120} parent=0 // pred_fallthru
    _

// kernel: cnn_attention_net_forward.121
$region0: #{cnn_attention_net_forward.121}
  #allocation0 [shape = 'u32[]', space=smem, size = 0x4, offset = 0x4, fixed_abs, tag = 'smem constant byte address 0x4 - core index']
  #allocation1 [shape = 'u32[144,128]{1,0:T(1,128)}', space=vmem, size = 0x12000, scoped, tag = 'internal scratch']
  %s0 = inlined_call_operand.vmem [shape: bf16[16,54], index: 0, kind: input, shape index: {}]
  %s1 = inlined_call_operand.vmem [shape: bf16[54,2], index: 1, kind: input, shape index: {}]
  %s2 = inlined_call_operand.hbm [shape: f32[1,2], index: 2, kind: input, shape index: {}]
  %s3 = inlined_call_operand.vmem [shape: f32[16,2], index: 3, kind: output, shape index: {}]
  %s4 = sld [smem:[#allocation0]]
  $region26: #{cnn_attention_net_forward.121} parent=0
    _
  %s6 = ssub.s32 1, %s4
  %s7 = scalar_select 0, %s6, %s4
  $region1: #{cnn_attention_net_forward.121} parent=0
    #allocation2 [shape = 'u8[512]{0}', space=vmem, size = 0x400, scoped, tag = 'input window, operand 2, single buffered']
    #allocation3 [shape = 's32[1]{0}', space=sflag, size = 0x4, scoped, tag = 'scoped memory for cnn_attention_net_forward.121']
    %8 = vsyncpa [#allocation3], 0
    // Predicated region
    $region2: #{cnn_attention_net_forward.121} parent=1 // pred_check
      _
    $region3: #{cnn_attention_net_forward.121} parent=1 // pred_check_branch
      %10 = sbr.rel (0) target = $region5
    $region4: #{cnn_attention_net_forward.121} parent=1 // pred_region
      _
    $region5: #{cnn_attention_net_forward.121} parent=1 // pred_fallthru
      _
    // Predicated region
    $region6: #{cnn_attention_net_forward.121} parent=1 // pred_check
      _
    $region7: #{cnn_attention_net_forward.121} parent=1 // pred_check_branch
      %12 = sbr.rel (0) target = $region9
    $region8: #{cnn_attention_net_forward.121} parent=1 // pred_region
      _
    $region9: #{cnn_attention_net_forward.121} parent=1 // pred_fallthru
      _
    // Predicated region
    $region10: #{cnn_attention_net_forward.121} parent=1 // pred_check
      _
    $region11: #{cnn_attention_net_forward.121} parent=1 // pred_check_branch
      %14 = sbr.rel (0) target = $region13
    $region12: #{cnn_attention_net_forward.121} parent=1 // pred_region
      %s16 = ssub.s32 16, 16
      %17 = vsyncadd [#allocation3], %s16
      %s19 = sshll.u32 [#allocation2], 4
      %s20 = int_to_ptr.vmem [resolvable:$true] %s19
      %22 = dma.hbm_to_vmem [thread:$0]  %s2, 16, %s20, [#allocation3]
    $region13: #{cnn_attention_net_forward.121} parent=1 // pred_fallthru
      _
    // Predicated region
    $region14: #{cnn_attention_net_forward.121} parent=1 // pred_check
      _
    $region15: #{cnn_attention_net_forward.121} parent=1 // pred_check_branch
      %24 = sbr.rel (0) target = $region17
    $region16: #{cnn_attention_net_forward.121} parent=1 // pred_region
      %25 = dma.done [#allocation3], 16
    $region17: #{cnn_attention_net_forward.121} parent=1 // pred_fallthru
      _
    %v27 = vld [vmem:[%s0] sm:$0xf]
    %v28 = vld [vmem:[%s0 + $0x4] sm:$0xf]
    %v29 = vld [vmem:[%s1] sm:$0xf]
    %v30 = vld [vmem:[%s1 + $0x4] sm:$0xf]
    %v31 = vld [vmem:[%s1 + $0x8] sm:$0xf]
    %v32 = vld [vmem:[%s1 + $0xc] sm:$0xf]
    %v33 = vld [vmem:[%s1 + $0x10] sm:$0xf]
    %v34 = vld [vmem:[%s1 + $0x14] sm:$0xf]
    %v35 = vld [vmem:[%s1 + $0x18] sm:$0x7]
    %v36 = vld [vmem:[#allocation2] sm:$0x1]
    %v38 = vlaneseq
    %v39 = vshrl.u32 %v38, 7
    %v40 = vsub.s32 0, %v39
    %v41 = vrot.slane %v36, %v40
    %v45 = vunpack.c.l.b16 %v27
    %v46 = vunpack.c.l.b16 %v28
    %v47 = vpack.c.b16 %v46, %v45
    %v55 = vunpack.c.l.b16 %v29
    %v56 = vunpack.c.l.b16 %v30
    %v57 = vunpack.c.l.b16 %v31
    %v58 = vunpack.c.l.b16 %v32
    %v59 = vunpack.c.l.b16 %v33
    %v60 = vunpack.c.l.b16 %v34
    %v61 = vunpack.c.l.b16 %v35
    %v62 = vpack.c.b16 %v56, %v55
    %v63 = vpack.c.b16 %v58, %v57
    %v64 = vpack.c.b16 %v60, %v59
    %v65 = vpack.c.b16 %v61, %v61
    %vm69 = vcmask 441344
    %v71 = vsel %vm69, %v47, 0
    %vm73 = vcmask 1042432
    %v75 = vsel %vm73, %v65, 0
    %77 = vmatprep.subr.bf16.mxu0 0
    %78 = vmatpush1.bf16.msra.mxu0 0
    %79 = vmatprep.subr.bf16.mxu0 0
    %80 = vmatpush1.bf16.msra.mxu0 0
    %81 = vmatprep.subr.bf16.mxu0 0
    %82 = vmatpush1.bf16.msra.mxu0 0
    %83 = vmatprep.subr.bf16.mxu0 0
    %84 = vmatpush1.bf16.msra.mxu0 0
    %85 = vmatprep.subr.bf16.mxu0 0
    %86 = vmatpush1.bf16.msra.mxu0 %v75
    %87 = vmatprep.subr.bf16.mxu0 0
    %88 = vmatpush1.bf16.msra.mxu0 %v64
    %89 = vmatprep.subr.bf16.mxu0 0
    %90 = vmatpush1.bf16.msra.mxu0 %v63
    %91 = vmatprep.subr.bf16.mxu0 0
    %92 = vmatpush1.bf16.msra.mxu0 %v62
    %93 = vmatprep.subr.bf16.mxu0 0
    %94 = vmatpush2.bf16.msra.mxu0 0
    %95 = vmatprep.subr.bf16.mxu0 0
    %96 = vmatpush2.bf16.msra.mxu0 0
    %97 = vmatprep.subr.bf16.mxu0 0
    %98 = vmatpush2.bf16.msra.mxu0 0
    %99 = vmatprep.subr.bf16.mxu0 0
    %100 = vmatpush2.bf16.msra.mxu0 0
    %101 = vmatprep.subr.bf16.mxu0 0
    %102 = vmatpush2.bf16.msra.mxu0 0
    %103 = vmatprep.subr.bf16.mxu0 0
    %104 = vmatpush2.bf16.msra.mxu0 0
    %105 = vmatprep.subr.bf16.mxu0 0
    %106 = vmatpush2.bf16.msra.mxu0 0
    %107 = vmatprep.subr.bf16.mxu0 0
    %108 = vmatpush2.bf16.msra.mxu0 0
    %109 = vmatprep.mubr.bf16.mxu0 0
    %110 = vmatmul.mubr.bf16.gmra.mxu0 %v71
    %v111 = vpop.f32.mrf.mxu0
    %v112 = vadd.f32 %v41, %v111
    %v113 = vpop.f32.mrf.mxu0
    %v114 = vpop.f32.mrf.mxu0
    %v115 = vadd.f32 %v41, %v114
    %v116 = vpop.f32.mrf.mxu0
    %117 = vdwg.mxu0
    %v118 = vmax.f32 %v112, 0.0
    %v119 = vmax.f32 %v115, 0.0
    %vm120 = vcmask 15360
    %121 = vst.msk [vmem:[%s3] sm:$0xff] %vm120, %v118
    %122 = vst.msk [vmem:[%s3 + $0x8] sm:$0xff] %vm120, %v119
    // Predicated region
    $region18: #{cnn_attention_net_forward.121} parent=1 // pred_check
      _
    $region19: #{cnn_attention_net_forward.121} parent=1 // pred_check_branch
      %124 = sbr.rel (0) target = $region21
    $region20: #{cnn_attention_net_forward.121} parent=1 // pred_region
      _
    $region21: #{cnn_attention_net_forward.121} parent=1 // pred_fallthru
      _
    // Predicated region
    $region22: #{cnn_attention_net_forward.121} parent=1 // pred_check
      _
    $region23: #{cnn_attention_net_forward.121} parent=1 // pred_check_branch
      %126 = sbr.rel (0) target = $region25
    $region24: #{cnn_attention_net_forward.121} parent=1 // pred_region
      _
    $region25: #{cnn_attention_net_forward.121} parent=1 // pred_fallthru
      _
    %127 = vsyncpa [#allocation3], 1

// kernel: cnn_attention_net_forward.122
$region0: #{cnn_attention_net_forward.122}
  #allocation0 [shape = 'u32[]', space=smem, size = 0x4, offset = 0x4, fixed_abs, tag = 'smem constant byte address 0x4 - core index']
  #allocation1 [shape = 'u32[144,128]{1,0:T(1,128)}', space=vmem, size = 0x12000, scoped, tag = 'internal scratch']
  %s0 = inlined_call_operand.vmem [shape: f32[16,2], index: 0, kind: input, shape index: {}]
  %s1 = inlined_call_operand.hbm [shape: bf16[2,8], index: 1, kind: input, shape index: {}]
  %s2 = inlined_call_operand.vmem [shape: f32[16,8], index: 2, kind: input, shape index: {}]
  %s3 = inlined_call_operand.vmem [shape: f32[16,8], index: 3, kind: output, shape index: {}]
  %s4 = sld [smem:[#allocation0]]
  $region26: #{cnn_attention_net_forward.122} parent=0
    _
  %s6 = ssub.s32 1, %s4
  %s7 = scalar_select 0, %s6, %s4
  $region1: #{cnn_attention_net_forward.122} parent=0
    #allocation2 [shape = 'u8[512]{0}', space=vmem, size = 0x400, scoped, tag = 'input window, operand 1, single buffered']
    #allocation3 [shape = 's32[1]{0}', space=sflag, size = 0x4, scoped, tag = 'scoped memory for cnn_attention_net_forward.122']
    %8 = vsyncpa [#allocation3], 0
    // Predicated region
    $region2: #{cnn_attention_net_forward.122} parent=1 // pred_check
      _
    $region3: #{cnn_attention_net_forward.122} parent=1 // pred_check_branch
      %10 = sbr.rel (0) target = $region5
    $region4: #{cnn_attention_net_forward.122} parent=1 // pred_region
      _
    $region5: #{cnn_attention_net_forward.122} parent=1 // pred_fallthru
      _
    // Predicated region
    $region6: #{cnn_attention_net_forward.122} parent=1 // pred_check
      _
    $region7: #{cnn_attention_net_forward.122} parent=1 // pred_check_branch
      %12 = sbr.rel (0) target = $region9
    $region8: #{cnn_attention_net_forward.122} parent=1 // pred_region
      %s14 = ssub.s32 16, 16
      %15 = vsyncadd [#allocation3], %s14
      %s17 = sshll.u32 [#allocation2], 4
      %s18 = int_to_ptr.vmem [resolvable:$true] %s17
      %20 = dma.hbm_to_vmem [thread:$0]  %s1, 16, %s18, [#allocation3]
    $region9: #{cnn_attention_net_forward.122} parent=1 // pred_fallthru
      _
    // Predicated region
    $region10: #{cnn_attention_net_forward.122} parent=1 // pred_check
      _
    $region11: #{cnn_attention_net_forward.122} parent=1 // pred_check_branch
      %22 = sbr.rel (0) target = $region13
    $region12: #{cnn_attention_net_forward.122} parent=1 // pred_region
      _
    $region13: #{cnn_attention_net_forward.122} parent=1 // pred_fallthru
      _
    // Predicated region
    $region14: #{cnn_attention_net_forward.122} parent=1 // pred_check
      _
    $region15: #{cnn_attention_net_forward.122} parent=1 // pred_check_branch
      %24 = sbr.rel (0) target = $region17
    $region16: #{cnn_attention_net_forward.122} parent=1 // pred_region
      %25 = dma.done [#allocation3], 16
    $region17: #{cnn_attention_net_forward.122} parent=1 // pred_fallthru
      _
    %v27 = vld [vmem:[%s0] sm:$0xff]
    %v28 = vld [vmem:[%s0 + $0x8] sm:$0xff]
    %v29 = vpack.c.bf16 %v28, %v27
    %v30 = vld [vmem:[#allocation2] sm:$0x1]
    %v31 = vld [vmem:[%s2] sm:$0xff]
    %v32 = vld [vmem:[%s2 + $0x8] sm:$0xff]
    %vm33 = vcmask 15360
    %v35 = vsel %vm33, %v29, 0
    %vm37 = vcmask 1040384
    %v39 = vsel %vm37, %v30, 0
    %41 = vmatprep.subr.bf16.mxu0 0
    %42 = vmatpush1.bf16.msra.mxu0 0
    %43 = vmatprep.subr.bf16.mxu0 0
    %44 = vmatpush1.bf16.msra.mxu0 0
    %45 = vmatprep.subr.bf16.mxu0 0
    %46 = vmatpush1.bf16.msra.mxu0 0
    %47 = vmatprep.subr.bf16.mxu0 0
    %48 = vmatpush1.bf16.msra.mxu0 0
    %49 = vmatprep.subr.bf16.mxu0 0
    %50 = vmatpush1.bf16.msra.mxu0 0
    %51 = vmatprep.subr.bf16.mxu0 0
    %52 = vmatpush1.bf16.msra.mxu0 0
    %53 = vmatprep.subr.bf16.mxu0 0
    %54 = vmatpush1.bf16.msra.mxu0 0
    %55 = vmatprep.subr.bf16.mxu0 0
    %56 = vmatpush1.bf16.msra.mxu0 %v39
    %57 = vmatprep.subr.bf16.mxu0 0
    %58 = vmatpush2.bf16.msra.mxu0 0
    %59 = vmatprep.subr.bf16.mxu0 0
    %60 = vmatpush2.bf16.msra.mxu0 0
    %61 = vmatprep.subr.bf16.mxu0 0
    %62 = vmatpush2.bf16.msra.mxu0 0
    %63 = vmatprep.subr.bf16.mxu0 0
    %64 = vmatpush2.bf16.msra.mxu0 0
    %65 = vmatprep.subr.bf16.mxu0 0
    %66 = vmatpush2.bf16.msra.mxu0 0
    %67 = vmatprep.subr.bf16.mxu0 0
    %68 = vmatpush2.bf16.msra.mxu0 0
    %69 = vmatprep.subr.bf16.mxu0 0
    %70 = vmatpush2.bf16.msra.mxu0 0
    %71 = vmatprep.subr.bf16.mxu0 0
    %72 = vmatpush2.bf16.msra.mxu0 0
    %73 = vmatprep.mubr.bf16.mxu0 0
    %74 = vmatmul.mubr.bf16.gmra.mxu0 %v35
    %v75 = vpop.f32.mrf.mxu0
    %v76 = vadd.f32 %v31, %v75
    %v77 = vpop.f32.mrf.mxu0
    %v78 = vpop.f32.mrf.mxu0
    %v79 = vadd.f32 %v32, %v78
    %v80 = vpop.f32.mrf.mxu0
    %81 = vdwg.mxu0
    %vm82 = vcmask 64512
    %83 = vst.msk [vmem:[%s3] sm:$0xff] %vm82, %v76
    %84 = vst.msk [vmem:[%s3 + $0x8] sm:$0xff] %vm82, %v79
    // Predicated region
    $region18: #{cnn_attention_net_forward.122} parent=1 // pred_check
      _
    $region19: #{cnn_attention_net_forward.122} parent=1 // pred_check_branch
      %86 = sbr.rel (0) target = $region21
    $region20: #{cnn_attention_net_forward.122} parent=1 // pred_region
      _
    $region21: #{cnn_attention_net_forward.122} parent=1 // pred_fallthru
      _
    // Predicated region
    $region22: #{cnn_attention_net_forward.122} parent=1 // pred_check
      _
    $region23: #{cnn_attention_net_forward.122} parent=1 // pred_check_branch
      %88 = sbr.rel (0) target = $region25
    $region24: #{cnn_attention_net_forward.122} parent=1 // pred_region
      _
    $region25: #{cnn_attention_net_forward.122} parent=1 // pred_fallthru
      _
    %89 = vsyncpa [#allocation3], 1

// kernel: cnn_attention_net_forward.123
$region0: #{cnn_attention_net_forward.123}
  #allocation0 [shape = 'u32[]', space=smem, size = 0x4, offset = 0x4, fixed_abs, tag = 'smem constant byte address 0x4 - core index']
  #allocation1 [shape = 'u32[144,128]{1,0:T(1,128)}', space=vmem, size = 0x12000, scoped, tag = 'internal scratch']
  %s0 = inlined_call_operand.vmem [shape: f32[16,8], index: 0, kind: input, shape index: {}]
  %s1 = inlined_call_operand.hbm [shape: f32[1,8], index: 1, kind: input, shape index: {}]
  %s2 = inlined_call_operand.hbm [shape: f32[1,8], index: 2, kind: input, shape index: {}]
  %s3 = inlined_call_operand.vmem [shape: bf16[8,2], index: 3, kind: input, shape index: {}]
  %s4 = inlined_call_operand.hbm [shape: f32[1,2], index: 4, kind: input, shape index: {}]
  %s5 = inlined_call_operand.vmem [shape: f32[16,2], index: 5, kind: output, shape index: {}]
  %s6 = sld [smem:[#allocation0]]
  $region42: #{cnn_attention_net_forward.123} parent=0
    _
  %s8 = ssub.s32 1, %s6
  %s9 = scalar_select 0, %s8, %s6
  $region1: #{cnn_attention_net_forward.123} parent=0
    #allocation2 [shape = 'u8[512]{0}', space=vmem, size = 0x400, scoped, tag = 'input window, operand 1, single buffered']
    #allocation3 [shape = 's32[1]{0}', space=sflag, size = 0x4, scoped, tag = 'scoped memory for cnn_attention_net_forward.123']
    #allocation4 [shape = 'u8[512]{0}', space=vmem, size = 0x400, scoped, tag = 'input window, operand 2, single buffered']
    #allocation5 [shape = 's32[1]{0}', space=sflag, size = 0x4, scoped, tag = 'scoped memory for cnn_attention_net_forward.123']
    #allocation6 [shape = 'u8[512]{0}', space=vmem, size = 0x400, scoped, tag = 'input window, operand 4, single buffered']
    %10 = vsyncpa [#allocation3], 0
    %11 = vsyncpa [#allocation5], 0
    // Predicated region
    $region2: #{cnn_attention_net_forward.123} parent=1 // pred_check
      _
    $region3: #{cnn_attention_net_forward.123} parent=1 // pred_check_branch
      %13 = sbr.rel (0) target = $region5
    $region4: #{cnn_attention_net_forward.123} parent=1 // pred_region
      _
    $region5: #{cnn_attention_net_forward.123} parent=1 // pred_fallthru
      _
    // Predicated region
    $region6: #{cnn_attention_net_forward.123} parent=1 // pred_check
      _
    $region7: #{cnn_attention_net_forward.123} parent=1 // pred_check_branch
      %15 = sbr.rel (0) target = $region9
    $region8: #{cnn_attention_net_forward.123} parent=1 // pred_region
      %s17 = ssub.s32 16, 16
      %18 = vsyncadd [#allocation3], %s17
      %s20 = sshll.u32 [#allocation2], 4
      %s21 = int_to_ptr.vmem [resolvable:$true] %s20
      %23 = dma.hbm_to_vmem [thread:$0]  %s1, 16, %s21, [#allocation3]
    $region9: #{cnn_attention_net_forward.123} parent=1 // pred_fallthru
      _
    // Predicated region
    $region10: #{cnn_attention_net_forward.123} parent=1 // pred_check
      _
    $region11: #{cnn_attention_net_forward.123} parent=1 // pred_check_branch
      %25 = sbr.rel (0) target = $region13
    $region12: #{cnn_attention_net_forward.123} parent=1 // pred_region
      %s27 = ssub.s32 16, 16
      %28 = vsyncadd [#allocation5], %s27
      %s30 = sshll.u32 [#allocation4], 4
      %s31 = int_to_ptr.vmem [resolvable:$true] %s30
      %33 = dma.hbm_to_vmem [thread:$0]  %s2, 16, %s31, [#allocation5]
    $region13: #{cnn_attention_net_forward.123} parent=1 // pred_fallthru
      _
    // Predicated region
    $region14: #{cnn_attention_net_forward.123} parent=1 // pred_check
      _
    $region15: #{cnn_attention_net_forward.123} parent=1 // pred_check_branch
      %35 = sbr.rel (0) target = $region17
    $region16: #{cnn_attention_net_forward.123} parent=1 // pred_region
      _
    $region17: #{cnn_attention_net_forward.123} parent=1 // pred_fallthru
      _
    // Predicated region
    $region18: #{cnn_attention_net_forward.123} parent=1 // pred_check
      _
    $region19: #{cnn_attention_net_forward.123} parent=1 // pred_check_branch
      %37 = sbr.rel (0) target = $region21
    $region20: #{cnn_attention_net_forward.123} parent=1 // pred_region
      %s39 = ssub.s32 16, 16
      %40 = vsyncadd [#allocation5], %s39
      %s42 = sshll.u32 [#allocation6], 4
      %s43 = int_to_ptr.vmem [resolvable:$true] %s42
      %45 = dma.hbm_to_vmem [thread:$0]  %s4, 16, %s43, [#allocation5]
    $region21: #{cnn_attention_net_forward.123} parent=1 // pred_fallthru
      _
    // Predicated region
    $region22: #{cnn_attention_net_forward.123} parent=1 // pred_check
      _
    $region23: #{cnn_attention_net_forward.123} parent=1 // pred_check_branch
      %47 = sbr.rel (0) target = $region25
    $region24: #{cnn_attention_net_forward.123} parent=1 // pred_region
      %48 = dma.done [#allocation3], 16
    $region25: #{cnn_attention_net_forward.123} parent=1 // pred_fallthru
      _
    // Predicated region
    $region26: #{cnn_attention_net_forward.123} parent=1 // pred_check
      _
    $region27: #{cnn_attention_net_forward.123} parent=1 // pred_check_branch
      %50 = sbr.rel (0) target = $region29
    $region28: #{cnn_attention_net_forward.123} parent=1 // pred_region
      %51 = dma.done [#allocation5], 16
    $region29: #{cnn_attention_net_forward.123} parent=1 // pred_fallthru
      _
    // Predicated region
    $region30: #{cnn_attention_net_forward.123} parent=1 // pred_check
      _
    $region31: #{cnn_attention_net_forward.123} parent=1 // pred_check_branch
      %53 = sbr.rel (0) target = $region33
    $region32: #{cnn_attention_net_forward.123} parent=1 // pred_region
      %54 = dma.done [#allocation5], 16
    $region33: #{cnn_attention_net_forward.123} parent=1 // pred_fallthru
      _
    %v56 = vld [vmem:[%s0] sm:$0xff]
    %v57 = vld [vmem:[%s0 + $0x8] sm:$0xff]
    %v58 = vld [vmem:[#allocation2] sm:$0x1]
    %v60 = vlaneseq
    %v61 = vshrl.u32 %v60, 7
    %v62 = vsub.s32 0, %v61
    %v63 = vrot.slane %v58, %v62
    %v65 = vmul.f32 %v56, %v63
    %v66 = vmul.f32 %v57, %v63
    %v67 = vld [vmem:[#allocation4] sm:$0x1]
    %v69 = vlaneseq
    %v70 = vshrl.u32 %v69, 7
    %v71 = vsub.s32 0, %v70
    %v72 = vrot.slane %v67, %v71
    %v74 = vadd.f32 %v65, %v72
    %v75 = vadd.f32 %v66, %v72
    %v76 = vmax.f32 %v74, 0.0
    %v77 = vmax.f32 %v75, 0.0
    %v78 = vpack.c.bf16 %v77, %v76
    %v79 = vld [vmem:[%s3] sm:$0xf]
    %v80 = vld [vmem:[#allocation6] sm:$0x1]
    %v82 = vlaneseq
    %v83 = vshrl.u32 %v82, 7
    %v84 = vsub.s32 0, %v83
    %v85 = vrot.slane %v80, %v84
    %vm87 = vcmask 64512
    %v89 = vsel %vm87, %v78, 0
    %vm91 = vcmask 1043456
    %v93 = vsel %vm91, %v79, 0
    %95 = vmatprep.subr.bf16.mxu0 0
    %96 = vmatpush1.bf16.msra.mxu0 0
    %97 = vmatprep.subr.bf16.mxu0 0
    %98 = vmatpush1.bf16.msra.mxu0 0
    %99 = vmatprep.subr.bf16.mxu0 0
    %100 = vmatpush1.bf16.msra.mxu0 0
    %101 = vmatprep.subr.bf16.mxu0 0
    %102 = vmatpush1.bf16.msra.mxu0 0
    %103 = vmatprep.subr.bf16.mxu0 0
    %104 = vmatpush1.bf16.msra.mxu0 0
    %105 = vmatprep.subr.bf16.mxu0 0
    %106 = vmatpush1.bf16.msra.mxu0 0
    %107 = vmatprep.subr.bf16.mxu0 0
    %108 = vmatpush1.bf16.msra.mxu0 0
    %109 = vmatprep.subr.bf16.mxu0 0
    %110 = vmatpush1.bf16.msra.mxu0 %v93
    %111 = vmatprep.subr.bf16.mxu0 0
    %112 = vmatpush2.bf16.msra.mxu0 0
    %113 = vmatprep.subr.bf16.mxu0 0
    %114 = vmatpush2.bf16.msra.mxu0 0
    %115 = vmatprep.subr.bf16.mxu0 0
    %116 = vmatpush2.bf16.msra.mxu0 0
    %117 = vmatprep.subr.bf16.mxu0 0
    %118 = vmatpush2.bf16.msra.mxu0 0
    %119 = vmatprep.subr.bf16.mxu0 0
    %120 = vmatpush2.bf16.msra.mxu0 0
    %121 = vmatprep.subr.bf16.mxu0 0
    %122 = vmatpush2.bf16.msra.mxu0 0
    %123 = vmatprep.subr.bf16.mxu0 0
    %124 = vmatpush2.bf16.msra.mxu0 0
    %125 = vmatprep.subr.bf16.mxu0 0
    %126 = vmatpush2.bf16.msra.mxu0 0
    %127 = vmatprep.mubr.bf16.mxu0 0
    %128 = vmatmul.mubr.bf16.gmra.mxu0 %v89
    %v129 = vpop.f32.mrf.mxu0
    %v130 = vadd.f32 %v85, %v129
    %v131 = vpop.f32.mrf.mxu0
    %v132 = vpop.f32.mrf.mxu0
    %v133 = vadd.f32 %v85, %v132
    %v134 = vpop.f32.mrf.mxu0
    %135 = vdwg.mxu0
    %v136 = vmax.f32 %v130, 0.0
    %v137 = vmax.f32 %v133, 0.0
    %vm138 = vcmask 15360
    %139 = vst.msk [vmem:[%s5] sm:$0xff] %vm138, %v136
    %140 = vst.msk [vmem:[%s5 + $0x8] sm:$0xff] %vm138, %v137
    // Predicated region
    $region34: #{cnn_attention_net_forward.123} parent=1 // pred_check
      _
    $region35: #{cnn_attention_net_forward.123} parent=1 // pred_check_branch
      %142 = sbr.rel (0) target = $region37
    $region36: #{cnn_attention_net_forward.123} parent=1 // pred_region
      _
    $region37: #{cnn_attention_net_forward.123} parent=1 // pred_fallthru
      _
    // Predicated region
    $region38: #{cnn_attention_net_forward.123} parent=1 // pred_check
      _
    $region39: #{cnn_attention_net_forward.123} parent=1 // pred_check_branch
      %144 = sbr.rel (0) target = $region41
    $region40: #{cnn_attention_net_forward.123} parent=1 // pred_region
      _
    $region41: #{cnn_attention_net_forward.123} parent=1 // pred_fallthru
      _
    %145 = vsyncpa [#allocation3], 1
    %146 = vsyncpa [#allocation5], 1

// kernel: cnn_attention_net_forward.129
$region0: #{cnn_attention_net_forward.129}
  #allocation0 [shape = 'u32[]', space=smem, size = 0x4, offset = 0x4, fixed_abs, tag = 'smem constant byte address 0x4 - core index']
  #allocation1 [shape = 'u32[144,128]{1,0:T(1,128)}', space=vmem, size = 0x12000, scoped, tag = 'internal scratch']
  %s0 = inlined_call_operand.vmem [shape: f32[2,8], index: 0, kind: input, shape index: {}]
  %s1 = inlined_call_operand.hbm [shape: f32[1,8], index: 1, kind: input, shape index: {}]
  %s2 = inlined_call_operand.hbm [shape: f32[1,8], index: 2, kind: input, shape index: {}]
  %s3 = inlined_call_operand.vmem [shape: bf16[8,2], index: 3, kind: input, shape index: {}]
  %s4 = inlined_call_operand.hbm [shape: f32[1,2], index: 4, kind: input, shape index: {}]
  %s5 = inlined_call_operand.vmem [shape: f32[2,2], index: 5, kind: output, shape index: {}]
  %s6 = sld [smem:[#allocation0]]
  $region42: #{cnn_attention_net_forward.129} parent=0
    _
  %s8 = ssub.s32 1, %s6
  %s9 = scalar_select 0, %s8, %s6
  $region1: #{cnn_attention_net_forward.129} parent=0
    #allocation2 [shape = 'u8[512]{0}', space=vmem, size = 0x400, scoped, tag = 'input window, operand 1, single buffered']
    #allocation3 [shape = 's32[1]{0}', space=sflag, size = 0x4, scoped, tag = 'scoped memory for cnn_attention_net_forward.129']
    #allocation4 [shape = 'u8[512]{0}', space=vmem, size = 0x400, scoped, tag = 'input window, operand 2, single buffered']
    #allocation5 [shape = 's32[1]{0}', space=sflag, size = 0x4, scoped, tag = 'scoped memory for cnn_attention_net_forward.129']
    #allocation6 [shape = 'u8[512]{0}', space=vmem, size = 0x400, scoped, tag = 'input window, operand 4, single buffered']
    %10 = vsyncpa [#allocation3], 0
    %11 = vsyncpa [#allocation5], 0
    // Predicated region
    $region2: #{cnn_attention_net_forward.129} parent=1 // pred_check
      _
    $region3: #{cnn_attention_net_forward.129} parent=1 // pred_check_branch
      %13 = sbr.rel (0) target = $region5
    $region4: #{cnn_attention_net_forward.129} parent=1 // pred_region
      _
    $region5: #{cnn_attention_net_forward.129} parent=1 // pred_fallthru
      _
    // Predicated region
    $region6: #{cnn_attention_net_forward.129} parent=1 // pred_check
      _
    $region7: #{cnn_attention_net_forward.129} parent=1 // pred_check_branch
      %15 = sbr.rel (0) target = $region9
    $region8: #{cnn_attention_net_forward.129} parent=1 // pred_region
      %s17 = ssub.s32 16, 16
      %18 = vsyncadd [#allocation3], %s17
      %s20 = sshll.u32 [#allocation2], 4
      %s21 = int_to_ptr.vmem [resolvable:$true] %s20
      %23 = dma.hbm_to_vmem [thread:$0]  %s1, 16, %s21, [#allocation3]
    $region9: #{cnn_attention_net_forward.129} parent=1 // pred_fallthru
      _
    // Predicated region
    $region10: #{cnn_attention_net_forward.129} parent=1 // pred_check
      _
    $region11: #{cnn_attention_net_forward.129} parent=1 // pred_check_branch
      %25 = sbr.rel (0) target = $region13
    $region12: #{cnn_attention_net_forward.129} parent=1 // pred_region
      %s27 = ssub.s32 16, 16
      %28 = vsyncadd [#allocation5], %s27
      %s30 = sshll.u32 [#allocation4], 4
      %s31 = int_to_ptr.vmem [resolvable:$true] %s30
      %33 = dma.hbm_to_vmem [thread:$0]  %s2, 16, %s31, [#allocation5]
    $region13: #{cnn_attention_net_forward.129} parent=1 // pred_fallthru
      _
    // Predicated region
    $region14: #{cnn_attention_net_forward.129} parent=1 // pred_check
      _
    $region15: #{cnn_attention_net_forward.129} parent=1 // pred_check_branch
      %35 = sbr.rel (0) target = $region17
    $region16: #{cnn_attention_net_forward.129} parent=1 // pred_region
      _
    $region17: #{cnn_attention_net_forward.129} parent=1 // pred_fallthru
      _
    // Predicated region
    $region18: #{cnn_attention_net_forward.129} parent=1 // pred_check
      _
    $region19: #{cnn_attention_net_forward.129} parent=1 // pred_check_branch
      %37 = sbr.rel (0) target = $region21
    $region20: #{cnn_attention_net_forward.129} parent=1 // pred_region
      %s39 = ssub.s32 16, 16
      %40 = vsyncadd [#allocation5], %s39
      %s42 = sshll.u32 [#allocation6], 4
      %s43 = int_to_ptr.vmem [resolvable:$true] %s42
      %45 = dma.hbm_to_vmem [thread:$0]  %s4, 16, %s43, [#allocation5]
    $region21: #{cnn_attention_net_forward.129} parent=1 // pred_fallthru
      _
    // Predicated region
    $region22: #{cnn_attention_net_forward.129} parent=1 // pred_check
      _
    $region23: #{cnn_attention_net_forward.129} parent=1 // pred_check_branch
      %47 = sbr.rel (0) target = $region25
    $region24: #{cnn_attention_net_forward.129} parent=1 // pred_region
      %48 = dma.done [#allocation3], 16
    $region25: #{cnn_attention_net_forward.129} parent=1 // pred_fallthru
      _
    // Predicated region
    $region26: #{cnn_attention_net_forward.129} parent=1 // pred_check
      _
    $region27: #{cnn_attention_net_forward.129} parent=1 // pred_check_branch
      %50 = sbr.rel (0) target = $region29
    $region28: #{cnn_attention_net_forward.129} parent=1 // pred_region
      %51 = dma.done [#allocation5], 16
    $region29: #{cnn_attention_net_forward.129} parent=1 // pred_fallthru
      _
    // Predicated region
    $region30: #{cnn_attention_net_forward.129} parent=1 // pred_check
      _
    $region31: #{cnn_attention_net_forward.129} parent=1 // pred_check_branch
      %53 = sbr.rel (0) target = $region33
    $region32: #{cnn_attention_net_forward.129} parent=1 // pred_region
      %54 = dma.done [#allocation5], 16
    $region33: #{cnn_attention_net_forward.129} parent=1 // pred_fallthru
      _
    %v56 = vld [vmem:[%s0] sm:$0x3]
    %v57 = vld [vmem:[#allocation2] sm:$0x1]
    %v59 = vlaneseq
    %v60 = vshrl.u32 %v59, 7
    %v61 = vsub.s32 0, %v60
    %v62 = vrot.slane %v57, %v61
    %v64 = vmul.f32 %v56, %v62
    %v65 = vld [vmem:[#allocation4] sm:$0x1]
    %v67 = vlaneseq
    %v68 = vshrl.u32 %v67, 7
    %v69 = vsub.s32 0, %v68
    %v70 = vrot.slane %v65, %v69
    %v72 = vadd.f32 %v64, %v70
    %v73 = vmax.f32 %v72, 0.0
    %v74 = vpack.c.bf16 %v73, %v73
    %v75 = vld [vmem:[%s3] sm:$0xf]
    %v76 = vld [vmem:[#allocation6] sm:$0x1]
    %v78 = vlaneseq
    %v79 = vshrl.u32 %v78, 7
    %v80 = vsub.s32 0, %v79
    %v81 = vrot.slane %v76, %v80
    %vm83 = vcmask 64512
    %v85 = vsel %vm83, %v74, 0
    %vm87 = vcmask 1043456
    %v89 = vsel %vm87, %v75, 0
    %91 = vmatprep.subr.bf16.mxu0 0
    %92 = vmatpush1.bf16.msra.mxu0 0
    %93 = vmatprep.subr.bf16.mxu0 0
    %94 = vmatpush1.bf16.msra.mxu0 0
    %95 = vmatprep.subr.bf16.mxu0 0
    %96 = vmatpush1.bf16.msra.mxu0 0
    %97 = vmatprep.subr.bf16.mxu0 0
    %98 = vmatpush1.bf16.msra.mxu0 0
    %99 = vmatprep.subr.bf16.mxu0 0
    %100 = vmatpush1.bf16.msra.mxu0 0
    %101 = vmatprep.subr.bf16.mxu0 0
    %102 = vmatpush1.bf16.msra.mxu0 0
    %103 = vmatprep.subr.bf16.mxu0 0
    %104 = vmatpush1.bf16.msra.mxu0 0
    %105 = vmatprep.subr.bf16.mxu0 0
    %106 = vmatpush1.bf16.msra.mxu0 %v89
    %107 = vmatprep.subr.bf16.mxu0 0
    %108 = vmatpush2.bf16.msra.mxu0 0
    %109 = vmatprep.subr.bf16.mxu0 0
    %110 = vmatpush2.bf16.msra.mxu0 0
    %111 = vmatprep.subr.bf16.mxu0 0
    %112 = vmatpush2.bf16.msra.mxu0 0
    %113 = vmatprep.subr.bf16.mxu0 0
    %114 = vmatpush2.bf16.msra.mxu0 0
    %115 = vmatprep.subr.bf16.mxu0 0
    %116 = vmatpush2.bf16.msra.mxu0 0
    %117 = vmatprep.subr.bf16.mxu0 0
    %118 = vmatpush2.bf16.msra.mxu0 0
    %119 = vmatprep.subr.bf16.mxu0 0
    %120 = vmatpush2.bf16.msra.mxu0 0
    %121 = vmatprep.subr.bf16.mxu0 0
    %122 = vmatpush2.bf16.msra.mxu0 0
    %123 = vmatprep.mubr.bf16.mxu0 0
    %124 = vmatmul.mubr.bf16.gmra.mxu0 %v85
    %v125 = vpop.f32.mrf.mxu0
    %v126 = vadd.f32 %v81, %v125
    %v127 = vpop.f32.mrf.mxu0
    %v128 = vpop.f32.mrf.mxu0
    %v129 = vpop.f32.mrf.mxu0
    %130 = vdwg.mxu0
    %v131 = vmax.f32 %v126, 0.0
    %vm132 = vcmask 9216
    %133 = vst.msk [vmem:[%s5] sm:$0x3] %vm132, %v131
    // Predicated region
    $region34: #{cnn_attention_net_forward.129} parent=1 // pred_check
      _
    $region35: #{cnn_attention_net_forward.129} parent=1 // pred_check_branch
      %135 = sbr.rel (0) target = $region37
    $region36: #{cnn_attention_net_forward.129} parent=1 // pred_region
      _
    $region37: #{cnn_attention_net_forward.129} parent=1 // pred_fallthru
      _
    // Predicated region
    $region38: #{cnn_attention_net_forward.129} parent=1 // pred_check
      _
    $region39: #{cnn_attention_net_forward.129} parent=1 // pred_check_branch
      %137 = sbr.rel (0) target = $region41
    $region40: #{cnn_attention_net_forward.129} parent=1 // pred_region
      _
    $region41: #{cnn_attention_net_forward.129} parent=1 // pred_fallthru
      _
    %138 = vsyncpa [#allocation3], 1
    %139 = vsyncpa [#allocation5], 1

// kernel: cnn_attention_net_forward.130
$region0: #{cnn_attention_net_forward.130}
  #allocation0 [shape = 'u32[]', space=smem, size = 0x4, offset = 0x4, fixed_abs, tag = 'smem constant byte address 0x4 - core index']
  #allocation1 [shape = 'u32[144,128]{1,0:T(1,128)}', space=vmem, size = 0x12000, scoped, tag = 'internal scratch']
  %s0 = inlined_call_operand.vmem [shape: bf16[2,54], index: 0, kind: input, shape index: {}]
  %s1 = inlined_call_operand.vmem [shape: bf16[54,2], index: 1, kind: input, shape index: {}]
  %s2 = inlined_call_operand.hbm [shape: f32[1,2], index: 2, kind: input, shape index: {}]
  %s3 = inlined_call_operand.vmem [shape: f32[2,2], index: 3, kind: output, shape index: {}]
  %s4 = sld [smem:[#allocation0]]
  $region26: #{cnn_attention_net_forward.130} parent=0
    _
  %s6 = ssub.s32 1, %s4
  %s7 = scalar_select 0, %s6, %s4
  $region1: #{cnn_attention_net_forward.130} parent=0
    #allocation2 [shape = 'u8[512]{0}', space=vmem, size = 0x400, scoped, tag = 'input window, operand 2, single buffered']
    #allocation3 [shape = 's32[1]{0}', space=sflag, size = 0x4, scoped, tag = 'scoped memory for cnn_attention_net_forward.130']
    %8 = vsyncpa [#allocation3], 0
    // Predicated region
    $region2: #{cnn_attention_net_forward.130} parent=1 // pred_check
      _
    $region3: #{cnn_attention_net_forward.130} parent=1 // pred_check_branch
      %10 = sbr.rel (0) target = $region5
    $region4: #{cnn_attention_net_forward.130} parent=1 // pred_region
      _
    $region5: #{cnn_attention_net_forward.130} parent=1 // pred_fallthru
      _
    // Predicated region
    $region6: #{cnn_attention_net_forward.130} parent=1 // pred_check
      _
    $region7: #{cnn_attention_net_forward.130} parent=1 // pred_check_branch
      %12 = sbr.rel (0) target = $region9
    $region8: #{cnn_attention_net_forward.130} parent=1 // pred_region
      _
    $region9: #{cnn_attention_net_forward.130} parent=1 // pred_fallthru
      _
    // Predicated region
    $region10: #{cnn_attention_net_forward.130} parent=1 // pred_check
      _
    $region11: #{cnn_attention_net_forward.130} parent=1 // pred_check_branch
      %14 = sbr.rel (0) target = $region13
    $region12: #{cnn_attention_net_forward.130} parent=1 // pred_region
      %s16 = ssub.s32 16, 16
      %17 = vsyncadd [#allocation3], %s16
      %s19 = sshll.u32 [#allocation2], 4
      %s20 = int_to_ptr.vmem [resolvable:$true] %s19
      %22 = dma.hbm_to_vmem [thread:$0]  %s2, 16, %s20, [#allocation3]
    $region13: #{cnn_attention_net_forward.130} parent=1 // pred_fallthru
      _
    // Predicated region
    $region14: #{cnn_attention_net_forward.130} parent=1 // pred_check
      _
    $region15: #{cnn_attention_net_forward.130} parent=1 // pred_check_branch
      %24 = sbr.rel (0) target = $region17
    $region16: #{cnn_attention_net_forward.130} parent=1 // pred_region
      %25 = dma.done [#allocation3], 16
    $region17: #{cnn_attention_net_forward.130} parent=1 // pred_fallthru
      _
    %v27 = vld [vmem:[%s0] sm:$0x1]
    %v28 = vld [vmem:[%s1] sm:$0xf]
    %v29 = vld [vmem:[%s1 + $0x4] sm:$0xf]
    %v30 = vld [vmem:[%s1 + $0x8] sm:$0xf]
    %v31 = vld [vmem:[%s1 + $0xc] sm:$0xf]
    %v32 = vld [vmem:[%s1 + $0x10] sm:$0xf]
    %v33 = vld [vmem:[%s1 + $0x14] sm:$0xf]
    %v34 = vld [vmem:[%s1 + $0x18] sm:$0x7]
    %v35 = vld [vmem:[#allocation2] sm:$0x1]
    %v37 = vlaneseq
    %v38 = vshrl.u32 %v37, 7
    %v39 = vsub.s32 0, %v38
    %v40 = vrot.slane %v35, %v39
    %v49 = vunpack.c.l.b16 %v28
    %v50 = vunpack.c.l.b16 %v29
    %v51 = vunpack.c.l.b16 %v30
    %v52 = vunpack.c.l.b16 %v31
    %v53 = vunpack.c.l.b16 %v32
    %v54 = vunpack.c.l.b16 %v33
    %v55 = vunpack.c.l.b16 %v34
    %v56 = vpack.c.b16 %v50, %v49
    %v57 = vpack.c.b16 %v52, %v51
    %v58 = vpack.c.b16 %v54, %v53
    %v59 = vpack.c.b16 %v55, %v55
    %vm63 = vcmask 441344
    %v65 = vsel %vm63, %v27, 0
    %vm67 = vcmask 1042432
    %v69 = vsel %vm67, %v59, 0
    %71 = vmatprep.subr.bf16.mxu0 0
    %72 = vmatpush1.bf16.msra.mxu0 0
    %73 = vmatprep.subr.bf16.mxu0 0
    %74 = vmatpush1.bf16.msra.mxu0 0
    %75 = vmatprep.subr.bf16.mxu0 0
    %76 = vmatpush1.bf16.msra.mxu0 0
    %77 = vmatprep.subr.bf16.mxu0 0
    %78 = vmatpush1.bf16.msra.mxu0 0
    %79 = vmatprep.subr.bf16.mxu0 0
    %80 = vmatpush1.bf16.msra.mxu0 %v69
    %81 = vmatprep.subr.bf16.mxu0 0
    %82 = vmatpush1.bf16.msra.mxu0 %v58
    %83 = vmatprep.subr.bf16.mxu0 0
    %84 = vmatpush1.bf16.msra.mxu0 %v57
    %85 = vmatprep.subr.bf16.mxu0 0
    %86 = vmatpush1.bf16.msra.mxu0 %v56
    %87 = vmatprep.subr.bf16.mxu0 0
    %88 = vmatpush2.bf16.msra.mxu0 0
    %89 = vmatprep.subr.bf16.mxu0 0
    %90 = vmatpush2.bf16.msra.mxu0 0
    %91 = vmatprep.subr.bf16.mxu0 0
    %92 = vmatpush2.bf16.msra.mxu0 0
    %93 = vmatprep.subr.bf16.mxu0 0
    %94 = vmatpush2.bf16.msra.mxu0 0
    %95 = vmatprep.subr.bf16.mxu0 0
    %96 = vmatpush2.bf16.msra.mxu0 0
    %97 = vmatprep.subr.bf16.mxu0 0
    %98 = vmatpush2.bf16.msra.mxu0 0
    %99 = vmatprep.subr.bf16.mxu0 0
    %100 = vmatpush2.bf16.msra.mxu0 0
    %101 = vmatprep.subr.bf16.mxu0 0
    %102 = vmatpush2.bf16.msra.mxu0 0
    %103 = vmatprep.mubr.bf16.mxu0 0
    %104 = vmatmul.mubr.bf16.gmra.mxu0 %v65
    %v105 = vpop.f32.mrf.mxu0
    %v106 = vadd.f32 %v40, %v105
    %v107 = vpop.f32.mrf.mxu0
    %v108 = vpop.f32.mrf.mxu0
    %v109 = vpop.f32.mrf.mxu0
    %110 = vdwg.mxu0
    %v111 = vmax.f32 %v106, 0.0
    %vm112 = vcmask 9216
    %113 = vst.msk [vmem:[%s3] sm:$0x3] %vm112, %v111
    // Predicated region
    $region18: #{cnn_attention_net_forward.130} parent=1 // pred_check
      _
    $region19: #{cnn_attention_net_forward.130} parent=1 // pred_check_branch
      %115 = sbr.rel (0) target = $region21
    $region20: #{cnn_attention_net_forward.130} parent=1 // pred_region
      _
    $region21: #{cnn_attention_net_forward.130} parent=1 // pred_fallthru
      _
    // Predicated region
    $region22: #{cnn_attention_net_forward.130} parent=1 // pred_check
      _
    $region23: #{cnn_attention_net_forward.130} parent=1 // pred_check_branch
      %117 = sbr.rel (0) target = $region25
    $region24: #{cnn_attention_net_forward.130} parent=1 // pred_region
      _
    $region25: #{cnn_attention_net_forward.130} parent=1 // pred_fallthru
      _
    %118 = vsyncpa [#allocation3], 1

// kernel: cnn_attention_net_forward.131
$region0: #{cnn_attention_net_forward.131}
  #allocation0 [shape = 'u32[]', space=smem, size = 0x4, offset = 0x4, fixed_abs, tag = 'smem constant byte address 0x4 - core index']
  #allocation1 [shape = 'u32[144,128]{1,0:T(1,128)}', space=vmem, size = 0x12000, scoped, tag = 'internal scratch']
  %s0 = inlined_call_operand.vmem [shape: f32[2,2], index: 0, kind: input, shape index: {}]
  %s1 = inlined_call_operand.vmem [shape: bf16[2,8], index: 1, kind: input, shape index: {}]
  %s2 = inlined_call_operand.vmem [shape: f32[2,8], index: 2, kind: input, shape index: {}]
  %s3 = inlined_call_operand.vmem [shape: f32[2,8], index: 3, kind: output, shape index: {}]
  %s4 = sld [smem:[#allocation0]]
  $region22: #{cnn_attention_net_forward.131} parent=0
    _
  %s6 = ssub.s32 1, %s4
  %s7 = scalar_select 0, %s6, %s4
  // Predicated region
  $region2: #{cnn_attention_net_forward.131} parent=0 // pred_check
    _
  $region3: #{cnn_attention_net_forward.131} parent=0 // pred_check_branch
    %9 = sbr.rel (0) target = $region5
  $region4: #{cnn_attention_net_forward.131} parent=0 // pred_region
    _
  $region5: #{cnn_attention_net_forward.131} parent=0 // pred_fallthru
    _
  // Predicated region
  $region6: #{cnn_attention_net_forward.131} parent=0 // pred_check
    _
  $region7: #{cnn_attention_net_forward.131} parent=0 // pred_check_branch
    %11 = sbr.rel (0) target = $region9
  $region8: #{cnn_attention_net_forward.131} parent=0 // pred_region
    _
  $region9: #{cnn_attention_net_forward.131} parent=0 // pred_fallthru
    _
  // Predicated region
  $region10: #{cnn_attention_net_forward.131} parent=0 // pred_check
    _
  $region11: #{cnn_attention_net_forward.131} parent=0 // pred_check_branch
    %13 = sbr.rel (0) target = $region13
  $region12: #{cnn_attention_net_forward.131} parent=0 // pred_region
    _
  $region13: #{cnn_attention_net_forward.131} parent=0 // pred_fallthru
    _
  %v15 = vld [vmem:[%s0] sm:$0x3]
  %v16 = vpack.c.bf16 %v15, %v15
  %v17 = vld [vmem:[%s1] sm:$0x1]
  %v18 = vld [vmem:[%s2] sm:$0x3]
  %vm19 = vcmask 15360
  %v21 = vsel %vm19, %v16, 0
  %vm23 = vcmask 1040384
  %v25 = vsel %vm23, %v17, 0
  %27 = vmatprep.subr.bf16.mxu0 0
  %28 = vmatpush1.bf16.msra.mxu0 0
  %29 = vmatprep.subr.bf16.mxu0 0
  %30 = vmatpush1.bf16.msra.mxu0 0
  %31 = vmatprep.subr.bf16.mxu0 0
  %32 = vmatpush1.bf16.msra.mxu0 0
  %33 = vmatprep.subr.bf16.mxu0 0
  %34 = vmatpush1.bf16.msra.mxu0 0
  %35 = vmatprep.subr.bf16.mxu0 0
  %36 = vmatpush1.bf16.msra.mxu0 0
  %37 = vmatprep.subr.bf16.mxu0 0
  %38 = vmatpush1.bf16.msra.mxu0 0
  %39 = vmatprep.subr.bf16.mxu0 0
  %40 = vmatpush1.bf16.msra.mxu0 0
  %41 = vmatprep.subr.bf16.mxu0 0
  %42 = vmatpush1.bf16.msra.mxu0 %v25
  %43 = vmatprep.subr.bf16.mxu0 0
  %44 = vmatpush2.bf16.msra.mxu0 0
  %45 = vmatprep.subr.bf16.mxu0 0
  %46 = vmatpush2.bf16.msra.mxu0 0
  %47 = vmatprep.subr.bf16.mxu0 0
  %48 = vmatpush2.bf16.msra.mxu0 0
  %49 = vmatprep.subr.bf16.mxu0 0
  %50 = vmatpush2.bf16.msra.mxu0 0
  %51 = vmatprep.subr.bf16.mxu0 0
  %52 = vmatpush2.bf16.msra.mxu0 0
  %53 = vmatprep.subr.bf16.mxu0 0
  %54 = vmatpush2.bf16.msra.mxu0 0
  %55 = vmatprep.subr.bf16.mxu0 0
  %56 = vmatpush2.bf16.msra.mxu0 0
  %57 = vmatprep.subr.bf16.mxu0 0
  %58 = vmatpush2.bf16.msra.mxu0 0
  %59 = vmatprep.mubr.bf16.mxu0 0
  %60 = vmatmul.mubr.bf16.gmra.mxu0 %v21
  %v61 = vpop.f32.mrf.mxu0
  %v62 = vadd.f32 %v18, %v61
  %v63 = vpop.f32.mrf.mxu0
  %v64 = vpop.f32.mrf.mxu0
  %v65 = vpop.f32.mrf.mxu0
  %66 = vdwg.mxu0
  %vm67 = vcmask 58368
  %68 = vst.msk [vmem:[%s3] sm:$0x3] %vm67, %v62
  // Predicated region
  $region14: #{cnn_attention_net_forward.131} parent=0 // pred_check
    _
  $region15: #{cnn_attention_net_forward.131} parent=0 // pred_check_branch
    %70 = sbr.rel (0) target = $region17
  $region16: #{cnn_attention_net_forward.131} parent=0 // pred_region
    _
  $region17: #{cnn_attention_net_forward.131} parent=0 // pred_fallthru
    _
  // Predicated region
  $region18: #{cnn_attention_net_forward.131} parent=0 // pred_check
    _
  $region19: #{cnn_attention_net_forward.131} parent=0 // pred_check_branch
    %72 = sbr.rel (0) target = $region21
  $region20: #{cnn_attention_net_forward.131} parent=0 // pred_region
    _
  $region21: #{cnn_attention_net_forward.131} parent=0 // pred_fallthru
    _

// kernel: cnn_attention_net_forward.154
$region0: #{cnn_attention_net_forward.154}
  #allocation0 [shape = 'u32[]', space=smem, size = 0x4, offset = 0x4, fixed_abs, tag = 'smem constant byte address 0x4 - core index']
  #allocation1 [shape = 'u32[144,128]{1,0:T(1,128)}', space=vmem, size = 0x12000, scoped, tag = 'internal scratch']
  %s0 = inlined_call_operand.vmem [shape: f32[16,8], index: 0, kind: input, shape index: {}]
  %s1 = inlined_call_operand.vmem [shape: bf16[8,8], index: 1, kind: input, shape index: {}]
  %s2 = inlined_call_operand.vmem [shape: f32[16,8], index: 2, kind: input, shape index: {}]
  %s3 = inlined_call_operand.vmem [shape: f32[16,8], index: 3, kind: output, shape index: {}]
  %s4 = sld [smem:[#allocation0]]
  $region22: #{cnn_attention_net_forward.154} parent=0
    _
  %s6 = ssub.s32 1, %s4
  %s7 = scalar_select 0, %s6, %s4
  // Predicated region
  $region2: #{cnn_attention_net_forward.154} parent=0 // pred_check
    _
  $region3: #{cnn_attention_net_forward.154} parent=0 // pred_check_branch
    %9 = sbr.rel (0) target = $region5
  $region4: #{cnn_attention_net_forward.154} parent=0 // pred_region
    _
  $region5: #{cnn_attention_net_forward.154} parent=0 // pred_fallthru
    _
  // Predicated region
  $region6: #{cnn_attention_net_forward.154} parent=0 // pred_check
    _
  $region7: #{cnn_attention_net_forward.154} parent=0 // pred_check_branch
    %11 = sbr.rel (0) target = $region9
  $region8: #{cnn_attention_net_forward.154} parent=0 // pred_region
    _
  $region9: #{cnn_attention_net_forward.154} parent=0 // pred_fallthru
    _
  // Predicated region
  $region10: #{cnn_attention_net_forward.154} parent=0 // pred_check
    _
  $region11: #{cnn_attention_net_forward.154} parent=0 // pred_check_branch
    %13 = sbr.rel (0) target = $region13
  $region12: #{cnn_attention_net_forward.154} parent=0 // pred_region
    _
  $region13: #{cnn_attention_net_forward.154} parent=0 // pred_fallthru
    _
  %v15 = vld [vmem:[%s0] sm:$0xff]
  %v16 = vld [vmem:[%s0 + $0x8] sm:$0xff]
  %v17 = vpack.c.bf16 %v16, %v15
  %v18 = vld [vmem:[%s1] sm:$0xf]
  %vm19 = vcmask 64512
  %v21 = vsel %vm19, %v17, 0
  %vm23 = vcmask 1043456
  %v25 = vsel %vm23, %v18, 0
  %27 = vmatprep.subr.bf16.mxu0 0
  %28 = vmatpush1.bf16.msra.mxu0 0
  %29 = vmatprep.subr.bf16.mxu0 0
  %30 = vmatpush1.bf16.msra.mxu0 0
  %31 = vmatprep.subr.bf16.mxu0 0
  %32 = vmatpush1.bf16.msra.mxu0 0
  %33 = vmatprep.subr.bf16.mxu0 0
  %34 = vmatpush1.bf16.msra.mxu0 0
  %35 = vmatprep.subr.bf16.mxu0 0
  %36 = vmatpush1.bf16.msra.mxu0 0
  %37 = vmatprep.subr.bf16.mxu0 0
  %38 = vmatpush1.bf16.msra.mxu0 0
  %39 = vmatprep.subr.bf16.mxu0 0
  %40 = vmatpush1.bf16.msra.mxu0 0
  %41 = vmatprep.subr.bf16.mxu0 0
  %42 = vmatpush1.bf16.msra.mxu0 %v25
  %43 = vmatprep.subr.bf16.mxu0 0
  %44 = vmatpush2.bf16.msra.mxu0 0
  %45 = vmatprep.subr.bf16.mxu0 0
  %46 = vmatpush2.bf16.msra.mxu0 0
  %47 = vmatprep.subr.bf16.mxu0 0
  %48 = vmatpush2.bf16.msra.mxu0 0
  %49 = vmatprep.subr.bf16.mxu0 0
  %50 = vmatpush2.bf16.msra.mxu0 0
  %51 = vmatprep.subr.bf16.mxu0 0
  %52 = vmatpush2.bf16.msra.mxu0 0
  %53 = vmatprep.subr.bf16.mxu0 0
  %54 = vmatpush2.bf16.msra.mxu0 0
  %55 = vmatprep.subr.bf16.mxu0 0
  %56 = vmatpush2.bf16.msra.mxu0 0
  %57 = vmatprep.subr.bf16.mxu0 0
  %58 = vmatpush2.bf16.msra.mxu0 0
  %59 = vmatprep.mubr.bf16.mxu0 0
  %60 = vmatmul.mubr.bf16.gmra.mxu0 %v21
  %v61 = vpop.f32.mrf.mxu0
  %v62 = vadd.f32 0.0, %v61
  %v63 = vpop.f32.mrf.mxu0
  %v64 = vpop.f32.mrf.mxu0
  %v65 = vadd.f32 0.0, %v64
  %v66 = vpop.f32.mrf.mxu0
  %67 = vdwg.mxu0
  %v68 = vxor.u32 %v62, 2147483648
  %v69 = vxor.u32 %v65, 2147483648
  %v70 = vmul.f32 %v68, 1.442695
  %v71 = vpow.pop %v70
  %v72 = vmul.f32 %v69, 1.442695
  %v73 = vpow.pop %v72
  %v74 = vadd.f32 %v71, 1.0
  %v75 = vadd.f32 %v73, 1.0
  %v76 = vrcp.pop %v74
  %v77 = vmul.f32 1.0, %v76
  %v78 = vrcp.pop %v75
  %v79 = vmul.f32 1.0, %v78
  %v80 = vadd.f32 %v77, 1.0
  %v81 = vadd.f32 %v79, 1.0
  %v82 = vld [vmem:[%s2] sm:$0xff]
  %v83 = vld [vmem:[%s2 + $0x8] sm:$0xff]
  %v84 = vmul.f32 %v80, %v82
  %v85 = vmul.f32 %v81, %v83
  %86 = vst.msk [vmem:[%s3] sm:$0xff] %vm19, %v84
  %87 = vst.msk [vmem:[%s3 + $0x8] sm:$0xff] %vm19, %v85
  // Predicated region
  $region14: #{cnn_attention_net_forward.154} parent=0 // pred_check
    _
  $region15: #{cnn_attention_net_forward.154} parent=0 // pred_check_branch
    %89 = sbr.rel (0) target = $region17
  $region16: #{cnn_attention_net_forward.154} parent=0 // pred_region
    _
  $region17: #{cnn_attention_net_forward.154} parent=0 // pred_fallthru
    _
  // Predicated region
  $region18: #{cnn_attention_net_forward.154} parent=0 // pred_check
    _
  $region19: #{cnn_attention_net_forward.154} parent=0 // pred_check_branch
    %91 = sbr.rel (0) target = $region21
  $region20: #{cnn_attention_net_forward.154} parent=0 // pred_region
    _
  $region21: #{cnn_attention_net_forward.154} parent=0 // pred_fallthru
    _

// kernel: cnn_attention_net_forward.153
$region0: #{cnn_attention_net_forward.153}
  #allocation0 [shape = 'u32[]', space=smem, size = 0x4, offset = 0x4, fixed_abs, tag = 'smem constant byte address 0x4 - core index']
  #allocation1 [shape = 'u32[144,128]{1,0:T(1,128)}', space=vmem, size = 0x12000, scoped, tag = 'internal scratch']
  %s0 = inlined_call_operand.vmem [shape: f32[16,8], index: 0, kind: input, shape index: {}]
  %s1 = inlined_call_operand.vmem [shape: f32[1,8], index: 1, kind: input, shape index: {}]
  %s2 = inlined_call_operand.hbm [shape: f32[1,8], index: 2, kind: input, shape index: {}]
  %s3 = inlined_call_operand.vmem [shape: bf16[8,8], index: 3, kind: input, shape index: {}]
  %s4 = inlined_call_operand.hbm [shape: f32[1,8], index: 4, kind: input, shape index: {}]
  %s5 = inlined_call_operand.vmem [shape: f32[16,8], index: 5, kind: output, shape index: {}]
  %s6 = sld [smem:[#allocation0]]
  $region38: #{cnn_attention_net_forward.153} parent=0
    _
  %s8 = ssub.s32 1, %s6
  %s9 = scalar_select 0, %s8, %s6
  $region1: #{cnn_attention_net_forward.153} parent=0
    #allocation2 [shape = 'u8[512]{0}', space=vmem, size = 0x400, scoped, tag = 'input window, operand 2, single buffered']
    #allocation3 [shape = 's32[1]{0}', space=sflag, size = 0x4, scoped, tag = 'scoped memory for cnn_attention_net_forward.153']
    #allocation4 [shape = 'u8[512]{0}', space=vmem, size = 0x400, scoped, tag = 'input window, operand 4, single buffered']
    #allocation5 [shape = 's32[1]{0}', space=sflag, size = 0x4, scoped, tag = 'scoped memory for cnn_attention_net_forward.153']
    %10 = vsyncpa [#allocation3], 0
    %11 = vsyncpa [#allocation5], 0
    // Predicated region
    $region2: #{cnn_attention_net_forward.153} parent=1 // pred_check
      _
    $region3: #{cnn_attention_net_forward.153} parent=1 // pred_check_branch
      %13 = sbr.rel (0) target = $region5
    $region4: #{cnn_attention_net_forward.153} parent=1 // pred_region
      _
    $region5: #{cnn_attention_net_forward.153} parent=1 // pred_fallthru
      _
    // Predicated region
    $region6: #{cnn_attention_net_forward.153} parent=1 // pred_check
      _
    $region7: #{cnn_attention_net_forward.153} parent=1 // pred_check_branch
      %15 = sbr.rel (0) target = $region9
    $region8: #{cnn_attention_net_forward.153} parent=1 // pred_region
      _
    $region9: #{cnn_attention_net_forward.153} parent=1 // pred_fallthru
      _
    // Predicated region
    $region10: #{cnn_attention_net_forward.153} parent=1 // pred_check
      _
    $region11: #{cnn_attention_net_forward.153} parent=1 // pred_check_branch
      %17 = sbr.rel (0) target = $region13
    $region12: #{cnn_attention_net_forward.153} parent=1 // pred_region
      %s19 = ssub.s32 16, 16
      %20 = vsyncadd [#allocation3], %s19
      %s22 = sshll.u32 [#allocation2], 4
      %s23 = int_to_ptr.vmem [resolvable:$true] %s22
      %25 = dma.hbm_to_vmem [thread:$0]  %s2, 16, %s23, [#allocation3]
    $region13: #{cnn_attention_net_forward.153} parent=1 // pred_fallthru
      _
    // Predicated region
    $region14: #{cnn_attention_net_forward.153} parent=1 // pred_check
      _
    $region15: #{cnn_attention_net_forward.153} parent=1 // pred_check_branch
      %27 = sbr.rel (0) target = $region17
    $region16: #{cnn_attention_net_forward.153} parent=1 // pred_region
      _
    $region17: #{cnn_attention_net_forward.153} parent=1 // pred_fallthru
      _
    // Predicated region
    $region18: #{cnn_attention_net_forward.153} parent=1 // pred_check
      _
    $region19: #{cnn_attention_net_forward.153} parent=1 // pred_check_branch
      %29 = sbr.rel (0) target = $region21
    $region20: #{cnn_attention_net_forward.153} parent=1 // pred_region
      %s31 = ssub.s32 16, 16
      %32 = vsyncadd [#allocation5], %s31
      %s34 = sshll.u32 [#allocation4], 4
      %s35 = int_to_ptr.vmem [resolvable:$true] %s34
      %37 = dma.hbm_to_vmem [thread:$0]  %s4, 16, %s35, [#allocation5]
    $region21: #{cnn_attention_net_forward.153} parent=1 // pred_fallthru
      _
    // Predicated region
    $region22: #{cnn_attention_net_forward.153} parent=1 // pred_check
      _
    $region23: #{cnn_attention_net_forward.153} parent=1 // pred_check_branch
      %39 = sbr.rel (0) target = $region25
    $region24: #{cnn_attention_net_forward.153} parent=1 // pred_region
      %40 = dma.done [#allocation3], 16
    $region25: #{cnn_attention_net_forward.153} parent=1 // pred_fallthru
      _
    // Predicated region
    $region26: #{cnn_attention_net_forward.153} parent=1 // pred_check
      _
    $region27: #{cnn_attention_net_forward.153} parent=1 // pred_check_branch
      %42 = sbr.rel (0) target = $region29
    $region28: #{cnn_attention_net_forward.153} parent=1 // pred_region
      %43 = dma.done [#allocation5], 16
    $region29: #{cnn_attention_net_forward.153} parent=1 // pred_fallthru
      _
    %v45 = vld [vmem:[%s0] sm:$0xff]
    %v46 = vld [vmem:[%s0 + $0x8] sm:$0xff]
    %v47 = vld [vmem:[%s1] sm:$0x1]
    %v49 = vlaneseq
    %v50 = vshrl.u32 %v49, 7
    %v51 = vsub.s32 0, %v50
    %v52 = vrot.slane %v47, %v51
    %v54 = vmul.f32 %v45, %v52
    %v55 = vmul.f32 %v46, %v52
    %v56 = vld [vmem:[#allocation2] sm:$0x1]
    %v58 = vlaneseq
    %v59 = vshrl.u32 %v58, 7
    %v60 = vsub.s32 0, %v59
    %v61 = vrot.slane %v56, %v60
    %v63 = vadd.f32 %v54, %v61
    %v64 = vadd.f32 %v55, %v61
    %v65 = vmax.f32 %v63, 0.0
    %v66 = vmax.f32 %v64, 0.0
    %v67 = vpack.c.bf16 %v66, %v65
    %v68 = vld [vmem:[%s3] sm:$0xf]
    %v69 = vld [vmem:[#allocation4] sm:$0x1]
    %v71 = vlaneseq
    %v72 = vshrl.u32 %v71, 7
    %v73 = vsub.s32 0, %v72
    %v74 = vrot.slane %v69, %v73
    %vm76 = vcmask 64512
    %v78 = vsel %vm76, %v67, 0
    %vm80 = vcmask 1043456
    %v82 = vsel %vm80, %v68, 0
    %84 = vmatprep.subr.bf16.mxu0 0
    %85 = vmatpush1.bf16.msra.mxu0 0
    %86 = vmatprep.subr.bf16.mxu0 0
    %87 = vmatpush1.bf16.msra.mxu0 0
    %88 = vmatprep.subr.bf16.mxu0 0
    %89 = vmatpush1.bf16.msra.mxu0 0
    %90 = vmatprep.subr.bf16.mxu0 0
    %91 = vmatpush1.bf16.msra.mxu0 0
    %92 = vmatprep.subr.bf16.mxu0 0
    %93 = vmatpush1.bf16.msra.mxu0 0
    %94 = vmatprep.subr.bf16.mxu0 0
    %95 = vmatpush1.bf16.msra.mxu0 0
    %96 = vmatprep.subr.bf16.mxu0 0
    %97 = vmatpush1.bf16.msra.mxu0 0
    %98 = vmatprep.subr.bf16.mxu0 0
    %99 = vmatpush1.bf16.msra.mxu0 %v82
    %100 = vmatprep.subr.bf16.mxu0 0
    %101 = vmatpush2.bf16.msra.mxu0 0
    %102 = vmatprep.subr.bf16.mxu0 0
    %103 = vmatpush2.bf16.msra.mxu0 0
    %104 = vmatprep.subr.bf16.mxu0 0
    %105 = vmatpush2.bf16.msra.mxu0 0
    %106 = vmatprep.subr.bf16.mxu0 0
    %107 = vmatpush2.bf16.msra.mxu0 0
    %108 = vmatprep.subr.bf16.mxu0 0
    %109 = vmatpush2.bf16.msra.mxu0 0
    %110 = vmatprep.subr.bf16.mxu0 0
    %111 = vmatpush2.bf16.msra.mxu0 0
    %112 = vmatprep.subr.bf16.mxu0 0
    %113 = vmatpush2.bf16.msra.mxu0 0
    %114 = vmatprep.subr.bf16.mxu0 0
    %115 = vmatpush2.bf16.msra.mxu0 0
    %116 = vmatprep.mubr.bf16.mxu0 0
    %117 = vmatmul.mubr.bf16.gmra.mxu0 %v78
    %v118 = vpop.f32.mrf.mxu0
    %v119 = vadd.f32 %v74, %v118
    %v120 = vpop.f32.mrf.mxu0
    %v121 = vpop.f32.mrf.mxu0
    %v122 = vadd.f32 %v74, %v121
    %v123 = vpop.f32.mrf.mxu0
    %124 = vdwg.mxu0
    %v125 = vmax.f32 %v119, 0.0
    %v126 = vmax.f32 %v122, 0.0
    %127 = vst.msk [vmem:[%s5] sm:$0xff] %vm76, %v125
    %128 = vst.msk [vmem:[%s5 + $0x8] sm:$0xff] %vm76, %v126
    // Predicated region
    $region30: #{cnn_attention_net_forward.153} parent=1 // pred_check
      _
    $region31: #{cnn_attention_net_forward.153} parent=1 // pred_check_branch
      %130 = sbr.rel (0) target = $region33
    $region32: #{cnn_attention_net_forward.153} parent=1 // pred_region
      _
    $region33: #{cnn_attention_net_forward.153} parent=1 // pred_fallthru
      _
    // Predicated region
    $region34: #{cnn_attention_net_forward.153} parent=1 // pred_check
      _
    $region35: #{cnn_attention_net_forward.153} parent=1 // pred_check_branch
      %132 = sbr.rel (0) target = $region37
    $region36: #{cnn_attention_net_forward.153} parent=1 // pred_region
      _
    $region37: #{cnn_attention_net_forward.153} parent=1 // pred_fallthru
      _
    %133 = vsyncpa [#allocation3], 1
    %134 = vsyncpa [#allocation5], 1

// kernel: cnn_attention_net_forward.156
$region0: #{cnn_attention_net_forward.156}
  #allocation0 [shape = 'u32[]', space=smem, size = 0x4, offset = 0x4, fixed_abs, tag = 'smem constant byte address 0x4 - core index']
  #allocation1 [shape = 'u32[144,128]{1,0:T(1,128)}', space=vmem, size = 0x12000, scoped, tag = 'internal scratch']
  %s0 = inlined_call_operand.vmem [shape: bf16[16,54], index: 0, kind: input, shape index: {}]
  %s1 = inlined_call_operand.vmem [shape: bf16[54,2], index: 1, kind: input, shape index: {}]
  %s2 = inlined_call_operand.vmem [shape: f32[1,2], index: 2, kind: input, shape index: {}]
  %s3 = inlined_call_operand.vmem [shape: f32[16,2], index: 3, kind: output, shape index: {}]
  %s4 = sld [smem:[#allocation0]]
  $region22: #{cnn_attention_net_forward.156} parent=0
    _
  %s6 = ssub.s32 1, %s4
  %s7 = scalar_select 0, %s6, %s4
  // Predicated region
  $region2: #{cnn_attention_net_forward.156} parent=0 // pred_check
    _
  $region3: #{cnn_attention_net_forward.156} parent=0 // pred_check_branch
    %9 = sbr.rel (0) target = $region5
  $region4: #{cnn_attention_net_forward.156} parent=0 // pred_region
    _
  $region5: #{cnn_attention_net_forward.156} parent=0 // pred_fallthru
    _
  // Predicated region
  $region6: #{cnn_attention_net_forward.156} parent=0 // pred_check
    _
  $region7: #{cnn_attention_net_forward.156} parent=0 // pred_check_branch
    %11 = sbr.rel (0) target = $region9
  $region8: #{cnn_attention_net_forward.156} parent=0 // pred_region
    _
  $region9: #{cnn_attention_net_forward.156} parent=0 // pred_fallthru
    _
  // Predicated region
  $region10: #{cnn_attention_net_forward.156} parent=0 // pred_check
    _
  $region11: #{cnn_attention_net_forward.156} parent=0 // pred_check_branch
    %13 = sbr.rel (0) target = $region13
  $region12: #{cnn_attention_net_forward.156} parent=0 // pred_region
    _
  $region13: #{cnn_attention_net_forward.156} parent=0 // pred_fallthru
    _
  %v15 = vld [vmem:[%s0] sm:$0xf]
  %v16 = vld [vmem:[%s0 + $0x4] sm:$0xf]
  %v17 = vld [vmem:[%s1] sm:$0xf]
  %v18 = vld [vmem:[%s1 + $0x4] sm:$0xf]
  %v19 = vld [vmem:[%s1 + $0x8] sm:$0xf]
  %v20 = vld [vmem:[%s1 + $0xc] sm:$0xf]
  %v21 = vld [vmem:[%s1 + $0x10] sm:$0xf]
  %v22 = vld [vmem:[%s1 + $0x14] sm:$0xf]
  %v23 = vld [vmem:[%s1 + $0x18] sm:$0x7]
  %v24 = vld [vmem:[%s2] sm:$0x1]
  %v26 = vlaneseq
  %v27 = vshrl.u32 %v26, 7
  %v28 = vsub.s32 0, %v27
  %v29 = vrot.slane %v24, %v28
  %v33 = vunpack.c.l.b16 %v15
  %v34 = vunpack.c.l.b16 %v16
  %v35 = vpack.c.b16 %v34, %v33
  %v43 = vunpack.c.l.b16 %v17
  %v44 = vunpack.c.l.b16 %v18
  %v45 = vunpack.c.l.b16 %v19
  %v46 = vunpack.c.l.b16 %v20
  %v47 = vunpack.c.l.b16 %v21
  %v48 = vunpack.c.l.b16 %v22
  %v49 = vunpack.c.l.b16 %v23
  %v50 = vpack.c.b16 %v44, %v43
  %v51 = vpack.c.b16 %v46, %v45
  %v52 = vpack.c.b16 %v48, %v47
  %v53 = vpack.c.b16 %v49, %v49
  %vm57 = vcmask 441344
  %v59 = vsel %vm57, %v35, 0
  %vm61 = vcmask 1042432
  %v63 = vsel %vm61, %v53, 0
  %65 = vmatprep.subr.bf16.mxu0 0
  %66 = vmatpush1.bf16.msra.mxu0 0
  %67 = vmatprep.subr.bf16.mxu0 0
  %68 = vmatpush1.bf16.msra.mxu0 0
  %69 = vmatprep.subr.bf16.mxu0 0
  %70 = vmatpush1.bf16.msra.mxu0 0
  %71 = vmatprep.subr.bf16.mxu0 0
  %72 = vmatpush1.bf16.msra.mxu0 0
  %73 = vmatprep.subr.bf16.mxu0 0
  %74 = vmatpush1.bf16.msra.mxu0 %v63
  %75 = vmatprep.subr.bf16.mxu0 0
  %76 = vmatpush1.bf16.msra.mxu0 %v52
  %77 = vmatprep.subr.bf16.mxu0 0
  %78 = vmatpush1.bf16.msra.mxu0 %v51
  %79 = vmatprep.subr.bf16.mxu0 0
  %80 = vmatpush1.bf16.msra.mxu0 %v50
  %81 = vmatprep.subr.bf16.mxu0 0
  %82 = vmatpush2.bf16.msra.mxu0 0
  %83 = vmatprep.subr.bf16.mxu0 0
  %84 = vmatpush2.bf16.msra.mxu0 0
  %85 = vmatprep.subr.bf16.mxu0 0
  %86 = vmatpush2.bf16.msra.mxu0 0
  %87 = vmatprep.subr.bf16.mxu0 0
  %88 = vmatpush2.bf16.msra.mxu0 0
  %89 = vmatprep.subr.bf16.mxu0 0
  %90 = vmatpush2.bf16.msra.mxu0 0
  %91 = vmatprep.subr.bf16.mxu0 0
  %92 = vmatpush2.bf16.msra.mxu0 0
  %93 = vmatprep.subr.bf16.mxu0 0
  %94 = vmatpush2.bf16.msra.mxu0 0
  %95 = vmatprep.subr.bf16.mxu0 0
  %96 = vmatpush2.bf16.msra.mxu0 0
  %97 = vmatprep.mubr.bf16.mxu0 0
  %98 = vmatmul.mubr.bf16.gmra.mxu0 %v59
  %v99 = vpop.f32.mrf.mxu0
  %v100 = vadd.f32 %v29, %v99
  %v101 = vpop.f32.mrf.mxu0
  %v102 = vpop.f32.mrf.mxu0
  %v103 = vadd.f32 %v29, %v102
  %v104 = vpop.f32.mrf.mxu0
  %105 = vdwg.mxu0
  %v106 = vmax.f32 %v100, 0.0
  %v107 = vmax.f32 %v103, 0.0
  %vm108 = vcmask 15360
  %109 = vst.msk [vmem:[%s3] sm:$0xff] %vm108, %v106
  %110 = vst.msk [vmem:[%s3 + $0x8] sm:$0xff] %vm108, %v107
  // Predicated region
  $region14: #{cnn_attention_net_forward.156} parent=0 // pred_check
    _
  $region15: #{cnn_attention_net_forward.156} parent=0 // pred_check_branch
    %112 = sbr.rel (0) target = $region17
  $region16: #{cnn_attention_net_forward.156} parent=0 // pred_region
    _
  $region17: #{cnn_attention_net_forward.156} parent=0 // pred_fallthru
    _
  // Predicated region
  $region18: #{cnn_attention_net_forward.156} parent=0 // pred_check
    _
  $region19: #{cnn_attention_net_forward.156} parent=0 // pred_check_branch
    %114 = sbr.rel (0) target = $region21
  $region20: #{cnn_attention_net_forward.156} parent=0 // pred_region
    _
  $region21: #{cnn_attention_net_forward.156} parent=0 // pred_fallthru
    _

// kernel: cnn_attention_net_forward.157
$region0: #{cnn_attention_net_forward.157}
  #allocation0 [shape = 'u32[]', space=smem, size = 0x4, offset = 0x4, fixed_abs, tag = 'smem constant byte address 0x4 - core index']
  #allocation1 [shape = 'u32[144,128]{1,0:T(1,128)}', space=vmem, size = 0x12000, scoped, tag = 'internal scratch']
  %s0 = inlined_call_operand.vmem [shape: f32[16,2], index: 0, kind: input, shape index: {}]
  %s1 = inlined_call_operand.vmem [shape: bf16[2,8], index: 1, kind: input, shape index: {}]
  %s2 = inlined_call_operand.vmem [shape: f32[16,8], index: 2, kind: input, shape index: {}]
  %s3 = inlined_call_operand.vmem [shape: f32[16,8], index: 3, kind: output, shape index: {}]
  %s4 = sld [smem:[#allocation0]]
  $region22: #{cnn_attention_net_forward.157} parent=0
    _
  %s6 = ssub.s32 1, %s4
  %s7 = scalar_select 0, %s6, %s4
  // Predicated region
  $region2: #{cnn_attention_net_forward.157} parent=0 // pred_check
    _
  $region3: #{cnn_attention_net_forward.157} parent=0 // pred_check_branch
    %9 = sbr.rel (0) target = $region5
  $region4: #{cnn_attention_net_forward.157} parent=0 // pred_region
    _
  $region5: #{cnn_attention_net_forward.157} parent=0 // pred_fallthru
    _
  // Predicated region
  $region6: #{cnn_attention_net_forward.157} parent=0 // pred_check
    _
  $region7: #{cnn_attention_net_forward.157} parent=0 // pred_check_branch
    %11 = sbr.rel (0) target = $region9
  $region8: #{cnn_attention_net_forward.157} parent=0 // pred_region
    _
  $region9: #{cnn_attention_net_forward.157} parent=0 // pred_fallthru
    _
  // Predicated region
  $region10: #{cnn_attention_net_forward.157} parent=0 // pred_check
    _
  $region11: #{cnn_attention_net_forward.157} parent=0 // pred_check_branch
    %13 = sbr.rel (0) target = $region13
  $region12: #{cnn_attention_net_forward.157} parent=0 // pred_region
    _
  $region13: #{cnn_attention_net_forward.157} parent=0 // pred_fallthru
    _
  %v15 = vld [vmem:[%s0] sm:$0xff]
  %v16 = vld [vmem:[%s0 + $0x8] sm:$0xff]
  %v17 = vpack.c.bf16 %v16, %v15
  %v18 = vld [vmem:[%s1] sm:$0x1]
  %v19 = vld [vmem:[%s2] sm:$0xff]
  %v20 = vld [vmem:[%s2 + $0x8] sm:$0xff]
  %vm21 = vcmask 15360
  %v23 = vsel %vm21, %v17, 0
  %vm25 = vcmask 1040384
  %v27 = vsel %vm25, %v18, 0
  %29 = vmatprep.subr.bf16.mxu0 0
  %30 = vmatpush1.bf16.msra.mxu0 0
  %31 = vmatprep.subr.bf16.mxu0 0
  %32 = vmatpush1.bf16.msra.mxu0 0
  %33 = vmatprep.subr.bf16.mxu0 0
  %34 = vmatpush1.bf16.msra.mxu0 0
  %35 = vmatprep.subr.bf16.mxu0 0
  %36 = vmatpush1.bf16.msra.mxu0 0
  %37 = vmatprep.subr.bf16.mxu0 0
  %38 = vmatpush1.bf16.msra.mxu0 0
  %39 = vmatprep.subr.bf16.mxu0 0
  %40 = vmatpush1.bf16.msra.mxu0 0
  %41 = vmatprep.subr.bf16.mxu0 0
  %42 = vmatpush1.bf16.msra.mxu0 0
  %43 = vmatprep.subr.bf16.mxu0 0
  %44 = vmatpush1.bf16.msra.mxu0 %v27
  %45 = vmatprep.subr.bf16.mxu0 0
  %46 = vmatpush2.bf16.msra.mxu0 0
  %47 = vmatprep.subr.bf16.mxu0 0
  %48 = vmatpush2.bf16.msra.mxu0 0
  %49 = vmatprep.subr.bf16.mxu0 0
  %50 = vmatpush2.bf16.msra.mxu0 0
  %51 = vmatprep.subr.bf16.mxu0 0
  %52 = vmatpush2.bf16.msra.mxu0 0
  %53 = vmatprep.subr.bf16.mxu0 0
  %54 = vmatpush2.bf16.msra.mxu0 0
  %55 = vmatprep.subr.bf16.mxu0 0
  %56 = vmatpush2.bf16.msra.mxu0 0
  %57 = vmatprep.subr.bf16.mxu0 0
  %58 = vmatpush2.bf16.msra.mxu0 0
  %59 = vmatprep.subr.bf16.mxu0 0
  %60 = vmatpush2.bf16.msra.mxu0 0
  %61 = vmatprep.mubr.bf16.mxu0 0
  %62 = vmatmul.mubr.bf16.gmra.mxu0 %v23
  %v63 = vpop.f32.mrf.mxu0
  %v64 = vadd.f32 %v19, %v63
  %v65 = vpop.f32.mrf.mxu0
  %v66 = vpop.f32.mrf.mxu0
  %v67 = vadd.f32 %v20, %v66
  %v68 = vpop.f32.mrf.mxu0
  %69 = vdwg.mxu0
  %vm70 = vcmask 64512
  %71 = vst.msk [vmem:[%s3] sm:$0xff] %vm70, %v64
  %72 = vst.msk [vmem:[%s3 + $0x8] sm:$0xff] %vm70, %v67
  // Predicated region
  $region14: #{cnn_attention_net_forward.157} parent=0 // pred_check
    _
  $region15: #{cnn_attention_net_forward.157} parent=0 // pred_check_branch
    %74 = sbr.rel (0) target = $region17
  $region16: #{cnn_attention_net_forward.157} parent=0 // pred_region
    _
  $region17: #{cnn_attention_net_forward.157} parent=0 // pred_fallthru
    _
  // Predicated region
  $region18: #{cnn_attention_net_forward.157} parent=0 // pred_check
    _
  $region19: #{cnn_attention_net_forward.157} parent=0 // pred_check_branch
    %76 = sbr.rel (0) target = $region21
  $region20: #{cnn_attention_net_forward.157} parent=0 // pred_region
    _
  $region21: #{cnn_attention_net_forward.157} parent=0 // pred_fallthru
    _

// kernel: cnn_attention_net_forward.158
$region0: #{cnn_attention_net_forward.158}
  #allocation0 [shape = 'u32[]', space=smem, size = 0x4, offset = 0x4, fixed_abs, tag = 'smem constant byte address 0x4 - core index']
  #allocation1 [shape = 'u32[144,128]{1,0:T(1,128)}', space=vmem, size = 0x12000, scoped, tag = 'internal scratch']
  %s0 = inlined_call_operand.vmem [shape: f32[2,64], index: 0, kind: input, shape index: {}]
  %s1 = inlined_call_operand.vmem [shape: bf16[64,16], index: 1, kind: input, shape index: {}]
  %s2 = inlined_call_operand.vmem [shape: f32[1,16], index: 2, kind: input, shape index: {}]
  %s3 = inlined_call_operand.vmem [shape: f32[2,16], index: 3, kind: output, shape index: {}]
  %s4 = sld [smem:[#allocation0]]
  $region22: #{cnn_attention_net_forward.158} parent=0
    _
  %s6 = ssub.s32 1, %s4
  %s7 = scalar_select 0, %s6, %s4
  // Predicated region
  $region2: #{cnn_attention_net_forward.158} parent=0 // pred_check
    _
  $region3: #{cnn_attention_net_forward.158} parent=0 // pred_check_branch
    %9 = sbr.rel (0) target = $region5
  $region4: #{cnn_attention_net_forward.158} parent=0 // pred_region
    _
  $region5: #{cnn_attention_net_forward.158} parent=0 // pred_fallthru
    _
  // Predicated region
  $region6: #{cnn_attention_net_forward.158} parent=0 // pred_check
    _
  $region7: #{cnn_attention_net_forward.158} parent=0 // pred_check_branch
    %11 = sbr.rel (0) target = $region9
  $region8: #{cnn_attention_net_forward.158} parent=0 // pred_region
    _
  $region9: #{cnn_attention_net_forward.158} parent=0 // pred_fallthru
    _
  // Predicated region
  $region10: #{cnn_attention_net_forward.158} parent=0 // pred_check
    _
  $region11: #{cnn_attention_net_forward.158} parent=0 // pred_check_branch
    %13 = sbr.rel (0) target = $region13
  $region12: #{cnn_attention_net_forward.158} parent=0 // pred_region
    _
  $region13: #{cnn_attention_net_forward.158} parent=0 // pred_fallthru
    _
  %v15 = vld [vmem:[%s0] sm:$0x3]
  %v16 = vpack.c.bf16 %v15, %v15
  %v17 = vld [vmem:[%s1] sm:$0xf]
  %v18 = vld [vmem:[%s1 + $0x4] sm:$0xf]
  %v19 = vld [vmem:[%s1 + $0x8] sm:$0xf]
  %v20 = vld [vmem:[%s1 + $0xc] sm:$0xf]
  %v21 = vld [vmem:[%s1 + $0x10] sm:$0xf]
  %v22 = vld [vmem:[%s1 + $0x14] sm:$0xf]
  %v23 = vld [vmem:[%s1 + $0x18] sm:$0xf]
  %v24 = vld [vmem:[%s1 + $0x1c] sm:$0xf]
  %v25 = vld [vmem:[%s2] sm:$0x1]
  %v27 = vlaneseq
  %v28 = vshrl.u32 %v27, 7
  %v29 = vsub.s32 0, %v28
  %v30 = vrot.slane %v25, %v29
  %v40 = vunpack.c.l.b16 %v17
  %v41 = vunpack.c.l.b16 %v18
  %v42 = vunpack.c.l.b16 %v19
  %v43 = vunpack.c.l.b16 %v20
  %v44 = vunpack.c.l.b16 %v21
  %v45 = vunpack.c.l.b16 %v22
  %v46 = vunpack.c.l.b16 %v23
  %v47 = vunpack.c.l.b16 %v24
  %v48 = vpack.c.b16 %v41, %v40
  %v49 = vpack.c.b16 %v43, %v42
  %v50 = vpack.c.b16 %v45, %v44
  %v51 = vpack.c.b16 %v47, %v46
  %vm56 = vcmask 523264
  %v58 = vsel %vm56, %v16, 0
  %60 = vmatprep.subr.bf16.mxu0 0
  %61 = vmatpush1.bf16.msra.mxu0 0
  %62 = vmatprep.subr.bf16.mxu0 0
  %63 = vmatpush1.bf16.msra.mxu0 0
  %64 = vmatprep.subr.bf16.mxu0 0
  %65 = vmatpush1.bf16.msra.mxu0 0
  %66 = vmatprep.subr.bf16.mxu0 0
  %67 = vmatpush1.bf16.msra.mxu0 0
  %68 = vmatprep.subr.bf16.mxu0 0
  %69 = vmatpush1.bf16.msra.mxu0 %v51
  %70 = vmatprep.subr.bf16.mxu0 0
  %71 = vmatpush1.bf16.msra.mxu0 %v50
  %72 = vmatprep.subr.bf16.mxu0 0
  %73 = vmatpush1.bf16.msra.mxu0 %v49
  %74 = vmatprep.subr.bf16.mxu0 0
  %75 = vmatpush1.bf16.msra.mxu0 %v48
  %76 = vmatprep.subr.bf16.mxu0 0
  %77 = vmatpush2.bf16.msra.mxu0 0
  %78 = vmatprep.subr.bf16.mxu0 0
  %79 = vmatpush2.bf16.msra.mxu0 0
  %80 = vmatprep.subr.bf16.mxu0 0
  %81 = vmatpush2.bf16.msra.mxu0 0
  %82 = vmatprep.subr.bf16.mxu0 0
  %83 = vmatpush2.bf16.msra.mxu0 0
  %84 = vmatprep.subr.bf16.mxu0 0
  %85 = vmatpush2.bf16.msra.mxu0 0
  %86 = vmatprep.subr.bf16.mxu0 0
  %87 = vmatpush2.bf16.msra.mxu0 0
  %88 = vmatprep.subr.bf16.mxu0 0
  %89 = vmatpush2.bf16.msra.mxu0 0
  %90 = vmatprep.subr.bf16.mxu0 0
  %91 = vmatpush2.bf16.msra.mxu0 0
  %92 = vmatprep.mubr.bf16.mxu0 0
  %93 = vmatmul.mubr.bf16.gmra.mxu0 %v58
  %v94 = vpop.f32.mrf.mxu0
  %v95 = vadd.f32 %v30, %v94
  %v96 = vpop.f32.mrf.mxu0
  %v97 = vpop.f32.mrf.mxu0
  %v98 = vpop.f32.mrf.mxu0
  %99 = vdwg.mxu0
  %v100 = vmax.f32 %v95, 0.0
  %vm101 = vcmask 123904
  %102 = vst.msk [vmem:[%s3] sm:$0x3] %vm101, %v100
  // Predicated region
  $region14: #{cnn_attention_net_forward.158} parent=0 // pred_check
    _
  $region15: #{cnn_attention_net_forward.158} parent=0 // pred_check_branch
    %104 = sbr.rel (0) target = $region17
  $region16: #{cnn_attention_net_forward.158} parent=0 // pred_region
    _
  $region17: #{cnn_attention_net_forward.158} parent=0 // pred_fallthru
    _
  // Predicated region
  $region18: #{cnn_attention_net_forward.158} parent=0 // pred_check
    _
  $region19: #{cnn_attention_net_forward.158} parent=0 // pred_check_branch
    %106 = sbr.rel (0) target = $region21
  $region20: #{cnn_attention_net_forward.158} parent=0 // pred_region
    _
  $region21: #{cnn_attention_net_forward.158} parent=0 // pred_fallthru
    _

// kernel: cnn_attention_net_forward.159
$region0: #{cnn_attention_net_forward.159}
  #allocation0 [shape = 'u32[]', space=smem, size = 0x4, offset = 0x4, fixed_abs, tag = 'smem constant byte address 0x4 - core index']
  #allocation1 [shape = 'u32[144,128]{1,0:T(1,128)}', space=vmem, size = 0x12000, scoped, tag = 'internal scratch']
  %s0 = inlined_call_operand.vmem [shape: f32[2,16], index: 0, kind: input, shape index: {}]
  %s1 = inlined_call_operand.vmem [shape: bf16[16,5], index: 1, kind: input, shape index: {}]
  %s2 = inlined_call_operand.vmem [shape: f32[1,5], index: 2, kind: input, shape index: {}]
  %s3 = inlined_call_operand.hbm [shape: f32[2,5], index: 3, kind: output, shape index: {}]
  %s4 = sld [smem:[#allocation0]]
  $region22: #{cnn_attention_net_forward.159} parent=0
    _
  %s6 = ssub.s32 1, %s4
  %s7 = scalar_select 0, %s6, %s4
  $region1: #{cnn_attention_net_forward.159} parent=0
    #allocation2 [shape = 'u8[1024]{0}', space=vmem, size = 0x400, scoped, tag = 'output window, operand 0, single buffered']
    #allocation3 [shape = 's32[1]{0}', space=sflag, size = 0x4, scoped, tag = 'scoped memory for cnn_attention_net_forward.159']
    %8 = vsyncpa [#allocation3], 0
    // Predicated region
    $region2: #{cnn_attention_net_forward.159} parent=1 // pred_check
      _
    $region3: #{cnn_attention_net_forward.159} parent=1 // pred_check_branch
      %10 = sbr.rel (0) target = $region5
    $region4: #{cnn_attention_net_forward.159} parent=1 // pred_region
      _
    $region5: #{cnn_attention_net_forward.159} parent=1 // pred_fallthru
      _
    // Predicated region
    $region6: #{cnn_attention_net_forward.159} parent=1 // pred_check
      _
    $region7: #{cnn_attention_net_forward.159} parent=1 // pred_check_branch
      %12 = sbr.rel (0) target = $region9
    $region8: #{cnn_attention_net_forward.159} parent=1 // pred_region
      _
    $region9: #{cnn_attention_net_forward.159} parent=1 // pred_fallthru
      _
    // Predicated region
    $region10: #{cnn_attention_net_forward.159} parent=1 // pred_check
      _
    $region11: #{cnn_attention_net_forward.159} parent=1 // pred_check_branch
      %14 = sbr.rel (0) target = $region13
    $region12: #{cnn_attention_net_forward.159} parent=1 // pred_region
      _
    $region13: #{cnn_attention_net_forward.159} parent=1 // pred_fallthru
      _
    %v16 = vld [vmem:[%s0] sm:$0x3]
    %v17 = vpack.c.bf16 %v16, %v16
    %v18 = vld [vmem:[%s1] sm:$0xf]
    %v19 = vld [vmem:[%s1 + $0x4] sm:$0xf]
    %v20 = vld [vmem:[%s2] sm:$0x1]
    %v22 = vlaneseq
    %v23 = vshrl.u32 %v22, 7
    %v24 = vsub.s32 0, %v23
    %v25 = vrot.slane %v20, %v24
    %v29 = vunpack.c.l.b16 %v18
    %v30 = vunpack.c.l.b16 %v19
    %v31 = vpack.c.b16 %v30, %v29
    %vm33 = vcmask 130048
    %v35 = vsel %vm33, %v17, 0
    %37 = vmatprep.subr.bf16.mxu0 0
    %38 = vmatpush1.bf16.msra.mxu0 0
    %39 = vmatprep.subr.bf16.mxu0 0
    %40 = vmatpush1.bf16.msra.mxu0 0
    %41 = vmatprep.subr.bf16.mxu0 0
    %42 = vmatpush1.bf16.msra.mxu0 0
    %43 = vmatprep.subr.bf16.mxu0 0
    %44 = vmatpush1.bf16.msra.mxu0 0
    %45 = vmatprep.subr.bf16.mxu0 0
    %46 = vmatpush1.bf16.msra.mxu0 0
    %47 = vmatprep.subr.bf16.mxu0 0
    %48 = vmatpush1.bf16.msra.mxu0 0
    %49 = vmatprep.subr.bf16.mxu0 0
    %50 = vmatpush1.bf16.msra.mxu0 0
    %51 = vmatprep.subr.bf16.mxu0 0
    %52 = vmatpush1.bf16.msra.mxu0 %v31
    %53 = vmatprep.subr.bf16.mxu0 0
    %54 = vmatpush2.bf16.msra.mxu0 0
    %55 = vmatprep.subr.bf16.mxu0 0
    %56 = vmatpush2.bf16.msra.mxu0 0
    %57 = vmatprep.subr.bf16.mxu0 0
    %58 = vmatpush2.bf16.msra.mxu0 0
    %59 = vmatprep.subr.bf16.mxu0 0
    %60 = vmatpush2.bf16.msra.mxu0 0
    %61 = vmatprep.subr.bf16.mxu0 0
    %62 = vmatpush2.bf16.msra.mxu0 0
    %63 = vmatprep.subr.bf16.mxu0 0
    %64 = vmatpush2.bf16.msra.mxu0 0
    %65 = vmatprep.subr.bf16.mxu0 0
    %66 = vmatpush2.bf16.msra.mxu0 0
    %67 = vmatprep.subr.bf16.mxu0 0
    %68 = vmatpush2.bf16.msra.mxu0 0
    %69 = vmatprep.mubr.bf16.mxu0 0
    %70 = vmatmul.mubr.bf16.gmra.mxu0 %v35
    %v71 = vpop.f32.mrf.mxu0
    %v72 = vadd.f32 %v25, %v71
    %v73 = vpop.f32.mrf.mxu0
    %v74 = vpop.f32.mrf.mxu0
    %v75 = vpop.f32.mrf.mxu0
    %76 = vdwg.mxu0
    %vm77 = vcmask 33792
    %v78 = vsel %vm77, %v72, -inf
    %79 = vmax.xlane.f32.xlu0 %v78
    %v80 = vpop.xlane.xlu0 %79
    %v81 = vsub.f32 %v72, %v80
    %v82 = vmul.f32 %v81, 1.442695
    %v83 = vpow.pop %v82
    %v84 = vsel %vm77, %v83, 0.0
    %85 = vadd.xlane.f32.xlu0 %v84
    %v86 = vpop.xlane.xlu0 %85
    %v87 = vrcp.pop %v86
    %v88 = vmul.f32 %v83, %v87
    %89 = vst.msk [vmem:[#allocation2] sm:$0x3] %vm77, %v88
    // Predicated region
    $region14: #{cnn_attention_net_forward.159} parent=1 // pred_check
      _
    $region15: #{cnn_attention_net_forward.159} parent=1 // pred_check_branch
      %91 = sbr.rel (0) target = $region17
    $region16: #{cnn_attention_net_forward.159} parent=1 // pred_region
      %s93 = ssub.s32 32, 32
      %94 = vsyncadd [#allocation3], %s93
      %s96 = sshll.u32 [#allocation2], 4
      %s97 = int_to_ptr.vmem [resolvable:$true] %s96
      %99 = dma.vmem_to_hbm [thread:$0]  %s97, 32, %s3, [#allocation3]
    $region17: #{cnn_attention_net_forward.159} parent=1 // pred_fallthru
      _
    // Predicated region
    $region18: #{cnn_attention_net_forward.159} parent=1 // pred_check
      _
    $region19: #{cnn_attention_net_forward.159} parent=1 // pred_check_branch
      %101 = sbr.rel (0) target = $region21
    $region20: #{cnn_attention_net_forward.159} parent=1 // pred_region
      %102 = dma.done [#allocation3], 32
    $region21: #{cnn_attention_net_forward.159} parent=1 // pred_fallthru
      _
    %103 = vsyncpa [#allocation3], 1

</llo_original>
